<compile_context>
chip_gen: v7x
topology: tpu7x:2x2x1
jax: 0.10.0
libtpu: 0.0.40
codegen_flags: <defaults>
</compile_context>

<pallas_src>
import functools

import jax
import jax.numpy as jnp
from jax.experimental import pallas as pl
from jax.experimental.pallas import tpu as pltpu


def _apc3d_kernel(x_ref, w_ref, m_ref, o_ref, *, deltas, mask_ids):
    # x_ref : (1, C, S)   one batch sample, S = D*H*W on the lane axis
    # w_ref : (T, C, C)   per-tap channel-mix matrices (C_out, C_in), T = 11
    # m_ref : (M, 1, S)   {0,1} border masks for the 10 off-center taps
    # o_ref : (1, C, S)   output
    C, S = o_ref.shape[1], o_ref.shape[2]

    # Single lane-aligned load of the whole sample; stays resident in vregs.
    x = x_ref[0]                                               # (C, S)

    # Fused center tap (in-plane (1,1) + through-plane kd=1): initialises the
    # accumulator directly — no zeros init, no bias (cancelled by InstanceNorm).
    acc = jnp.dot(w_ref[0], x, preferred_element_type=jnp.float32)   # (C, S)

    for t in range(1, len(deltas)):
        delta, mid = deltas[t], mask_ids[t]
        # roll(x, -delta)[.., s] == x[.., s + delta]; wrapped lanes land on
        # volume borders that this tap's mask zeroes, so the rotation is an
        # exact replacement for a padded, lane-misaligned window load.
        win = pltpu.roll(x, shift=(-delta) % S, axis=1)        # XLU, (C, S)
        win = win * m_ref[mid]                                 # border mask
        acc = acc + jnp.dot(w_ref[t], win, preferred_element_type=jnp.float32)

    # InstanceNorm3d (affine=False): per-channel stats over D*H*W (lane
    # reduce), biased variance, eps = 1e-5, fused with LeakyReLU(0.01).
    mean = jnp.mean(acc, axis=1, keepdims=True)
    centered = acc - mean
    var = jnp.mean(centered * centered, axis=1, keepdims=True)
    y = centered * jax.lax.rsqrt(var + 1e-5)
    o_ref[0] = jnp.where(y >= 0.0, y, 0.01 * y)                # lane-dense store


def residual_inner_forward(x_ncdhw, w1, b1, w2, b2):
    """x_ncdhw: (N, C, D, H, W) float32.
    w1: (C, C, 1, 3, 3) PyTorch conv weight (in-plane branch),      b1: (C,)
    w2: (C, C, 3, 1, 1) PyTorch conv weight (through-plane branch), b2: (C,)
    Returns: (N, C, D, H, W) float32.
    Note: b1/b2 are accepted for interface fidelity but unused — a per-channel
    bias is exactly cancelled by the affine-free InstanceNorm that follows.
    """
    N, C, D, H, W = x_ncdhw.shape
    S = D * H * W
    # TODO(synk): S is assumed to be a multiple of 128 (true for typical APRNet
    # patch sizes); otherwise pad S in the wrapper.

    # Glue: channels already leading (NCDHW); flatten spatial dims (pure
    # metadata reshape, no padding needed with the roll-based taps).
    x_flat = x_ncdhw.reshape(N, C, S).astype(jnp.float32)

    # Glue: per-tap (C_out, C_in) weights + static flat lane offsets + masks.
    deltas, mask_ids, w_list, mask_list = [], [], [], []

    d_idx, h_idx, w_idx = jnp.arange(D), jnp.arange(H), jnp.arange(W)

    def add_mask(dd, dh, dw):
        vd = (d_idx + dd >= 0) & (d_idx + dd < D)
        vh = (h_idx + dh >= 0) & (h_idx + dh < H)
        vw = (w_idx + dw >= 0) & (w_idx + dw < W)
        m = vd[:, None, None] & vh[None, :, None] & vw[None, None, :]
        mask_list.append(m.reshape(1, S).astype(jnp.float32))
        return len(mask_list) - 1

    # Fused center tap: in-plane (kh,kw)=(1,1) + through-plane kd=1 (no mask).
    w_list.append((w1[:, :, 0, 1, 1] + w2[:, :, 1, 0, 0]).astype(jnp.float32))
    deltas.append(0)
    mask_ids.append(-1)

    # Through-plane taps kd in {0,2}: depth borders handled by a depth mask.
    for kd in (0, 2):
        dd = kd - 1
        w_list.append(w2[:, :, kd, 0, 0].astype(jnp.float32))
        deltas.append(dd * H * W)
        mask_ids.append(add_mask(dd, 0, 0))

    # Off-center in-plane taps: H/W border masks.
    for kh in range(3):
        for kw in range(3):
            if kh == 1 and kw == 1:
                continue
            dh, dw = kh - 1, kw - 1
            w_list.append(w1[:, :, 0, kh, kw].astype(jnp.float32))
            deltas.append(dh * W + dw)
            mask_ids.append(add_mask(0, dh, dw))

    w_all = jnp.stack(w_list)                            # (11, C, C)
    masks = jnp.stack(mask_list)                         # (10, 1, S) float32
    T, M = w_all.shape[0], masks.shape[0]

    kernel = functools.partial(_apc3d_kernel, deltas=tuple(deltas),
                               mask_ids=tuple(mask_ids))

    out = pl.pallas_call(
        kernel,
        out_shape=jax.ShapeDtypeStruct((N, C, S), jnp.float32),
        grid=(N,),
        in_specs=[
            pl.BlockSpec((1, C, S), lambda n: (n, 0, 0)),
            pl.BlockSpec((T, C, C), lambda n: (0, 0, 0)),   # fetched once
            pl.BlockSpec((M, 1, S), lambda n: (0, 0, 0)),   # fetched once
        ],
        out_specs=pl.BlockSpec((1, C, S), lambda n: (n, 0, 0)),
        compiler_params=pltpu.CompilerParams(
            dimension_semantics=("parallel",)),
    )(x_flat, w_all, masks)

    # Glue: back to (N, C, D, H, W) — a pure metadata reshape.
    return out.reshape(N, C, D, H, W)


def _reference(x, w1, b1, w2, b2):
    """Pure-JAX reference of the same forward pass (for correctness check)."""
    dn = jax.lax.conv_dimension_numbers(x.shape, w1.shape,
                                        ('NCDHW', 'OIDHW', 'NCDHW'))
    y1 = jax.lax.conv_general_dilated(
        x, w1, (1, 1, 1), [(0, 0), (1, 1), (1, 1)], dimension_numbers=dn)
    y2 = jax.lax.conv_general_dilated(
        x, w2, (1, 1, 1), [(1, 1), (0, 0), (0, 0)], dimension_numbers=dn)
    y = y1 + b1.reshape(1, -1, 1, 1, 1) + y2 + b2.reshape(1, -1, 1, 1, 1)
    mean = y.mean(axis=(2, 3, 4), keepdims=True)
    var = ((y - mean) ** 2).mean(axis=(2, 3, 4), keepdims=True)
    y = (y - mean) / jnp.sqrt(var + 1e-5)
    return jnp.where(y >= 0, y, 0.01 * y)


if __name__ == "__main__":
    N, C, D, H, W = 2, 4, 8, 16, 16
    key = jax.random.PRNGKey(0)
    kx, k1, kb1, k2, kb2 = jax.random.split(key, 5)

    x = jax.random.normal(kx, (N, C, D, H, W), jnp.float32)
    # Deterministic synthetic parameters (shapes from APC3D's two Conv3d's).
    w1 = jax.random.normal(k1, (C, C, 1, 3, 3), jnp.float32) * 0.2
    b1 = jax.random.normal(kb1, (C,), jnp.float32) * 0.1
    w2 = jax.random.normal(k2, (C, C, 3, 1, 1), jnp.float32) * 0.2
    b2 = jax.random.normal(kb2, (C,), jnp.float32) * 0.1

    out = residual_inner_forward(x, w1, b1, w2, b2)
    out = jax.block_until_ready(out)

    ref = _reference(x, w1, b1, w2, b2)
    assert out.shape == (N, C, D, H, W), out.shape
    assert jnp.allclose(out, ref, rtol=1e-4, atol=1e-4), \
        float(jnp.max(jnp.abs(out - ref)))

    print("KERNEL_OK")
</pallas_src>

<mosaic_0001>
module attributes {stable_mosaic.version = 11 : i64} {
  func.func @_apc3d_kernel(%arg0: i32, %arg1: memref<1x4x2048xf32, #tpu.memory_space<vmem>>, %arg2: memref<11x4x4xf32, #tpu.memory_space<vmem>>, %arg3: memref<10x1x2048xf32, #tpu.memory_space<vmem>>, %arg4: memref<1x4x2048xf32, #tpu.memory_space<vmem>>) attributes {dimension_semantics = [#tpu.dimension_semantics<parallel>], iteration_bounds = array<i64: 2>, scalar_prefetch = 0 : i64, scratch_operands = 0 : i64, tpu.core_type = #tpu.core_type<tc>, window_params = [{transform_indices = @transform_0, window_bounds = array<i64: 1, 4, 2048>}, {pipeline_mode = #tpu.pipeline_mode<synchronous>, transform_indices = @transform_1, window_bounds = array<i64: 11, 4, 4>}, {pipeline_mode = #tpu.pipeline_mode<synchronous>, transform_indices = @transform_2, window_bounds = array<i64: 10, 1, 2048>}, {transform_indices = @transform_3, window_bounds = array<i64: 1, 4, 2048>}]} {
    %c0 = arith.constant 0 : index
    %c0_0 = arith.constant 0 : index
    %c0_1 = arith.constant 0 : index
    %0 = vector.load %arg1[%c0, %c0_0, %c0_1] : memref<1x4x2048xf32, #tpu.memory_space<vmem>>, vector<1x4x2048xf32>
    %1 = vector.shape_cast %0 : vector<1x4x2048xf32> to vector<4x2048xf32>
    %c0_2 = arith.constant 0 : index
    %c0_3 = arith.constant 0 : index
    %c0_4 = arith.constant 0 : index
    %2 = vector.load %arg2[%c0_2, %c0_3, %c0_4] : memref<11x4x4xf32, #tpu.memory_space<vmem>>, vector<1x4x4xf32>
    %3 = vector.shape_cast %2 : vector<1x4x4xf32> to vector<4x4xf32>
    %cst = arith.constant dense<0.000000e+00> : vector<4x2048xf32>
    %4 = tpu.matmul %3, %1, %cst {dimension_numbers = #tpu.dot_dimension_numbers<[1], [0], [0], [1], [0, 0, 1, 1], [], []>} : vector<4x4xf32>, vector<4x2048xf32>, vector<4x2048xf32> -> vector<4x2048xf32>
    %c256_i32 = arith.constant 256 : i32
    %5 = tpu.dynamic_rotate %1 by %c256_i32 dim 1 : vector<4x2048xf32>, i32 -> vector<4x2048xf32>
    %c0_5 = arith.constant 0 : index
    %c0_6 = arith.constant 0 : index
    %c0_7 = arith.constant 0 : index
    %6 = vector.load %arg3[%c0_5, %c0_6, %c0_7] : memref<10x1x2048xf32, #tpu.memory_space<vmem>>, vector<1x1x2048xf32>
    %7 = vector.shape_cast %6 : vector<1x1x2048xf32> to vector<1x2048xf32>
    %8 = vector.broadcast %7 : vector<1x2048xf32> to vector<4x2048xf32>
    %9 = arith.mulf %5, %8 : vector<4x2048xf32>
    %c1 = arith.constant 1 : index
    %c0_8 = arith.constant 0 : index
    %c0_9 = arith.constant 0 : index
    %10 = vector.load %arg2[%c1, %c0_8, %c0_9] : memref<11x4x4xf32, #tpu.memory_space<vmem>>, vector<1x4x4xf32>
    %11 = vector.shape_cast %10 : vector<1x4x4xf32> to vector<4x4xf32>
    %cst_10 = arith.constant dense<0.000000e+00> : vector<4x2048xf32>
    %12 = tpu.matmul %11, %9, %cst_10 {dimension_numbers = #tpu.dot_dimension_numbers<[1], [0], [0], [1], [0, 0, 1, 1], [], []>} : vector<4x4xf32>, vector<4x2048xf32>, vector<4x2048xf32> -> vector<4x2048xf32>
    %13 = arith.addf %4, %12 : vector<4x2048xf32>
    %c1792_i32 = arith.constant 1792 : i32
    %14 = tpu.dynamic_rotate %1 by %c1792_i32 dim 1 : vector<4x2048xf32>, i32 -> vector<4x2048xf32>
    %c1_11 = arith.constant 1 : index
    %c0_12 = arith.constant 0 : index
    %c0_13 = arith.constant 0 : index
    %15 = vector.load %arg3[%c1_11, %c0_12, %c0_13] : memref<10x1x2048xf32, #tpu.memory_space<vmem>>, vector<1x1x2048xf32>
    %16 = vector.shape_cast %15 : vector<1x1x2048xf32> to vector<1x2048xf32>
    %17 = vector.broadcast %16 : vector<1x2048xf32> to vector<4x2048xf32>
    %18 = arith.mulf %14, %17 : vector<4x2048xf32>
    %c2 = arith.constant 2 : index
    %c0_14 = arith.constant 0 : index
    %c0_15 = arith.constant 0 : index
    %19 = vector.load %arg2[%c2, %c0_14, %c0_15] : memref<11x4x4xf32, #tpu.memory_space<vmem>>, vector<1x4x4xf32>
    %20 = vector.shape_cast %19 : vector<1x4x4xf32> to vector<4x4xf32>
    %cst_16 = arith.constant dense<0.000000e+00> : vector<4x2048xf32>
    %21 = tpu.matmul %20, %18, %cst_16 {dimension_numbers = #tpu.dot_dimension_numbers<[1], [0], [0], [1], [0, 0, 1, 1], [], []>} : vector<4x4xf32>, vector<4x2048xf32>, vector<4x2048xf32> -> vector<4x2048xf32>
    %22 = arith.addf %13, %21 : vector<4x2048xf32>
    %c17_i32 = arith.constant 17 : i32
    %23 = tpu.dynamic_rotate %1 by %c17_i32 dim 1 : vector<4x2048xf32>, i32 -> vector<4x2048xf32>
    %c2_17 = arith.constant 2 : index
    %c0_18 = arith.constant 0 : index
    %c0_19 = arith.constant 0 : index
    %24 = vector.load %arg3[%c2_17, %c0_18, %c0_19] : memref<10x1x2048xf32, #tpu.memory_space<vmem>>, vector<1x1x2048xf32>
    %25 = vector.shape_cast %24 : vector<1x1x2048xf32> to vector<1x2048xf32>
    %26 = vector.broadcast %25 : vector<1x2048xf32> to vector<4x2048xf32>
    %27 = arith.mulf %23, %26 : vector<4x2048xf32>
    %c3 = arith.constant 3 : index
    %c0_20 = arith.constant 0 : index
    %c0_21 = arith.constant 0 : index
    %28 = vector.load %arg2[%c3, %c0_20, %c0_21] : memref<11x4x4xf32, #tpu.memory_space<vmem>>, vector<1x4x4xf32>
    %29 = vector.shape_cast %28 : vector<1x4x4xf32> to vector<4x4xf32>
    %cst_22 = arith.constant dense<0.000000e+00> : vector<4x2048xf32>
    %30 = tpu.matmul %29, %27, %cst_22 {dimension_numbers = #tpu.dot_dimension_numbers<[1], [0], [0], [1], [0, 0, 1, 1], [], []>} : vector<4x4xf32>, vector<4x2048xf32>, vector<4x2048xf32> -> vector<4x2048xf32>
    %31 = arith.addf %22, %30 : vector<4x2048xf32>
    %c16_i32 = arith.constant 16 : i32
    %32 = tpu.dynamic_rotate %1 by %c16_i32 dim 1 : vector<4x2048xf32>, i32 -> vector<4x2048xf32>
    %c3_23 = arith.constant 3 : index
    %c0_24 = arith.constant 0 : index
    %c0_25 = arith.constant 0 : index
    %33 = vector.load %arg3[%c3_23, %c0_24, %c0_25] : memref<10x1x2048xf32, #tpu.memory_space<vmem>>, vector<1x1x2048xf32>
    %34 = vector.shape_cast %33 : vector<1x1x2048xf32> to vector<1x2048xf32>
    %35 = vector.broadcast %34 : vector<1x2048xf32> to vector<4x2048xf32>
    %36 = arith.mulf %32, %35 : vector<4x2048xf32>
    %c4 = arith.constant 4 : index
    %c0_26 = arith.constant 0 : index
    %c0_27 = arith.constant 0 : index
    %37 = vector.load %arg2[%c4, %c0_26, %c0_27] : memref<11x4x4xf32, #tpu.memory_space<vmem>>, vector<1x4x4xf32>
    %38 = vector.shape_cast %37 : vector<1x4x4xf32> to vector<4x4xf32>
    %cst_28 = arith.constant dense<0.000000e+00> : vector<4x2048xf32>
    %39 = tpu.matmul %38, %36, %cst_28 {dimension_numbers = #tpu.dot_dimension_numbers<[1], [0], [0], [1], [0, 0, 1, 1], [], []>} : vector<4x4xf32>, vector<4x2048xf32>, vector<4x2048xf32> -> vector<4x2048xf32>
    %40 = arith.addf %31, %39 : vector<4x2048xf32>
    %c15_i32 = arith.constant 15 : i32
    %41 = tpu.dynamic_rotate %1 by %c15_i32 dim 1 : vector<4x2048xf32>, i32 -> vector<4x2048xf32>
    %c4_29 = arith.constant 4 : index
    %c0_30 = arith.constant 0 : index
    %c0_31 = arith.constant 0 : index
    %42 = vector.load %arg3[%c4_29, %c0_30, %c0_31] : memref<10x1x2048xf32, #tpu.memory_space<vmem>>, vector<1x1x2048xf32>
    %43 = vector.shape_cast %42 : vector<1x1x2048xf32> to vector<1x2048xf32>
    %44 = vector.broadcast %43 : vector<1x2048xf32> to vector<4x2048xf32>
    %45 = arith.mulf %41, %44 : vector<4x2048xf32>
    %c5 = arith.constant 5 : index
    %c0_32 = arith.constant 0 : index
    %c0_33 = arith.constant 0 : index
    %46 = vector.load %arg2[%c5, %c0_32, %c0_33] : memref<11x4x4xf32, #tpu.memory_space<vmem>>, vector<1x4x4xf32>
    %47 = vector.shape_cast %46 : vector<1x4x4xf32> to vector<4x4xf32>
    %cst_34 = arith.constant dense<0.000000e+00> : vector<4x2048xf32>
    %48 = tpu.matmul %47, %45, %cst_34 {dimension_numbers = #tpu.dot_dimension_numbers<[1], [0], [0], [1], [0, 0, 1, 1], [], []>} : vector<4x4xf32>, vector<4x2048xf32>, vector<4x2048xf32> -> vector<4x2048xf32>
    %49 = arith.addf %40, %48 : vector<4x2048xf32>
    %c1_i32 = arith.constant 1 : i32
    %50 = tpu.dynamic_rotate %1 by %c1_i32 dim 1 : vector<4x2048xf32>, i32 -> vector<4x2048xf32>
    %c5_35 = arith.constant 5 : index
    %c0_36 = arith.constant 0 : index
    %c0_37 = arith.constant 0 : index
    %51 = vector.load %arg3[%c5_35, %c0_36, %c0_37] : memref<10x1x2048xf32, #tpu.memory_space<vmem>>, vector<1x1x2048xf32>
    %52 = vector.shape_cast %51 : vector<1x1x2048xf32> to vector<1x2048xf32>
    %53 = vector.broadcast %52 : vector<1x2048xf32> to vector<4x2048xf32>
    %54 = arith.mulf %50, %53 : vector<4x2048xf32>
    %c6 = arith.constant 6 : index
    %c0_38 = arith.constant 0 : index
    %c0_39 = arith.constant 0 : index
    %55 = vector.load %arg2[%c6, %c0_38, %c0_39] : memref<11x4x4xf32, #tpu.memory_space<vmem>>, vector<1x4x4xf32>
    %56 = vector.shape_cast %55 : vector<1x4x4xf32> to vector<4x4xf32>
    %cst_40 = arith.constant dense<0.000000e+00> : vector<4x2048xf32>
    %57 = tpu.matmul %56, %54, %cst_40 {dimension_numbers = #tpu.dot_dimension_numbers<[1], [0], [0], [1], [0, 0, 1, 1], [], []>} : vector<4x4xf32>, vector<4x2048xf32>, vector<4x2048xf32> -> vector<4x2048xf32>
    %58 = arith.addf %49, %57 : vector<4x2048xf32>
    %c2047_i32 = arith.constant 2047 : i32
    %59 = tpu.dynamic_rotate %1 by %c2047_i32 dim 1 : vector<4x2048xf32>, i32 -> vector<4x2048xf32>
    %c6_41 = arith.constant 6 : index
    %c0_42 = arith.constant 0 : index
    %c0_43 = arith.constant 0 : index
    %60 = vector.load %arg3[%c6_41, %c0_42, %c0_43] : memref<10x1x2048xf32, #tpu.memory_space<vmem>>, vector<1x1x2048xf32>
    %61 = vector.shape_cast %60 : vector<1x1x2048xf32> to vector<1x2048xf32>
    %62 = vector.broadcast %61 : vector<1x2048xf32> to vector<4x2048xf32>
    %63 = arith.mulf %59, %62 : vector<4x2048xf32>
    %c7 = arith.constant 7 : index
    %c0_44 = arith.constant 0 : index
    %c0_45 = arith.constant 0 : index
    %64 = vector.load %arg2[%c7, %c0_44, %c0_45] : memref<11x4x4xf32, #tpu.memory_space<vmem>>, vector<1x4x4xf32>
    %65 = vector.shape_cast %64 : vector<1x4x4xf32> to vector<4x4xf32>
    %cst_46 = arith.constant dense<0.000000e+00> : vector<4x2048xf32>
    %66 = tpu.matmul %65, %63, %cst_46 {dimension_numbers = #tpu.dot_dimension_numbers<[1], [0], [0], [1], [0, 0, 1, 1], [], []>} : vector<4x4xf32>, vector<4x2048xf32>, vector<4x2048xf32> -> vector<4x2048xf32>
    %67 = arith.addf %58, %66 : vector<4x2048xf32>
    %c2033_i32 = arith.constant 2033 : i32
    %68 = tpu.dynamic_rotate %1 by %c2033_i32 dim 1 : vector<4x2048xf32>, i32 -> vector<4x2048xf32>
    %c7_47 = arith.constant 7 : index
    %c0_48 = arith.constant 0 : index
    %c0_49 = arith.constant 0 : index
    %69 = vector.load %arg3[%c7_47, %c0_48, %c0_49] : memref<10x1x2048xf32, #tpu.memory_space<vmem>>, vector<1x1x2048xf32>
    %70 = vector.shape_cast %69 : vector<1x1x2048xf32> to vector<1x2048xf32>
    %71 = vector.broadcast %70 : vector<1x2048xf32> to vector<4x2048xf32>
    %72 = arith.mulf %68, %71 : vector<4x2048xf32>
    %c8 = arith.constant 8 : index
    %c0_50 = arith.constant 0 : index
    %c0_51 = arith.constant 0 : index
    %73 = vector.load %arg2[%c8, %c0_50, %c0_51] : memref<11x4x4xf32, #tpu.memory_space<vmem>>, vector<1x4x4xf32>
    %74 = vector.shape_cast %73 : vector<1x4x4xf32> to vector<4x4xf32>
    %cst_52 = arith.constant dense<0.000000e+00> : vector<4x2048xf32>
    %75 = tpu.matmul %74, %72, %cst_52 {dimension_numbers = #tpu.dot_dimension_numbers<[1], [0], [0], [1], [0, 0, 1, 1], [], []>} : vector<4x4xf32>, vector<4x2048xf32>, vector<4x2048xf32> -> vector<4x2048xf32>
    %76 = arith.addf %67, %75 : vector<4x2048xf32>
    %c2032_i32 = arith.constant 2032 : i32
    %77 = tpu.dynamic_rotate %1 by %c2032_i32 dim 1 : vector<4x2048xf32>, i32 -> vector<4x2048xf32>
    %c8_53 = arith.constant 8 : index
    %c0_54 = arith.constant 0 : index
    %c0_55 = arith.constant 0 : index
    %78 = vector.load %arg3[%c8_53, %c0_54, %c0_55] : memref<10x1x2048xf32, #tpu.memory_space<vmem>>, vector<1x1x2048xf32>
    %79 = vector.shape_cast %78 : vector<1x1x2048xf32> to vector<1x2048xf32>
    %80 = vector.broadcast %79 : vector<1x2048xf32> to vector<4x2048xf32>
    %81 = arith.mulf %77, %80 : vector<4x2048xf32>
    %c9 = arith.constant 9 : index
    %c0_56 = arith.constant 0 : index
    %c0_57 = arith.constant 0 : index
    %82 = vector.load %arg2[%c9, %c0_56, %c0_57] : memref<11x4x4xf32, #tpu.memory_space<vmem>>, vector<1x4x4xf32>
    %83 = vector.shape_cast %82 : vector<1x4x4xf32> to vector<4x4xf32>
    %cst_58 = arith.constant dense<0.000000e+00> : vector<4x2048xf32>
    %84 = tpu.matmul %83, %81, %cst_58 {dimension_numbers = #tpu.dot_dimension_numbers<[1], [0], [0], [1], [0, 0, 1, 1], [], []>} : vector<4x4xf32>, vector<4x2048xf32>, vector<4x2048xf32> -> vector<4x2048xf32>
    %85 = arith.addf %76, %84 : vector<4x2048xf32>
    %c2031_i32 = arith.constant 2031 : i32
    %86 = tpu.dynamic_rotate %1 by %c2031_i32 dim 1 : vector<4x2048xf32>, i32 -> vector<4x2048xf32>
    %c9_59 = arith.constant 9 : index
    %c0_60 = arith.constant 0 : index
    %c0_61 = arith.constant 0 : index
    %87 = vector.load %arg3[%c9_59, %c0_60, %c0_61] : memref<10x1x2048xf32, #tpu.memory_space<vmem>>, vector<1x1x2048xf32>
    %88 = vector.shape_cast %87 : vector<1x1x2048xf32> to vector<1x2048xf32>
    %89 = vector.broadcast %88 : vector<1x2048xf32> to vector<4x2048xf32>
    %90 = arith.mulf %86, %89 : vector<4x2048xf32>
    %c10 = arith.constant 10 : index
    %c0_62 = arith.constant 0 : index
    %c0_63 = arith.constant 0 : index
    %91 = vector.load %arg2[%c10, %c0_62, %c0_63] : memref<11x4x4xf32, #tpu.memory_space<vmem>>, vector<1x4x4xf32>
    %92 = vector.shape_cast %91 : vector<1x4x4xf32> to vector<4x4xf32>
    %cst_64 = arith.constant dense<0.000000e+00> : vector<4x2048xf32>
    %93 = tpu.matmul %92, %90, %cst_64 {dimension_numbers = #tpu.dot_dimension_numbers<[1], [0], [0], [1], [0, 0, 1, 1], [], []>} : vector<4x4xf32>, vector<4x2048xf32>, vector<4x2048xf32> -> vector<4x2048xf32>
    %94 = arith.addf %85, %93 : vector<4x2048xf32>
    %cst_65 = arith.constant dense<0.000000e+00> : vector<4xf32>
    %95 = vector.multi_reduction <add>, %94, %cst_65 [1] : vector<4x2048xf32> to vector<4xf32>
    %96 = vector.shape_cast %95 : vector<4xf32> to vector<4x1xf32>
    %cst_66 = arith.constant 2.048000e+03 : f32
    %97 = vector.broadcast %cst_66 : f32 to vector<4x1xf32>
    %98 = arith.divf %96, %97 : vector<4x1xf32>
    %99 = vector.broadcast %98 : vector<4x1xf32> to vector<4x2048xf32>
    %100 = arith.subf %94, %99 : vector<4x2048xf32>
    %101 = arith.mulf %100, %100 : vector<4x2048xf32>
    %cst_67 = arith.constant dense<0.000000e+00> : vector<4xf32>
    %102 = vector.multi_reduction <add>, %101, %cst_67 [1] : vector<4x2048xf32> to vector<4xf32>
    %103 = vector.shape_cast %102 : vector<4xf32> to vector<4x1xf32>
    %cst_68 = arith.constant 2.048000e+03 : f32
    %104 = vector.broadcast %cst_68 : f32 to vector<4x1xf32>
    %105 = arith.divf %103, %104 : vector<4x1xf32>
    %cst_69 = arith.constant 9.99999974E-6 : f32
    %106 = vector.broadcast %cst_69 : f32 to vector<4x1xf32>
    %107 = arith.addf %105, %106 : vector<4x1xf32>
    %108 = math.rsqrt %107 : vector<4x1xf32>
    %109 = vector.broadcast %108 : vector<4x1xf32> to vector<4x2048xf32>
    %110 = arith.mulf %100, %109 : vector<4x2048xf32>
    %cst_70 = arith.constant 0.000000e+00 : f32
    %111 = vector.broadcast %cst_70 : f32 to vector<4x2048xf32>
    %112 = arith.cmpf oge, %110, %111 : vector<4x2048xf32>
    %cst_71 = arith.constant 0.00999999977 : f32
    %113 = vector.broadcast %cst_71 : f32 to vector<4x2048xf32>
    %114 = arith.mulf %113, %110 : vector<4x2048xf32>
    %115 = arith.select %112, %110, %114 : vector<4x2048xi1>, vector<4x2048xf32>
    %c0_72 = arith.constant 0 : index
    %c0_73 = arith.constant 0 : index
    %c0_74 = arith.constant 0 : index
    %116 = vector.load %arg4[%c0_72, %c0_73, %c0_74] : memref<1x4x2048xf32, #tpu.memory_space<vmem>>, vector<1x4x2048xf32>
    %117 = vector.shape_cast %116 : vector<1x4x2048xf32> to vector<4x2048xf32>
    %118 = vector.shape_cast %115 : vector<4x2048xf32> to vector<1x4x2048xf32>
    tpu.vector_store %arg4[%c0_72, %c0_73, %c0_74], %118 {strides = array<i32>} : memref<1x4x2048xf32, #tpu.memory_space<vmem>>, vector<1x4x2048xf32>,
    return
  }
  func.func @transform_0(%arg0: i32) -> (i32, i32, i32) {
    %c0_i32 = arith.constant 0 : i32
    %c0_i32_0 = arith.constant 0 : i32
    %c0_i32_1 = arith.constant 0 : i32
    return %arg0, %c0_i32, %c0_i32_0 : i32, i32, i32
  }
  func.func @transform_1(%arg0: i32) -> (i32, i32, i32) {
    %c0_i32 = arith.constant 0 : i32
    %c0_i32_0 = arith.constant 0 : i32
    %c0_i32_1 = arith.constant 0 : i32
    %c0_i32_2 = arith.constant 0 : i32
    return %c0_i32, %c0_i32_0, %c0_i32_1 : i32, i32, i32
  }
  func.func @transform_2(%arg0: i32) -> (i32, i32, i32) {
    %c0_i32 = arith.constant 0 : i32
    %c0_i32_0 = arith.constant 0 : i32
    %c0_i32_1 = arith.constant 0 : i32
    %c0_i32_2 = arith.constant 0 : i32
    return %c0_i32, %c0_i32_0, %c0_i32_1 : i32, i32, i32
  }
  func.func @transform_3(%arg0: i32) -> (i32, i32, i32) {
    %c0_i32 = arith.constant 0 : i32
    %c0_i32_0 = arith.constant 0 : i32
    %c0_i32_1 = arith.constant 0 : i32
    return %arg0, %c0_i32, %c0_i32_0 : i32, i32, i32
  }
}

</mosaic_0001>

<llo_original>
// kernel: tpu_custom_call.1
$region0: #{tpu_custom_call.1}
  #allocation0 [shape = 'u32[]', space=smem, size = 0x4, offset = 0x4, fixed_abs, tag = 'smem constant byte address 0x4 - core index']
  #allocation1 [shape = 'u32[144,128]{1,0:T(1,128)}', space=vmem, size = 0x12000, scoped, tag = 'internal scratch']
  %s0 = inlined_call_operand.hbm [shape: f32[2,4,2048], index: 0, kind: input, shape index: {}]
  %s1 = inlined_call_operand.vmem [shape: f32[11,4,4], index: 1, kind: input, shape index: {}]
  %s2 = inlined_call_operand.hbm [shape: f32[10,1,2048], index: 2, kind: input, shape index: {}]
  %s3 = inlined_call_operand.hbm [shape: f32[2,4,2048], index: 3, kind: output, shape index: {}]
  %s4 = sld [smem:[#allocation0]]
  $region53: #{tpu_custom_call.1} parent=0
    _
  %s6 = ssub.s32 1, %s4
  %s7 = scalar_select 0, %s6, %s4
  $region1: #{tpu_custom_call.1} parent=0
    #allocation2 [shape = 'u8[65536]{0}', space=vmem, size = 0x10000, scoped, tag = 'input window, operand 0']
    #allocation3 [shape = 's32[2]{0}', space=sflag, size = 0x8, scoped, tag = 'scoped memory for tpu_custom_call.1']
    #allocation4 [shape = 's32[2]{0}', space=sflag, size = 0x8, scoped, tag = 'scoped memory for tpu_custom_call.1']
    #allocation5 [shape = 'u8[81920]{0}', space=vmem, size = 0x14000, scoped, tag = 'input window, operand 2, single buffered']
    #allocation6 [shape = 's32[1]{0}', space=sflag, size = 0x4, scoped, tag = 'scoped memory for tpu_custom_call.1']
    #allocation7 [shape = 'u8[65536]{0}', space=vmem, size = 0x10000, scoped, tag = 'output window, operand 0']
    %8 = vsyncpa [#allocation3], 0
    %s9 = scalar_lea.sflag [#allocation3], 1
    %10 = vsyncpa %s9, 0
    %11 = vsyncpa [#allocation6], 0
    %12 = vsyncpa [#allocation4], 0
    %s13 = scalar_lea.sflag [#allocation4], 1
    %14 = vsyncpa %s13, 0
    loop: start=0, step=1, limit=4
    $region2: #{tpu_custom_call.1} parent=1 // loop_pre_header
      _
    $region3: #{tpu_custom_call.1} parent=1 // loop_header
      %s16 = sphi 0, %s20
      %p17 = scmp.ge.s32.totalorder %s16, 4
      %s26 = sphi 0, %s28
      %s29 = sphi 0, %s26
      %s30 = sphi 0, %s29
      %s46 = sphi 0, %s30
      %s50 = sphi 0, %s50
      %s52 = sphi 0, %s50
      %s53 = sphi 0, %s52
      %s67 = sphi 0, %s53
      %s71 = sphi 0, %s71
      %s73 = sphi 0, %s71
      %s74 = sphi 0, %s73
      %s88 = sphi 0, %s74
      %s94 = sphi 0, %s96
      %s97 = sphi 0, %s94
      %s98 = sphi 0, %s97
      %s114 = sphi 0, %s98
    $region4: #{tpu_custom_call.1} parent=1 // loop_header_branch
      %19 = sbr.rel (%p17) target = $region8
    $region5: #{tpu_custom_call.1} parent=1 // loop_body
      %s21 = ssub.s32 %s16, 1
      %s22 = ssub.s32 %s16, 2
      %s23 = sadd.s32 %s16, 1
      %s24 = ssub.s32 %s16, %s23
      %p25 = scmp.eq.s32.totalorder %s24, 0
      %s27 = sadd.s32 %s26, 1
      %s28 = scalar_select %p25, %s26, %s27
      %p31 = pneg %p25
      %p32 = scmp.eq.s32.totalorder %s16, 1
      %p33 = por %p31, %p32
      %p34 = scmp.ne.s32.totalorder %s26, %s29
      %p35 = scmp.eq.s32.totalorder %s16, 0
      %p36 = por %p34, %p35
      %p37 = scmp.ne.s32.totalorder %s26, %s29
      %p38 = scmp.eq.s32.totalorder %s21, 1
      %p39 = por %p37, %p38
      %p40 = scmp.ne.s32.totalorder %s29, %s30
      %p41 = scmp.eq.s32.totalorder %s21, 0
      %p42 = por %p40, %p41
      %p43 = scmp.ne.s32.totalorder %s29, %s30
      %p44 = scmp.eq.s32.totalorder %s22, 1
      %p45 = por %p43, %p44
      %p47 = scmp.ne.s32.totalorder %s30, %s46
      %p48 = scmp.eq.s32.totalorder %s22, 0
      %p49 = por %p47, %p48
      %s51 = sadd.s32 %s50, 1
      %p54 = scmp.eq.s32.totalorder %s16, 1
      %p55 = scmp.ne.s32.totalorder %s50, %s52
      %p56 = scmp.eq.s32.totalorder %s16, 0
      %p57 = por %p55, %p56
      %p58 = scmp.ne.s32.totalorder %s50, %s52
      %p59 = scmp.eq.s32.totalorder %s21, 1
      %p60 = por %p58, %p59
      %p61 = scmp.ne.s32.totalorder %s52, %s53
      %p62 = scmp.eq.s32.totalorder %s21, 0
      %p63 = por %p61, %p62
      %p64 = scmp.ne.s32.totalorder %s52, %s53
      %p65 = scmp.eq.s32.totalorder %s22, 1
      %p66 = por %p64, %p65
      %p68 = scmp.ne.s32.totalorder %s53, %s67
      %p69 = scmp.eq.s32.totalorder %s22, 0
      %p70 = por %p68, %p69
      %s72 = sadd.s32 %s71, 1
      %p75 = scmp.eq.s32.totalorder %s16, 1
      %p76 = scmp.ne.s32.totalorder %s71, %s73
      %p77 = scmp.eq.s32.totalorder %s16, 0
      %p78 = por %p76, %p77
      %p79 = scmp.ne.s32.totalorder %s71, %s73
      %p80 = scmp.eq.s32.totalorder %s21, 1
      %p81 = por %p79, %p80
      %p82 = scmp.ne.s32.totalorder %s73, %s74
      %p83 = scmp.eq.s32.totalorder %s21, 0
      %p84 = por %p82, %p83
      %p85 = scmp.ne.s32.totalorder %s73, %s74
      %p86 = scmp.eq.s32.totalorder %s22, 1
      %p87 = por %p85, %p86
      %p89 = scmp.ne.s32.totalorder %s74, %s88
      %p90 = scmp.eq.s32.totalorder %s22, 0
      %p91 = por %p89, %p90
      %s92 = ssub.s32 %s16, %s23
      %p93 = scmp.eq.s32.totalorder %s92, 0
      %s95 = sadd.s32 %s94, 1
      %s96 = scalar_select %p93, %s94, %s95
      %p99 = pneg %p93
      %p100 = scmp.eq.s32.totalorder %s16, 1
      %p101 = por %p99, %p100
      %p102 = scmp.ne.s32.totalorder %s94, %s97
      %p103 = scmp.eq.s32.totalorder %s16, 0
      %p104 = por %p102, %p103
      %p105 = scmp.ne.s32.totalorder %s94, %s97
      %p106 = scmp.eq.s32.totalorder %s21, 1
      %p107 = por %p105, %p106
      %p108 = scmp.ne.s32.totalorder %s97, %s98
      %p109 = scmp.eq.s32.totalorder %s21, 0
      %p110 = por %p108, %p109
      %p111 = scmp.ne.s32.totalorder %s97, %s98
      %p112 = scmp.eq.s32.totalorder %s22, 1
      %p113 = por %p111, %p112
      %p115 = scmp.ne.s32.totalorder %s98, %s114
      %p116 = scmp.eq.s32.totalorder %s22, 0
      %p117 = por %p115, %p116
      %p118 = scmp.le.s32.totalorder 1, %s16
      %p119 = scmp.lt.s32.totalorder %s16, 3
      %p120 = pnand %p118, %p119
      %p121 = pneg %p120
      // Predicated region
      $region9: #{tpu_custom_call.1} parent=5 // pred_check
        _
      $region10: #{tpu_custom_call.1} parent=5 // pred_check_branch
        %123 = sbr.rel (%p120) target = $region12
      $region11: #{tpu_custom_call.1} parent=5 // pred_region
        %s124 = ssub.s32 %s16, 1
        // Predicated region
        $region13: #{tpu_custom_call.1} parent=11 // pred_check
          %p125 = pneg %p63
        $region14: #{tpu_custom_call.1} parent=11 // pred_check_branch
          %127 = sbr.rel (%p125) target = $region16
        $region15: #{tpu_custom_call.1} parent=11 // pred_region
          _
        $region16: #{tpu_custom_call.1} parent=11 // pred_fallthru
          _
        // Predicated region
        $region17: #{tpu_custom_call.1} parent=11 // pred_check
          %p128 = pneg %p84
        $region18: #{tpu_custom_call.1} parent=11 // pred_check_branch
          %130 = sbr.rel (%p128) target = $region20
        $region19: #{tpu_custom_call.1} parent=11 // pred_region
          %s132 = ssub.s32 2560, 2560
          %133 = vsyncadd [#allocation6], %s132
          %s134 = sshll.u32 [#allocation5], 4
          %s135 = int_to_ptr.vmem [resolvable:$true] %s134
          %140 = dma.hbm_to_vmem [thread:$0]  %s2, 2560, %s135, [#allocation6], 256, 256, 16
        $region20: #{tpu_custom_call.1} parent=11 // pred_fallthru
          _
      $region12: #{tpu_custom_call.1} parent=5 // pred_fallthru
        _
      %p141 = scmp.lt.s32.totalorder %s16, 2
      // Predicated region
      $region21: #{tpu_custom_call.1} parent=5 // pred_check
        %p142 = pneg %p141
      $region22: #{tpu_custom_call.1} parent=5 // pred_check_branch
        %144 = sbr.rel (%p142) target = $region24
      $region23: #{tpu_custom_call.1} parent=5 // pred_region
        // Predicated region
        $region25: #{tpu_custom_call.1} parent=23 // pred_check
          %p145 = pneg %p36
        $region26: #{tpu_custom_call.1} parent=23 // pred_check_branch
          %147 = sbr.rel (%p145) target = $region28
        $region27: #{tpu_custom_call.1} parent=23 // pred_region
          %s148 = sand.u32 %s26, 1
          %s149 = scalar_lea.sflag [#allocation3], %s148
          %s150 = sand.u32 %s26, 1
          %s151 = smul.addr %s150, 64
          %s152 = scalar_lea.vmem [#allocation2], %s151
          %s154 = ssub.s32 1024, 1024
          %155 = vsyncadd %s149, %s154
          %s156 = smul.addr %s16, 16
          %s157 = smul.addr %s156, 64
          %s158 = scalar_lea.hbm %s0, %s157
          %s160 = sshll.u32 %s152, 4
          %s161 = int_to_ptr.vmem [resolvable:$true] %s160
          %163 = dma.hbm_to_vmem [thread:$0]  %s158, 1024, %s161, %s149
        $region28: #{tpu_custom_call.1} parent=23 // pred_fallthru
          _
      $region24: #{tpu_custom_call.1} parent=5 // pred_fallthru
        _
      %p164 = scmp.le.s32.totalorder 1, %s16
      %p165 = scmp.lt.s32.totalorder %s16, 3
      %p166 = pnand %p164, %p165
      %p167 = pneg %p166
      // Predicated region
      $region29: #{tpu_custom_call.1} parent=5 // pred_check
        _
      $region30: #{tpu_custom_call.1} parent=5 // pred_check_branch
        %169 = sbr.rel (%p166) target = $region32
      $region31: #{tpu_custom_call.1} parent=5 // pred_region
        %s170 = ssub.s32 %s16, 1
        %s171 = sand.u32 %s29, 1
        %s172 = scalar_lea.sflag [#allocation3], %s171
        %s173 = sand.u32 %s29, 1
        %s174 = smul.addr %s173, 64
        %s175 = scalar_lea.vmem [#allocation2], %s174
        // Predicated region
        $region33: #{tpu_custom_call.1} parent=31 // pred_check
          %p176 = pneg %p42
        $region34: #{tpu_custom_call.1} parent=31 // pred_check_branch
          %178 = sbr.rel (%p176) target = $region36
        $region35: #{tpu_custom_call.1} parent=31 // pred_region
          %179 = dma.done %s172, 1024
        $region36: #{tpu_custom_call.1} parent=31 // pred_fallthru
          _
        // Predicated region
        $region37: #{tpu_custom_call.1} parent=31 // pred_check
          %p180 = pneg %p84
        $region38: #{tpu_custom_call.1} parent=31 // pred_check_branch
          %182 = sbr.rel (%p180) target = $region40
        $region39: #{tpu_custom_call.1} parent=31 // pred_region
          %183 = dma.done [#allocation6], 2560
        $region40: #{tpu_custom_call.1} parent=31 // pred_fallthru
          _
        %s184 = sand.u32 %s29, 1
        %s185 = scalar_lea.sflag [#allocation3], %s184
        %s186 = sand.u32 %s29, 1
        %s187 = smul.addr %s186, 64
        %s188 = scalar_lea.vmem [#allocation2], %s187
        %p189 = pneg %p42
        %p190 = pneg %p39
        %p191 = pneg %p63
        %p192 = pneg %p60
        %p193 = pneg %p84
        %p194 = pneg %p81
        %p195 = pneg %p110
        %p196 = pneg %p107
        %s197 = sand.u32 %s97, 1
        %s198 = scalar_lea.sflag [#allocation4], %s197
        %s199 = sand.u32 %s97, 1
        %s200 = smul.addr %s199, 64
        %s201 = scalar_lea.vmem [#allocation7], %s200
        %v202 = vld [vmem:[%s175] sm:$0xff]
        %v203 = vld [vmem:[%s175 + $0x8] sm:$0xff]
        %v204 = vld [vmem:[%s175 + $0x10] sm:$0xff]
        %v205 = vld [vmem:[%s175 + $0x18] sm:$0xff]
        %v206 = vld [vmem:[%s175 + $0x20] sm:$0xff]
        %v207 = vld [vmem:[%s175 + $0x28] sm:$0xff]
        %v208 = vld [vmem:[%s175 + $0x30] sm:$0xff]
        %v209 = vld [vmem:[%s175 + $0x38] sm:$0xff]
        %v210 = vld [vmem:[%s1] sm:$0xf]
        %v219 = vcombine.high %v202, %v202
        %v220 = vcombine.high %v203, %v203
        %v221 = vcombine.high %v204, %v204
        %v222 = vcombine.high %v205, %v205
        %v223 = vcombine.high %v206, %v206
        %v224 = vcombine.high %v207, %v207
        %v225 = vcombine.high %v208, %v208
        %v226 = vcombine.high %v209, %v209
        %v235 = vld [vmem:[#allocation5] sm:$0xff]
        %v236 = vld [vmem:[#allocation5 + $0x8] sm:$0xff]
        %v239 = vlaneseq
        %v240 = vshrl.u32 %v239, 7
        %v241 = vsub.s32 0, %v240
        %v242 = vrot.slane %v235, %v241
        %v243 = vlaneseq
        %v244 = vshrl.u32 %v243, 7
        %v245 = vsub.s32 1, %v244
        %v246 = vrot.slane %v235, %v245
        %v247 = vlaneseq
        %v248 = vshrl.u32 %v247, 7
        %v249 = vsub.s32 2, %v248
        %v250 = vrot.slane %v235, %v249
        %v251 = vlaneseq
        %v252 = vshrl.u32 %v251, 7
        %v253 = vsub.s32 3, %v252
        %v254 = vrot.slane %v235, %v253
        %v255 = vlaneseq
        %v256 = vshrl.u32 %v255, 7
        %v257 = vsub.s32 4, %v256
        %v258 = vrot.slane %v235, %v257
        %v259 = vlaneseq
        %v260 = vshrl.u32 %v259, 7
        %v261 = vsub.s32 5, %v260
        %v262 = vrot.slane %v235, %v261
        %v263 = vlaneseq
        %v264 = vshrl.u32 %v263, 7
        %v265 = vsub.s32 6, %v264
        %v266 = vrot.slane %v235, %v265
        %v267 = vlaneseq
        %v268 = vshrl.u32 %v267, 7
        %v269 = vsub.s32 7, %v268
        %v270 = vrot.slane %v235, %v269
        %v271 = vlaneseq
        %v272 = vshrl.u32 %v271, 7
        %v273 = vsub.s32 0, %v272
        %v274 = vrot.slane %v236, %v273
        %v275 = vlaneseq
        %v276 = vshrl.u32 %v275, 7
        %v277 = vsub.s32 1, %v276
        %v278 = vrot.slane %v236, %v277
        %v279 = vlaneseq
        %v280 = vshrl.u32 %v279, 7
        %v281 = vsub.s32 2, %v280
        %v282 = vrot.slane %v236, %v281
        %v283 = vlaneseq
        %v284 = vshrl.u32 %v283, 7
        %v285 = vsub.s32 3, %v284
        %v286 = vrot.slane %v236, %v285
        %v287 = vlaneseq
        %v288 = vshrl.u32 %v287, 7
        %v289 = vsub.s32 4, %v288
        %v290 = vrot.slane %v236, %v289
        %v291 = vlaneseq
        %v292 = vshrl.u32 %v291, 7
        %v293 = vsub.s32 5, %v292
        %v294 = vrot.slane %v236, %v293
        %v295 = vlaneseq
        %v296 = vshrl.u32 %v295, 7
        %v297 = vsub.s32 6, %v296
        %v298 = vrot.slane %v236, %v297
        %v299 = vlaneseq
        %v300 = vshrl.u32 %v299, 7
        %v301 = vsub.s32 7, %v300
        %v302 = vrot.slane %v236, %v301
        %v319 = vmul.f32 %v209, %v242
        %v320 = vmul.f32 %v226, %v246
        %v321 = vmul.f32 %v202, %v250
        %v322 = vmul.f32 %v219, %v254
        %v323 = vmul.f32 %v203, %v258
        %v324 = vmul.f32 %v220, %v262
        %v325 = vmul.f32 %v204, %v266
        %v326 = vmul.f32 %v221, %v270
        %v327 = vmul.f32 %v205, %v274
        %v328 = vmul.f32 %v222, %v278
        %v329 = vmul.f32 %v206, %v282
        %v330 = vmul.f32 %v223, %v286
        %v331 = vmul.f32 %v207, %v290
        %v332 = vmul.f32 %v224, %v294
        %v333 = vmul.f32 %v208, %v298
        %v334 = vmul.f32 %v225, %v302
        %s335 = scalar_lea.vmem %s1, 4
        %v336 = vld [vmem:[%s335] sm:$0xf]
        %vm337 = vcmask 31744
        %v339 = vsel %vm337, %v336, 0
        %vm341 = vcmask 1043456
        %v343 = vsel %vm341, %v319, 0
        %v346 = vsel %vm341, %v320, 0
        %v349 = vsel %vm341, %v321, 0
        %v352 = vsel %vm341, %v322, 0
        %v355 = vsel %vm341, %v323, 0
        %v358 = vsel %vm341, %v324, 0
        %v361 = vsel %vm341, %v325, 0
        %v364 = vsel %vm341, %v326, 0
        %v367 = vsel %vm341, %v327, 0
        %v370 = vsel %vm341, %v328, 0
        %v373 = vsel %vm341, %v329, 0
        %v376 = vsel %vm341, %v330, 0
        %v379 = vsel %vm341, %v331, 0
        %v382 = vsel %vm341, %v332, 0
        %v385 = vsel %vm341, %v333, 0
        %v388 = vsel %vm341, %v334, 0
        %390 = vmatprep.subr.mxu0 %v346
        %391 = vmatpush1.msra.mxu0 %v343
        %392 = vmatprep.subr.mxu0 0.0
        %393 = vmatpush1.msra.mxu0 0.0
        %394 = vmatprep.subr.mxu0 0.0
        %395 = vmatpush1.msra.mxu0 0.0
        %396 = vmatprep.subr.mxu0 0.0
        %397 = vmatpush1.msra.mxu0 0.0
        %398 = vmatprep.subr.mxu0 0.0
        %399 = vmatpush1.msra.mxu0 0.0
        %400 = vmatprep.subr.mxu0 0.0
        %401 = vmatpush1.msra.mxu0 0.0
        %402 = vmatprep.subr.mxu0 0.0
        %403 = vmatpush1.msra.mxu0 0.0
        %404 = vmatprep.subr.mxu0 0.0
        %405 = vmatpush1.msra.mxu0 0.0
        %406 = vmatprep.subr.mxu0 0.0
        %407 = vmatpush1.msra.mxu0 0.0
        %408 = vmatprep.subr.mxu0 0.0
        %409 = vmatpush1.msra.mxu0 0.0
        %410 = vmatprep.subr.mxu0 0.0
        %411 = vmatpush1.msra.mxu0 0.0
        %412 = vmatprep.subr.mxu0 0.0
        %413 = vmatpush1.msra.mxu0 0.0
        %414 = vmatprep.subr.mxu0 0.0
        %415 = vmatpush1.msra.mxu0 0.0
        %416 = vmatprep.subr.mxu0 0.0
        %417 = vmatpush1.msra.mxu0 0.0
        %418 = vmatprep.subr.mxu0 0.0
        %419 = vmatpush1.msra.mxu0 0.0
        %420 = vmatprep.subr.mxu0 0.0
        %421 = vmatpush1.msra.mxu0 0.0
        %422 = vmatprep.subr.mxu0 0.0
        %423 = vmatpush1.msra.mxu0 0.0
        %424 = vmatprep.subr.mxu0 0.0
        %425 = vmatpush1.msra.mxu0 0.0
        %426 = vmatprep.subr.mxu0 0.0
        %427 = vmatpush1.msra.mxu0 0.0
        %428 = vmatprep.subr.mxu0 0.0
        %429 = vmatpush1.msra.mxu0 0.0
        %430 = vmatprep.subr.mxu0 0.0
        %431 = vmatpush1.msra.mxu0 0.0
        %432 = vmatprep.subr.mxu0 0.0
        %433 = vmatpush1.msra.mxu0 0.0
        %434 = vmatprep.subr.mxu0 0.0
        %435 = vmatpush1.msra.mxu0 0.0
        %436 = vmatprep.subr.mxu0 0.0
        %437 = vmatpush1.msra.mxu0 0.0
        %438 = vmatprep.subr.mxu0 0.0
        %439 = vmatpush1.msra.mxu0 0.0
        %440 = vmatprep.subr.mxu0 0.0
        %441 = vmatpush1.msra.mxu0 0.0
        %442 = vmatprep.subr.mxu0 0.0
        %443 = vmatpush1.msra.mxu0 0.0
        %444 = vmatprep.subr.mxu0 0.0
        %445 = vmatpush1.msra.mxu0 0.0
        %446 = vmatprep.subr.mxu0 0.0
        %447 = vmatpush1.msra.mxu0 0.0
        %448 = vmatprep.subr.mxu0 0.0
        %449 = vmatpush1.msra.mxu0 0.0
        %450 = vmatprep.subr.mxu0 0.0
        %451 = vmatpush1.msra.mxu0 0.0
        %452 = vmatprep.subr.mxu0 0.0
        %453 = vmatpush1.msra.mxu0 0.0
        %454 = vmatprep.mubr.f32.mxu0 0.0
        %455 = vmatmul.mubr.f32.gmra.mrb[0].mxu0 %v339
        %v456 = vpop.f32.mrb[0].mxu0
        %v457 = vadd.f32 0.0, %v456
        %v458 = vpop.f32.mrb[0].mxu0
        %v459 = vadd.f32 0.0, %v458
        %460 = vdwg.mxu0
        %461 = vmatprep.subr.mxu0 %v352
        %462 = vmatpush1.msra.mxu0 %v349
        %463 = vmatprep.subr.mxu0 0.0
        %464 = vmatpush1.msra.mxu0 0.0
        %465 = vmatprep.subr.mxu0 0.0
        %466 = vmatpush1.msra.mxu0 0.0
        %467 = vmatprep.subr.mxu0 0.0
        %468 = vmatpush1.msra.mxu0 0.0
        %469 = vmatprep.subr.mxu0 0.0
        %470 = vmatpush1.msra.mxu0 0.0
        %471 = vmatprep.subr.mxu0 0.0
        %472 = vmatpush1.msra.mxu0 0.0
        %473 = vmatprep.subr.mxu0 0.0
        %474 = vmatpush1.msra.mxu0 0.0
        %475 = vmatprep.subr.mxu0 0.0
        %476 = vmatpush1.msra.mxu0 0.0
        %477 = vmatprep.subr.mxu0 0.0
        %478 = vmatpush1.msra.mxu0 0.0
        %479 = vmatprep.subr.mxu0 0.0
        %480 = vmatpush1.msra.mxu0 0.0
        %481 = vmatprep.subr.mxu0 0.0
        %482 = vmatpush1.msra.mxu0 0.0
        %483 = vmatprep.subr.mxu0 0.0
        %484 = vmatpush1.msra.mxu0 0.0
        %485 = vmatprep.subr.mxu0 0.0
        %486 = vmatpush1.msra.mxu0 0.0
        %487 = vmatprep.subr.mxu0 0.0
        %488 = vmatpush1.msra.mxu0 0.0
        %489 = vmatprep.subr.mxu0 0.0
        %490 = vmatpush1.msra.mxu0 0.0
        %491 = vmatprep.subr.mxu0 0.0
        %492 = vmatpush1.msra.mxu0 0.0
        %493 = vmatprep.subr.mxu0 0.0
        %494 = vmatpush1.msra.mxu0 0.0
        %495 = vmatprep.subr.mxu0 0.0
        %496 = vmatpush1.msra.mxu0 0.0
        %497 = vmatprep.subr.mxu0 0.0
        %498 = vmatpush1.msra.mxu0 0.0
        %499 = vmatprep.subr.mxu0 0.0
        %500 = vmatpush1.msra.mxu0 0.0
        %501 = vmatprep.subr.mxu0 0.0
        %502 = vmatpush1.msra.mxu0 0.0
        %503 = vmatprep.subr.mxu0 0.0
        %504 = vmatpush1.msra.mxu0 0.0
        %505 = vmatprep.subr.mxu0 0.0
        %506 = vmatpush1.msra.mxu0 0.0
        %507 = vmatprep.subr.mxu0 0.0
        %508 = vmatpush1.msra.mxu0 0.0
        %509 = vmatprep.subr.mxu0 0.0
        %510 = vmatpush1.msra.mxu0 0.0
        %511 = vmatprep.subr.mxu0 0.0
        %512 = vmatpush1.msra.mxu0 0.0
        %513 = vmatprep.subr.mxu0 0.0
        %514 = vmatpush1.msra.mxu0 0.0
        %515 = vmatprep.subr.mxu0 0.0
        %516 = vmatpush1.msra.mxu0 0.0
        %517 = vmatprep.subr.mxu0 0.0
        %518 = vmatpush1.msra.mxu0 0.0
        %519 = vmatprep.subr.mxu0 0.0
        %520 = vmatpush1.msra.mxu0 0.0
        %521 = vmatprep.subr.mxu0 0.0
        %522 = vmatpush1.msra.mxu0 0.0
        %523 = vmatprep.subr.mxu0 0.0
        %524 = vmatpush1.msra.mxu0 0.0
        %525 = vmatprep.mubr.f32.mxu0 0.0
        %526 = vmatmul.mubr.f32.gmra.mrb[0].mxu0 %v339
        %v527 = vpop.f32.mrb[0].mxu0
        %v528 = vadd.f32 0.0, %v527
        %v529 = vpop.f32.mrb[0].mxu0
        %v530 = vadd.f32 0.0, %v529
        %531 = vdwg.mxu0
        %532 = vmatprep.subr.mxu0 %v358
        %533 = vmatpush1.msra.mxu0 %v355
        %534 = vmatprep.subr.mxu0 0.0
        %535 = vmatpush1.msra.mxu0 0.0
        %536 = vmatprep.subr.mxu0 0.0
        %537 = vmatpush1.msra.mxu0 0.0
        %538 = vmatprep.subr.mxu0 0.0
        %539 = vmatpush1.msra.mxu0 0.0
        %540 = vmatprep.subr.mxu0 0.0
        %541 = vmatpush1.msra.mxu0 0.0
        %542 = vmatprep.subr.mxu0 0.0
        %543 = vmatpush1.msra.mxu0 0.0
        %544 = vmatprep.subr.mxu0 0.0
        %545 = vmatpush1.msra.mxu0 0.0
        %546 = vmatprep.subr.mxu0 0.0
        %547 = vmatpush1.msra.mxu0 0.0
        %548 = vmatprep.subr.mxu0 0.0
        %549 = vmatpush1.msra.mxu0 0.0
        %550 = vmatprep.subr.mxu0 0.0
        %551 = vmatpush1.msra.mxu0 0.0
        %552 = vmatprep.subr.mxu0 0.0
        %553 = vmatpush1.msra.mxu0 0.0
        %554 = vmatprep.subr.mxu0 0.0
        %555 = vmatpush1.msra.mxu0 0.0
        %556 = vmatprep.subr.mxu0 0.0
        %557 = vmatpush1.msra.mxu0 0.0
        %558 = vmatprep.subr.mxu0 0.0
        %559 = vmatpush1.msra.mxu0 0.0
        %560 = vmatprep.subr.mxu0 0.0
        %561 = vmatpush1.msra.mxu0 0.0
        %562 = vmatprep.subr.mxu0 0.0
        %563 = vmatpush1.msra.mxu0 0.0
        %564 = vmatprep.subr.mxu0 0.0
        %565 = vmatpush1.msra.mxu0 0.0
        %566 = vmatprep.subr.mxu0 0.0
        %567 = vmatpush1.msra.mxu0 0.0
        %568 = vmatprep.subr.mxu0 0.0
        %569 = vmatpush1.msra.mxu0 0.0
        %570 = vmatprep.subr.mxu0 0.0
        %571 = vmatpush1.msra.mxu0 0.0
        %572 = vmatprep.subr.mxu0 0.0
        %573 = vmatpush1.msra.mxu0 0.0
        %574 = vmatprep.subr.mxu0 0.0
        %575 = vmatpush1.msra.mxu0 0.0
        %576 = vmatprep.subr.mxu0 0.0
        %577 = vmatpush1.msra.mxu0 0.0
        %578 = vmatprep.subr.mxu0 0.0
        %579 = vmatpush1.msra.mxu0 0.0
        %580 = vmatprep.subr.mxu0 0.0
        %581 = vmatpush1.msra.mxu0 0.0
        %582 = vmatprep.subr.mxu0 0.0
        %583 = vmatpush1.msra.mxu0 0.0
        %584 = vmatprep.subr.mxu0 0.0
        %585 = vmatpush1.msra.mxu0 0.0
        %586 = vmatprep.subr.mxu0 0.0
        %587 = vmatpush1.msra.mxu0 0.0
        %588 = vmatprep.subr.mxu0 0.0
        %589 = vmatpush1.msra.mxu0 0.0
        %590 = vmatprep.subr.mxu0 0.0
        %591 = vmatpush1.msra.mxu0 0.0
        %592 = vmatprep.subr.mxu0 0.0
        %593 = vmatpush1.msra.mxu0 0.0
        %594 = vmatprep.subr.mxu0 0.0
        %595 = vmatpush1.msra.mxu0 0.0
        %596 = vmatprep.mubr.f32.mxu0 0.0
        %597 = vmatmul.mubr.f32.gmra.mrb[0].mxu0 %v339
        %v598 = vpop.f32.mrb[0].mxu0
        %v599 = vadd.f32 0.0, %v598
        %v600 = vpop.f32.mrb[0].mxu0
        %v601 = vadd.f32 0.0, %v600
        %602 = vdwg.mxu0
        %603 = vmatprep.subr.mxu0 %v364
        %604 = vmatpush1.msra.mxu0 %v361
        %605 = vmatprep.subr.mxu0 0.0
        %606 = vmatpush1.msra.mxu0 0.0
        %607 = vmatprep.subr.mxu0 0.0
        %608 = vmatpush1.msra.mxu0 0.0
        %609 = vmatprep.subr.mxu0 0.0
        %610 = vmatpush1.msra.mxu0 0.0
        %611 = vmatprep.subr.mxu0 0.0
        %612 = vmatpush1.msra.mxu0 0.0
        %613 = vmatprep.subr.mxu0 0.0
        %614 = vmatpush1.msra.mxu0 0.0
        %615 = vmatprep.subr.mxu0 0.0
        %616 = vmatpush1.msra.mxu0 0.0
        %617 = vmatprep.subr.mxu0 0.0
        %618 = vmatpush1.msra.mxu0 0.0
        %619 = vmatprep.subr.mxu0 0.0
        %620 = vmatpush1.msra.mxu0 0.0
        %621 = vmatprep.subr.mxu0 0.0
        %622 = vmatpush1.msra.mxu0 0.0
        %623 = vmatprep.subr.mxu0 0.0
        %624 = vmatpush1.msra.mxu0 0.0
        %625 = vmatprep.subr.mxu0 0.0
        %626 = vmatpush1.msra.mxu0 0.0
        %627 = vmatprep.subr.mxu0 0.0
        %628 = vmatpush1.msra.mxu0 0.0
        %629 = vmatprep.subr.mxu0 0.0
        %630 = vmatpush1.msra.mxu0 0.0
        %631 = vmatprep.subr.mxu0 0.0
        %632 = vmatpush1.msra.mxu0 0.0
        %633 = vmatprep.subr.mxu0 0.0
        %634 = vmatpush1.msra.mxu0 0.0
        %635 = vmatprep.subr.mxu0 0.0
        %636 = vmatpush1.msra.mxu0 0.0
        %637 = vmatprep.subr.mxu0 0.0
        %638 = vmatpush1.msra.mxu0 0.0
        %639 = vmatprep.subr.mxu0 0.0
        %640 = vmatpush1.msra.mxu0 0.0
        %641 = vmatprep.subr.mxu0 0.0
        %642 = vmatpush1.msra.mxu0 0.0
        %643 = vmatprep.subr.mxu0 0.0
        %644 = vmatpush1.msra.mxu0 0.0
        %645 = vmatprep.subr.mxu0 0.0
        %646 = vmatpush1.msra.mxu0 0.0
        %647 = vmatprep.subr.mxu0 0.0
        %648 = vmatpush1.msra.mxu0 0.0
        %649 = vmatprep.subr.mxu0 0.0
        %650 = vmatpush1.msra.mxu0 0.0
        %651 = vmatprep.subr.mxu0 0.0
        %652 = vmatpush1.msra.mxu0 0.0
        %653 = vmatprep.subr.mxu0 0.0
        %654 = vmatpush1.msra.mxu0 0.0
        %655 = vmatprep.subr.mxu0 0.0
        %656 = vmatpush1.msra.mxu0 0.0
        %657 = vmatprep.subr.mxu0 0.0
        %658 = vmatpush1.msra.mxu0 0.0
        %659 = vmatprep.subr.mxu0 0.0
        %660 = vmatpush1.msra.mxu0 0.0
        %661 = vmatprep.subr.mxu0 0.0
        %662 = vmatpush1.msra.mxu0 0.0
        %663 = vmatprep.subr.mxu0 0.0
        %664 = vmatpush1.msra.mxu0 0.0
        %665 = vmatprep.subr.mxu0 0.0
        %666 = vmatpush1.msra.mxu0 0.0
        %667 = vmatprep.mubr.f32.mxu0 0.0
        %668 = vmatmul.mubr.f32.gmra.mrb[0].mxu0 %v339
        %v669 = vpop.f32.mrb[0].mxu0
        %v670 = vadd.f32 0.0, %v669
        %v671 = vpop.f32.mrb[0].mxu0
        %v672 = vadd.f32 0.0, %v671
        %673 = vdwg.mxu0
        %674 = vmatprep.subr.mxu0 %v370
        %675 = vmatpush1.msra.mxu0 %v367
        %676 = vmatprep.subr.mxu0 0.0
        %677 = vmatpush1.msra.mxu0 0.0
        %678 = vmatprep.subr.mxu0 0.0
        %679 = vmatpush1.msra.mxu0 0.0
        %680 = vmatprep.subr.mxu0 0.0
        %681 = vmatpush1.msra.mxu0 0.0
        %682 = vmatprep.subr.mxu0 0.0
        %683 = vmatpush1.msra.mxu0 0.0
        %684 = vmatprep.subr.mxu0 0.0
        %685 = vmatpush1.msra.mxu0 0.0
        %686 = vmatprep.subr.mxu0 0.0
        %687 = vmatpush1.msra.mxu0 0.0
        %688 = vmatprep.subr.mxu0 0.0
        %689 = vmatpush1.msra.mxu0 0.0
        %690 = vmatprep.subr.mxu0 0.0
        %691 = vmatpush1.msra.mxu0 0.0
        %692 = vmatprep.subr.mxu0 0.0
        %693 = vmatpush1.msra.mxu0 0.0
        %694 = vmatprep.subr.mxu0 0.0
        %695 = vmatpush1.msra.mxu0 0.0
        %696 = vmatprep.subr.mxu0 0.0
        %697 = vmatpush1.msra.mxu0 0.0
        %698 = vmatprep.subr.mxu0 0.0
        %699 = vmatpush1.msra.mxu0 0.0
        %700 = vmatprep.subr.mxu0 0.0
        %701 = vmatpush1.msra.mxu0 0.0
        %702 = vmatprep.subr.mxu0 0.0
        %703 = vmatpush1.msra.mxu0 0.0
        %704 = vmatprep.subr.mxu0 0.0
        %705 = vmatpush1.msra.mxu0 0.0
        %706 = vmatprep.subr.mxu0 0.0
        %707 = vmatpush1.msra.mxu0 0.0
        %708 = vmatprep.subr.mxu0 0.0
        %709 = vmatpush1.msra.mxu0 0.0
        %710 = vmatprep.subr.mxu0 0.0
        %711 = vmatpush1.msra.mxu0 0.0
        %712 = vmatprep.subr.mxu0 0.0
        %713 = vmatpush1.msra.mxu0 0.0
        %714 = vmatprep.subr.mxu0 0.0
        %715 = vmatpush1.msra.mxu0 0.0
        %716 = vmatprep.subr.mxu0 0.0
        %717 = vmatpush1.msra.mxu0 0.0
        %718 = vmatprep.subr.mxu0 0.0
        %719 = vmatpush1.msra.mxu0 0.0
        %720 = vmatprep.subr.mxu0 0.0
        %721 = vmatpush1.msra.mxu0 0.0
        %722 = vmatprep.subr.mxu0 0.0
        %723 = vmatpush1.msra.mxu0 0.0
        %724 = vmatprep.subr.mxu0 0.0
        %725 = vmatpush1.msra.mxu0 0.0
        %726 = vmatprep.subr.mxu0 0.0
        %727 = vmatpush1.msra.mxu0 0.0
        %728 = vmatprep.subr.mxu0 0.0
        %729 = vmatpush1.msra.mxu0 0.0
        %730 = vmatprep.subr.mxu0 0.0
        %731 = vmatpush1.msra.mxu0 0.0
        %732 = vmatprep.subr.mxu0 0.0
        %733 = vmatpush1.msra.mxu0 0.0
        %734 = vmatprep.subr.mxu0 0.0
        %735 = vmatpush1.msra.mxu0 0.0
        %736 = vmatprep.subr.mxu0 0.0
        %737 = vmatpush1.msra.mxu0 0.0
        %738 = vmatprep.mubr.f32.mxu0 0.0
        %739 = vmatmul.mubr.f32.gmra.mrb[0].mxu0 %v339
        %v740 = vpop.f32.mrb[0].mxu0
        %v741 = vadd.f32 0.0, %v740
        %v742 = vpop.f32.mrb[0].mxu0
        %v743 = vadd.f32 0.0, %v742
        %744 = vdwg.mxu0
        %745 = vmatprep.subr.mxu0 %v376
        %746 = vmatpush1.msra.mxu0 %v373
        %747 = vmatprep.subr.mxu0 0.0
        %748 = vmatpush1.msra.mxu0 0.0
        %749 = vmatprep.subr.mxu0 0.0
        %750 = vmatpush1.msra.mxu0 0.0
        %751 = vmatprep.subr.mxu0 0.0
        %752 = vmatpush1.msra.mxu0 0.0
        %753 = vmatprep.subr.mxu0 0.0
        %754 = vmatpush1.msra.mxu0 0.0
        %755 = vmatprep.subr.mxu0 0.0
        %756 = vmatpush1.msra.mxu0 0.0
        %757 = vmatprep.subr.mxu0 0.0
        %758 = vmatpush1.msra.mxu0 0.0
        %759 = vmatprep.subr.mxu0 0.0
        %760 = vmatpush1.msra.mxu0 0.0
        %761 = vmatprep.subr.mxu0 0.0
        %762 = vmatpush1.msra.mxu0 0.0
        %763 = vmatprep.subr.mxu0 0.0
        %764 = vmatpush1.msra.mxu0 0.0
        %765 = vmatprep.subr.mxu0 0.0
        %766 = vmatpush1.msra.mxu0 0.0
        %767 = vmatprep.subr.mxu0 0.0
        %768 = vmatpush1.msra.mxu0 0.0
        %769 = vmatprep.subr.mxu0 0.0
        %770 = vmatpush1.msra.mxu0 0.0
        %771 = vmatprep.subr.mxu0 0.0
        %772 = vmatpush1.msra.mxu0 0.0
        %773 = vmatprep.subr.mxu0 0.0
        %774 = vmatpush1.msra.mxu0 0.0
        %775 = vmatprep.subr.mxu0 0.0
        %776 = vmatpush1.msra.mxu0 0.0
        %777 = vmatprep.subr.mxu0 0.0
        %778 = vmatpush1.msra.mxu0 0.0
        %779 = vmatprep.subr.mxu0 0.0
        %780 = vmatpush1.msra.mxu0 0.0
        %781 = vmatprep.subr.mxu0 0.0
        %782 = vmatpush1.msra.mxu0 0.0
        %783 = vmatprep.subr.mxu0 0.0
        %784 = vmatpush1.msra.mxu0 0.0
        %785 = vmatprep.subr.mxu0 0.0
        %786 = vmatpush1.msra.mxu0 0.0
        %787 = vmatprep.subr.mxu0 0.0
        %788 = vmatpush1.msra.mxu0 0.0
        %789 = vmatprep.subr.mxu0 0.0
        %790 = vmatpush1.msra.mxu0 0.0
        %791 = vmatprep.subr.mxu0 0.0
        %792 = vmatpush1.msra.mxu0 0.0
        %793 = vmatprep.subr.mxu0 0.0
        %794 = vmatpush1.msra.mxu0 0.0
        %795 = vmatprep.subr.mxu0 0.0
        %796 = vmatpush1.msra.mxu0 0.0
        %797 = vmatprep.subr.mxu0 0.0
        %798 = vmatpush1.msra.mxu0 0.0
        %799 = vmatprep.subr.mxu0 0.0
        %800 = vmatpush1.msra.mxu0 0.0
        %801 = vmatprep.subr.mxu0 0.0
        %802 = vmatpush1.msra.mxu0 0.0
        %803 = vmatprep.subr.mxu0 0.0
        %804 = vmatpush1.msra.mxu0 0.0
        %805 = vmatprep.subr.mxu0 0.0
        %806 = vmatpush1.msra.mxu0 0.0
        %807 = vmatprep.subr.mxu0 0.0
        %808 = vmatpush1.msra.mxu0 0.0
        %809 = vmatprep.mubr.f32.mxu0 0.0
        %810 = vmatmul.mubr.f32.gmra.mrb[0].mxu0 %v339
        %v811 = vpop.f32.mrb[0].mxu0
        %v812 = vadd.f32 0.0, %v811
        %v813 = vpop.f32.mrb[0].mxu0
        %v814 = vadd.f32 0.0, %v813
        %815 = vdwg.mxu0
        %816 = vmatprep.subr.mxu0 %v382
        %817 = vmatpush1.msra.mxu0 %v379
        %818 = vmatprep.subr.mxu0 0.0
        %819 = vmatpush1.msra.mxu0 0.0
        %820 = vmatprep.subr.mxu0 0.0
        %821 = vmatpush1.msra.mxu0 0.0
        %822 = vmatprep.subr.mxu0 0.0
        %823 = vmatpush1.msra.mxu0 0.0
        %824 = vmatprep.subr.mxu0 0.0
        %825 = vmatpush1.msra.mxu0 0.0
        %826 = vmatprep.subr.mxu0 0.0
        %827 = vmatpush1.msra.mxu0 0.0
        %828 = vmatprep.subr.mxu0 0.0
        %829 = vmatpush1.msra.mxu0 0.0
        %830 = vmatprep.subr.mxu0 0.0
        %831 = vmatpush1.msra.mxu0 0.0
        %832 = vmatprep.subr.mxu0 0.0
        %833 = vmatpush1.msra.mxu0 0.0
        %834 = vmatprep.subr.mxu0 0.0
        %835 = vmatpush1.msra.mxu0 0.0
        %836 = vmatprep.subr.mxu0 0.0
        %837 = vmatpush1.msra.mxu0 0.0
        %838 = vmatprep.subr.mxu0 0.0
        %839 = vmatpush1.msra.mxu0 0.0
        %840 = vmatprep.subr.mxu0 0.0
        %841 = vmatpush1.msra.mxu0 0.0
        %842 = vmatprep.subr.mxu0 0.0
        %843 = vmatpush1.msra.mxu0 0.0
        %844 = vmatprep.subr.mxu0 0.0
        %845 = vmatpush1.msra.mxu0 0.0
        %846 = vmatprep.subr.mxu0 0.0
        %847 = vmatpush1.msra.mxu0 0.0
        %848 = vmatprep.subr.mxu0 0.0
        %849 = vmatpush1.msra.mxu0 0.0
        %850 = vmatprep.subr.mxu0 0.0
        %851 = vmatpush1.msra.mxu0 0.0
        %852 = vmatprep.subr.mxu0 0.0
        %853 = vmatpush1.msra.mxu0 0.0
        %854 = vmatprep.subr.mxu0 0.0
        %855 = vmatpush1.msra.mxu0 0.0
        %856 = vmatprep.subr.mxu0 0.0
        %857 = vmatpush1.msra.mxu0 0.0
        %858 = vmatprep.subr.mxu0 0.0
        %859 = vmatpush1.msra.mxu0 0.0
        %860 = vmatprep.subr.mxu0 0.0
        %861 = vmatpush1.msra.mxu0 0.0
        %862 = vmatprep.subr.mxu0 0.0
        %863 = vmatpush1.msra.mxu0 0.0
        %864 = vmatprep.subr.mxu0 0.0
        %865 = vmatpush1.msra.mxu0 0.0
        %866 = vmatprep.subr.mxu0 0.0
        %867 = vmatpush1.msra.mxu0 0.0
        %868 = vmatprep.subr.mxu0 0.0
        %869 = vmatpush1.msra.mxu0 0.0
        %870 = vmatprep.subr.mxu0 0.0
        %871 = vmatpush1.msra.mxu0 0.0
        %872 = vmatprep.subr.mxu0 0.0
        %873 = vmatpush1.msra.mxu0 0.0
        %874 = vmatprep.subr.mxu0 0.0
        %875 = vmatpush1.msra.mxu0 0.0
        %876 = vmatprep.subr.mxu0 0.0
        %877 = vmatpush1.msra.mxu0 0.0
        %878 = vmatprep.subr.mxu0 0.0
        %879 = vmatpush1.msra.mxu0 0.0
        %880 = vmatprep.mubr.f32.mxu0 0.0
        %881 = vmatmul.mubr.f32.gmra.mrb[0].mxu0 %v339
        %v882 = vpop.f32.mrb[0].mxu0
        %v883 = vadd.f32 0.0, %v882
        %v884 = vpop.f32.mrb[0].mxu0
        %v885 = vadd.f32 0.0, %v884
        %886 = vdwg.mxu0
        %887 = vmatprep.subr.mxu0 %v388
        %888 = vmatpush1.msra.mxu0 %v385
        %889 = vmatprep.subr.mxu0 0.0
        %890 = vmatpush1.msra.mxu0 0.0
        %891 = vmatprep.subr.mxu0 0.0
        %892 = vmatpush1.msra.mxu0 0.0
        %893 = vmatprep.subr.mxu0 0.0
        %894 = vmatpush1.msra.mxu0 0.0
        %895 = vmatprep.subr.mxu0 0.0
        %896 = vmatpush1.msra.mxu0 0.0
        %897 = vmatprep.subr.mxu0 0.0
        %898 = vmatpush1.msra.mxu0 0.0
        %899 = vmatprep.subr.mxu0 0.0
        %900 = vmatpush1.msra.mxu0 0.0
        %901 = vmatprep.subr.mxu0 0.0
        %902 = vmatpush1.msra.mxu0 0.0
        %903 = vmatprep.subr.mxu0 0.0
        %904 = vmatpush1.msra.mxu0 0.0
        %905 = vmatprep.subr.mxu0 0.0
        %906 = vmatpush1.msra.mxu0 0.0
        %907 = vmatprep.subr.mxu0 0.0
        %908 = vmatpush1.msra.mxu0 0.0
        %909 = vmatprep.subr.mxu0 0.0
        %910 = vmatpush1.msra.mxu0 0.0
        %911 = vmatprep.subr.mxu0 0.0
        %912 = vmatpush1.msra.mxu0 0.0
        %913 = vmatprep.subr.mxu0 0.0
        %914 = vmatpush1.msra.mxu0 0.0
        %915 = vmatprep.subr.mxu0 0.0
        %916 = vmatpush1.msra.mxu0 0.0
        %917 = vmatprep.subr.mxu0 0.0
        %918 = vmatpush1.msra.mxu0 0.0
        %919 = vmatprep.subr.mxu0 0.0
        %920 = vmatpush1.msra.mxu0 0.0
        %921 = vmatprep.subr.mxu0 0.0
        %922 = vmatpush1.msra.mxu0 0.0
        %923 = vmatprep.subr.mxu0 0.0
        %924 = vmatpush1.msra.mxu0 0.0
        %925 = vmatprep.subr.mxu0 0.0
        %926 = vmatpush1.msra.mxu0 0.0
        %927 = vmatprep.subr.mxu0 0.0
        %928 = vmatpush1.msra.mxu0 0.0
        %929 = vmatprep.subr.mxu0 0.0
        %930 = vmatpush1.msra.mxu0 0.0
        %931 = vmatprep.subr.mxu0 0.0
        %932 = vmatpush1.msra.mxu0 0.0
        %933 = vmatprep.subr.mxu0 0.0
        %934 = vmatpush1.msra.mxu0 0.0
        %935 = vmatprep.subr.mxu0 0.0
        %936 = vmatpush1.msra.mxu0 0.0
        %937 = vmatprep.subr.mxu0 0.0
        %938 = vmatpush1.msra.mxu0 0.0
        %939 = vmatprep.subr.mxu0 0.0
        %940 = vmatpush1.msra.mxu0 0.0
        %941 = vmatprep.subr.mxu0 0.0
        %942 = vmatpush1.msra.mxu0 0.0
        %943 = vmatprep.subr.mxu0 0.0
        %944 = vmatpush1.msra.mxu0 0.0
        %945 = vmatprep.subr.mxu0 0.0
        %946 = vmatpush1.msra.mxu0 0.0
        %947 = vmatprep.subr.mxu0 0.0
        %948 = vmatpush1.msra.mxu0 0.0
        %949 = vmatprep.subr.mxu0 0.0
        %950 = vmatpush1.msra.mxu0 0.0
        %951 = vmatprep.mubr.f32.mxu0 0.0
        %952 = vmatmul.mubr.f32.gmra.mrb[0].mxu0 %v339
        %v953 = vpop.f32.mrb[0].mxu0
        %v954 = vadd.f32 0.0, %v953
        %v955 = vpop.f32.mrb[0].mxu0
        %v956 = vadd.f32 0.0, %v955
        %957 = vdwg.mxu0
        %v959 = vsel %vm337, %v210, 0
        %v961 = vsel %vm341, %v202, 0
        %v963 = vsel %vm341, %v219, 0
        %v965 = vsel %vm341, %v203, 0
        %v967 = vsel %vm341, %v220, 0
        %v969 = vsel %vm341, %v204, 0
        %v971 = vsel %vm341, %v221, 0
        %v973 = vsel %vm341, %v205, 0
        %v975 = vsel %vm341, %v222, 0
        %v977 = vsel %vm341, %v206, 0
        %v979 = vsel %vm341, %v223, 0
        %v981 = vsel %vm341, %v207, 0
        %v983 = vsel %vm341, %v224, 0
        %v985 = vsel %vm341, %v208, 0
        %v987 = vsel %vm341, %v225, 0
        %v989 = vsel %vm341, %v209, 0
        %v991 = vsel %vm341, %v226, 0
        %993 = vmatprep.subr.mxu0 %v963
        %994 = vmatpush1.msra.mxu0 %v961
        %995 = vmatprep.subr.mxu0 0.0
        %996 = vmatpush1.msra.mxu0 0.0
        %997 = vmatprep.subr.mxu0 0.0
        %998 = vmatpush1.msra.mxu0 0.0
        %999 = vmatprep.subr.mxu0 0.0
        %1000 = vmatpush1.msra.mxu0 0.0
        %1001 = vmatprep.subr.mxu0 0.0
        %1002 = vmatpush1.msra.mxu0 0.0
        %1003 = vmatprep.subr.mxu0 0.0
        %1004 = vmatpush1.msra.mxu0 0.0
        %1005 = vmatprep.subr.mxu0 0.0
        %1006 = vmatpush1.msra.mxu0 0.0
        %1007 = vmatprep.subr.mxu0 0.0
        %1008 = vmatpush1.msra.mxu0 0.0
        %1009 = vmatprep.subr.mxu0 0.0
        %1010 = vmatpush1.msra.mxu0 0.0
        %1011 = vmatprep.subr.mxu0 0.0
        %1012 = vmatpush1.msra.mxu0 0.0
        %1013 = vmatprep.subr.mxu0 0.0
        %1014 = vmatpush1.msra.mxu0 0.0
        %1015 = vmatprep.subr.mxu0 0.0
        %1016 = vmatpush1.msra.mxu0 0.0
        %1017 = vmatprep.subr.mxu0 0.0
        %1018 = vmatpush1.msra.mxu0 0.0
        %1019 = vmatprep.subr.mxu0 0.0
        %1020 = vmatpush1.msra.mxu0 0.0
        %1021 = vmatprep.subr.mxu0 0.0
        %1022 = vmatpush1.msra.mxu0 0.0
        %1023 = vmatprep.subr.mxu0 0.0
        %1024 = vmatpush1.msra.mxu0 0.0
        %1025 = vmatprep.subr.mxu0 0.0
        %1026 = vmatpush1.msra.mxu0 0.0
        %1027 = vmatprep.subr.mxu0 0.0
        %1028 = vmatpush1.msra.mxu0 0.0
        %1029 = vmatprep.subr.mxu0 0.0
        %1030 = vmatpush1.msra.mxu0 0.0
        %1031 = vmatprep.subr.mxu0 0.0
        %1032 = vmatpush1.msra.mxu0 0.0
        %1033 = vmatprep.subr.mxu0 0.0
        %1034 = vmatpush1.msra.mxu0 0.0
        %1035 = vmatprep.subr.mxu0 0.0
        %1036 = vmatpush1.msra.mxu0 0.0
        %1037 = vmatprep.subr.mxu0 0.0
        %1038 = vmatpush1.msra.mxu0 0.0
        %1039 = vmatprep.subr.mxu0 0.0
        %1040 = vmatpush1.msra.mxu0 0.0
        %1041 = vmatprep.subr.mxu0 0.0
        %1042 = vmatpush1.msra.mxu0 0.0
        %1043 = vmatprep.subr.mxu0 0.0
        %1044 = vmatpush1.msra.mxu0 0.0
        %1045 = vmatprep.subr.mxu0 0.0
        %1046 = vmatpush1.msra.mxu0 0.0
        %1047 = vmatprep.subr.mxu0 0.0
        %1048 = vmatpush1.msra.mxu0 0.0
        %1049 = vmatprep.subr.mxu0 0.0
        %1050 = vmatpush1.msra.mxu0 0.0
        %1051 = vmatprep.subr.mxu0 0.0
        %1052 = vmatpush1.msra.mxu0 0.0
        %1053 = vmatprep.subr.mxu0 0.0
        %1054 = vmatpush1.msra.mxu0 0.0
        %1055 = vmatprep.subr.mxu0 0.0
        %1056 = vmatpush1.msra.mxu0 0.0
        %1057 = vmatprep.mubr.f32.mxu0 0.0
        %1058 = vmatmul.mubr.f32.gmra.mrb[0].mxu0 %v959
        %v1059 = vpop.f32.mrb[0].mxu0
        %v1060 = vadd.f32 %v457, %v1059
        %v1061 = vpop.f32.mrb[0].mxu0
        %v1062 = vadd.f32 %v459, %v1061
        %1063 = vdwg.mxu0
        %1064 = vmatprep.subr.mxu0 %v967
        %1065 = vmatpush1.msra.mxu0 %v965
        %1066 = vmatprep.subr.mxu0 0.0
        %1067 = vmatpush1.msra.mxu0 0.0
        %1068 = vmatprep.subr.mxu0 0.0
        %1069 = vmatpush1.msra.mxu0 0.0
        %1070 = vmatprep.subr.mxu0 0.0
        %1071 = vmatpush1.msra.mxu0 0.0
        %1072 = vmatprep.subr.mxu0 0.0
        %1073 = vmatpush1.msra.mxu0 0.0
        %1074 = vmatprep.subr.mxu0 0.0
        %1075 = vmatpush1.msra.mxu0 0.0
        %1076 = vmatprep.subr.mxu0 0.0
        %1077 = vmatpush1.msra.mxu0 0.0
        %1078 = vmatprep.subr.mxu0 0.0
        %1079 = vmatpush1.msra.mxu0 0.0
        %1080 = vmatprep.subr.mxu0 0.0
        %1081 = vmatpush1.msra.mxu0 0.0
        %1082 = vmatprep.subr.mxu0 0.0
        %1083 = vmatpush1.msra.mxu0 0.0
        %1084 = vmatprep.subr.mxu0 0.0
        %1085 = vmatpush1.msra.mxu0 0.0
        %1086 = vmatprep.subr.mxu0 0.0
        %1087 = vmatpush1.msra.mxu0 0.0
        %1088 = vmatprep.subr.mxu0 0.0
        %1089 = vmatpush1.msra.mxu0 0.0
        %1090 = vmatprep.subr.mxu0 0.0
        %1091 = vmatpush1.msra.mxu0 0.0
        %1092 = vmatprep.subr.mxu0 0.0
        %1093 = vmatpush1.msra.mxu0 0.0
        %1094 = vmatprep.subr.mxu0 0.0
        %1095 = vmatpush1.msra.mxu0 0.0
        %1096 = vmatprep.subr.mxu0 0.0
        %1097 = vmatpush1.msra.mxu0 0.0
        %1098 = vmatprep.subr.mxu0 0.0
        %1099 = vmatpush1.msra.mxu0 0.0
        %1100 = vmatprep.subr.mxu0 0.0
        %1101 = vmatpush1.msra.mxu0 0.0
        %1102 = vmatprep.subr.mxu0 0.0
        %1103 = vmatpush1.msra.mxu0 0.0
        %1104 = vmatprep.subr.mxu0 0.0
        %1105 = vmatpush1.msra.mxu0 0.0
        %1106 = vmatprep.subr.mxu0 0.0
        %1107 = vmatpush1.msra.mxu0 0.0
        %1108 = vmatprep.subr.mxu0 0.0
        %1109 = vmatpush1.msra.mxu0 0.0
        %1110 = vmatprep.subr.mxu0 0.0
        %1111 = vmatpush1.msra.mxu0 0.0
        %1112 = vmatprep.subr.mxu0 0.0
        %1113 = vmatpush1.msra.mxu0 0.0
        %1114 = vmatprep.subr.mxu0 0.0
        %1115 = vmatpush1.msra.mxu0 0.0
        %1116 = vmatprep.subr.mxu0 0.0
        %1117 = vmatpush1.msra.mxu0 0.0
        %1118 = vmatprep.subr.mxu0 0.0
        %1119 = vmatpush1.msra.mxu0 0.0
        %1120 = vmatprep.subr.mxu0 0.0
        %1121 = vmatpush1.msra.mxu0 0.0
        %1122 = vmatprep.subr.mxu0 0.0
        %1123 = vmatpush1.msra.mxu0 0.0
        %1124 = vmatprep.subr.mxu0 0.0
        %1125 = vmatpush1.msra.mxu0 0.0
        %1126 = vmatprep.subr.mxu0 0.0
        %1127 = vmatpush1.msra.mxu0 0.0
        %1128 = vmatprep.mubr.f32.mxu0 0.0
        %1129 = vmatmul.mubr.f32.gmra.mrb[0].mxu0 %v959
        %v1130 = vpop.f32.mrb[0].mxu0
        %v1131 = vadd.f32 %v528, %v1130
        %v1132 = vpop.f32.mrb[0].mxu0
        %v1133 = vadd.f32 %v530, %v1132
        %1134 = vdwg.mxu0
        %1135 = vmatprep.subr.mxu0 %v971
        %1136 = vmatpush1.msra.mxu0 %v969
        %1137 = vmatprep.subr.mxu0 0.0
        %1138 = vmatpush1.msra.mxu0 0.0
        %1139 = vmatprep.subr.mxu0 0.0
        %1140 = vmatpush1.msra.mxu0 0.0
        %1141 = vmatprep.subr.mxu0 0.0
        %1142 = vmatpush1.msra.mxu0 0.0
        %1143 = vmatprep.subr.mxu0 0.0
        %1144 = vmatpush1.msra.mxu0 0.0
        %1145 = vmatprep.subr.mxu0 0.0
        %1146 = vmatpush1.msra.mxu0 0.0
        %1147 = vmatprep.subr.mxu0 0.0
        %1148 = vmatpush1.msra.mxu0 0.0
        %1149 = vmatprep.subr.mxu0 0.0
        %1150 = vmatpush1.msra.mxu0 0.0
        %1151 = vmatprep.subr.mxu0 0.0
        %1152 = vmatpush1.msra.mxu0 0.0
        %1153 = vmatprep.subr.mxu0 0.0
        %1154 = vmatpush1.msra.mxu0 0.0
        %1155 = vmatprep.subr.mxu0 0.0
        %1156 = vmatpush1.msra.mxu0 0.0
        %1157 = vmatprep.subr.mxu0 0.0
        %1158 = vmatpush1.msra.mxu0 0.0
        %1159 = vmatprep.subr.mxu0 0.0
        %1160 = vmatpush1.msra.mxu0 0.0
        %1161 = vmatprep.subr.mxu0 0.0
        %1162 = vmatpush1.msra.mxu0 0.0
        %1163 = vmatprep.subr.mxu0 0.0
        %1164 = vmatpush1.msra.mxu0 0.0
        %1165 = vmatprep.subr.mxu0 0.0
        %1166 = vmatpush1.msra.mxu0 0.0
        %1167 = vmatprep.subr.mxu0 0.0
        %1168 = vmatpush1.msra.mxu0 0.0
        %1169 = vmatprep.subr.mxu0 0.0
        %1170 = vmatpush1.msra.mxu0 0.0
        %1171 = vmatprep.subr.mxu0 0.0
        %1172 = vmatpush1.msra.mxu0 0.0
        %1173 = vmatprep.subr.mxu0 0.0
        %1174 = vmatpush1.msra.mxu0 0.0
        %1175 = vmatprep.subr.mxu0 0.0
        %1176 = vmatpush1.msra.mxu0 0.0
        %1177 = vmatprep.subr.mxu0 0.0
        %1178 = vmatpush1.msra.mxu0 0.0
        %1179 = vmatprep.subr.mxu0 0.0
        %1180 = vmatpush1.msra.mxu0 0.0
        %1181 = vmatprep.subr.mxu0 0.0
        %1182 = vmatpush1.msra.mxu0 0.0
        %1183 = vmatprep.subr.mxu0 0.0
        %1184 = vmatpush1.msra.mxu0 0.0
        %1185 = vmatprep.subr.mxu0 0.0
        %1186 = vmatpush1.msra.mxu0 0.0
        %1187 = vmatprep.subr.mxu0 0.0
        %1188 = vmatpush1.msra.mxu0 0.0
        %1189 = vmatprep.subr.mxu0 0.0
        %1190 = vmatpush1.msra.mxu0 0.0
        %1191 = vmatprep.subr.mxu0 0.0
        %1192 = vmatpush1.msra.mxu0 0.0
        %1193 = vmatprep.subr.mxu0 0.0
        %1194 = vmatpush1.msra.mxu0 0.0
        %1195 = vmatprep.subr.mxu0 0.0
        %1196 = vmatpush1.msra.mxu0 0.0
        %1197 = vmatprep.subr.mxu0 0.0
        %1198 = vmatpush1.msra.mxu0 0.0
        %1199 = vmatprep.mubr.f32.mxu0 0.0
        %1200 = vmatmul.mubr.f32.gmra.mrb[0].mxu0 %v959
        %v1201 = vpop.f32.mrb[0].mxu0
        %v1202 = vadd.f32 %v599, %v1201
        %v1203 = vpop.f32.mrb[0].mxu0
        %v1204 = vadd.f32 %v601, %v1203
        %1205 = vdwg.mxu0
        %1206 = vmatprep.subr.mxu0 %v975
        %1207 = vmatpush1.msra.mxu0 %v973
        %1208 = vmatprep.subr.mxu0 0.0
        %1209 = vmatpush1.msra.mxu0 0.0
        %1210 = vmatprep.subr.mxu0 0.0
        %1211 = vmatpush1.msra.mxu0 0.0
        %1212 = vmatprep.subr.mxu0 0.0
        %1213 = vmatpush1.msra.mxu0 0.0
        %1214 = vmatprep.subr.mxu0 0.0
        %1215 = vmatpush1.msra.mxu0 0.0
        %1216 = vmatprep.subr.mxu0 0.0
        %1217 = vmatpush1.msra.mxu0 0.0
        %1218 = vmatprep.subr.mxu0 0.0
        %1219 = vmatpush1.msra.mxu0 0.0
        %1220 = vmatprep.subr.mxu0 0.0
        %1221 = vmatpush1.msra.mxu0 0.0
        %1222 = vmatprep.subr.mxu0 0.0
        %1223 = vmatpush1.msra.mxu0 0.0
        %1224 = vmatprep.subr.mxu0 0.0
        %1225 = vmatpush1.msra.mxu0 0.0
        %1226 = vmatprep.subr.mxu0 0.0
        %1227 = vmatpush1.msra.mxu0 0.0
        %1228 = vmatprep.subr.mxu0 0.0
        %1229 = vmatpush1.msra.mxu0 0.0
        %1230 = vmatprep.subr.mxu0 0.0
        %1231 = vmatpush1.msra.mxu0 0.0
        %1232 = vmatprep.subr.mxu0 0.0
        %1233 = vmatpush1.msra.mxu0 0.0
        %1234 = vmatprep.subr.mxu0 0.0
        %1235 = vmatpush1.msra.mxu0 0.0
        %1236 = vmatprep.subr.mxu0 0.0
        %1237 = vmatpush1.msra.mxu0 0.0
        %1238 = vmatprep.subr.mxu0 0.0
        %1239 = vmatpush1.msra.mxu0 0.0
        %1240 = vmatprep.subr.mxu0 0.0
        %1241 = vmatpush1.msra.mxu0 0.0
        %1242 = vmatprep.subr.mxu0 0.0
        %1243 = vmatpush1.msra.mxu0 0.0
        %1244 = vmatprep.subr.mxu0 0.0
        %1245 = vmatpush1.msra.mxu0 0.0
        %1246 = vmatprep.subr.mxu0 0.0
        %1247 = vmatpush1.msra.mxu0 0.0
        %1248 = vmatprep.subr.mxu0 0.0
        %1249 = vmatpush1.msra.mxu0 0.0
        %1250 = vmatprep.subr.mxu0 0.0
        %1251 = vmatpush1.msra.mxu0 0.0
        %1252 = vmatprep.subr.mxu0 0.0
        %1253 = vmatpush1.msra.mxu0 0.0
        %1254 = vmatprep.subr.mxu0 0.0
        %1255 = vmatpush1.msra.mxu0 0.0
        %1256 = vmatprep.subr.mxu0 0.0
        %1257 = vmatpush1.msra.mxu0 0.0
        %1258 = vmatprep.subr.mxu0 0.0
        %1259 = vmatpush1.msra.mxu0 0.0
        %1260 = vmatprep.subr.mxu0 0.0
        %1261 = vmatpush1.msra.mxu0 0.0
        %1262 = vmatprep.subr.mxu0 0.0
        %1263 = vmatpush1.msra.mxu0 0.0
        %1264 = vmatprep.subr.mxu0 0.0
        %1265 = vmatpush1.msra.mxu0 0.0
        %1266 = vmatprep.subr.mxu0 0.0
        %1267 = vmatpush1.msra.mxu0 0.0
        %1268 = vmatprep.subr.mxu0 0.0
        %1269 = vmatpush1.msra.mxu0 0.0
        %1270 = vmatprep.mubr.f32.mxu0 0.0
        %1271 = vmatmul.mubr.f32.gmra.mrb[0].mxu0 %v959
        %v1272 = vpop.f32.mrb[0].mxu0
        %v1273 = vadd.f32 %v670, %v1272
        %v1274 = vpop.f32.mrb[0].mxu0
        %v1275 = vadd.f32 %v672, %v1274
        %1276 = vdwg.mxu0
        %1277 = vmatprep.subr.mxu0 %v979
        %1278 = vmatpush1.msra.mxu0 %v977
        %1279 = vmatprep.subr.mxu0 0.0
        %1280 = vmatpush1.msra.mxu0 0.0
        %1281 = vmatprep.subr.mxu0 0.0
        %1282 = vmatpush1.msra.mxu0 0.0
        %1283 = vmatprep.subr.mxu0 0.0
        %1284 = vmatpush1.msra.mxu0 0.0
        %1285 = vmatprep.subr.mxu0 0.0
        %1286 = vmatpush1.msra.mxu0 0.0
        %1287 = vmatprep.subr.mxu0 0.0
        %1288 = vmatpush1.msra.mxu0 0.0
        %1289 = vmatprep.subr.mxu0 0.0
        %1290 = vmatpush1.msra.mxu0 0.0
        %1291 = vmatprep.subr.mxu0 0.0
        %1292 = vmatpush1.msra.mxu0 0.0
        %1293 = vmatprep.subr.mxu0 0.0
        %1294 = vmatpush1.msra.mxu0 0.0
        %1295 = vmatprep.subr.mxu0 0.0
        %1296 = vmatpush1.msra.mxu0 0.0
        %1297 = vmatprep.subr.mxu0 0.0
        %1298 = vmatpush1.msra.mxu0 0.0
        %1299 = vmatprep.subr.mxu0 0.0
        %1300 = vmatpush1.msra.mxu0 0.0
        %1301 = vmatprep.subr.mxu0 0.0
        %1302 = vmatpush1.msra.mxu0 0.0
        %1303 = vmatprep.subr.mxu0 0.0
        %1304 = vmatpush1.msra.mxu0 0.0
        %1305 = vmatprep.subr.mxu0 0.0
        %1306 = vmatpush1.msra.mxu0 0.0
        %1307 = vmatprep.subr.mxu0 0.0
        %1308 = vmatpush1.msra.mxu0 0.0
        %1309 = vmatprep.subr.mxu0 0.0
        %1310 = vmatpush1.msra.mxu0 0.0
        %1311 = vmatprep.subr.mxu0 0.0
        %1312 = vmatpush1.msra.mxu0 0.0
        %1313 = vmatprep.subr.mxu0 0.0
        %1314 = vmatpush1.msra.mxu0 0.0
        %1315 = vmatprep.subr.mxu0 0.0
        %1316 = vmatpush1.msra.mxu0 0.0
        %1317 = vmatprep.subr.mxu0 0.0
        %1318 = vmatpush1.msra.mxu0 0.0
        %1319 = vmatprep.subr.mxu0 0.0
        %1320 = vmatpush1.msra.mxu0 0.0
        %1321 = vmatprep.subr.mxu0 0.0
        %1322 = vmatpush1.msra.mxu0 0.0
        %1323 = vmatprep.subr.mxu0 0.0
        %1324 = vmatpush1.msra.mxu0 0.0
        %1325 = vmatprep.subr.mxu0 0.0
        %1326 = vmatpush1.msra.mxu0 0.0
        %1327 = vmatprep.subr.mxu0 0.0
        %1328 = vmatpush1.msra.mxu0 0.0
        %1329 = vmatprep.subr.mxu0 0.0
        %1330 = vmatpush1.msra.mxu0 0.0
        %1331 = vmatprep.subr.mxu0 0.0
        %1332 = vmatpush1.msra.mxu0 0.0
        %1333 = vmatprep.subr.mxu0 0.0
        %1334 = vmatpush1.msra.mxu0 0.0
        %1335 = vmatprep.subr.mxu0 0.0
        %1336 = vmatpush1.msra.mxu0 0.0
        %1337 = vmatprep.subr.mxu0 0.0
        %1338 = vmatpush1.msra.mxu0 0.0
        %1339 = vmatprep.subr.mxu0 0.0
        %1340 = vmatpush1.msra.mxu0 0.0
        %1341 = vmatprep.mubr.f32.mxu0 0.0
        %1342 = vmatmul.mubr.f32.gmra.mrb[0].mxu0 %v959
        %v1343 = vpop.f32.mrb[0].mxu0
        %v1344 = vadd.f32 %v741, %v1343
        %v1345 = vpop.f32.mrb[0].mxu0
        %v1346 = vadd.f32 %v743, %v1345
        %1347 = vdwg.mxu0
        %1348 = vmatprep.subr.mxu0 %v983
        %1349 = vmatpush1.msra.mxu0 %v981
        %1350 = vmatprep.subr.mxu0 0.0
        %1351 = vmatpush1.msra.mxu0 0.0
        %1352 = vmatprep.subr.mxu0 0.0
        %1353 = vmatpush1.msra.mxu0 0.0
        %1354 = vmatprep.subr.mxu0 0.0
        %1355 = vmatpush1.msra.mxu0 0.0
        %1356 = vmatprep.subr.mxu0 0.0
        %1357 = vmatpush1.msra.mxu0 0.0
        %1358 = vmatprep.subr.mxu0 0.0
        %1359 = vmatpush1.msra.mxu0 0.0
        %1360 = vmatprep.subr.mxu0 0.0
        %1361 = vmatpush1.msra.mxu0 0.0
        %1362 = vmatprep.subr.mxu0 0.0
        %1363 = vmatpush1.msra.mxu0 0.0
        %1364 = vmatprep.subr.mxu0 0.0
        %1365 = vmatpush1.msra.mxu0 0.0
        %1366 = vmatprep.subr.mxu0 0.0
        %1367 = vmatpush1.msra.mxu0 0.0
        %1368 = vmatprep.subr.mxu0 0.0
        %1369 = vmatpush1.msra.mxu0 0.0
        %1370 = vmatprep.subr.mxu0 0.0
        %1371 = vmatpush1.msra.mxu0 0.0
        %1372 = vmatprep.subr.mxu0 0.0
        %1373 = vmatpush1.msra.mxu0 0.0
        %1374 = vmatprep.subr.mxu0 0.0
        %1375 = vmatpush1.msra.mxu0 0.0
        %1376 = vmatprep.subr.mxu0 0.0
        %1377 = vmatpush1.msra.mxu0 0.0
        %1378 = vmatprep.subr.mxu0 0.0
        %1379 = vmatpush1.msra.mxu0 0.0
        %1380 = vmatprep.subr.mxu0 0.0
        %1381 = vmatpush1.msra.mxu0 0.0
        %1382 = vmatprep.subr.mxu0 0.0
        %1383 = vmatpush1.msra.mxu0 0.0
        %1384 = vmatprep.subr.mxu0 0.0
        %1385 = vmatpush1.msra.mxu0 0.0
        %1386 = vmatprep.subr.mxu0 0.0
        %1387 = vmatpush1.msra.mxu0 0.0
        %1388 = vmatprep.subr.mxu0 0.0
        %1389 = vmatpush1.msra.mxu0 0.0
        %1390 = vmatprep.subr.mxu0 0.0
        %1391 = vmatpush1.msra.mxu0 0.0
        %1392 = vmatprep.subr.mxu0 0.0
        %1393 = vmatpush1.msra.mxu0 0.0
        %1394 = vmatprep.subr.mxu0 0.0
        %1395 = vmatpush1.msra.mxu0 0.0
        %1396 = vmatprep.subr.mxu0 0.0
        %1397 = vmatpush1.msra.mxu0 0.0
        %1398 = vmatprep.subr.mxu0 0.0
        %1399 = vmatpush1.msra.mxu0 0.0
        %1400 = vmatprep.subr.mxu0 0.0
        %1401 = vmatpush1.msra.mxu0 0.0
        %1402 = vmatprep.subr.mxu0 0.0
        %1403 = vmatpush1.msra.mxu0 0.0
        %1404 = vmatprep.subr.mxu0 0.0
        %1405 = vmatpush1.msra.mxu0 0.0
        %1406 = vmatprep.subr.mxu0 0.0
        %1407 = vmatpush1.msra.mxu0 0.0
        %1408 = vmatprep.subr.mxu0 0.0
        %1409 = vmatpush1.msra.mxu0 0.0
        %1410 = vmatprep.subr.mxu0 0.0
        %1411 = vmatpush1.msra.mxu0 0.0
        %1412 = vmatprep.mubr.f32.mxu0 0.0
        %1413 = vmatmul.mubr.f32.gmra.mrb[0].mxu0 %v959
        %v1414 = vpop.f32.mrb[0].mxu0
        %v1415 = vadd.f32 %v812, %v1414
        %v1416 = vpop.f32.mrb[0].mxu0
        %v1417 = vadd.f32 %v814, %v1416
        %1418 = vdwg.mxu0
        %1419 = vmatprep.subr.mxu0 %v987
        %1420 = vmatpush1.msra.mxu0 %v985
        %1421 = vmatprep.subr.mxu0 0.0
        %1422 = vmatpush1.msra.mxu0 0.0
        %1423 = vmatprep.subr.mxu0 0.0
        %1424 = vmatpush1.msra.mxu0 0.0
        %1425 = vmatprep.subr.mxu0 0.0
        %1426 = vmatpush1.msra.mxu0 0.0
        %1427 = vmatprep.subr.mxu0 0.0
        %1428 = vmatpush1.msra.mxu0 0.0
        %1429 = vmatprep.subr.mxu0 0.0
        %1430 = vmatpush1.msra.mxu0 0.0
        %1431 = vmatprep.subr.mxu0 0.0
        %1432 = vmatpush1.msra.mxu0 0.0
        %1433 = vmatprep.subr.mxu0 0.0
        %1434 = vmatpush1.msra.mxu0 0.0
        %1435 = vmatprep.subr.mxu0 0.0
        %1436 = vmatpush1.msra.mxu0 0.0
        %1437 = vmatprep.subr.mxu0 0.0
        %1438 = vmatpush1.msra.mxu0 0.0
        %1439 = vmatprep.subr.mxu0 0.0
        %1440 = vmatpush1.msra.mxu0 0.0
        %1441 = vmatprep.subr.mxu0 0.0
        %1442 = vmatpush1.msra.mxu0 0.0
        %1443 = vmatprep.subr.mxu0 0.0
        %1444 = vmatpush1.msra.mxu0 0.0
        %1445 = vmatprep.subr.mxu0 0.0
        %1446 = vmatpush1.msra.mxu0 0.0
        %1447 = vmatprep.subr.mxu0 0.0
        %1448 = vmatpush1.msra.mxu0 0.0
        %1449 = vmatprep.subr.mxu0 0.0
        %1450 = vmatpush1.msra.mxu0 0.0
        %1451 = vmatprep.subr.mxu0 0.0
        %1452 = vmatpush1.msra.mxu0 0.0
        %1453 = vmatprep.subr.mxu0 0.0
        %1454 = vmatpush1.msra.mxu0 0.0
        %1455 = vmatprep.subr.mxu0 0.0
        %1456 = vmatpush1.msra.mxu0 0.0
        %1457 = vmatprep.subr.mxu0 0.0
        %1458 = vmatpush1.msra.mxu0 0.0
        %1459 = vmatprep.subr.mxu0 0.0
        %1460 = vmatpush1.msra.mxu0 0.0
        %1461 = vmatprep.subr.mxu0 0.0
        %1462 = vmatpush1.msra.mxu0 0.0
        %1463 = vmatprep.subr.mxu0 0.0
        %1464 = vmatpush1.msra.mxu0 0.0
        %1465 = vmatprep.subr.mxu0 0.0
        %1466 = vmatpush1.msra.mxu0 0.0
        %1467 = vmatprep.subr.mxu0 0.0
        %1468 = vmatpush1.msra.mxu0 0.0
        %1469 = vmatprep.subr.mxu0 0.0
        %1470 = vmatpush1.msra.mxu0 0.0
        %1471 = vmatprep.subr.mxu0 0.0
        %1472 = vmatpush1.msra.mxu0 0.0
        %1473 = vmatprep.subr.mxu0 0.0
        %1474 = vmatpush1.msra.mxu0 0.0
        %1475 = vmatprep.subr.mxu0 0.0
        %1476 = vmatpush1.msra.mxu0 0.0
        %1477 = vmatprep.subr.mxu0 0.0
        %1478 = vmatpush1.msra.mxu0 0.0
        %1479 = vmatprep.subr.mxu0 0.0
        %1480 = vmatpush1.msra.mxu0 0.0
        %1481 = vmatprep.subr.mxu0 0.0
        %1482 = vmatpush1.msra.mxu0 0.0
        %1483 = vmatprep.mubr.f32.mxu0 0.0
        %1484 = vmatmul.mubr.f32.gmra.mrb[0].mxu0 %v959
        %v1485 = vpop.f32.mrb[0].mxu0
        %v1486 = vadd.f32 %v883, %v1485
        %v1487 = vpop.f32.mrb[0].mxu0
        %v1488 = vadd.f32 %v885, %v1487
        %1489 = vdwg.mxu0
        %1490 = vmatprep.subr.mxu0 %v991
        %1491 = vmatpush1.msra.mxu0 %v989
        %1492 = vmatprep.subr.mxu0 0.0
        %1493 = vmatpush1.msra.mxu0 0.0
        %1494 = vmatprep.subr.mxu0 0.0
        %1495 = vmatpush1.msra.mxu0 0.0
        %1496 = vmatprep.subr.mxu0 0.0
        %1497 = vmatpush1.msra.mxu0 0.0
        %1498 = vmatprep.subr.mxu0 0.0
        %1499 = vmatpush1.msra.mxu0 0.0
        %1500 = vmatprep.subr.mxu0 0.0
        %1501 = vmatpush1.msra.mxu0 0.0
        %1502 = vmatprep.subr.mxu0 0.0
        %1503 = vmatpush1.msra.mxu0 0.0
        %1504 = vmatprep.subr.mxu0 0.0
        %1505 = vmatpush1.msra.mxu0 0.0
        %1506 = vmatprep.subr.mxu0 0.0
        %1507 = vmatpush1.msra.mxu0 0.0
        %1508 = vmatprep.subr.mxu0 0.0
        %1509 = vmatpush1.msra.mxu0 0.0
        %1510 = vmatprep.subr.mxu0 0.0
        %1511 = vmatpush1.msra.mxu0 0.0
        %1512 = vmatprep.subr.mxu0 0.0
        %1513 = vmatpush1.msra.mxu0 0.0
        %1514 = vmatprep.subr.mxu0 0.0
        %1515 = vmatpush1.msra.mxu0 0.0
        %1516 = vmatprep.subr.mxu0 0.0
        %1517 = vmatpush1.msra.mxu0 0.0
        %1518 = vmatprep.subr.mxu0 0.0
        %1519 = vmatpush1.msra.mxu0 0.0
        %1520 = vmatprep.subr.mxu0 0.0
        %1521 = vmatpush1.msra.mxu0 0.0
        %1522 = vmatprep.subr.mxu0 0.0
        %1523 = vmatpush1.msra.mxu0 0.0
        %1524 = vmatprep.subr.mxu0 0.0
        %1525 = vmatpush1.msra.mxu0 0.0
        %1526 = vmatprep.subr.mxu0 0.0
        %1527 = vmatpush1.msra.mxu0 0.0
        %1528 = vmatprep.subr.mxu0 0.0
        %1529 = vmatpush1.msra.mxu0 0.0
        %1530 = vmatprep.subr.mxu0 0.0
        %1531 = vmatpush1.msra.mxu0 0.0
        %1532 = vmatprep.subr.mxu0 0.0
        %1533 = vmatpush1.msra.mxu0 0.0
        %1534 = vmatprep.subr.mxu0 0.0
        %1535 = vmatpush1.msra.mxu0 0.0
        %1536 = vmatprep.subr.mxu0 0.0
        %1537 = vmatpush1.msra.mxu0 0.0
        %1538 = vmatprep.subr.mxu0 0.0
        %1539 = vmatpush1.msra.mxu0 0.0
        %1540 = vmatprep.subr.mxu0 0.0
        %1541 = vmatpush1.msra.mxu0 0.0
        %1542 = vmatprep.subr.mxu0 0.0
        %1543 = vmatpush1.msra.mxu0 0.0
        %1544 = vmatprep.subr.mxu0 0.0
        %1545 = vmatpush1.msra.mxu0 0.0
        %1546 = vmatprep.subr.mxu0 0.0
        %1547 = vmatpush1.msra.mxu0 0.0
        %1548 = vmatprep.subr.mxu0 0.0
        %1549 = vmatpush1.msra.mxu0 0.0
        %1550 = vmatprep.subr.mxu0 0.0
        %1551 = vmatpush1.msra.mxu0 0.0
        %1552 = vmatprep.subr.mxu0 0.0
        %1553 = vmatpush1.msra.mxu0 0.0
        %1554 = vmatprep.mubr.f32.mxu0 0.0
        %1555 = vmatmul.mubr.f32.gmra.mrb[0].mxu0 %v959
        %v1556 = vpop.f32.mrb[0].mxu0
        %v1557 = vadd.f32 %v954, %v1556
        %v1558 = vpop.f32.mrb[0].mxu0
        %v1559 = vadd.f32 %v956, %v1558
        %1560 = vdwg.mxu0
        %s1561 = scalar_lea.vmem [#allocation5], 16
        %v1562 = vld [vmem:[%s1561] sm:$0xff]
        %v1563 = vld [vmem:[%s1561 + $0x8] sm:$0xff]
        %v1566 = vlaneseq
        %v1567 = vshrl.u32 %v1566, 7
        %v1568 = vsub.s32 0, %v1567
        %v1569 = vrot.slane %v1562, %v1568
        %v1570 = vlaneseq
        %v1571 = vshrl.u32 %v1570, 7
        %v1572 = vsub.s32 1, %v1571
        %v1573 = vrot.slane %v1562, %v1572
        %v1574 = vlaneseq
        %v1575 = vshrl.u32 %v1574, 7
        %v1576 = vsub.s32 2, %v1575
        %v1577 = vrot.slane %v1562, %v1576
        %v1578 = vlaneseq
        %v1579 = vshrl.u32 %v1578, 7
        %v1580 = vsub.s32 3, %v1579
        %v1581 = vrot.slane %v1562, %v1580
        %v1582 = vlaneseq
        %v1583 = vshrl.u32 %v1582, 7
        %v1584 = vsub.s32 4, %v1583
        %v1585 = vrot.slane %v1562, %v1584
        %v1586 = vlaneseq
        %v1587 = vshrl.u32 %v1586, 7
        %v1588 = vsub.s32 5, %v1587
        %v1589 = vrot.slane %v1562, %v1588
        %v1590 = vlaneseq
        %v1591 = vshrl.u32 %v1590, 7
        %v1592 = vsub.s32 6, %v1591
        %v1593 = vrot.slane %v1562, %v1592
        %v1594 = vlaneseq
        %v1595 = vshrl.u32 %v1594, 7
        %v1596 = vsub.s32 7, %v1595
        %v1597 = vrot.slane %v1562, %v1596
        %v1598 = vlaneseq
        %v1599 = vshrl.u32 %v1598, 7
        %v1600 = vsub.s32 0, %v1599
        %v1601 = vrot.slane %v1563, %v1600
        %v1602 = vlaneseq
        %v1603 = vshrl.u32 %v1602, 7
        %v1604 = vsub.s32 1, %v1603
        %v1605 = vrot.slane %v1563, %v1604
        %v1606 = vlaneseq
        %v1607 = vshrl.u32 %v1606, 7
        %v1608 = vsub.s32 2, %v1607
        %v1609 = vrot.slane %v1563, %v1608
        %v1610 = vlaneseq
        %v1611 = vshrl.u32 %v1610, 7
        %v1612 = vsub.s32 3, %v1611
        %v1613 = vrot.slane %v1563, %v1612
        %v1614 = vlaneseq
        %v1615 = vshrl.u32 %v1614, 7
        %v1616 = vsub.s32 4, %v1615
        %v1617 = vrot.slane %v1563, %v1616
        %v1618 = vlaneseq
        %v1619 = vshrl.u32 %v1618, 7
        %v1620 = vsub.s32 5, %v1619
        %v1621 = vrot.slane %v1563, %v1620
        %v1622 = vlaneseq
        %v1623 = vshrl.u32 %v1622, 7
        %v1624 = vsub.s32 6, %v1623
        %v1625 = vrot.slane %v1563, %v1624
        %v1626 = vlaneseq
        %v1627 = vshrl.u32 %v1626, 7
        %v1628 = vsub.s32 7, %v1627
        %v1629 = vrot.slane %v1563, %v1628
        %v1646 = vmul.f32 %v203, %v1569
        %v1647 = vmul.f32 %v220, %v1573
        %v1648 = vmul.f32 %v204, %v1577
        %v1649 = vmul.f32 %v221, %v1581
        %v1650 = vmul.f32 %v205, %v1585
        %v1651 = vmul.f32 %v222, %v1589
        %v1652 = vmul.f32 %v206, %v1593
        %v1653 = vmul.f32 %v223, %v1597
        %v1654 = vmul.f32 %v207, %v1601
        %v1655 = vmul.f32 %v224, %v1605
        %v1656 = vmul.f32 %v208, %v1609
        %v1657 = vmul.f32 %v225, %v1613
        %v1658 = vmul.f32 %v209, %v1617
        %v1659 = vmul.f32 %v226, %v1621
        %v1660 = vmul.f32 %v202, %v1625
        %v1661 = vmul.f32 %v219, %v1629
        %s1662 = scalar_lea.vmem %s1, 8
        %v1663 = vld [vmem:[%s1662] sm:$0xf]
        %v1665 = vsel %vm337, %v1663, 0
        %v1668 = vsel %vm341, %v1646, 0
        %v1671 = vsel %vm341, %v1647, 0
        %v1674 = vsel %vm341, %v1648, 0
        %v1677 = vsel %vm341, %v1649, 0
        %v1680 = vsel %vm341, %v1650, 0
        %v1683 = vsel %vm341, %v1651, 0
        %v1686 = vsel %vm341, %v1652, 0
        %v1689 = vsel %vm341, %v1653, 0
        %v1692 = vsel %vm341, %v1654, 0
        %v1695 = vsel %vm341, %v1655, 0
        %v1698 = vsel %vm341, %v1656, 0
        %v1701 = vsel %vm341, %v1657, 0
        %v1704 = vsel %vm341, %v1658, 0
        %v1707 = vsel %vm341, %v1659, 0
        %v1710 = vsel %vm341, %v1660, 0
        %v1713 = vsel %vm341, %v1661, 0
        %1715 = vmatprep.subr.mxu0 %v1671
        %1716 = vmatpush1.msra.mxu0 %v1668
        %1717 = vmatprep.subr.mxu0 0.0
        %1718 = vmatpush1.msra.mxu0 0.0
        %1719 = vmatprep.subr.mxu0 0.0
        %1720 = vmatpush1.msra.mxu0 0.0
        %1721 = vmatprep.subr.mxu0 0.0
        %1722 = vmatpush1.msra.mxu0 0.0
        %1723 = vmatprep.subr.mxu0 0.0
        %1724 = vmatpush1.msra.mxu0 0.0
        %1725 = vmatprep.subr.mxu0 0.0
        %1726 = vmatpush1.msra.mxu0 0.0
        %1727 = vmatprep.subr.mxu0 0.0
        %1728 = vmatpush1.msra.mxu0 0.0
        %1729 = vmatprep.subr.mxu0 0.0
        %1730 = vmatpush1.msra.mxu0 0.0
        %1731 = vmatprep.subr.mxu0 0.0
        %1732 = vmatpush1.msra.mxu0 0.0
        %1733 = vmatprep.subr.mxu0 0.0
        %1734 = vmatpush1.msra.mxu0 0.0
        %1735 = vmatprep.subr.mxu0 0.0
        %1736 = vmatpush1.msra.mxu0 0.0
        %1737 = vmatprep.subr.mxu0 0.0
        %1738 = vmatpush1.msra.mxu0 0.0
        %1739 = vmatprep.subr.mxu0 0.0
        %1740 = vmatpush1.msra.mxu0 0.0
        %1741 = vmatprep.subr.mxu0 0.0
        %1742 = vmatpush1.msra.mxu0 0.0
        %1743 = vmatprep.subr.mxu0 0.0
        %1744 = vmatpush1.msra.mxu0 0.0
        %1745 = vmatprep.subr.mxu0 0.0
        %1746 = vmatpush1.msra.mxu0 0.0
        %1747 = vmatprep.subr.mxu0 0.0
        %1748 = vmatpush1.msra.mxu0 0.0
        %1749 = vmatprep.subr.mxu0 0.0
        %1750 = vmatpush1.msra.mxu0 0.0
        %1751 = vmatprep.subr.mxu0 0.0
        %1752 = vmatpush1.msra.mxu0 0.0
        %1753 = vmatprep.subr.mxu0 0.0
        %1754 = vmatpush1.msra.mxu0 0.0
        %1755 = vmatprep.subr.mxu0 0.0
        %1756 = vmatpush1.msra.mxu0 0.0
        %1757 = vmatprep.subr.mxu0 0.0
        %1758 = vmatpush1.msra.mxu0 0.0
        %1759 = vmatprep.subr.mxu0 0.0
        %1760 = vmatpush1.msra.mxu0 0.0
        %1761 = vmatprep.subr.mxu0 0.0
        %1762 = vmatpush1.msra.mxu0 0.0
        %1763 = vmatprep.subr.mxu0 0.0
        %1764 = vmatpush1.msra.mxu0 0.0
        %1765 = vmatprep.subr.mxu0 0.0
        %1766 = vmatpush1.msra.mxu0 0.0
        %1767 = vmatprep.subr.mxu0 0.0
        %1768 = vmatpush1.msra.mxu0 0.0
        %1769 = vmatprep.subr.mxu0 0.0
        %1770 = vmatpush1.msra.mxu0 0.0
        %1771 = vmatprep.subr.mxu0 0.0
        %1772 = vmatpush1.msra.mxu0 0.0
        %1773 = vmatprep.subr.mxu0 0.0
        %1774 = vmatpush1.msra.mxu0 0.0
        %1775 = vmatprep.subr.mxu0 0.0
        %1776 = vmatpush1.msra.mxu0 0.0
        %1777 = vmatprep.subr.mxu0 0.0
        %1778 = vmatpush1.msra.mxu0 0.0
        %1779 = vmatprep.mubr.f32.mxu0 0.0
        %1780 = vmatmul.mubr.f32.gmra.mrb[0].mxu0 %v1665
        %v1781 = vpop.f32.mrb[0].mxu0
        %v1782 = vadd.f32 0.0, %v1781
        %v1783 = vpop.f32.mrb[0].mxu0
        %v1784 = vadd.f32 0.0, %v1783
        %1785 = vdwg.mxu0
        %1786 = vmatprep.subr.mxu0 %v1677
        %1787 = vmatpush1.msra.mxu0 %v1674
        %1788 = vmatprep.subr.mxu0 0.0
        %1789 = vmatpush1.msra.mxu0 0.0
        %1790 = vmatprep.subr.mxu0 0.0
        %1791 = vmatpush1.msra.mxu0 0.0
        %1792 = vmatprep.subr.mxu0 0.0
        %1793 = vmatpush1.msra.mxu0 0.0
        %1794 = vmatprep.subr.mxu0 0.0
        %1795 = vmatpush1.msra.mxu0 0.0
        %1796 = vmatprep.subr.mxu0 0.0
        %1797 = vmatpush1.msra.mxu0 0.0
        %1798 = vmatprep.subr.mxu0 0.0
        %1799 = vmatpush1.msra.mxu0 0.0
        %1800 = vmatprep.subr.mxu0 0.0
        %1801 = vmatpush1.msra.mxu0 0.0
        %1802 = vmatprep.subr.mxu0 0.0
        %1803 = vmatpush1.msra.mxu0 0.0
        %1804 = vmatprep.subr.mxu0 0.0
        %1805 = vmatpush1.msra.mxu0 0.0
        %1806 = vmatprep.subr.mxu0 0.0
        %1807 = vmatpush1.msra.mxu0 0.0
        %1808 = vmatprep.subr.mxu0 0.0
        %1809 = vmatpush1.msra.mxu0 0.0
        %1810 = vmatprep.subr.mxu0 0.0
        %1811 = vmatpush1.msra.mxu0 0.0
        %1812 = vmatprep.subr.mxu0 0.0
        %1813 = vmatpush1.msra.mxu0 0.0
        %1814 = vmatprep.subr.mxu0 0.0
        %1815 = vmatpush1.msra.mxu0 0.0
        %1816 = vmatprep.subr.mxu0 0.0
        %1817 = vmatpush1.msra.mxu0 0.0
        %1818 = vmatprep.subr.mxu0 0.0
        %1819 = vmatpush1.msra.mxu0 0.0
        %1820 = vmatprep.subr.mxu0 0.0
        %1821 = vmatpush1.msra.mxu0 0.0
        %1822 = vmatprep.subr.mxu0 0.0
        %1823 = vmatpush1.msra.mxu0 0.0
        %1824 = vmatprep.subr.mxu0 0.0
        %1825 = vmatpush1.msra.mxu0 0.0
        %1826 = vmatprep.subr.mxu0 0.0
        %1827 = vmatpush1.msra.mxu0 0.0
        %1828 = vmatprep.subr.mxu0 0.0
        %1829 = vmatpush1.msra.mxu0 0.0
        %1830 = vmatprep.subr.mxu0 0.0
        %1831 = vmatpush1.msra.mxu0 0.0
        %1832 = vmatprep.subr.mxu0 0.0
        %1833 = vmatpush1.msra.mxu0 0.0
        %1834 = vmatprep.subr.mxu0 0.0
        %1835 = vmatpush1.msra.mxu0 0.0
        %1836 = vmatprep.subr.mxu0 0.0
        %1837 = vmatpush1.msra.mxu0 0.0
        %1838 = vmatprep.subr.mxu0 0.0
        %1839 = vmatpush1.msra.mxu0 0.0
        %1840 = vmatprep.subr.mxu0 0.0
        %1841 = vmatpush1.msra.mxu0 0.0
        %1842 = vmatprep.subr.mxu0 0.0
        %1843 = vmatpush1.msra.mxu0 0.0
        %1844 = vmatprep.subr.mxu0 0.0
        %1845 = vmatpush1.msra.mxu0 0.0
        %1846 = vmatprep.subr.mxu0 0.0
        %1847 = vmatpush1.msra.mxu0 0.0
        %1848 = vmatprep.subr.mxu0 0.0
        %1849 = vmatpush1.msra.mxu0 0.0
        %1850 = vmatprep.mubr.f32.mxu0 0.0
        %1851 = vmatmul.mubr.f32.gmra.mrb[0].mxu0 %v1665
        %v1852 = vpop.f32.mrb[0].mxu0
        %v1853 = vadd.f32 0.0, %v1852
        %v1854 = vpop.f32.mrb[0].mxu0
        %v1855 = vadd.f32 0.0, %v1854
        %1856 = vdwg.mxu0
        %1857 = vmatprep.subr.mxu0 %v1683
        %1858 = vmatpush1.msra.mxu0 %v1680
        %1859 = vmatprep.subr.mxu0 0.0
        %1860 = vmatpush1.msra.mxu0 0.0
        %1861 = vmatprep.subr.mxu0 0.0
        %1862 = vmatpush1.msra.mxu0 0.0
        %1863 = vmatprep.subr.mxu0 0.0
        %1864 = vmatpush1.msra.mxu0 0.0
        %1865 = vmatprep.subr.mxu0 0.0
        %1866 = vmatpush1.msra.mxu0 0.0
        %1867 = vmatprep.subr.mxu0 0.0
        %1868 = vmatpush1.msra.mxu0 0.0
        %1869 = vmatprep.subr.mxu0 0.0
        %1870 = vmatpush1.msra.mxu0 0.0
        %1871 = vmatprep.subr.mxu0 0.0
        %1872 = vmatpush1.msra.mxu0 0.0
        %1873 = vmatprep.subr.mxu0 0.0
        %1874 = vmatpush1.msra.mxu0 0.0
        %1875 = vmatprep.subr.mxu0 0.0
        %1876 = vmatpush1.msra.mxu0 0.0
        %1877 = vmatprep.subr.mxu0 0.0
        %1878 = vmatpush1.msra.mxu0 0.0
        %1879 = vmatprep.subr.mxu0 0.0
        %1880 = vmatpush1.msra.mxu0 0.0
        %1881 = vmatprep.subr.mxu0 0.0
        %1882 = vmatpush1.msra.mxu0 0.0
        %1883 = vmatprep.subr.mxu0 0.0
        %1884 = vmatpush1.msra.mxu0 0.0
        %1885 = vmatprep.subr.mxu0 0.0
        %1886 = vmatpush1.msra.mxu0 0.0
        %1887 = vmatprep.subr.mxu0 0.0
        %1888 = vmatpush1.msra.mxu0 0.0
        %1889 = vmatprep.subr.mxu0 0.0
        %1890 = vmatpush1.msra.mxu0 0.0
        %1891 = vmatprep.subr.mxu0 0.0
        %1892 = vmatpush1.msra.mxu0 0.0
        %1893 = vmatprep.subr.mxu0 0.0
        %1894 = vmatpush1.msra.mxu0 0.0
        %1895 = vmatprep.subr.mxu0 0.0
        %1896 = vmatpush1.msra.mxu0 0.0
        %1897 = vmatprep.subr.mxu0 0.0
        %1898 = vmatpush1.msra.mxu0 0.0
        %1899 = vmatprep.subr.mxu0 0.0
        %1900 = vmatpush1.msra.mxu0 0.0
        %1901 = vmatprep.subr.mxu0 0.0
        %1902 = vmatpush1.msra.mxu0 0.0
        %1903 = vmatprep.subr.mxu0 0.0
        %1904 = vmatpush1.msra.mxu0 0.0
        %1905 = vmatprep.subr.mxu0 0.0
        %1906 = vmatpush1.msra.mxu0 0.0
        %1907 = vmatprep.subr.mxu0 0.0
        %1908 = vmatpush1.msra.mxu0 0.0
        %1909 = vmatprep.subr.mxu0 0.0
        %1910 = vmatpush1.msra.mxu0 0.0
        %1911 = vmatprep.subr.mxu0 0.0
        %1912 = vmatpush1.msra.mxu0 0.0
        %1913 = vmatprep.subr.mxu0 0.0
        %1914 = vmatpush1.msra.mxu0 0.0
        %1915 = vmatprep.subr.mxu0 0.0
        %1916 = vmatpush1.msra.mxu0 0.0
        %1917 = vmatprep.subr.mxu0 0.0
        %1918 = vmatpush1.msra.mxu0 0.0
        %1919 = vmatprep.subr.mxu0 0.0
        %1920 = vmatpush1.msra.mxu0 0.0
        %1921 = vmatprep.mubr.f32.mxu0 0.0
        %1922 = vmatmul.mubr.f32.gmra.mrb[0].mxu0 %v1665
        %v1923 = vpop.f32.mrb[0].mxu0
        %v1924 = vadd.f32 0.0, %v1923
        %v1925 = vpop.f32.mrb[0].mxu0
        %v1926 = vadd.f32 0.0, %v1925
        %1927 = vdwg.mxu0
        %1928 = vmatprep.subr.mxu0 %v1689
        %1929 = vmatpush1.msra.mxu0 %v1686
        %1930 = vmatprep.subr.mxu0 0.0
        %1931 = vmatpush1.msra.mxu0 0.0
        %1932 = vmatprep.subr.mxu0 0.0
        %1933 = vmatpush1.msra.mxu0 0.0
        %1934 = vmatprep.subr.mxu0 0.0
        %1935 = vmatpush1.msra.mxu0 0.0
        %1936 = vmatprep.subr.mxu0 0.0
        %1937 = vmatpush1.msra.mxu0 0.0
        %1938 = vmatprep.subr.mxu0 0.0
        %1939 = vmatpush1.msra.mxu0 0.0
        %1940 = vmatprep.subr.mxu0 0.0
        %1941 = vmatpush1.msra.mxu0 0.0
        %1942 = vmatprep.subr.mxu0 0.0
        %1943 = vmatpush1.msra.mxu0 0.0
        %1944 = vmatprep.subr.mxu0 0.0
        %1945 = vmatpush1.msra.mxu0 0.0
        %1946 = vmatprep.subr.mxu0 0.0
        %1947 = vmatpush1.msra.mxu0 0.0
        %1948 = vmatprep.subr.mxu0 0.0
        %1949 = vmatpush1.msra.mxu0 0.0
        %1950 = vmatprep.subr.mxu0 0.0
        %1951 = vmatpush1.msra.mxu0 0.0
        %1952 = vmatprep.subr.mxu0 0.0
        %1953 = vmatpush1.msra.mxu0 0.0
        %1954 = vmatprep.subr.mxu0 0.0
        %1955 = vmatpush1.msra.mxu0 0.0
        %1956 = vmatprep.subr.mxu0 0.0
        %1957 = vmatpush1.msra.mxu0 0.0
        %1958 = vmatprep.subr.mxu0 0.0
        %1959 = vmatpush1.msra.mxu0 0.0
        %1960 = vmatprep.subr.mxu0 0.0
        %1961 = vmatpush1.msra.mxu0 0.0
        %1962 = vmatprep.subr.mxu0 0.0
        %1963 = vmatpush1.msra.mxu0 0.0
        %1964 = vmatprep.subr.mxu0 0.0
        %1965 = vmatpush1.msra.mxu0 0.0
        %1966 = vmatprep.subr.mxu0 0.0
        %1967 = vmatpush1.msra.mxu0 0.0
        %1968 = vmatprep.subr.mxu0 0.0
        %1969 = vmatpush1.msra.mxu0 0.0
        %1970 = vmatprep.subr.mxu0 0.0
        %1971 = vmatpush1.msra.mxu0 0.0
        %1972 = vmatprep.subr.mxu0 0.0
        %1973 = vmatpush1.msra.mxu0 0.0
        %1974 = vmatprep.subr.mxu0 0.0
        %1975 = vmatpush1.msra.mxu0 0.0
        %1976 = vmatprep.subr.mxu0 0.0
        %1977 = vmatpush1.msra.mxu0 0.0
        %1978 = vmatprep.subr.mxu0 0.0
        %1979 = vmatpush1.msra.mxu0 0.0
        %1980 = vmatprep.subr.mxu0 0.0
        %1981 = vmatpush1.msra.mxu0 0.0
        %1982 = vmatprep.subr.mxu0 0.0
        %1983 = vmatpush1.msra.mxu0 0.0
        %1984 = vmatprep.subr.mxu0 0.0
        %1985 = vmatpush1.msra.mxu0 0.0
        %1986 = vmatprep.subr.mxu0 0.0
        %1987 = vmatpush1.msra.mxu0 0.0
        %1988 = vmatprep.subr.mxu0 0.0
        %1989 = vmatpush1.msra.mxu0 0.0
        %1990 = vmatprep.subr.mxu0 0.0
        %1991 = vmatpush1.msra.mxu0 0.0
        %1992 = vmatprep.mubr.f32.mxu0 0.0
        %1993 = vmatmul.mubr.f32.gmra.mrb[0].mxu0 %v1665
        %v1994 = vpop.f32.mrb[0].mxu0
        %v1995 = vadd.f32 0.0, %v1994
        %v1996 = vpop.f32.mrb[0].mxu0
        %v1997 = vadd.f32 0.0, %v1996
        %1998 = vdwg.mxu0
        %1999 = vmatprep.subr.mxu0 %v1695
        %2000 = vmatpush1.msra.mxu0 %v1692
        %2001 = vmatprep.subr.mxu0 0.0
        %2002 = vmatpush1.msra.mxu0 0.0
        %2003 = vmatprep.subr.mxu0 0.0
        %2004 = vmatpush1.msra.mxu0 0.0
        %2005 = vmatprep.subr.mxu0 0.0
        %2006 = vmatpush1.msra.mxu0 0.0
        %2007 = vmatprep.subr.mxu0 0.0
        %2008 = vmatpush1.msra.mxu0 0.0
        %2009 = vmatprep.subr.mxu0 0.0
        %2010 = vmatpush1.msra.mxu0 0.0
        %2011 = vmatprep.subr.mxu0 0.0
        %2012 = vmatpush1.msra.mxu0 0.0
        %2013 = vmatprep.subr.mxu0 0.0
        %2014 = vmatpush1.msra.mxu0 0.0
        %2015 = vmatprep.subr.mxu0 0.0
        %2016 = vmatpush1.msra.mxu0 0.0
        %2017 = vmatprep.subr.mxu0 0.0
        %2018 = vmatpush1.msra.mxu0 0.0
        %2019 = vmatprep.subr.mxu0 0.0
        %2020 = vmatpush1.msra.mxu0 0.0
        %2021 = vmatprep.subr.mxu0 0.0
        %2022 = vmatpush1.msra.mxu0 0.0
        %2023 = vmatprep.subr.mxu0 0.0
        %2024 = vmatpush1.msra.mxu0 0.0
        %2025 = vmatprep.subr.mxu0 0.0
        %2026 = vmatpush1.msra.mxu0 0.0
        %2027 = vmatprep.subr.mxu0 0.0
        %2028 = vmatpush1.msra.mxu0 0.0
        %2029 = vmatprep.subr.mxu0 0.0
        %2030 = vmatpush1.msra.mxu0 0.0
        %2031 = vmatprep.subr.mxu0 0.0
        %2032 = vmatpush1.msra.mxu0 0.0
        %2033 = vmatprep.subr.mxu0 0.0
        %2034 = vmatpush1.msra.mxu0 0.0
        %2035 = vmatprep.subr.mxu0 0.0
        %2036 = vmatpush1.msra.mxu0 0.0
        %2037 = vmatprep.subr.mxu0 0.0
        %2038 = vmatpush1.msra.mxu0 0.0
        %2039 = vmatprep.subr.mxu0 0.0
        %2040 = vmatpush1.msra.mxu0 0.0
        %2041 = vmatprep.subr.mxu0 0.0
        %2042 = vmatpush1.msra.mxu0 0.0
        %2043 = vmatprep.subr.mxu0 0.0
        %2044 = vmatpush1.msra.mxu0 0.0
        %2045 = vmatprep.subr.mxu0 0.0
        %2046 = vmatpush1.msra.mxu0 0.0
        %2047 = vmatprep.subr.mxu0 0.0
        %2048 = vmatpush1.msra.mxu0 0.0
        %2049 = vmatprep.subr.mxu0 0.0
        %2050 = vmatpush1.msra.mxu0 0.0
        %2051 = vmatprep.subr.mxu0 0.0
        %2052 = vmatpush1.msra.mxu0 0.0
        %2053 = vmatprep.subr.mxu0 0.0
        %2054 = vmatpush1.msra.mxu0 0.0
        %2055 = vmatprep.subr.mxu0 0.0
        %2056 = vmatpush1.msra.mxu0 0.0
        %2057 = vmatprep.subr.mxu0 0.0
        %2058 = vmatpush1.msra.mxu0 0.0
        %2059 = vmatprep.subr.mxu0 0.0
        %2060 = vmatpush1.msra.mxu0 0.0
        %2061 = vmatprep.subr.mxu0 0.0
        %2062 = vmatpush1.msra.mxu0 0.0
        %2063 = vmatprep.mubr.f32.mxu0 0.0
        %2064 = vmatmul.mubr.f32.gmra.mrb[0].mxu0 %v1665
        %v2065 = vpop.f32.mrb[0].mxu0
        %v2066 = vadd.f32 0.0, %v2065
        %v2067 = vpop.f32.mrb[0].mxu0
        %v2068 = vadd.f32 0.0, %v2067
        %2069 = vdwg.mxu0
        %2070 = vmatprep.subr.mxu0 %v1701
        %2071 = vmatpush1.msra.mxu0 %v1698
        %2072 = vmatprep.subr.mxu0 0.0
        %2073 = vmatpush1.msra.mxu0 0.0
        %2074 = vmatprep.subr.mxu0 0.0
        %2075 = vmatpush1.msra.mxu0 0.0
        %2076 = vmatprep.subr.mxu0 0.0
        %2077 = vmatpush1.msra.mxu0 0.0
        %2078 = vmatprep.subr.mxu0 0.0
        %2079 = vmatpush1.msra.mxu0 0.0
        %2080 = vmatprep.subr.mxu0 0.0
        %2081 = vmatpush1.msra.mxu0 0.0
        %2082 = vmatprep.subr.mxu0 0.0
        %2083 = vmatpush1.msra.mxu0 0.0
        %2084 = vmatprep.subr.mxu0 0.0
        %2085 = vmatpush1.msra.mxu0 0.0
        %2086 = vmatprep.subr.mxu0 0.0
        %2087 = vmatpush1.msra.mxu0 0.0
        %2088 = vmatprep.subr.mxu0 0.0
        %2089 = vmatpush1.msra.mxu0 0.0
        %2090 = vmatprep.subr.mxu0 0.0
        %2091 = vmatpush1.msra.mxu0 0.0
        %2092 = vmatprep.subr.mxu0 0.0
        %2093 = vmatpush1.msra.mxu0 0.0
        %2094 = vmatprep.subr.mxu0 0.0
        %2095 = vmatpush1.msra.mxu0 0.0
        %2096 = vmatprep.subr.mxu0 0.0
        %2097 = vmatpush1.msra.mxu0 0.0
        %2098 = vmatprep.subr.mxu0 0.0
        %2099 = vmatpush1.msra.mxu0 0.0
        %2100 = vmatprep.subr.mxu0 0.0
        %2101 = vmatpush1.msra.mxu0 0.0
        %2102 = vmatprep.subr.mxu0 0.0
        %2103 = vmatpush1.msra.mxu0 0.0
        %2104 = vmatprep.subr.mxu0 0.0
        %2105 = vmatpush1.msra.mxu0 0.0
        %2106 = vmatprep.subr.mxu0 0.0
        %2107 = vmatpush1.msra.mxu0 0.0
        %2108 = vmatprep.subr.mxu0 0.0
        %2109 = vmatpush1.msra.mxu0 0.0
        %2110 = vmatprep.subr.mxu0 0.0
        %2111 = vmatpush1.msra.mxu0 0.0
        %2112 = vmatprep.subr.mxu0 0.0
        %2113 = vmatpush1.msra.mxu0 0.0
        %2114 = vmatprep.subr.mxu0 0.0
        %2115 = vmatpush1.msra.mxu0 0.0
        %2116 = vmatprep.subr.mxu0 0.0
        %2117 = vmatpush1.msra.mxu0 0.0
        %2118 = vmatprep.subr.mxu0 0.0
        %2119 = vmatpush1.msra.mxu0 0.0
        %2120 = vmatprep.subr.mxu0 0.0
        %2121 = vmatpush1.msra.mxu0 0.0
        %2122 = vmatprep.subr.mxu0 0.0
        %2123 = vmatpush1.msra.mxu0 0.0
        %2124 = vmatprep.subr.mxu0 0.0
        %2125 = vmatpush1.msra.mxu0 0.0
        %2126 = vmatprep.subr.mxu0 0.0
        %2127 = vmatpush1.msra.mxu0 0.0
        %2128 = vmatprep.subr.mxu0 0.0
        %2129 = vmatpush1.msra.mxu0 0.0
        %2130 = vmatprep.subr.mxu0 0.0
        %2131 = vmatpush1.msra.mxu0 0.0
        %2132 = vmatprep.subr.mxu0 0.0
        %2133 = vmatpush1.msra.mxu0 0.0
        %2134 = vmatprep.mubr.f32.mxu0 0.0
        %2135 = vmatmul.mubr.f32.gmra.mrb[0].mxu0 %v1665
        %v2136 = vpop.f32.mrb[0].mxu0
        %v2137 = vadd.f32 0.0, %v2136
        %v2138 = vpop.f32.mrb[0].mxu0
        %v2139 = vadd.f32 0.0, %v2138
        %2140 = vdwg.mxu0
        %2141 = vmatprep.subr.mxu0 %v1707
        %2142 = vmatpush1.msra.mxu0 %v1704
        %2143 = vmatprep.subr.mxu0 0.0
        %2144 = vmatpush1.msra.mxu0 0.0
        %2145 = vmatprep.subr.mxu0 0.0
        %2146 = vmatpush1.msra.mxu0 0.0
        %2147 = vmatprep.subr.mxu0 0.0
        %2148 = vmatpush1.msra.mxu0 0.0
        %2149 = vmatprep.subr.mxu0 0.0
        %2150 = vmatpush1.msra.mxu0 0.0
        %2151 = vmatprep.subr.mxu0 0.0
        %2152 = vmatpush1.msra.mxu0 0.0
        %2153 = vmatprep.subr.mxu0 0.0
        %2154 = vmatpush1.msra.mxu0 0.0
        %2155 = vmatprep.subr.mxu0 0.0
        %2156 = vmatpush1.msra.mxu0 0.0
        %2157 = vmatprep.subr.mxu0 0.0
        %2158 = vmatpush1.msra.mxu0 0.0
        %2159 = vmatprep.subr.mxu0 0.0
        %2160 = vmatpush1.msra.mxu0 0.0
        %2161 = vmatprep.subr.mxu0 0.0
        %2162 = vmatpush1.msra.mxu0 0.0
        %2163 = vmatprep.subr.mxu0 0.0
        %2164 = vmatpush1.msra.mxu0 0.0
        %2165 = vmatprep.subr.mxu0 0.0
        %2166 = vmatpush1.msra.mxu0 0.0
        %2167 = vmatprep.subr.mxu0 0.0
        %2168 = vmatpush1.msra.mxu0 0.0
        %2169 = vmatprep.subr.mxu0 0.0
        %2170 = vmatpush1.msra.mxu0 0.0
        %2171 = vmatprep.subr.mxu0 0.0
        %2172 = vmatpush1.msra.mxu0 0.0
        %2173 = vmatprep.subr.mxu0 0.0
        %2174 = vmatpush1.msra.mxu0 0.0
        %2175 = vmatprep.subr.mxu0 0.0
        %2176 = vmatpush1.msra.mxu0 0.0
        %2177 = vmatprep.subr.mxu0 0.0
        %2178 = vmatpush1.msra.mxu0 0.0
        %2179 = vmatprep.subr.mxu0 0.0
        %2180 = vmatpush1.msra.mxu0 0.0
        %2181 = vmatprep.subr.mxu0 0.0
        %2182 = vmatpush1.msra.mxu0 0.0
        %2183 = vmatprep.subr.mxu0 0.0
        %2184 = vmatpush1.msra.mxu0 0.0
        %2185 = vmatprep.subr.mxu0 0.0
        %2186 = vmatpush1.msra.mxu0 0.0
        %2187 = vmatprep.subr.mxu0 0.0
        %2188 = vmatpush1.msra.mxu0 0.0
        %2189 = vmatprep.subr.mxu0 0.0
        %2190 = vmatpush1.msra.mxu0 0.0
        %2191 = vmatprep.subr.mxu0 0.0
        %2192 = vmatpush1.msra.mxu0 0.0
        %2193 = vmatprep.subr.mxu0 0.0
        %2194 = vmatpush1.msra.mxu0 0.0
        %2195 = vmatprep.subr.mxu0 0.0
        %2196 = vmatpush1.msra.mxu0 0.0
        %2197 = vmatprep.subr.mxu0 0.0
        %2198 = vmatpush1.msra.mxu0 0.0
        %2199 = vmatprep.subr.mxu0 0.0
        %2200 = vmatpush1.msra.mxu0 0.0
        %2201 = vmatprep.subr.mxu0 0.0
        %2202 = vmatpush1.msra.mxu0 0.0
        %2203 = vmatprep.subr.mxu0 0.0
        %2204 = vmatpush1.msra.mxu0 0.0
        %2205 = vmatprep.mubr.f32.mxu0 0.0
        %2206 = vmatmul.mubr.f32.gmra.mrb[0].mxu0 %v1665
        %v2207 = vpop.f32.mrb[0].mxu0
        %v2208 = vadd.f32 0.0, %v2207
        %v2209 = vpop.f32.mrb[0].mxu0
        %v2210 = vadd.f32 0.0, %v2209
        %2211 = vdwg.mxu0
        %2212 = vmatprep.subr.mxu0 %v1713
        %2213 = vmatpush1.msra.mxu0 %v1710
        %2214 = vmatprep.subr.mxu0 0.0
        %2215 = vmatpush1.msra.mxu0 0.0
        %2216 = vmatprep.subr.mxu0 0.0
        %2217 = vmatpush1.msra.mxu0 0.0
        %2218 = vmatprep.subr.mxu0 0.0
        %2219 = vmatpush1.msra.mxu0 0.0
        %2220 = vmatprep.subr.mxu0 0.0
        %2221 = vmatpush1.msra.mxu0 0.0
        %2222 = vmatprep.subr.mxu0 0.0
        %2223 = vmatpush1.msra.mxu0 0.0
        %2224 = vmatprep.subr.mxu0 0.0
        %2225 = vmatpush1.msra.mxu0 0.0
        %2226 = vmatprep.subr.mxu0 0.0
        %2227 = vmatpush1.msra.mxu0 0.0
        %2228 = vmatprep.subr.mxu0 0.0
        %2229 = vmatpush1.msra.mxu0 0.0
        %2230 = vmatprep.subr.mxu0 0.0
        %2231 = vmatpush1.msra.mxu0 0.0
        %2232 = vmatprep.subr.mxu0 0.0
        %2233 = vmatpush1.msra.mxu0 0.0
        %2234 = vmatprep.subr.mxu0 0.0
        %2235 = vmatpush1.msra.mxu0 0.0
        %2236 = vmatprep.subr.mxu0 0.0
        %2237 = vmatpush1.msra.mxu0 0.0
        %2238 = vmatprep.subr.mxu0 0.0
        %2239 = vmatpush1.msra.mxu0 0.0
        %2240 = vmatprep.subr.mxu0 0.0
        %2241 = vmatpush1.msra.mxu0 0.0
        %2242 = vmatprep.subr.mxu0 0.0
        %2243 = vmatpush1.msra.mxu0 0.0
        %2244 = vmatprep.subr.mxu0 0.0
        %2245 = vmatpush1.msra.mxu0 0.0
        %2246 = vmatprep.subr.mxu0 0.0
        %2247 = vmatpush1.msra.mxu0 0.0
        %2248 = vmatprep.subr.mxu0 0.0
        %2249 = vmatpush1.msra.mxu0 0.0
        %2250 = vmatprep.subr.mxu0 0.0
        %2251 = vmatpush1.msra.mxu0 0.0
        %2252 = vmatprep.subr.mxu0 0.0
        %2253 = vmatpush1.msra.mxu0 0.0
        %2254 = vmatprep.subr.mxu0 0.0
        %2255 = vmatpush1.msra.mxu0 0.0
        %2256 = vmatprep.subr.mxu0 0.0
        %2257 = vmatpush1.msra.mxu0 0.0
        %2258 = vmatprep.subr.mxu0 0.0
        %2259 = vmatpush1.msra.mxu0 0.0
        %2260 = vmatprep.subr.mxu0 0.0
        %2261 = vmatpush1.msra.mxu0 0.0
        %2262 = vmatprep.subr.mxu0 0.0
        %2263 = vmatpush1.msra.mxu0 0.0
        %2264 = vmatprep.subr.mxu0 0.0
        %2265 = vmatpush1.msra.mxu0 0.0
        %2266 = vmatprep.subr.mxu0 0.0
        %2267 = vmatpush1.msra.mxu0 0.0
        %2268 = vmatprep.subr.mxu0 0.0
        %2269 = vmatpush1.msra.mxu0 0.0
        %2270 = vmatprep.subr.mxu0 0.0
        %2271 = vmatpush1.msra.mxu0 0.0
        %2272 = vmatprep.subr.mxu0 0.0
        %2273 = vmatpush1.msra.mxu0 0.0
        %2274 = vmatprep.subr.mxu0 0.0
        %2275 = vmatpush1.msra.mxu0 0.0
        %2276 = vmatprep.mubr.f32.mxu0 0.0
        %2277 = vmatmul.mubr.f32.gmra.mrb[0].mxu0 %v1665
        %v2278 = vpop.f32.mrb[0].mxu0
        %v2279 = vadd.f32 0.0, %v2278
        %v2280 = vpop.f32.mrb[0].mxu0
        %v2281 = vadd.f32 0.0, %v2280
        %2282 = vdwg.mxu0
        %v2283 = vadd.f32 %v1060, %v1782
        %v2284 = vadd.f32 %v1062, %v1784
        %v2285 = vadd.f32 %v1131, %v1853
        %v2286 = vadd.f32 %v1133, %v1855
        %v2287 = vadd.f32 %v1202, %v1924
        %v2288 = vadd.f32 %v1204, %v1926
        %v2289 = vadd.f32 %v1273, %v1995
        %v2290 = vadd.f32 %v1275, %v1997
        %v2291 = vadd.f32 %v1344, %v2066
        %v2292 = vadd.f32 %v1346, %v2068
        %v2293 = vadd.f32 %v1415, %v2137
        %v2294 = vadd.f32 %v1417, %v2139
        %v2295 = vadd.f32 %v1486, %v2208
        %v2296 = vadd.f32 %v1488, %v2210
        %v2297 = vadd.f32 %v1557, %v2279
        %v2298 = vadd.f32 %v1559, %v2281
        %2299 = vrot.lane.b32.xlu0 %v202, 17
        %v2300 = vpop.permute.xlu0 %2299
        %2301 = vrot.lane.b32.xlu0 %v219, 17
        %v2302 = vpop.permute.xlu0 %2301
        %2303 = vrot.lane.b32.xlu0 %v203, 17
        %v2304 = vpop.permute.xlu0 %2303
        %2305 = vrot.lane.b32.xlu0 %v220, 17
        %v2306 = vpop.permute.xlu0 %2305
        %2307 = vrot.lane.b32.xlu0 %v204, 17
        %v2308 = vpop.permute.xlu0 %2307
        %2309 = vrot.lane.b32.xlu0 %v221, 17
        %v2310 = vpop.permute.xlu0 %2309
        %2311 = vrot.lane.b32.xlu0 %v205, 17
        %v2312 = vpop.permute.xlu0 %2311
        %2313 = vrot.lane.b32.xlu0 %v222, 17
        %v2314 = vpop.permute.xlu0 %2313
        %2315 = vrot.lane.b32.xlu0 %v206, 17
        %v2316 = vpop.permute.xlu0 %2315
        %2317 = vrot.lane.b32.xlu0 %v223, 17
        %v2318 = vpop.permute.xlu0 %2317
        %2319 = vrot.lane.b32.xlu0 %v207, 17
        %v2320 = vpop.permute.xlu0 %2319
        %2321 = vrot.lane.b32.xlu0 %v224, 17
        %v2322 = vpop.permute.xlu0 %2321
        %2323 = vrot.lane.b32.xlu0 %v208, 17
        %v2324 = vpop.permute.xlu0 %2323
        %2325 = vrot.lane.b32.xlu0 %v225, 17
        %v2326 = vpop.permute.xlu0 %2325
        %2327 = vrot.lane.b32.xlu0 %v209, 17
        %v2328 = vpop.permute.xlu0 %2327
        %2329 = vrot.lane.b32.xlu0 %v226, 17
        %v2330 = vpop.permute.xlu0 %2329
        %v2331 = vlaneseq
        %v2332 = vand.u32 %v2331, 127
        %vm2333 = vcmp.lt.s32.totalorder %v2332, 17
        %v2334 = vsel %vm2333, %v2328, %v2330
        %v2335 = vsel %vm2333, %v2326, %v2328
        %v2336 = vsel %vm2333, %v2324, %v2326
        %v2337 = vsel %vm2333, %v2322, %v2324
        %v2338 = vsel %vm2333, %v2320, %v2322
        %v2339 = vsel %vm2333, %v2318, %v2320
        %v2340 = vsel %vm2333, %v2316, %v2318
        %v2341 = vsel %vm2333, %v2314, %v2316
        %v2342 = vsel %vm2333, %v2312, %v2314
        %v2343 = vsel %vm2333, %v2310, %v2312
        %v2344 = vsel %vm2333, %v2308, %v2310
        %v2345 = vsel %vm2333, %v2306, %v2308
        %v2346 = vsel %vm2333, %v2304, %v2306
        %v2347 = vsel %vm2333, %v2302, %v2304
        %v2348 = vsel %vm2333, %v2300, %v2302
        %v2349 = vsel %vm2333, %v2330, %v2300
        %s2350 = scalar_lea.vmem [#allocation5], 32
        %v2351 = vld [vmem:[%s2350] sm:$0xff]
        %v2352 = vld [vmem:[%s2350 + $0x8] sm:$0xff]
        %v2355 = vlaneseq
        %v2356 = vshrl.u32 %v2355, 7
        %v2357 = vsub.s32 0, %v2356
        %v2358 = vrot.slane %v2351, %v2357
        %v2359 = vlaneseq
        %v2360 = vshrl.u32 %v2359, 7
        %v2361 = vsub.s32 1, %v2360
        %v2362 = vrot.slane %v2351, %v2361
        %v2363 = vlaneseq
        %v2364 = vshrl.u32 %v2363, 7
        %v2365 = vsub.s32 2, %v2364
        %v2366 = vrot.slane %v2351, %v2365
        %v2367 = vlaneseq
        %v2368 = vshrl.u32 %v2367, 7
        %v2369 = vsub.s32 3, %v2368
        %v2370 = vrot.slane %v2351, %v2369
        %v2371 = vlaneseq
        %v2372 = vshrl.u32 %v2371, 7
        %v2373 = vsub.s32 4, %v2372
        %v2374 = vrot.slane %v2351, %v2373
        %v2375 = vlaneseq
        %v2376 = vshrl.u32 %v2375, 7
        %v2377 = vsub.s32 5, %v2376
        %v2378 = vrot.slane %v2351, %v2377
        %v2379 = vlaneseq
        %v2380 = vshrl.u32 %v2379, 7
        %v2381 = vsub.s32 6, %v2380
        %v2382 = vrot.slane %v2351, %v2381
        %v2383 = vlaneseq
        %v2384 = vshrl.u32 %v2383, 7
        %v2385 = vsub.s32 7, %v2384
        %v2386 = vrot.slane %v2351, %v2385
        %v2387 = vlaneseq
        %v2388 = vshrl.u32 %v2387, 7
        %v2389 = vsub.s32 0, %v2388
        %v2390 = vrot.slane %v2352, %v2389
        %v2391 = vlaneseq
        %v2392 = vshrl.u32 %v2391, 7
        %v2393 = vsub.s32 1, %v2392
        %v2394 = vrot.slane %v2352, %v2393
        %v2395 = vlaneseq
        %v2396 = vshrl.u32 %v2395, 7
        %v2397 = vsub.s32 2, %v2396
        %v2398 = vrot.slane %v2352, %v2397
        %v2399 = vlaneseq
        %v2400 = vshrl.u32 %v2399, 7
        %v2401 = vsub.s32 3, %v2400
        %v2402 = vrot.slane %v2352, %v2401
        %v2403 = vlaneseq
        %v2404 = vshrl.u32 %v2403, 7
        %v2405 = vsub.s32 4, %v2404
        %v2406 = vrot.slane %v2352, %v2405
        %v2407 = vlaneseq
        %v2408 = vshrl.u32 %v2407, 7
        %v2409 = vsub.s32 5, %v2408
        %v2410 = vrot.slane %v2352, %v2409
        %v2411 = vlaneseq
        %v2412 = vshrl.u32 %v2411, 7
        %v2413 = vsub.s32 6, %v2412
        %v2414 = vrot.slane %v2352, %v2413
        %v2415 = vlaneseq
        %v2416 = vshrl.u32 %v2415, 7
        %v2417 = vsub.s32 7, %v2416
        %v2418 = vrot.slane %v2352, %v2417
        %v2435 = vmul.f32 %v2349, %v2358
        %v2436 = vmul.f32 %v2348, %v2362
        %v2437 = vmul.f32 %v2347, %v2366
        %v2438 = vmul.f32 %v2346, %v2370
        %v2439 = vmul.f32 %v2345, %v2374
        %v2440 = vmul.f32 %v2344, %v2378
        %v2441 = vmul.f32 %v2343, %v2382
        %v2442 = vmul.f32 %v2342, %v2386
        %v2443 = vmul.f32 %v2341, %v2390
        %v2444 = vmul.f32 %v2340, %v2394
        %v2445 = vmul.f32 %v2339, %v2398
        %v2446 = vmul.f32 %v2338, %v2402
        %v2447 = vmul.f32 %v2337, %v2406
        %v2448 = vmul.f32 %v2336, %v2410
        %v2449 = vmul.f32 %v2335, %v2414
        %v2450 = vmul.f32 %v2334, %v2418
        %s2451 = scalar_lea.vmem %s1, 12
        %v2452 = vld [vmem:[%s2451] sm:$0xf]
        %v2454 = vsel %vm337, %v2452, 0
        %v2457 = vsel %vm341, %v2435, 0
        %v2460 = vsel %vm341, %v2436, 0
        %v2463 = vsel %vm341, %v2437, 0
        %v2466 = vsel %vm341, %v2438, 0
        %v2469 = vsel %vm341, %v2439, 0
        %v2472 = vsel %vm341, %v2440, 0
        %v2475 = vsel %vm341, %v2441, 0
        %v2478 = vsel %vm341, %v2442, 0
        %v2481 = vsel %vm341, %v2443, 0
        %v2484 = vsel %vm341, %v2444, 0
        %v2487 = vsel %vm341, %v2445, 0
        %v2490 = vsel %vm341, %v2446, 0
        %v2493 = vsel %vm341, %v2447, 0
        %v2496 = vsel %vm341, %v2448, 0
        %v2499 = vsel %vm341, %v2449, 0
        %v2502 = vsel %vm341, %v2450, 0
        %2504 = vmatprep.subr.mxu0 %v2460
        %2505 = vmatpush1.msra.mxu0 %v2457
        %2506 = vmatprep.subr.mxu0 0.0
        %2507 = vmatpush1.msra.mxu0 0.0
        %2508 = vmatprep.subr.mxu0 0.0
        %2509 = vmatpush1.msra.mxu0 0.0
        %2510 = vmatprep.subr.mxu0 0.0
        %2511 = vmatpush1.msra.mxu0 0.0
        %2512 = vmatprep.subr.mxu0 0.0
        %2513 = vmatpush1.msra.mxu0 0.0
        %2514 = vmatprep.subr.mxu0 0.0
        %2515 = vmatpush1.msra.mxu0 0.0
        %2516 = vmatprep.subr.mxu0 0.0
        %2517 = vmatpush1.msra.mxu0 0.0
        %2518 = vmatprep.subr.mxu0 0.0
        %2519 = vmatpush1.msra.mxu0 0.0
        %2520 = vmatprep.subr.mxu0 0.0
        %2521 = vmatpush1.msra.mxu0 0.0
        %2522 = vmatprep.subr.mxu0 0.0
        %2523 = vmatpush1.msra.mxu0 0.0
        %2524 = vmatprep.subr.mxu0 0.0
        %2525 = vmatpush1.msra.mxu0 0.0
        %2526 = vmatprep.subr.mxu0 0.0
        %2527 = vmatpush1.msra.mxu0 0.0
        %2528 = vmatprep.subr.mxu0 0.0
        %2529 = vmatpush1.msra.mxu0 0.0
        %2530 = vmatprep.subr.mxu0 0.0
        %2531 = vmatpush1.msra.mxu0 0.0
        %2532 = vmatprep.subr.mxu0 0.0
        %2533 = vmatpush1.msra.mxu0 0.0
        %2534 = vmatprep.subr.mxu0 0.0
        %2535 = vmatpush1.msra.mxu0 0.0
        %2536 = vmatprep.subr.mxu0 0.0
        %2537 = vmatpush1.msra.mxu0 0.0
        %2538 = vmatprep.subr.mxu0 0.0
        %2539 = vmatpush1.msra.mxu0 0.0
        %2540 = vmatprep.subr.mxu0 0.0
        %2541 = vmatpush1.msra.mxu0 0.0
        %2542 = vmatprep.subr.mxu0 0.0
        %2543 = vmatpush1.msra.mxu0 0.0
        %2544 = vmatprep.subr.mxu0 0.0
        %2545 = vmatpush1.msra.mxu0 0.0
        %2546 = vmatprep.subr.mxu0 0.0
        %2547 = vmatpush1.msra.mxu0 0.0
        %2548 = vmatprep.subr.mxu0 0.0
        %2549 = vmatpush1.msra.mxu0 0.0
        %2550 = vmatprep.subr.mxu0 0.0
        %2551 = vmatpush1.msra.mxu0 0.0
        %2552 = vmatprep.subr.mxu0 0.0
        %2553 = vmatpush1.msra.mxu0 0.0
        %2554 = vmatprep.subr.mxu0 0.0
        %2555 = vmatpush1.msra.mxu0 0.0
        %2556 = vmatprep.subr.mxu0 0.0
        %2557 = vmatpush1.msra.mxu0 0.0
        %2558 = vmatprep.subr.mxu0 0.0
        %2559 = vmatpush1.msra.mxu0 0.0
        %2560 = vmatprep.subr.mxu0 0.0
        %2561 = vmatpush1.msra.mxu0 0.0
        %2562 = vmatprep.subr.mxu0 0.0
        %2563 = vmatpush1.msra.mxu0 0.0
        %2564 = vmatprep.subr.mxu0 0.0
        %2565 = vmatpush1.msra.mxu0 0.0
        %2566 = vmatprep.subr.mxu0 0.0
        %2567 = vmatpush1.msra.mxu0 0.0
        %2568 = vmatprep.mubr.f32.mxu0 0.0
        %2569 = vmatmul.mubr.f32.gmra.mrb[0].mxu0 %v2454
        %v2570 = vpop.f32.mrb[0].mxu0
        %v2571 = vadd.f32 0.0, %v2570
        %v2572 = vpop.f32.mrb[0].mxu0
        %v2573 = vadd.f32 0.0, %v2572
        %2574 = vdwg.mxu0
        %2575 = vmatprep.subr.mxu0 %v2466
        %2576 = vmatpush1.msra.mxu0 %v2463
        %2577 = vmatprep.subr.mxu0 0.0
        %2578 = vmatpush1.msra.mxu0 0.0
        %2579 = vmatprep.subr.mxu0 0.0
        %2580 = vmatpush1.msra.mxu0 0.0
        %2581 = vmatprep.subr.mxu0 0.0
        %2582 = vmatpush1.msra.mxu0 0.0
        %2583 = vmatprep.subr.mxu0 0.0
        %2584 = vmatpush1.msra.mxu0 0.0
        %2585 = vmatprep.subr.mxu0 0.0
        %2586 = vmatpush1.msra.mxu0 0.0
        %2587 = vmatprep.subr.mxu0 0.0
        %2588 = vmatpush1.msra.mxu0 0.0
        %2589 = vmatprep.subr.mxu0 0.0
        %2590 = vmatpush1.msra.mxu0 0.0
        %2591 = vmatprep.subr.mxu0 0.0
        %2592 = vmatpush1.msra.mxu0 0.0
        %2593 = vmatprep.subr.mxu0 0.0
        %2594 = vmatpush1.msra.mxu0 0.0
        %2595 = vmatprep.subr.mxu0 0.0
        %2596 = vmatpush1.msra.mxu0 0.0
        %2597 = vmatprep.subr.mxu0 0.0
        %2598 = vmatpush1.msra.mxu0 0.0
        %2599 = vmatprep.subr.mxu0 0.0
        %2600 = vmatpush1.msra.mxu0 0.0
        %2601 = vmatprep.subr.mxu0 0.0
        %2602 = vmatpush1.msra.mxu0 0.0
        %2603 = vmatprep.subr.mxu0 0.0
        %2604 = vmatpush1.msra.mxu0 0.0
        %2605 = vmatprep.subr.mxu0 0.0
        %2606 = vmatpush1.msra.mxu0 0.0
        %2607 = vmatprep.subr.mxu0 0.0
        %2608 = vmatpush1.msra.mxu0 0.0
        %2609 = vmatprep.subr.mxu0 0.0
        %2610 = vmatpush1.msra.mxu0 0.0
        %2611 = vmatprep.subr.mxu0 0.0
        %2612 = vmatpush1.msra.mxu0 0.0
        %2613 = vmatprep.subr.mxu0 0.0
        %2614 = vmatpush1.msra.mxu0 0.0
        %2615 = vmatprep.subr.mxu0 0.0
        %2616 = vmatpush1.msra.mxu0 0.0
        %2617 = vmatprep.subr.mxu0 0.0
        %2618 = vmatpush1.msra.mxu0 0.0
        %2619 = vmatprep.subr.mxu0 0.0
        %2620 = vmatpush1.msra.mxu0 0.0
        %2621 = vmatprep.subr.mxu0 0.0
        %2622 = vmatpush1.msra.mxu0 0.0
        %2623 = vmatprep.subr.mxu0 0.0
        %2624 = vmatpush1.msra.mxu0 0.0
        %2625 = vmatprep.subr.mxu0 0.0
        %2626 = vmatpush1.msra.mxu0 0.0
        %2627 = vmatprep.subr.mxu0 0.0
        %2628 = vmatpush1.msra.mxu0 0.0
        %2629 = vmatprep.subr.mxu0 0.0
        %2630 = vmatpush1.msra.mxu0 0.0
        %2631 = vmatprep.subr.mxu0 0.0
        %2632 = vmatpush1.msra.mxu0 0.0
        %2633 = vmatprep.subr.mxu0 0.0
        %2634 = vmatpush1.msra.mxu0 0.0
        %2635 = vmatprep.subr.mxu0 0.0
        %2636 = vmatpush1.msra.mxu0 0.0
        %2637 = vmatprep.subr.mxu0 0.0
        %2638 = vmatpush1.msra.mxu0 0.0
        %2639 = vmatprep.mubr.f32.mxu0 0.0
        %2640 = vmatmul.mubr.f32.gmra.mrb[0].mxu0 %v2454
        %v2641 = vpop.f32.mrb[0].mxu0
        %v2642 = vadd.f32 0.0, %v2641
        %v2643 = vpop.f32.mrb[0].mxu0
        %v2644 = vadd.f32 0.0, %v2643
        %2645 = vdwg.mxu0
        %2646 = vmatprep.subr.mxu0 %v2472
        %2647 = vmatpush1.msra.mxu0 %v2469
        %2648 = vmatprep.subr.mxu0 0.0
        %2649 = vmatpush1.msra.mxu0 0.0
        %2650 = vmatprep.subr.mxu0 0.0
        %2651 = vmatpush1.msra.mxu0 0.0
        %2652 = vmatprep.subr.mxu0 0.0
        %2653 = vmatpush1.msra.mxu0 0.0
        %2654 = vmatprep.subr.mxu0 0.0
        %2655 = vmatpush1.msra.mxu0 0.0
        %2656 = vmatprep.subr.mxu0 0.0
        %2657 = vmatpush1.msra.mxu0 0.0
        %2658 = vmatprep.subr.mxu0 0.0
        %2659 = vmatpush1.msra.mxu0 0.0
        %2660 = vmatprep.subr.mxu0 0.0
        %2661 = vmatpush1.msra.mxu0 0.0
        %2662 = vmatprep.subr.mxu0 0.0
        %2663 = vmatpush1.msra.mxu0 0.0
        %2664 = vmatprep.subr.mxu0 0.0
        %2665 = vmatpush1.msra.mxu0 0.0
        %2666 = vmatprep.subr.mxu0 0.0
        %2667 = vmatpush1.msra.mxu0 0.0
        %2668 = vmatprep.subr.mxu0 0.0
        %2669 = vmatpush1.msra.mxu0 0.0
        %2670 = vmatprep.subr.mxu0 0.0
        %2671 = vmatpush1.msra.mxu0 0.0
        %2672 = vmatprep.subr.mxu0 0.0
        %2673 = vmatpush1.msra.mxu0 0.0
        %2674 = vmatprep.subr.mxu0 0.0
        %2675 = vmatpush1.msra.mxu0 0.0
        %2676 = vmatprep.subr.mxu0 0.0
        %2677 = vmatpush1.msra.mxu0 0.0
        %2678 = vmatprep.subr.mxu0 0.0
        %2679 = vmatpush1.msra.mxu0 0.0
        %2680 = vmatprep.subr.mxu0 0.0
        %2681 = vmatpush1.msra.mxu0 0.0
        %2682 = vmatprep.subr.mxu0 0.0
        %2683 = vmatpush1.msra.mxu0 0.0
        %2684 = vmatprep.subr.mxu0 0.0
        %2685 = vmatpush1.msra.mxu0 0.0
        %2686 = vmatprep.subr.mxu0 0.0
        %2687 = vmatpush1.msra.mxu0 0.0
        %2688 = vmatprep.subr.mxu0 0.0
        %2689 = vmatpush1.msra.mxu0 0.0
        %2690 = vmatprep.subr.mxu0 0.0
        %2691 = vmatpush1.msra.mxu0 0.0
        %2692 = vmatprep.subr.mxu0 0.0
        %2693 = vmatpush1.msra.mxu0 0.0
        %2694 = vmatprep.subr.mxu0 0.0
        %2695 = vmatpush1.msra.mxu0 0.0
        %2696 = vmatprep.subr.mxu0 0.0
        %2697 = vmatpush1.msra.mxu0 0.0
        %2698 = vmatprep.subr.mxu0 0.0
        %2699 = vmatpush1.msra.mxu0 0.0
        %2700 = vmatprep.subr.mxu0 0.0
        %2701 = vmatpush1.msra.mxu0 0.0
        %2702 = vmatprep.subr.mxu0 0.0
        %2703 = vmatpush1.msra.mxu0 0.0
        %2704 = vmatprep.subr.mxu0 0.0
        %2705 = vmatpush1.msra.mxu0 0.0
        %2706 = vmatprep.subr.mxu0 0.0
        %2707 = vmatpush1.msra.mxu0 0.0
        %2708 = vmatprep.subr.mxu0 0.0
        %2709 = vmatpush1.msra.mxu0 0.0
        %2710 = vmatprep.mubr.f32.mxu0 0.0
        %2711 = vmatmul.mubr.f32.gmra.mrb[0].mxu0 %v2454
        %v2712 = vpop.f32.mrb[0].mxu0
        %v2713 = vadd.f32 0.0, %v2712
        %v2714 = vpop.f32.mrb[0].mxu0
        %v2715 = vadd.f32 0.0, %v2714
        %2716 = vdwg.mxu0
        %2717 = vmatprep.subr.mxu0 %v2478
        %2718 = vmatpush1.msra.mxu0 %v2475
        %2719 = vmatprep.subr.mxu0 0.0
        %2720 = vmatpush1.msra.mxu0 0.0
        %2721 = vmatprep.subr.mxu0 0.0
        %2722 = vmatpush1.msra.mxu0 0.0
        %2723 = vmatprep.subr.mxu0 0.0
        %2724 = vmatpush1.msra.mxu0 0.0
        %2725 = vmatprep.subr.mxu0 0.0
        %2726 = vmatpush1.msra.mxu0 0.0
        %2727 = vmatprep.subr.mxu0 0.0
        %2728 = vmatpush1.msra.mxu0 0.0
        %2729 = vmatprep.subr.mxu0 0.0
        %2730 = vmatpush1.msra.mxu0 0.0
        %2731 = vmatprep.subr.mxu0 0.0
        %2732 = vmatpush1.msra.mxu0 0.0
        %2733 = vmatprep.subr.mxu0 0.0
        %2734 = vmatpush1.msra.mxu0 0.0
        %2735 = vmatprep.subr.mxu0 0.0
        %2736 = vmatpush1.msra.mxu0 0.0
        %2737 = vmatprep.subr.mxu0 0.0
        %2738 = vmatpush1.msra.mxu0 0.0
        %2739 = vmatprep.subr.mxu0 0.0
        %2740 = vmatpush1.msra.mxu0 0.0
        %2741 = vmatprep.subr.mxu0 0.0
        %2742 = vmatpush1.msra.mxu0 0.0
        %2743 = vmatprep.subr.mxu0 0.0
        %2744 = vmatpush1.msra.mxu0 0.0
        %2745 = vmatprep.subr.mxu0 0.0
        %2746 = vmatpush1.msra.mxu0 0.0
        %2747 = vmatprep.subr.mxu0 0.0
        %2748 = vmatpush1.msra.mxu0 0.0
        %2749 = vmatprep.subr.mxu0 0.0
        %2750 = vmatpush1.msra.mxu0 0.0
        %2751 = vmatprep.subr.mxu0 0.0
        %2752 = vmatpush1.msra.mxu0 0.0
        %2753 = vmatprep.subr.mxu0 0.0
        %2754 = vmatpush1.msra.mxu0 0.0
        %2755 = vmatprep.subr.mxu0 0.0
        %2756 = vmatpush1.msra.mxu0 0.0
        %2757 = vmatprep.subr.mxu0 0.0
        %2758 = vmatpush1.msra.mxu0 0.0
        %2759 = vmatprep.subr.mxu0 0.0
        %2760 = vmatpush1.msra.mxu0 0.0
        %2761 = vmatprep.subr.mxu0 0.0
        %2762 = vmatpush1.msra.mxu0 0.0
        %2763 = vmatprep.subr.mxu0 0.0
        %2764 = vmatpush1.msra.mxu0 0.0
        %2765 = vmatprep.subr.mxu0 0.0
        %2766 = vmatpush1.msra.mxu0 0.0
        %2767 = vmatprep.subr.mxu0 0.0
        %2768 = vmatpush1.msra.mxu0 0.0
        %2769 = vmatprep.subr.mxu0 0.0
        %2770 = vmatpush1.msra.mxu0 0.0
        %2771 = vmatprep.subr.mxu0 0.0
        %2772 = vmatpush1.msra.mxu0 0.0
        %2773 = vmatprep.subr.mxu0 0.0
        %2774 = vmatpush1.msra.mxu0 0.0
        %2775 = vmatprep.subr.mxu0 0.0
        %2776 = vmatpush1.msra.mxu0 0.0
        %2777 = vmatprep.subr.mxu0 0.0
        %2778 = vmatpush1.msra.mxu0 0.0
        %2779 = vmatprep.subr.mxu0 0.0
        %2780 = vmatpush1.msra.mxu0 0.0
        %2781 = vmatprep.mubr.f32.mxu0 0.0
        %2782 = vmatmul.mubr.f32.gmra.mrb[0].mxu0 %v2454
        %v2783 = vpop.f32.mrb[0].mxu0
        %v2784 = vadd.f32 0.0, %v2783
        %v2785 = vpop.f32.mrb[0].mxu0
        %v2786 = vadd.f32 0.0, %v2785
        %2787 = vdwg.mxu0
        %2788 = vmatprep.subr.mxu0 %v2484
        %2789 = vmatpush1.msra.mxu0 %v2481
        %2790 = vmatprep.subr.mxu0 0.0
        %2791 = vmatpush1.msra.mxu0 0.0
        %2792 = vmatprep.subr.mxu0 0.0
        %2793 = vmatpush1.msra.mxu0 0.0
        %2794 = vmatprep.subr.mxu0 0.0
        %2795 = vmatpush1.msra.mxu0 0.0
        %2796 = vmatprep.subr.mxu0 0.0
        %2797 = vmatpush1.msra.mxu0 0.0
        %2798 = vmatprep.subr.mxu0 0.0
        %2799 = vmatpush1.msra.mxu0 0.0
        %2800 = vmatprep.subr.mxu0 0.0
        %2801 = vmatpush1.msra.mxu0 0.0
        %2802 = vmatprep.subr.mxu0 0.0
        %2803 = vmatpush1.msra.mxu0 0.0
        %2804 = vmatprep.subr.mxu0 0.0
        %2805 = vmatpush1.msra.mxu0 0.0
        %2806 = vmatprep.subr.mxu0 0.0
        %2807 = vmatpush1.msra.mxu0 0.0
        %2808 = vmatprep.subr.mxu0 0.0
        %2809 = vmatpush1.msra.mxu0 0.0
        %2810 = vmatprep.subr.mxu0 0.0
        %2811 = vmatpush1.msra.mxu0 0.0
        %2812 = vmatprep.subr.mxu0 0.0
        %2813 = vmatpush1.msra.mxu0 0.0
        %2814 = vmatprep.subr.mxu0 0.0
        %2815 = vmatpush1.msra.mxu0 0.0
        %2816 = vmatprep.subr.mxu0 0.0
        %2817 = vmatpush1.msra.mxu0 0.0
        %2818 = vmatprep.subr.mxu0 0.0
        %2819 = vmatpush1.msra.mxu0 0.0
        %2820 = vmatprep.subr.mxu0 0.0
        %2821 = vmatpush1.msra.mxu0 0.0
        %2822 = vmatprep.subr.mxu0 0.0
        %2823 = vmatpush1.msra.mxu0 0.0
        %2824 = vmatprep.subr.mxu0 0.0
        %2825 = vmatpush1.msra.mxu0 0.0
        %2826 = vmatprep.subr.mxu0 0.0
        %2827 = vmatpush1.msra.mxu0 0.0
        %2828 = vmatprep.subr.mxu0 0.0
        %2829 = vmatpush1.msra.mxu0 0.0
        %2830 = vmatprep.subr.mxu0 0.0
        %2831 = vmatpush1.msra.mxu0 0.0
        %2832 = vmatprep.subr.mxu0 0.0
        %2833 = vmatpush1.msra.mxu0 0.0
        %2834 = vmatprep.subr.mxu0 0.0
        %2835 = vmatpush1.msra.mxu0 0.0
        %2836 = vmatprep.subr.mxu0 0.0
        %2837 = vmatpush1.msra.mxu0 0.0
        %2838 = vmatprep.subr.mxu0 0.0
        %2839 = vmatpush1.msra.mxu0 0.0
        %2840 = vmatprep.subr.mxu0 0.0
        %2841 = vmatpush1.msra.mxu0 0.0
        %2842 = vmatprep.subr.mxu0 0.0
        %2843 = vmatpush1.msra.mxu0 0.0
        %2844 = vmatprep.subr.mxu0 0.0
        %2845 = vmatpush1.msra.mxu0 0.0
        %2846 = vmatprep.subr.mxu0 0.0
        %2847 = vmatpush1.msra.mxu0 0.0
        %2848 = vmatprep.subr.mxu0 0.0
        %2849 = vmatpush1.msra.mxu0 0.0
        %2850 = vmatprep.subr.mxu0 0.0
        %2851 = vmatpush1.msra.mxu0 0.0
        %2852 = vmatprep.mubr.f32.mxu0 0.0
        %2853 = vmatmul.mubr.f32.gmra.mrb[0].mxu0 %v2454
        %v2854 = vpop.f32.mrb[0].mxu0
        %v2855 = vadd.f32 0.0, %v2854
        %v2856 = vpop.f32.mrb[0].mxu0
        %v2857 = vadd.f32 0.0, %v2856
        %2858 = vdwg.mxu0
        %2859 = vmatprep.subr.mxu0 %v2490
        %2860 = vmatpush1.msra.mxu0 %v2487
        %2861 = vmatprep.subr.mxu0 0.0
        %2862 = vmatpush1.msra.mxu0 0.0
        %2863 = vmatprep.subr.mxu0 0.0
        %2864 = vmatpush1.msra.mxu0 0.0
        %2865 = vmatprep.subr.mxu0 0.0
        %2866 = vmatpush1.msra.mxu0 0.0
        %2867 = vmatprep.subr.mxu0 0.0
        %2868 = vmatpush1.msra.mxu0 0.0
        %2869 = vmatprep.subr.mxu0 0.0
        %2870 = vmatpush1.msra.mxu0 0.0
        %2871 = vmatprep.subr.mxu0 0.0
        %2872 = vmatpush1.msra.mxu0 0.0
        %2873 = vmatprep.subr.mxu0 0.0
        %2874 = vmatpush1.msra.mxu0 0.0
        %2875 = vmatprep.subr.mxu0 0.0
        %2876 = vmatpush1.msra.mxu0 0.0
        %2877 = vmatprep.subr.mxu0 0.0
        %2878 = vmatpush1.msra.mxu0 0.0
        %2879 = vmatprep.subr.mxu0 0.0
        %2880 = vmatpush1.msra.mxu0 0.0
        %2881 = vmatprep.subr.mxu0 0.0
        %2882 = vmatpush1.msra.mxu0 0.0
        %2883 = vmatprep.subr.mxu0 0.0
        %2884 = vmatpush1.msra.mxu0 0.0
        %2885 = vmatprep.subr.mxu0 0.0
        %2886 = vmatpush1.msra.mxu0 0.0
        %2887 = vmatprep.subr.mxu0 0.0
        %2888 = vmatpush1.msra.mxu0 0.0
        %2889 = vmatprep.subr.mxu0 0.0
        %2890 = vmatpush1.msra.mxu0 0.0
        %2891 = vmatprep.subr.mxu0 0.0
        %2892 = vmatpush1.msra.mxu0 0.0
        %2893 = vmatprep.subr.mxu0 0.0
        %2894 = vmatpush1.msra.mxu0 0.0
        %2895 = vmatprep.subr.mxu0 0.0
        %2896 = vmatpush1.msra.mxu0 0.0
        %2897 = vmatprep.subr.mxu0 0.0
        %2898 = vmatpush1.msra.mxu0 0.0
        %2899 = vmatprep.subr.mxu0 0.0
        %2900 = vmatpush1.msra.mxu0 0.0
        %2901 = vmatprep.subr.mxu0 0.0
        %2902 = vmatpush1.msra.mxu0 0.0
        %2903 = vmatprep.subr.mxu0 0.0
        %2904 = vmatpush1.msra.mxu0 0.0
        %2905 = vmatprep.subr.mxu0 0.0
        %2906 = vmatpush1.msra.mxu0 0.0
        %2907 = vmatprep.subr.mxu0 0.0
        %2908 = vmatpush1.msra.mxu0 0.0
        %2909 = vmatprep.subr.mxu0 0.0
        %2910 = vmatpush1.msra.mxu0 0.0
        %2911 = vmatprep.subr.mxu0 0.0
        %2912 = vmatpush1.msra.mxu0 0.0
        %2913 = vmatprep.subr.mxu0 0.0
        %2914 = vmatpush1.msra.mxu0 0.0
        %2915 = vmatprep.subr.mxu0 0.0
        %2916 = vmatpush1.msra.mxu0 0.0
        %2917 = vmatprep.subr.mxu0 0.0
        %2918 = vmatpush1.msra.mxu0 0.0
        %2919 = vmatprep.subr.mxu0 0.0
        %2920 = vmatpush1.msra.mxu0 0.0
        %2921 = vmatprep.subr.mxu0 0.0
        %2922 = vmatpush1.msra.mxu0 0.0
        %2923 = vmatprep.mubr.f32.mxu0 0.0
        %2924 = vmatmul.mubr.f32.gmra.mrb[0].mxu0 %v2454
        %v2925 = vpop.f32.mrb[0].mxu0
        %v2926 = vadd.f32 0.0, %v2925
        %v2927 = vpop.f32.mrb[0].mxu0
        %v2928 = vadd.f32 0.0, %v2927
        %2929 = vdwg.mxu0
        %2930 = vmatprep.subr.mxu0 %v2496
        %2931 = vmatpush1.msra.mxu0 %v2493
        %2932 = vmatprep.subr.mxu0 0.0
        %2933 = vmatpush1.msra.mxu0 0.0
        %2934 = vmatprep.subr.mxu0 0.0
        %2935 = vmatpush1.msra.mxu0 0.0
        %2936 = vmatprep.subr.mxu0 0.0
        %2937 = vmatpush1.msra.mxu0 0.0
        %2938 = vmatprep.subr.mxu0 0.0
        %2939 = vmatpush1.msra.mxu0 0.0
        %2940 = vmatprep.subr.mxu0 0.0
        %2941 = vmatpush1.msra.mxu0 0.0
        %2942 = vmatprep.subr.mxu0 0.0
        %2943 = vmatpush1.msra.mxu0 0.0
        %2944 = vmatprep.subr.mxu0 0.0
        %2945 = vmatpush1.msra.mxu0 0.0
        %2946 = vmatprep.subr.mxu0 0.0
        %2947 = vmatpush1.msra.mxu0 0.0
        %2948 = vmatprep.subr.mxu0 0.0
        %2949 = vmatpush1.msra.mxu0 0.0
        %2950 = vmatprep.subr.mxu0 0.0
        %2951 = vmatpush1.msra.mxu0 0.0
        %2952 = vmatprep.subr.mxu0 0.0
        %2953 = vmatpush1.msra.mxu0 0.0
        %2954 = vmatprep.subr.mxu0 0.0
        %2955 = vmatpush1.msra.mxu0 0.0
        %2956 = vmatprep.subr.mxu0 0.0
        %2957 = vmatpush1.msra.mxu0 0.0
        %2958 = vmatprep.subr.mxu0 0.0
        %2959 = vmatpush1.msra.mxu0 0.0
        %2960 = vmatprep.subr.mxu0 0.0
        %2961 = vmatpush1.msra.mxu0 0.0
        %2962 = vmatprep.subr.mxu0 0.0
        %2963 = vmatpush1.msra.mxu0 0.0
        %2964 = vmatprep.subr.mxu0 0.0
        %2965 = vmatpush1.msra.mxu0 0.0
        %2966 = vmatprep.subr.mxu0 0.0
        %2967 = vmatpush1.msra.mxu0 0.0
        %2968 = vmatprep.subr.mxu0 0.0
        %2969 = vmatpush1.msra.mxu0 0.0
        %2970 = vmatprep.subr.mxu0 0.0
        %2971 = vmatpush1.msra.mxu0 0.0
        %2972 = vmatprep.subr.mxu0 0.0
        %2973 = vmatpush1.msra.mxu0 0.0
        %2974 = vmatprep.subr.mxu0 0.0
        %2975 = vmatpush1.msra.mxu0 0.0
        %2976 = vmatprep.subr.mxu0 0.0
        %2977 = vmatpush1.msra.mxu0 0.0
        %2978 = vmatprep.subr.mxu0 0.0
        %2979 = vmatpush1.msra.mxu0 0.0
        %2980 = vmatprep.subr.mxu0 0.0
        %2981 = vmatpush1.msra.mxu0 0.0
        %2982 = vmatprep.subr.mxu0 0.0
        %2983 = vmatpush1.msra.mxu0 0.0
        %2984 = vmatprep.subr.mxu0 0.0
        %2985 = vmatpush1.msra.mxu0 0.0
        %2986 = vmatprep.subr.mxu0 0.0
        %2987 = vmatpush1.msra.mxu0 0.0
        %2988 = vmatprep.subr.mxu0 0.0
        %2989 = vmatpush1.msra.mxu0 0.0
        %2990 = vmatprep.subr.mxu0 0.0
        %2991 = vmatpush1.msra.mxu0 0.0
        %2992 = vmatprep.subr.mxu0 0.0
        %2993 = vmatpush1.msra.mxu0 0.0
        %2994 = vmatprep.mubr.f32.mxu0 0.0
        %2995 = vmatmul.mubr.f32.gmra.mrb[0].mxu0 %v2454
        %v2996 = vpop.f32.mrb[0].mxu0
        %v2997 = vadd.f32 0.0, %v2996
        %v2998 = vpop.f32.mrb[0].mxu0
        %v2999 = vadd.f32 0.0, %v2998
        %3000 = vdwg.mxu0
        %3001 = vmatprep.subr.mxu0 %v2502
        %3002 = vmatpush1.msra.mxu0 %v2499
        %3003 = vmatprep.subr.mxu0 0.0
        %3004 = vmatpush1.msra.mxu0 0.0
        %3005 = vmatprep.subr.mxu0 0.0
        %3006 = vmatpush1.msra.mxu0 0.0
        %3007 = vmatprep.subr.mxu0 0.0
        %3008 = vmatpush1.msra.mxu0 0.0
        %3009 = vmatprep.subr.mxu0 0.0
        %3010 = vmatpush1.msra.mxu0 0.0
        %3011 = vmatprep.subr.mxu0 0.0
        %3012 = vmatpush1.msra.mxu0 0.0
        %3013 = vmatprep.subr.mxu0 0.0
        %3014 = vmatpush1.msra.mxu0 0.0
        %3015 = vmatprep.subr.mxu0 0.0
        %3016 = vmatpush1.msra.mxu0 0.0
        %3017 = vmatprep.subr.mxu0 0.0
        %3018 = vmatpush1.msra.mxu0 0.0
        %3019 = vmatprep.subr.mxu0 0.0
        %3020 = vmatpush1.msra.mxu0 0.0
        %3021 = vmatprep.subr.mxu0 0.0
        %3022 = vmatpush1.msra.mxu0 0.0
        %3023 = vmatprep.subr.mxu0 0.0
        %3024 = vmatpush1.msra.mxu0 0.0
        %3025 = vmatprep.subr.mxu0 0.0
        %3026 = vmatpush1.msra.mxu0 0.0
        %3027 = vmatprep.subr.mxu0 0.0
        %3028 = vmatpush1.msra.mxu0 0.0
        %3029 = vmatprep.subr.mxu0 0.0
        %3030 = vmatpush1.msra.mxu0 0.0
        %3031 = vmatprep.subr.mxu0 0.0
        %3032 = vmatpush1.msra.mxu0 0.0
        %3033 = vmatprep.subr.mxu0 0.0
        %3034 = vmatpush1.msra.mxu0 0.0
        %3035 = vmatprep.subr.mxu0 0.0
        %3036 = vmatpush1.msra.mxu0 0.0
        %3037 = vmatprep.subr.mxu0 0.0
        %3038 = vmatpush1.msra.mxu0 0.0
        %3039 = vmatprep.subr.mxu0 0.0
        %3040 = vmatpush1.msra.mxu0 0.0
        %3041 = vmatprep.subr.mxu0 0.0
        %3042 = vmatpush1.msra.mxu0 0.0
        %3043 = vmatprep.subr.mxu0 0.0
        %3044 = vmatpush1.msra.mxu0 0.0
        %3045 = vmatprep.subr.mxu0 0.0
        %3046 = vmatpush1.msra.mxu0 0.0
        %3047 = vmatprep.subr.mxu0 0.0
        %3048 = vmatpush1.msra.mxu0 0.0
        %3049 = vmatprep.subr.mxu0 0.0
        %3050 = vmatpush1.msra.mxu0 0.0
        %3051 = vmatprep.subr.mxu0 0.0
        %3052 = vmatpush1.msra.mxu0 0.0
        %3053 = vmatprep.subr.mxu0 0.0
        %3054 = vmatpush1.msra.mxu0 0.0
        %3055 = vmatprep.subr.mxu0 0.0
        %3056 = vmatpush1.msra.mxu0 0.0
        %3057 = vmatprep.subr.mxu0 0.0
        %3058 = vmatpush1.msra.mxu0 0.0
        %3059 = vmatprep.subr.mxu0 0.0
        %3060 = vmatpush1.msra.mxu0 0.0
        %3061 = vmatprep.subr.mxu0 0.0
        %3062 = vmatpush1.msra.mxu0 0.0
        %3063 = vmatprep.subr.mxu0 0.0
        %3064 = vmatpush1.msra.mxu0 0.0
        %3065 = vmatprep.mubr.f32.mxu0 0.0
        %3066 = vmatmul.mubr.f32.gmra.mrb[0].mxu0 %v2454
        %v3067 = vpop.f32.mrb[0].mxu0
        %v3068 = vadd.f32 0.0, %v3067
        %v3069 = vpop.f32.mrb[0].mxu0
        %v3070 = vadd.f32 0.0, %v3069
        %3071 = vdwg.mxu0
        %v3072 = vadd.f32 %v2283, %v2571
        %v3073 = vadd.f32 %v2284, %v2573
        %v3074 = vadd.f32 %v2285, %v2642
        %v3075 = vadd.f32 %v2286, %v2644
        %v3076 = vadd.f32 %v2287, %v2713
        %v3077 = vadd.f32 %v2288, %v2715
        %v3078 = vadd.f32 %v2289, %v2784
        %v3079 = vadd.f32 %v2290, %v2786
        %v3080 = vadd.f32 %v2291, %v2855
        %v3081 = vadd.f32 %v2292, %v2857
        %v3082 = vadd.f32 %v2293, %v2926
        %v3083 = vadd.f32 %v2294, %v2928
        %v3084 = vadd.f32 %v2295, %v2997
        %v3085 = vadd.f32 %v2296, %v2999
        %v3086 = vadd.f32 %v2297, %v3068
        %v3087 = vadd.f32 %v2298, %v3070
        %3088 = vrot.lane.b32.xlu0 %v202, 16
        %v3089 = vpop.permute.xlu0 %3088
        %3090 = vrot.lane.b32.xlu0 %v219, 16
        %v3091 = vpop.permute.xlu0 %3090
        %3092 = vrot.lane.b32.xlu0 %v203, 16
        %v3093 = vpop.permute.xlu0 %3092
        %3094 = vrot.lane.b32.xlu0 %v220, 16
        %v3095 = vpop.permute.xlu0 %3094
        %3096 = vrot.lane.b32.xlu0 %v204, 16
        %v3097 = vpop.permute.xlu0 %3096
        %3098 = vrot.lane.b32.xlu0 %v221, 16
        %v3099 = vpop.permute.xlu0 %3098
        %3100 = vrot.lane.b32.xlu0 %v205, 16
        %v3101 = vpop.permute.xlu0 %3100
        %3102 = vrot.lane.b32.xlu0 %v222, 16
        %v3103 = vpop.permute.xlu0 %3102
        %3104 = vrot.lane.b32.xlu0 %v206, 16
        %v3105 = vpop.permute.xlu0 %3104
        %3106 = vrot.lane.b32.xlu0 %v223, 16
        %v3107 = vpop.permute.xlu0 %3106
        %3108 = vrot.lane.b32.xlu0 %v207, 16
        %v3109 = vpop.permute.xlu0 %3108
        %3110 = vrot.lane.b32.xlu0 %v224, 16
        %v3111 = vpop.permute.xlu0 %3110
        %3112 = vrot.lane.b32.xlu0 %v208, 16
        %v3113 = vpop.permute.xlu0 %3112
        %3114 = vrot.lane.b32.xlu0 %v225, 16
        %v3115 = vpop.permute.xlu0 %3114
        %3116 = vrot.lane.b32.xlu0 %v209, 16
        %v3117 = vpop.permute.xlu0 %3116
        %3118 = vrot.lane.b32.xlu0 %v226, 16
        %v3119 = vpop.permute.xlu0 %3118
        %vm3120 = vcmp.lt.s32.totalorder %v2332, 16
        %v3121 = vsel %vm3120, %v3117, %v3119
        %v3122 = vsel %vm3120, %v3115, %v3117
        %v3123 = vsel %vm3120, %v3113, %v3115
        %v3124 = vsel %vm3120, %v3111, %v3113
        %v3125 = vsel %vm3120, %v3109, %v3111
        %v3126 = vsel %vm3120, %v3107, %v3109
        %v3127 = vsel %vm3120, %v3105, %v3107
        %v3128 = vsel %vm3120, %v3103, %v3105
        %v3129 = vsel %vm3120, %v3101, %v3103
        %v3130 = vsel %vm3120, %v3099, %v3101
        %v3131 = vsel %vm3120, %v3097, %v3099
        %v3132 = vsel %vm3120, %v3095, %v3097
        %v3133 = vsel %vm3120, %v3093, %v3095
        %v3134 = vsel %vm3120, %v3091, %v3093
        %v3135 = vsel %vm3120, %v3089, %v3091
        %v3136 = vsel %vm3120, %v3119, %v3089
        %s3137 = scalar_lea.vmem [#allocation5], 48
        %v3138 = vld [vmem:[%s3137] sm:$0xff]
        %v3139 = vld [vmem:[%s3137 + $0x8] sm:$0xff]
        %v3142 = vlaneseq
        %v3143 = vshrl.u32 %v3142, 7
        %v3144 = vsub.s32 0, %v3143
        %v3145 = vrot.slane %v3138, %v3144
        %v3146 = vlaneseq
        %v3147 = vshrl.u32 %v3146, 7
        %v3148 = vsub.s32 1, %v3147
        %v3149 = vrot.slane %v3138, %v3148
        %v3150 = vlaneseq
        %v3151 = vshrl.u32 %v3150, 7
        %v3152 = vsub.s32 2, %v3151
        %v3153 = vrot.slane %v3138, %v3152
        %v3154 = vlaneseq
        %v3155 = vshrl.u32 %v3154, 7
        %v3156 = vsub.s32 3, %v3155
        %v3157 = vrot.slane %v3138, %v3156
        %v3158 = vlaneseq
        %v3159 = vshrl.u32 %v3158, 7
        %v3160 = vsub.s32 4, %v3159
        %v3161 = vrot.slane %v3138, %v3160
        %v3162 = vlaneseq
        %v3163 = vshrl.u32 %v3162, 7
        %v3164 = vsub.s32 5, %v3163
        %v3165 = vrot.slane %v3138, %v3164
        %v3166 = vlaneseq
        %v3167 = vshrl.u32 %v3166, 7
        %v3168 = vsub.s32 6, %v3167
        %v3169 = vrot.slane %v3138, %v3168
        %v3170 = vlaneseq
        %v3171 = vshrl.u32 %v3170, 7
        %v3172 = vsub.s32 7, %v3171
        %v3173 = vrot.slane %v3138, %v3172
        %v3174 = vlaneseq
        %v3175 = vshrl.u32 %v3174, 7
        %v3176 = vsub.s32 0, %v3175
        %v3177 = vrot.slane %v3139, %v3176
        %v3178 = vlaneseq
        %v3179 = vshrl.u32 %v3178, 7
        %v3180 = vsub.s32 1, %v3179
        %v3181 = vrot.slane %v3139, %v3180
        %v3182 = vlaneseq
        %v3183 = vshrl.u32 %v3182, 7
        %v3184 = vsub.s32 2, %v3183
        %v3185 = vrot.slane %v3139, %v3184
        %v3186 = vlaneseq
        %v3187 = vshrl.u32 %v3186, 7
        %v3188 = vsub.s32 3, %v3187
        %v3189 = vrot.slane %v3139, %v3188
        %v3190 = vlaneseq
        %v3191 = vshrl.u32 %v3190, 7
        %v3192 = vsub.s32 4, %v3191
        %v3193 = vrot.slane %v3139, %v3192
        %v3194 = vlaneseq
        %v3195 = vshrl.u32 %v3194, 7
        %v3196 = vsub.s32 5, %v3195
        %v3197 = vrot.slane %v3139, %v3196
        %v3198 = vlaneseq
        %v3199 = vshrl.u32 %v3198, 7
        %v3200 = vsub.s32 6, %v3199
        %v3201 = vrot.slane %v3139, %v3200
        %v3202 = vlaneseq
        %v3203 = vshrl.u32 %v3202, 7
        %v3204 = vsub.s32 7, %v3203
        %v3205 = vrot.slane %v3139, %v3204
        %v3222 = vmul.f32 %v3136, %v3145
        %v3223 = vmul.f32 %v3135, %v3149
        %v3224 = vmul.f32 %v3134, %v3153
        %v3225 = vmul.f32 %v3133, %v3157
        %v3226 = vmul.f32 %v3132, %v3161
        %v3227 = vmul.f32 %v3131, %v3165
        %v3228 = vmul.f32 %v3130, %v3169
        %v3229 = vmul.f32 %v3129, %v3173
        %v3230 = vmul.f32 %v3128, %v3177
        %v3231 = vmul.f32 %v3127, %v3181
        %v3232 = vmul.f32 %v3126, %v3185
        %v3233 = vmul.f32 %v3125, %v3189
        %v3234 = vmul.f32 %v3124, %v3193
        %v3235 = vmul.f32 %v3123, %v3197
        %v3236 = vmul.f32 %v3122, %v3201
        %v3237 = vmul.f32 %v3121, %v3205
        %s3238 = scalar_lea.vmem %s1, 16
        %v3239 = vld [vmem:[%s3238] sm:$0xf]
        %v3241 = vsel %vm337, %v3239, 0
        %v3244 = vsel %vm341, %v3222, 0
        %v3247 = vsel %vm341, %v3223, 0
        %v3250 = vsel %vm341, %v3224, 0
        %v3253 = vsel %vm341, %v3225, 0
        %v3256 = vsel %vm341, %v3226, 0
        %v3259 = vsel %vm341, %v3227, 0
        %v3262 = vsel %vm341, %v3228, 0
        %v3265 = vsel %vm341, %v3229, 0
        %v3268 = vsel %vm341, %v3230, 0
        %v3271 = vsel %vm341, %v3231, 0
        %v3274 = vsel %vm341, %v3232, 0
        %v3277 = vsel %vm341, %v3233, 0
        %v3280 = vsel %vm341, %v3234, 0
        %v3283 = vsel %vm341, %v3235, 0
        %v3286 = vsel %vm341, %v3236, 0
        %v3289 = vsel %vm341, %v3237, 0
        %3291 = vmatprep.subr.mxu0 %v3247
        %3292 = vmatpush1.msra.mxu0 %v3244
        %3293 = vmatprep.subr.mxu0 0.0
        %3294 = vmatpush1.msra.mxu0 0.0
        %3295 = vmatprep.subr.mxu0 0.0
        %3296 = vmatpush1.msra.mxu0 0.0
        %3297 = vmatprep.subr.mxu0 0.0
        %3298 = vmatpush1.msra.mxu0 0.0
        %3299 = vmatprep.subr.mxu0 0.0
        %3300 = vmatpush1.msra.mxu0 0.0
        %3301 = vmatprep.subr.mxu0 0.0
        %3302 = vmatpush1.msra.mxu0 0.0
        %3303 = vmatprep.subr.mxu0 0.0
        %3304 = vmatpush1.msra.mxu0 0.0
        %3305 = vmatprep.subr.mxu0 0.0
        %3306 = vmatpush1.msra.mxu0 0.0
        %3307 = vmatprep.subr.mxu0 0.0
        %3308 = vmatpush1.msra.mxu0 0.0
        %3309 = vmatprep.subr.mxu0 0.0
        %3310 = vmatpush1.msra.mxu0 0.0
        %3311 = vmatprep.subr.mxu0 0.0
        %3312 = vmatpush1.msra.mxu0 0.0
        %3313 = vmatprep.subr.mxu0 0.0
        %3314 = vmatpush1.msra.mxu0 0.0
        %3315 = vmatprep.subr.mxu0 0.0
        %3316 = vmatpush1.msra.mxu0 0.0
        %3317 = vmatprep.subr.mxu0 0.0
        %3318 = vmatpush1.msra.mxu0 0.0
        %3319 = vmatprep.subr.mxu0 0.0
        %3320 = vmatpush1.msra.mxu0 0.0
        %3321 = vmatprep.subr.mxu0 0.0
        %3322 = vmatpush1.msra.mxu0 0.0
        %3323 = vmatprep.subr.mxu0 0.0
        %3324 = vmatpush1.msra.mxu0 0.0
        %3325 = vmatprep.subr.mxu0 0.0
        %3326 = vmatpush1.msra.mxu0 0.0
        %3327 = vmatprep.subr.mxu0 0.0
        %3328 = vmatpush1.msra.mxu0 0.0
        %3329 = vmatprep.subr.mxu0 0.0
        %3330 = vmatpush1.msra.mxu0 0.0
        %3331 = vmatprep.subr.mxu0 0.0
        %3332 = vmatpush1.msra.mxu0 0.0
        %3333 = vmatprep.subr.mxu0 0.0
        %3334 = vmatpush1.msra.mxu0 0.0
        %3335 = vmatprep.subr.mxu0 0.0
        %3336 = vmatpush1.msra.mxu0 0.0
        %3337 = vmatprep.subr.mxu0 0.0
        %3338 = vmatpush1.msra.mxu0 0.0
        %3339 = vmatprep.subr.mxu0 0.0
        %3340 = vmatpush1.msra.mxu0 0.0
        %3341 = vmatprep.subr.mxu0 0.0
        %3342 = vmatpush1.msra.mxu0 0.0
        %3343 = vmatprep.subr.mxu0 0.0
        %3344 = vmatpush1.msra.mxu0 0.0
        %3345 = vmatprep.subr.mxu0 0.0
        %3346 = vmatpush1.msra.mxu0 0.0
        %3347 = vmatprep.subr.mxu0 0.0
        %3348 = vmatpush1.msra.mxu0 0.0
        %3349 = vmatprep.subr.mxu0 0.0
        %3350 = vmatpush1.msra.mxu0 0.0
        %3351 = vmatprep.subr.mxu0 0.0
        %3352 = vmatpush1.msra.mxu0 0.0
        %3353 = vmatprep.subr.mxu0 0.0
        %3354 = vmatpush1.msra.mxu0 0.0
        %3355 = vmatprep.mubr.f32.mxu0 0.0
        %3356 = vmatmul.mubr.f32.gmra.mrb[0].mxu0 %v3241
        %v3357 = vpop.f32.mrb[0].mxu0
        %v3358 = vadd.f32 0.0, %v3357
        %v3359 = vpop.f32.mrb[0].mxu0
        %v3360 = vadd.f32 0.0, %v3359
        %3361 = vdwg.mxu0
        %3362 = vmatprep.subr.mxu0 %v3253
        %3363 = vmatpush1.msra.mxu0 %v3250
        %3364 = vmatprep.subr.mxu0 0.0
        %3365 = vmatpush1.msra.mxu0 0.0
        %3366 = vmatprep.subr.mxu0 0.0
        %3367 = vmatpush1.msra.mxu0 0.0
        %3368 = vmatprep.subr.mxu0 0.0
        %3369 = vmatpush1.msra.mxu0 0.0
        %3370 = vmatprep.subr.mxu0 0.0
        %3371 = vmatpush1.msra.mxu0 0.0
        %3372 = vmatprep.subr.mxu0 0.0
        %3373 = vmatpush1.msra.mxu0 0.0
        %3374 = vmatprep.subr.mxu0 0.0
        %3375 = vmatpush1.msra.mxu0 0.0
        %3376 = vmatprep.subr.mxu0 0.0
        %3377 = vmatpush1.msra.mxu0 0.0
        %3378 = vmatprep.subr.mxu0 0.0
        %3379 = vmatpush1.msra.mxu0 0.0
        %3380 = vmatprep.subr.mxu0 0.0
        %3381 = vmatpush1.msra.mxu0 0.0
        %3382 = vmatprep.subr.mxu0 0.0
        %3383 = vmatpush1.msra.mxu0 0.0
        %3384 = vmatprep.subr.mxu0 0.0
        %3385 = vmatpush1.msra.mxu0 0.0
        %3386 = vmatprep.subr.mxu0 0.0
        %3387 = vmatpush1.msra.mxu0 0.0
        %3388 = vmatprep.subr.mxu0 0.0
        %3389 = vmatpush1.msra.mxu0 0.0
        %3390 = vmatprep.subr.mxu0 0.0
        %3391 = vmatpush1.msra.mxu0 0.0
        %3392 = vmatprep.subr.mxu0 0.0
        %3393 = vmatpush1.msra.mxu0 0.0
        %3394 = vmatprep.subr.mxu0 0.0
        %3395 = vmatpush1.msra.mxu0 0.0
        %3396 = vmatprep.subr.mxu0 0.0
        %3397 = vmatpush1.msra.mxu0 0.0
        %3398 = vmatprep.subr.mxu0 0.0
        %3399 = vmatpush1.msra.mxu0 0.0
        %3400 = vmatprep.subr.mxu0 0.0
        %3401 = vmatpush1.msra.mxu0 0.0
        %3402 = vmatprep.subr.mxu0 0.0
        %3403 = vmatpush1.msra.mxu0 0.0
        %3404 = vmatprep.subr.mxu0 0.0
        %3405 = vmatpush1.msra.mxu0 0.0
        %3406 = vmatprep.subr.mxu0 0.0
        %3407 = vmatpush1.msra.mxu0 0.0
        %3408 = vmatprep.subr.mxu0 0.0
        %3409 = vmatpush1.msra.mxu0 0.0
        %3410 = vmatprep.subr.mxu0 0.0
        %3411 = vmatpush1.msra.mxu0 0.0
        %3412 = vmatprep.subr.mxu0 0.0
        %3413 = vmatpush1.msra.mxu0 0.0
        %3414 = vmatprep.subr.mxu0 0.0
        %3415 = vmatpush1.msra.mxu0 0.0
        %3416 = vmatprep.subr.mxu0 0.0
        %3417 = vmatpush1.msra.mxu0 0.0
        %3418 = vmatprep.subr.mxu0 0.0
        %3419 = vmatpush1.msra.mxu0 0.0
        %3420 = vmatprep.subr.mxu0 0.0
        %3421 = vmatpush1.msra.mxu0 0.0
        %3422 = vmatprep.subr.mxu0 0.0
        %3423 = vmatpush1.msra.mxu0 0.0
        %3424 = vmatprep.subr.mxu0 0.0
        %3425 = vmatpush1.msra.mxu0 0.0
        %3426 = vmatprep.mubr.f32.mxu0 0.0
        %3427 = vmatmul.mubr.f32.gmra.mrb[0].mxu0 %v3241
        %v3428 = vpop.f32.mrb[0].mxu0
        %v3429 = vadd.f32 0.0, %v3428
        %v3430 = vpop.f32.mrb[0].mxu0
        %v3431 = vadd.f32 0.0, %v3430
        %3432 = vdwg.mxu0
        %3433 = vmatprep.subr.mxu0 %v3259
        %3434 = vmatpush1.msra.mxu0 %v3256
        %3435 = vmatprep.subr.mxu0 0.0
        %3436 = vmatpush1.msra.mxu0 0.0
        %3437 = vmatprep.subr.mxu0 0.0
        %3438 = vmatpush1.msra.mxu0 0.0
        %3439 = vmatprep.subr.mxu0 0.0
        %3440 = vmatpush1.msra.mxu0 0.0
        %3441 = vmatprep.subr.mxu0 0.0
        %3442 = vmatpush1.msra.mxu0 0.0
        %3443 = vmatprep.subr.mxu0 0.0
        %3444 = vmatpush1.msra.mxu0 0.0
        %3445 = vmatprep.subr.mxu0 0.0
        %3446 = vmatpush1.msra.mxu0 0.0
        %3447 = vmatprep.subr.mxu0 0.0
        %3448 = vmatpush1.msra.mxu0 0.0
        %3449 = vmatprep.subr.mxu0 0.0
        %3450 = vmatpush1.msra.mxu0 0.0
        %3451 = vmatprep.subr.mxu0 0.0
        %3452 = vmatpush1.msra.mxu0 0.0
        %3453 = vmatprep.subr.mxu0 0.0
        %3454 = vmatpush1.msra.mxu0 0.0
        %3455 = vmatprep.subr.mxu0 0.0
        %3456 = vmatpush1.msra.mxu0 0.0
        %3457 = vmatprep.subr.mxu0 0.0
        %3458 = vmatpush1.msra.mxu0 0.0
        %3459 = vmatprep.subr.mxu0 0.0
        %3460 = vmatpush1.msra.mxu0 0.0
        %3461 = vmatprep.subr.mxu0 0.0
        %3462 = vmatpush1.msra.mxu0 0.0
        %3463 = vmatprep.subr.mxu0 0.0
        %3464 = vmatpush1.msra.mxu0 0.0
        %3465 = vmatprep.subr.mxu0 0.0
        %3466 = vmatpush1.msra.mxu0 0.0
        %3467 = vmatprep.subr.mxu0 0.0
        %3468 = vmatpush1.msra.mxu0 0.0
        %3469 = vmatprep.subr.mxu0 0.0
        %3470 = vmatpush1.msra.mxu0 0.0
        %3471 = vmatprep.subr.mxu0 0.0
        %3472 = vmatpush1.msra.mxu0 0.0
        %3473 = vmatprep.subr.mxu0 0.0
        %3474 = vmatpush1.msra.mxu0 0.0
        %3475 = vmatprep.subr.mxu0 0.0
        %3476 = vmatpush1.msra.mxu0 0.0
        %3477 = vmatprep.subr.mxu0 0.0
        %3478 = vmatpush1.msra.mxu0 0.0
        %3479 = vmatprep.subr.mxu0 0.0
        %3480 = vmatpush1.msra.mxu0 0.0
        %3481 = vmatprep.subr.mxu0 0.0
        %3482 = vmatpush1.msra.mxu0 0.0
        %3483 = vmatprep.subr.mxu0 0.0
        %3484 = vmatpush1.msra.mxu0 0.0
        %3485 = vmatprep.subr.mxu0 0.0
        %3486 = vmatpush1.msra.mxu0 0.0
        %3487 = vmatprep.subr.mxu0 0.0
        %3488 = vmatpush1.msra.mxu0 0.0
        %3489 = vmatprep.subr.mxu0 0.0
        %3490 = vmatpush1.msra.mxu0 0.0
        %3491 = vmatprep.subr.mxu0 0.0
        %3492 = vmatpush1.msra.mxu0 0.0
        %3493 = vmatprep.subr.mxu0 0.0
        %3494 = vmatpush1.msra.mxu0 0.0
        %3495 = vmatprep.subr.mxu0 0.0
        %3496 = vmatpush1.msra.mxu0 0.0
        %3497 = vmatprep.mubr.f32.mxu0 0.0
        %3498 = vmatmul.mubr.f32.gmra.mrb[0].mxu0 %v3241
        %v3499 = vpop.f32.mrb[0].mxu0
        %v3500 = vadd.f32 0.0, %v3499
        %v3501 = vpop.f32.mrb[0].mxu0
        %v3502 = vadd.f32 0.0, %v3501
        %3503 = vdwg.mxu0
        %3504 = vmatprep.subr.mxu0 %v3265
        %3505 = vmatpush1.msra.mxu0 %v3262
        %3506 = vmatprep.subr.mxu0 0.0
        %3507 = vmatpush1.msra.mxu0 0.0
        %3508 = vmatprep.subr.mxu0 0.0
        %3509 = vmatpush1.msra.mxu0 0.0
        %3510 = vmatprep.subr.mxu0 0.0
        %3511 = vmatpush1.msra.mxu0 0.0
        %3512 = vmatprep.subr.mxu0 0.0
        %3513 = vmatpush1.msra.mxu0 0.0
        %3514 = vmatprep.subr.mxu0 0.0
        %3515 = vmatpush1.msra.mxu0 0.0
        %3516 = vmatprep.subr.mxu0 0.0
        %3517 = vmatpush1.msra.mxu0 0.0
        %3518 = vmatprep.subr.mxu0 0.0
        %3519 = vmatpush1.msra.mxu0 0.0
        %3520 = vmatprep.subr.mxu0 0.0
        %3521 = vmatpush1.msra.mxu0 0.0
        %3522 = vmatprep.subr.mxu0 0.0
        %3523 = vmatpush1.msra.mxu0 0.0
        %3524 = vmatprep.subr.mxu0 0.0
        %3525 = vmatpush1.msra.mxu0 0.0
        %3526 = vmatprep.subr.mxu0 0.0
        %3527 = vmatpush1.msra.mxu0 0.0
        %3528 = vmatprep.subr.mxu0 0.0
        %3529 = vmatpush1.msra.mxu0 0.0
        %3530 = vmatprep.subr.mxu0 0.0
        %3531 = vmatpush1.msra.mxu0 0.0
        %3532 = vmatprep.subr.mxu0 0.0
        %3533 = vmatpush1.msra.mxu0 0.0
        %3534 = vmatprep.subr.mxu0 0.0
        %3535 = vmatpush1.msra.mxu0 0.0
        %3536 = vmatprep.subr.mxu0 0.0
        %3537 = vmatpush1.msra.mxu0 0.0
        %3538 = vmatprep.subr.mxu0 0.0
        %3539 = vmatpush1.msra.mxu0 0.0
        %3540 = vmatprep.subr.mxu0 0.0
        %3541 = vmatpush1.msra.mxu0 0.0
        %3542 = vmatprep.subr.mxu0 0.0
        %3543 = vmatpush1.msra.mxu0 0.0
        %3544 = vmatprep.subr.mxu0 0.0
        %3545 = vmatpush1.msra.mxu0 0.0
        %3546 = vmatprep.subr.mxu0 0.0
        %3547 = vmatpush1.msra.mxu0 0.0
        %3548 = vmatprep.subr.mxu0 0.0
        %3549 = vmatpush1.msra.mxu0 0.0
        %3550 = vmatprep.subr.mxu0 0.0
        %3551 = vmatpush1.msra.mxu0 0.0
        %3552 = vmatprep.subr.mxu0 0.0
        %3553 = vmatpush1.msra.mxu0 0.0
        %3554 = vmatprep.subr.mxu0 0.0
        %3555 = vmatpush1.msra.mxu0 0.0
        %3556 = vmatprep.subr.mxu0 0.0
        %3557 = vmatpush1.msra.mxu0 0.0
        %3558 = vmatprep.subr.mxu0 0.0
        %3559 = vmatpush1.msra.mxu0 0.0
        %3560 = vmatprep.subr.mxu0 0.0
        %3561 = vmatpush1.msra.mxu0 0.0
        %3562 = vmatprep.subr.mxu0 0.0
        %3563 = vmatpush1.msra.mxu0 0.0
        %3564 = vmatprep.subr.mxu0 0.0
        %3565 = vmatpush1.msra.mxu0 0.0
        %3566 = vmatprep.subr.mxu0 0.0
        %3567 = vmatpush1.msra.mxu0 0.0
        %3568 = vmatprep.mubr.f32.mxu0 0.0
        %3569 = vmatmul.mubr.f32.gmra.mrb[0].mxu0 %v3241
        %v3570 = vpop.f32.mrb[0].mxu0
        %v3571 = vadd.f32 0.0, %v3570
        %v3572 = vpop.f32.mrb[0].mxu0
        %v3573 = vadd.f32 0.0, %v3572
        %3574 = vdwg.mxu0
        %3575 = vmatprep.subr.mxu0 %v3271
        %3576 = vmatpush1.msra.mxu0 %v3268
        %3577 = vmatprep.subr.mxu0 0.0
        %3578 = vmatpush1.msra.mxu0 0.0
        %3579 = vmatprep.subr.mxu0 0.0
        %3580 = vmatpush1.msra.mxu0 0.0
        %3581 = vmatprep.subr.mxu0 0.0
        %3582 = vmatpush1.msra.mxu0 0.0
        %3583 = vmatprep.subr.mxu0 0.0
        %3584 = vmatpush1.msra.mxu0 0.0
        %3585 = vmatprep.subr.mxu0 0.0
        %3586 = vmatpush1.msra.mxu0 0.0
        %3587 = vmatprep.subr.mxu0 0.0
        %3588 = vmatpush1.msra.mxu0 0.0
        %3589 = vmatprep.subr.mxu0 0.0
        %3590 = vmatpush1.msra.mxu0 0.0
        %3591 = vmatprep.subr.mxu0 0.0
        %3592 = vmatpush1.msra.mxu0 0.0
        %3593 = vmatprep.subr.mxu0 0.0
        %3594 = vmatpush1.msra.mxu0 0.0
        %3595 = vmatprep.subr.mxu0 0.0
        %3596 = vmatpush1.msra.mxu0 0.0
        %3597 = vmatprep.subr.mxu0 0.0
        %3598 = vmatpush1.msra.mxu0 0.0
        %3599 = vmatprep.subr.mxu0 0.0
        %3600 = vmatpush1.msra.mxu0 0.0
        %3601 = vmatprep.subr.mxu0 0.0
        %3602 = vmatpush1.msra.mxu0 0.0
        %3603 = vmatprep.subr.mxu0 0.0
        %3604 = vmatpush1.msra.mxu0 0.0
        %3605 = vmatprep.subr.mxu0 0.0
        %3606 = vmatpush1.msra.mxu0 0.0
        %3607 = vmatprep.subr.mxu0 0.0
        %3608 = vmatpush1.msra.mxu0 0.0
        %3609 = vmatprep.subr.mxu0 0.0
        %3610 = vmatpush1.msra.mxu0 0.0
        %3611 = vmatprep.subr.mxu0 0.0
        %3612 = vmatpush1.msra.mxu0 0.0
        %3613 = vmatprep.subr.mxu0 0.0
        %3614 = vmatpush1.msra.mxu0 0.0
        %3615 = vmatprep.subr.mxu0 0.0
        %3616 = vmatpush1.msra.mxu0 0.0
        %3617 = vmatprep.subr.mxu0 0.0
        %3618 = vmatpush1.msra.mxu0 0.0
        %3619 = vmatprep.subr.mxu0 0.0
        %3620 = vmatpush1.msra.mxu0 0.0
        %3621 = vmatprep.subr.mxu0 0.0
        %3622 = vmatpush1.msra.mxu0 0.0
        %3623 = vmatprep.subr.mxu0 0.0
        %3624 = vmatpush1.msra.mxu0 0.0
        %3625 = vmatprep.subr.mxu0 0.0
        %3626 = vmatpush1.msra.mxu0 0.0
        %3627 = vmatprep.subr.mxu0 0.0
        %3628 = vmatpush1.msra.mxu0 0.0
        %3629 = vmatprep.subr.mxu0 0.0
        %3630 = vmatpush1.msra.mxu0 0.0
        %3631 = vmatprep.subr.mxu0 0.0
        %3632 = vmatpush1.msra.mxu0 0.0
        %3633 = vmatprep.subr.mxu0 0.0
        %3634 = vmatpush1.msra.mxu0 0.0
        %3635 = vmatprep.subr.mxu0 0.0
        %3636 = vmatpush1.msra.mxu0 0.0
        %3637 = vmatprep.subr.mxu0 0.0
        %3638 = vmatpush1.msra.mxu0 0.0
        %3639 = vmatprep.mubr.f32.mxu0 0.0
        %3640 = vmatmul.mubr.f32.gmra.mrb[0].mxu0 %v3241
        %v3641 = vpop.f32.mrb[0].mxu0
        %v3642 = vadd.f32 0.0, %v3641
        %v3643 = vpop.f32.mrb[0].mxu0
        %v3644 = vadd.f32 0.0, %v3643
        %3645 = vdwg.mxu0
        %3646 = vmatprep.subr.mxu0 %v3277
        %3647 = vmatpush1.msra.mxu0 %v3274
        %3648 = vmatprep.subr.mxu0 0.0
        %3649 = vmatpush1.msra.mxu0 0.0
        %3650 = vmatprep.subr.mxu0 0.0
        %3651 = vmatpush1.msra.mxu0 0.0
        %3652 = vmatprep.subr.mxu0 0.0
        %3653 = vmatpush1.msra.mxu0 0.0
        %3654 = vmatprep.subr.mxu0 0.0
        %3655 = vmatpush1.msra.mxu0 0.0
        %3656 = vmatprep.subr.mxu0 0.0
        %3657 = vmatpush1.msra.mxu0 0.0
        %3658 = vmatprep.subr.mxu0 0.0
        %3659 = vmatpush1.msra.mxu0 0.0
        %3660 = vmatprep.subr.mxu0 0.0
        %3661 = vmatpush1.msra.mxu0 0.0
        %3662 = vmatprep.subr.mxu0 0.0
        %3663 = vmatpush1.msra.mxu0 0.0
        %3664 = vmatprep.subr.mxu0 0.0
        %3665 = vmatpush1.msra.mxu0 0.0
        %3666 = vmatprep.subr.mxu0 0.0
        %3667 = vmatpush1.msra.mxu0 0.0
        %3668 = vmatprep.subr.mxu0 0.0
        %3669 = vmatpush1.msra.mxu0 0.0
        %3670 = vmatprep.subr.mxu0 0.0
        %3671 = vmatpush1.msra.mxu0 0.0
        %3672 = vmatprep.subr.mxu0 0.0
        %3673 = vmatpush1.msra.mxu0 0.0
        %3674 = vmatprep.subr.mxu0 0.0
        %3675 = vmatpush1.msra.mxu0 0.0
        %3676 = vmatprep.subr.mxu0 0.0
        %3677 = vmatpush1.msra.mxu0 0.0
        %3678 = vmatprep.subr.mxu0 0.0
        %3679 = vmatpush1.msra.mxu0 0.0
        %3680 = vmatprep.subr.mxu0 0.0
        %3681 = vmatpush1.msra.mxu0 0.0
        %3682 = vmatprep.subr.mxu0 0.0
        %3683 = vmatpush1.msra.mxu0 0.0
        %3684 = vmatprep.subr.mxu0 0.0
        %3685 = vmatpush1.msra.mxu0 0.0
        %3686 = vmatprep.subr.mxu0 0.0
        %3687 = vmatpush1.msra.mxu0 0.0
        %3688 = vmatprep.subr.mxu0 0.0
        %3689 = vmatpush1.msra.mxu0 0.0
        %3690 = vmatprep.subr.mxu0 0.0
        %3691 = vmatpush1.msra.mxu0 0.0
        %3692 = vmatprep.subr.mxu0 0.0
        %3693 = vmatpush1.msra.mxu0 0.0
        %3694 = vmatprep.subr.mxu0 0.0
        %3695 = vmatpush1.msra.mxu0 0.0
        %3696 = vmatprep.subr.mxu0 0.0
        %3697 = vmatpush1.msra.mxu0 0.0
        %3698 = vmatprep.subr.mxu0 0.0
        %3699 = vmatpush1.msra.mxu0 0.0
        %3700 = vmatprep.subr.mxu0 0.0
        %3701 = vmatpush1.msra.mxu0 0.0
        %3702 = vmatprep.subr.mxu0 0.0
        %3703 = vmatpush1.msra.mxu0 0.0
        %3704 = vmatprep.subr.mxu0 0.0
        %3705 = vmatpush1.msra.mxu0 0.0
        %3706 = vmatprep.subr.mxu0 0.0
        %3707 = vmatpush1.msra.mxu0 0.0
        %3708 = vmatprep.subr.mxu0 0.0
        %3709 = vmatpush1.msra.mxu0 0.0
        %3710 = vmatprep.mubr.f32.mxu0 0.0
        %3711 = vmatmul.mubr.f32.gmra.mrb[0].mxu0 %v3241
        %v3712 = vpop.f32.mrb[0].mxu0
        %v3713 = vadd.f32 0.0, %v3712
        %v3714 = vpop.f32.mrb[0].mxu0
        %v3715 = vadd.f32 0.0, %v3714
        %3716 = vdwg.mxu0
        %3717 = vmatprep.subr.mxu0 %v3283
        %3718 = vmatpush1.msra.mxu0 %v3280
        %3719 = vmatprep.subr.mxu0 0.0
        %3720 = vmatpush1.msra.mxu0 0.0
        %3721 = vmatprep.subr.mxu0 0.0
        %3722 = vmatpush1.msra.mxu0 0.0
        %3723 = vmatprep.subr.mxu0 0.0
        %3724 = vmatpush1.msra.mxu0 0.0
        %3725 = vmatprep.subr.mxu0 0.0
        %3726 = vmatpush1.msra.mxu0 0.0
        %3727 = vmatprep.subr.mxu0 0.0
        %3728 = vmatpush1.msra.mxu0 0.0
        %3729 = vmatprep.subr.mxu0 0.0
        %3730 = vmatpush1.msra.mxu0 0.0
        %3731 = vmatprep.subr.mxu0 0.0
        %3732 = vmatpush1.msra.mxu0 0.0
        %3733 = vmatprep.subr.mxu0 0.0
        %3734 = vmatpush1.msra.mxu0 0.0
        %3735 = vmatprep.subr.mxu0 0.0
        %3736 = vmatpush1.msra.mxu0 0.0
        %3737 = vmatprep.subr.mxu0 0.0
        %3738 = vmatpush1.msra.mxu0 0.0
        %3739 = vmatprep.subr.mxu0 0.0
        %3740 = vmatpush1.msra.mxu0 0.0
        %3741 = vmatprep.subr.mxu0 0.0
        %3742 = vmatpush1.msra.mxu0 0.0
        %3743 = vmatprep.subr.mxu0 0.0
        %3744 = vmatpush1.msra.mxu0 0.0
        %3745 = vmatprep.subr.mxu0 0.0
        %3746 = vmatpush1.msra.mxu0 0.0
        %3747 = vmatprep.subr.mxu0 0.0
        %3748 = vmatpush1.msra.mxu0 0.0
        %3749 = vmatprep.subr.mxu0 0.0
        %3750 = vmatpush1.msra.mxu0 0.0
        %3751 = vmatprep.subr.mxu0 0.0
        %3752 = vmatpush1.msra.mxu0 0.0
        %3753 = vmatprep.subr.mxu0 0.0
        %3754 = vmatpush1.msra.mxu0 0.0
        %3755 = vmatprep.subr.mxu0 0.0
        %3756 = vmatpush1.msra.mxu0 0.0
        %3757 = vmatprep.subr.mxu0 0.0
        %3758 = vmatpush1.msra.mxu0 0.0
        %3759 = vmatprep.subr.mxu0 0.0
        %3760 = vmatpush1.msra.mxu0 0.0
        %3761 = vmatprep.subr.mxu0 0.0
        %3762 = vmatpush1.msra.mxu0 0.0
        %3763 = vmatprep.subr.mxu0 0.0
        %3764 = vmatpush1.msra.mxu0 0.0
        %3765 = vmatprep.subr.mxu0 0.0
        %3766 = vmatpush1.msra.mxu0 0.0
        %3767 = vmatprep.subr.mxu0 0.0
        %3768 = vmatpush1.msra.mxu0 0.0
        %3769 = vmatprep.subr.mxu0 0.0
        %3770 = vmatpush1.msra.mxu0 0.0
        %3771 = vmatprep.subr.mxu0 0.0
        %3772 = vmatpush1.msra.mxu0 0.0
        %3773 = vmatprep.subr.mxu0 0.0
        %3774 = vmatpush1.msra.mxu0 0.0
        %3775 = vmatprep.subr.mxu0 0.0
        %3776 = vmatpush1.msra.mxu0 0.0
        %3777 = vmatprep.subr.mxu0 0.0
        %3778 = vmatpush1.msra.mxu0 0.0
        %3779 = vmatprep.subr.mxu0 0.0
        %3780 = vmatpush1.msra.mxu0 0.0
        %3781 = vmatprep.mubr.f32.mxu0 0.0
        %3782 = vmatmul.mubr.f32.gmra.mrb[0].mxu0 %v3241
        %v3783 = vpop.f32.mrb[0].mxu0
        %v3784 = vadd.f32 0.0, %v3783
        %v3785 = vpop.f32.mrb[0].mxu0
        %v3786 = vadd.f32 0.0, %v3785
        %3787 = vdwg.mxu0
        %3788 = vmatprep.subr.mxu0 %v3289
        %3789 = vmatpush1.msra.mxu0 %v3286
        %3790 = vmatprep.subr.mxu0 0.0
        %3791 = vmatpush1.msra.mxu0 0.0
        %3792 = vmatprep.subr.mxu0 0.0
        %3793 = vmatpush1.msra.mxu0 0.0
        %3794 = vmatprep.subr.mxu0 0.0
        %3795 = vmatpush1.msra.mxu0 0.0
        %3796 = vmatprep.subr.mxu0 0.0
        %3797 = vmatpush1.msra.mxu0 0.0
        %3798 = vmatprep.subr.mxu0 0.0
        %3799 = vmatpush1.msra.mxu0 0.0
        %3800 = vmatprep.subr.mxu0 0.0
        %3801 = vmatpush1.msra.mxu0 0.0
        %3802 = vmatprep.subr.mxu0 0.0
        %3803 = vmatpush1.msra.mxu0 0.0
        %3804 = vmatprep.subr.mxu0 0.0
        %3805 = vmatpush1.msra.mxu0 0.0
        %3806 = vmatprep.subr.mxu0 0.0
        %3807 = vmatpush1.msra.mxu0 0.0
        %3808 = vmatprep.subr.mxu0 0.0
        %3809 = vmatpush1.msra.mxu0 0.0
        %3810 = vmatprep.subr.mxu0 0.0
        %3811 = vmatpush1.msra.mxu0 0.0
        %3812 = vmatprep.subr.mxu0 0.0
        %3813 = vmatpush1.msra.mxu0 0.0
        %3814 = vmatprep.subr.mxu0 0.0
        %3815 = vmatpush1.msra.mxu0 0.0
        %3816 = vmatprep.subr.mxu0 0.0
        %3817 = vmatpush1.msra.mxu0 0.0
        %3818 = vmatprep.subr.mxu0 0.0
        %3819 = vmatpush1.msra.mxu0 0.0
        %3820 = vmatprep.subr.mxu0 0.0
        %3821 = vmatpush1.msra.mxu0 0.0
        %3822 = vmatprep.subr.mxu0 0.0
        %3823 = vmatpush1.msra.mxu0 0.0
        %3824 = vmatprep.subr.mxu0 0.0
        %3825 = vmatpush1.msra.mxu0 0.0
        %3826 = vmatprep.subr.mxu0 0.0
        %3827 = vmatpush1.msra.mxu0 0.0
        %3828 = vmatprep.subr.mxu0 0.0
        %3829 = vmatpush1.msra.mxu0 0.0
        %3830 = vmatprep.subr.mxu0 0.0
        %3831 = vmatpush1.msra.mxu0 0.0
        %3832 = vmatprep.subr.mxu0 0.0
        %3833 = vmatpush1.msra.mxu0 0.0
        %3834 = vmatprep.subr.mxu0 0.0
        %3835 = vmatpush1.msra.mxu0 0.0
        %3836 = vmatprep.subr.mxu0 0.0
        %3837 = vmatpush1.msra.mxu0 0.0
        %3838 = vmatprep.subr.mxu0 0.0
        %3839 = vmatpush1.msra.mxu0 0.0
        %3840 = vmatprep.subr.mxu0 0.0
        %3841 = vmatpush1.msra.mxu0 0.0
        %3842 = vmatprep.subr.mxu0 0.0
        %3843 = vmatpush1.msra.mxu0 0.0
        %3844 = vmatprep.subr.mxu0 0.0
        %3845 = vmatpush1.msra.mxu0 0.0
        %3846 = vmatprep.subr.mxu0 0.0
        %3847 = vmatpush1.msra.mxu0 0.0
        %3848 = vmatprep.subr.mxu0 0.0
        %3849 = vmatpush1.msra.mxu0 0.0
        %3850 = vmatprep.subr.mxu0 0.0
        %3851 = vmatpush1.msra.mxu0 0.0
        %3852 = vmatprep.mubr.f32.mxu0 0.0
        %3853 = vmatmul.mubr.f32.gmra.mrb[0].mxu0 %v3241
        %v3854 = vpop.f32.mrb[0].mxu0
        %v3855 = vadd.f32 0.0, %v3854
        %v3856 = vpop.f32.mrb[0].mxu0
        %v3857 = vadd.f32 0.0, %v3856
        %3858 = vdwg.mxu0
        %v3859 = vadd.f32 %v3072, %v3358
        %v3860 = vadd.f32 %v3073, %v3360
        %v3861 = vadd.f32 %v3074, %v3429
        %v3862 = vadd.f32 %v3075, %v3431
        %v3863 = vadd.f32 %v3076, %v3500
        %v3864 = vadd.f32 %v3077, %v3502
        %v3865 = vadd.f32 %v3078, %v3571
        %v3866 = vadd.f32 %v3079, %v3573
        %v3867 = vadd.f32 %v3080, %v3642
        %v3868 = vadd.f32 %v3081, %v3644
        %v3869 = vadd.f32 %v3082, %v3713
        %v3870 = vadd.f32 %v3083, %v3715
        %v3871 = vadd.f32 %v3084, %v3784
        %v3872 = vadd.f32 %v3085, %v3786
        %v3873 = vadd.f32 %v3086, %v3855
        %v3874 = vadd.f32 %v3087, %v3857
        %3875 = vrot.lane.b32.xlu0 %v202, 15
        %v3876 = vpop.permute.xlu0 %3875
        %3877 = vrot.lane.b32.xlu0 %v219, 15
        %v3878 = vpop.permute.xlu0 %3877
        %3879 = vrot.lane.b32.xlu0 %v203, 15
        %v3880 = vpop.permute.xlu0 %3879
        %3881 = vrot.lane.b32.xlu0 %v220, 15
        %v3882 = vpop.permute.xlu0 %3881
        %3883 = vrot.lane.b32.xlu0 %v204, 15
        %v3884 = vpop.permute.xlu0 %3883
        %3885 = vrot.lane.b32.xlu0 %v221, 15
        %v3886 = vpop.permute.xlu0 %3885
        %3887 = vrot.lane.b32.xlu0 %v205, 15
        %v3888 = vpop.permute.xlu0 %3887
        %3889 = vrot.lane.b32.xlu0 %v222, 15
        %v3890 = vpop.permute.xlu0 %3889
        %3891 = vrot.lane.b32.xlu0 %v206, 15
        %v3892 = vpop.permute.xlu0 %3891
        %3893 = vrot.lane.b32.xlu0 %v223, 15
        %v3894 = vpop.permute.xlu0 %3893
        %3895 = vrot.lane.b32.xlu0 %v207, 15
        %v3896 = vpop.permute.xlu0 %3895
        %3897 = vrot.lane.b32.xlu0 %v224, 15
        %v3898 = vpop.permute.xlu0 %3897
        %3899 = vrot.lane.b32.xlu0 %v208, 15
        %v3900 = vpop.permute.xlu0 %3899
        %3901 = vrot.lane.b32.xlu0 %v225, 15
        %v3902 = vpop.permute.xlu0 %3901
        %3903 = vrot.lane.b32.xlu0 %v209, 15
        %v3904 = vpop.permute.xlu0 %3903
        %3905 = vrot.lane.b32.xlu0 %v226, 15
        %v3906 = vpop.permute.xlu0 %3905
        %vm3907 = vcmp.lt.s32.totalorder %v2332, 15
        %v3908 = vsel %vm3907, %v3904, %v3906
        %v3909 = vsel %vm3907, %v3902, %v3904
        %v3910 = vsel %vm3907, %v3900, %v3902
        %v3911 = vsel %vm3907, %v3898, %v3900
        %v3912 = vsel %vm3907, %v3896, %v3898
        %v3913 = vsel %vm3907, %v3894, %v3896
        %v3914 = vsel %vm3907, %v3892, %v3894
        %v3915 = vsel %vm3907, %v3890, %v3892
        %v3916 = vsel %vm3907, %v3888, %v3890
        %v3917 = vsel %vm3907, %v3886, %v3888
        %v3918 = vsel %vm3907, %v3884, %v3886
        %v3919 = vsel %vm3907, %v3882, %v3884
        %v3920 = vsel %vm3907, %v3880, %v3882
        %v3921 = vsel %vm3907, %v3878, %v3880
        %v3922 = vsel %vm3907, %v3876, %v3878
        %v3923 = vsel %vm3907, %v3906, %v3876
        %s3924 = scalar_lea.vmem [#allocation5], 64
        %v3925 = vld [vmem:[%s3924] sm:$0xff]
        %v3926 = vld [vmem:[%s3924 + $0x8] sm:$0xff]
        %v3929 = vlaneseq
        %v3930 = vshrl.u32 %v3929, 7
        %v3931 = vsub.s32 0, %v3930
        %v3932 = vrot.slane %v3925, %v3931
        %v3933 = vlaneseq
        %v3934 = vshrl.u32 %v3933, 7
        %v3935 = vsub.s32 1, %v3934
        %v3936 = vrot.slane %v3925, %v3935
        %v3937 = vlaneseq
        %v3938 = vshrl.u32 %v3937, 7
        %v3939 = vsub.s32 2, %v3938
        %v3940 = vrot.slane %v3925, %v3939
        %v3941 = vlaneseq
        %v3942 = vshrl.u32 %v3941, 7
        %v3943 = vsub.s32 3, %v3942
        %v3944 = vrot.slane %v3925, %v3943
        %v3945 = vlaneseq
        %v3946 = vshrl.u32 %v3945, 7
        %v3947 = vsub.s32 4, %v3946
        %v3948 = vrot.slane %v3925, %v3947
        %v3949 = vlaneseq
        %v3950 = vshrl.u32 %v3949, 7
        %v3951 = vsub.s32 5, %v3950
        %v3952 = vrot.slane %v3925, %v3951
        %v3953 = vlaneseq
        %v3954 = vshrl.u32 %v3953, 7
        %v3955 = vsub.s32 6, %v3954
        %v3956 = vrot.slane %v3925, %v3955
        %v3957 = vlaneseq
        %v3958 = vshrl.u32 %v3957, 7
        %v3959 = vsub.s32 7, %v3958
        %v3960 = vrot.slane %v3925, %v3959
        %v3961 = vlaneseq
        %v3962 = vshrl.u32 %v3961, 7
        %v3963 = vsub.s32 0, %v3962
        %v3964 = vrot.slane %v3926, %v3963
        %v3965 = vlaneseq
        %v3966 = vshrl.u32 %v3965, 7
        %v3967 = vsub.s32 1, %v3966
        %v3968 = vrot.slane %v3926, %v3967
        %v3969 = vlaneseq
        %v3970 = vshrl.u32 %v3969, 7
        %v3971 = vsub.s32 2, %v3970
        %v3972 = vrot.slane %v3926, %v3971
        %v3973 = vlaneseq
        %v3974 = vshrl.u32 %v3973, 7
        %v3975 = vsub.s32 3, %v3974
        %v3976 = vrot.slane %v3926, %v3975
        %v3977 = vlaneseq
        %v3978 = vshrl.u32 %v3977, 7
        %v3979 = vsub.s32 4, %v3978
        %v3980 = vrot.slane %v3926, %v3979
        %v3981 = vlaneseq
        %v3982 = vshrl.u32 %v3981, 7
        %v3983 = vsub.s32 5, %v3982
        %v3984 = vrot.slane %v3926, %v3983
        %v3985 = vlaneseq
        %v3986 = vshrl.u32 %v3985, 7
        %v3987 = vsub.s32 6, %v3986
        %v3988 = vrot.slane %v3926, %v3987
        %v3989 = vlaneseq
        %v3990 = vshrl.u32 %v3989, 7
        %v3991 = vsub.s32 7, %v3990
        %v3992 = vrot.slane %v3926, %v3991
        %v4009 = vmul.f32 %v3923, %v3932
        %v4010 = vmul.f32 %v3922, %v3936
        %v4011 = vmul.f32 %v3921, %v3940
        %v4012 = vmul.f32 %v3920, %v3944
        %v4013 = vmul.f32 %v3919, %v3948
        %v4014 = vmul.f32 %v3918, %v3952
        %v4015 = vmul.f32 %v3917, %v3956
        %v4016 = vmul.f32 %v3916, %v3960
        %v4017 = vmul.f32 %v3915, %v3964
        %v4018 = vmul.f32 %v3914, %v3968
        %v4019 = vmul.f32 %v3913, %v3972
        %v4020 = vmul.f32 %v3912, %v3976
        %v4021 = vmul.f32 %v3911, %v3980
        %v4022 = vmul.f32 %v3910, %v3984
        %v4023 = vmul.f32 %v3909, %v3988
        %v4024 = vmul.f32 %v3908, %v3992
        %s4025 = scalar_lea.vmem %s1, 20
        %v4026 = vld [vmem:[%s4025] sm:$0xf]
        %v4028 = vsel %vm337, %v4026, 0
        %v4031 = vsel %vm341, %v4009, 0
        %v4034 = vsel %vm341, %v4010, 0
        %v4037 = vsel %vm341, %v4011, 0
        %v4040 = vsel %vm341, %v4012, 0
        %v4043 = vsel %vm341, %v4013, 0
        %v4046 = vsel %vm341, %v4014, 0
        %v4049 = vsel %vm341, %v4015, 0
        %v4052 = vsel %vm341, %v4016, 0
        %v4055 = vsel %vm341, %v4017, 0
        %v4058 = vsel %vm341, %v4018, 0
        %v4061 = vsel %vm341, %v4019, 0
        %v4064 = vsel %vm341, %v4020, 0
        %v4067 = vsel %vm341, %v4021, 0
        %v4070 = vsel %vm341, %v4022, 0
        %v4073 = vsel %vm341, %v4023, 0
        %v4076 = vsel %vm341, %v4024, 0
        %4078 = vmatprep.subr.mxu0 %v4034
        %4079 = vmatpush1.msra.mxu0 %v4031
        %4080 = vmatprep.subr.mxu0 0.0
        %4081 = vmatpush1.msra.mxu0 0.0
        %4082 = vmatprep.subr.mxu0 0.0
        %4083 = vmatpush1.msra.mxu0 0.0
        %4084 = vmatprep.subr.mxu0 0.0
        %4085 = vmatpush1.msra.mxu0 0.0
        %4086 = vmatprep.subr.mxu0 0.0
        %4087 = vmatpush1.msra.mxu0 0.0
        %4088 = vmatprep.subr.mxu0 0.0
        %4089 = vmatpush1.msra.mxu0 0.0
        %4090 = vmatprep.subr.mxu0 0.0
        %4091 = vmatpush1.msra.mxu0 0.0
        %4092 = vmatprep.subr.mxu0 0.0
        %4093 = vmatpush1.msra.mxu0 0.0
        %4094 = vmatprep.subr.mxu0 0.0
        %4095 = vmatpush1.msra.mxu0 0.0
        %4096 = vmatprep.subr.mxu0 0.0
        %4097 = vmatpush1.msra.mxu0 0.0
        %4098 = vmatprep.subr.mxu0 0.0
        %4099 = vmatpush1.msra.mxu0 0.0
        %4100 = vmatprep.subr.mxu0 0.0
        %4101 = vmatpush1.msra.mxu0 0.0
        %4102 = vmatprep.subr.mxu0 0.0
        %4103 = vmatpush1.msra.mxu0 0.0
        %4104 = vmatprep.subr.mxu0 0.0
        %4105 = vmatpush1.msra.mxu0 0.0
        %4106 = vmatprep.subr.mxu0 0.0
        %4107 = vmatpush1.msra.mxu0 0.0
        %4108 = vmatprep.subr.mxu0 0.0
        %4109 = vmatpush1.msra.mxu0 0.0
        %4110 = vmatprep.subr.mxu0 0.0
        %4111 = vmatpush1.msra.mxu0 0.0
        %4112 = vmatprep.subr.mxu0 0.0
        %4113 = vmatpush1.msra.mxu0 0.0
        %4114 = vmatprep.subr.mxu0 0.0
        %4115 = vmatpush1.msra.mxu0 0.0
        %4116 = vmatprep.subr.mxu0 0.0
        %4117 = vmatpush1.msra.mxu0 0.0
        %4118 = vmatprep.subr.mxu0 0.0
        %4119 = vmatpush1.msra.mxu0 0.0
        %4120 = vmatprep.subr.mxu0 0.0
        %4121 = vmatpush1.msra.mxu0 0.0
        %4122 = vmatprep.subr.mxu0 0.0
        %4123 = vmatpush1.msra.mxu0 0.0
        %4124 = vmatprep.subr.mxu0 0.0
        %4125 = vmatpush1.msra.mxu0 0.0
        %4126 = vmatprep.subr.mxu0 0.0
        %4127 = vmatpush1.msra.mxu0 0.0
        %4128 = vmatprep.subr.mxu0 0.0
        %4129 = vmatpush1.msra.mxu0 0.0
        %4130 = vmatprep.subr.mxu0 0.0
        %4131 = vmatpush1.msra.mxu0 0.0
        %4132 = vmatprep.subr.mxu0 0.0
        %4133 = vmatpush1.msra.mxu0 0.0
        %4134 = vmatprep.subr.mxu0 0.0
        %4135 = vmatpush1.msra.mxu0 0.0
        %4136 = vmatprep.subr.mxu0 0.0
        %4137 = vmatpush1.msra.mxu0 0.0
        %4138 = vmatprep.subr.mxu0 0.0
        %4139 = vmatpush1.msra.mxu0 0.0
        %4140 = vmatprep.subr.mxu0 0.0
        %4141 = vmatpush1.msra.mxu0 0.0
        %4142 = vmatprep.mubr.f32.mxu0 0.0
        %4143 = vmatmul.mubr.f32.gmra.mrb[0].mxu0 %v4028
        %v4144 = vpop.f32.mrb[0].mxu0
        %v4145 = vadd.f32 0.0, %v4144
        %v4146 = vpop.f32.mrb[0].mxu0
        %v4147 = vadd.f32 0.0, %v4146
        %4148 = vdwg.mxu0
        %4149 = vmatprep.subr.mxu0 %v4040
        %4150 = vmatpush1.msra.mxu0 %v4037
        %4151 = vmatprep.subr.mxu0 0.0
        %4152 = vmatpush1.msra.mxu0 0.0
        %4153 = vmatprep.subr.mxu0 0.0
        %4154 = vmatpush1.msra.mxu0 0.0
        %4155 = vmatprep.subr.mxu0 0.0
        %4156 = vmatpush1.msra.mxu0 0.0
        %4157 = vmatprep.subr.mxu0 0.0
        %4158 = vmatpush1.msra.mxu0 0.0
        %4159 = vmatprep.subr.mxu0 0.0
        %4160 = vmatpush1.msra.mxu0 0.0
        %4161 = vmatprep.subr.mxu0 0.0
        %4162 = vmatpush1.msra.mxu0 0.0
        %4163 = vmatprep.subr.mxu0 0.0
        %4164 = vmatpush1.msra.mxu0 0.0
        %4165 = vmatprep.subr.mxu0 0.0
        %4166 = vmatpush1.msra.mxu0 0.0
        %4167 = vmatprep.subr.mxu0 0.0
        %4168 = vmatpush1.msra.mxu0 0.0
        %4169 = vmatprep.subr.mxu0 0.0
        %4170 = vmatpush1.msra.mxu0 0.0
        %4171 = vmatprep.subr.mxu0 0.0
        %4172 = vmatpush1.msra.mxu0 0.0
        %4173 = vmatprep.subr.mxu0 0.0
        %4174 = vmatpush1.msra.mxu0 0.0
        %4175 = vmatprep.subr.mxu0 0.0
        %4176 = vmatpush1.msra.mxu0 0.0
        %4177 = vmatprep.subr.mxu0 0.0
        %4178 = vmatpush1.msra.mxu0 0.0
        %4179 = vmatprep.subr.mxu0 0.0
        %4180 = vmatpush1.msra.mxu0 0.0
        %4181 = vmatprep.subr.mxu0 0.0
        %4182 = vmatpush1.msra.mxu0 0.0
        %4183 = vmatprep.subr.mxu0 0.0
        %4184 = vmatpush1.msra.mxu0 0.0
        %4185 = vmatprep.subr.mxu0 0.0
        %4186 = vmatpush1.msra.mxu0 0.0
        %4187 = vmatprep.subr.mxu0 0.0
        %4188 = vmatpush1.msra.mxu0 0.0
        %4189 = vmatprep.subr.mxu0 0.0
        %4190 = vmatpush1.msra.mxu0 0.0
        %4191 = vmatprep.subr.mxu0 0.0
        %4192 = vmatpush1.msra.mxu0 0.0
        %4193 = vmatprep.subr.mxu0 0.0
        %4194 = vmatpush1.msra.mxu0 0.0
        %4195 = vmatprep.subr.mxu0 0.0
        %4196 = vmatpush1.msra.mxu0 0.0
        %4197 = vmatprep.subr.mxu0 0.0
        %4198 = vmatpush1.msra.mxu0 0.0
        %4199 = vmatprep.subr.mxu0 0.0
        %4200 = vmatpush1.msra.mxu0 0.0
        %4201 = vmatprep.subr.mxu0 0.0
        %4202 = vmatpush1.msra.mxu0 0.0
        %4203 = vmatprep.subr.mxu0 0.0
        %4204 = vmatpush1.msra.mxu0 0.0
        %4205 = vmatprep.subr.mxu0 0.0
        %4206 = vmatpush1.msra.mxu0 0.0
        %4207 = vmatprep.subr.mxu0 0.0
        %4208 = vmatpush1.msra.mxu0 0.0
        %4209 = vmatprep.subr.mxu0 0.0
        %4210 = vmatpush1.msra.mxu0 0.0
        %4211 = vmatprep.subr.mxu0 0.0
        %4212 = vmatpush1.msra.mxu0 0.0
        %4213 = vmatprep.mubr.f32.mxu0 0.0
        %4214 = vmatmul.mubr.f32.gmra.mrb[0].mxu0 %v4028
        %v4215 = vpop.f32.mrb[0].mxu0
        %v4216 = vadd.f32 0.0, %v4215
        %v4217 = vpop.f32.mrb[0].mxu0
        %v4218 = vadd.f32 0.0, %v4217
        %4219 = vdwg.mxu0
        %4220 = vmatprep.subr.mxu0 %v4046
        %4221 = vmatpush1.msra.mxu0 %v4043
        %4222 = vmatprep.subr.mxu0 0.0
        %4223 = vmatpush1.msra.mxu0 0.0
        %4224 = vmatprep.subr.mxu0 0.0
        %4225 = vmatpush1.msra.mxu0 0.0
        %4226 = vmatprep.subr.mxu0 0.0
        %4227 = vmatpush1.msra.mxu0 0.0
        %4228 = vmatprep.subr.mxu0 0.0
        %4229 = vmatpush1.msra.mxu0 0.0
        %4230 = vmatprep.subr.mxu0 0.0
        %4231 = vmatpush1.msra.mxu0 0.0
        %4232 = vmatprep.subr.mxu0 0.0
        %4233 = vmatpush1.msra.mxu0 0.0
        %4234 = vmatprep.subr.mxu0 0.0
        %4235 = vmatpush1.msra.mxu0 0.0
        %4236 = vmatprep.subr.mxu0 0.0
        %4237 = vmatpush1.msra.mxu0 0.0
        %4238 = vmatprep.subr.mxu0 0.0
        %4239 = vmatpush1.msra.mxu0 0.0
        %4240 = vmatprep.subr.mxu0 0.0
        %4241 = vmatpush1.msra.mxu0 0.0
        %4242 = vmatprep.subr.mxu0 0.0
        %4243 = vmatpush1.msra.mxu0 0.0
        %4244 = vmatprep.subr.mxu0 0.0
        %4245 = vmatpush1.msra.mxu0 0.0
        %4246 = vmatprep.subr.mxu0 0.0
        %4247 = vmatpush1.msra.mxu0 0.0
        %4248 = vmatprep.subr.mxu0 0.0
        %4249 = vmatpush1.msra.mxu0 0.0
        %4250 = vmatprep.subr.mxu0 0.0
        %4251 = vmatpush1.msra.mxu0 0.0
        %4252 = vmatprep.subr.mxu0 0.0
        %4253 = vmatpush1.msra.mxu0 0.0
        %4254 = vmatprep.subr.mxu0 0.0
        %4255 = vmatpush1.msra.mxu0 0.0
        %4256 = vmatprep.subr.mxu0 0.0
        %4257 = vmatpush1.msra.mxu0 0.0
        %4258 = vmatprep.subr.mxu0 0.0
        %4259 = vmatpush1.msra.mxu0 0.0
        %4260 = vmatprep.subr.mxu0 0.0
        %4261 = vmatpush1.msra.mxu0 0.0
        %4262 = vmatprep.subr.mxu0 0.0
        %4263 = vmatpush1.msra.mxu0 0.0
        %4264 = vmatprep.subr.mxu0 0.0
        %4265 = vmatpush1.msra.mxu0 0.0
        %4266 = vmatprep.subr.mxu0 0.0
        %4267 = vmatpush1.msra.mxu0 0.0
        %4268 = vmatprep.subr.mxu0 0.0
        %4269 = vmatpush1.msra.mxu0 0.0
        %4270 = vmatprep.subr.mxu0 0.0
        %4271 = vmatpush1.msra.mxu0 0.0
        %4272 = vmatprep.subr.mxu0 0.0
        %4273 = vmatpush1.msra.mxu0 0.0
        %4274 = vmatprep.subr.mxu0 0.0
        %4275 = vmatpush1.msra.mxu0 0.0
        %4276 = vmatprep.subr.mxu0 0.0
        %4277 = vmatpush1.msra.mxu0 0.0
        %4278 = vmatprep.subr.mxu0 0.0
        %4279 = vmatpush1.msra.mxu0 0.0
        %4280 = vmatprep.subr.mxu0 0.0
        %4281 = vmatpush1.msra.mxu0 0.0
        %4282 = vmatprep.subr.mxu0 0.0
        %4283 = vmatpush1.msra.mxu0 0.0
        %4284 = vmatprep.mubr.f32.mxu0 0.0
        %4285 = vmatmul.mubr.f32.gmra.mrb[0].mxu0 %v4028
        %v4286 = vpop.f32.mrb[0].mxu0
        %v4287 = vadd.f32 0.0, %v4286
        %v4288 = vpop.f32.mrb[0].mxu0
        %v4289 = vadd.f32 0.0, %v4288
        %4290 = vdwg.mxu0
        %4291 = vmatprep.subr.mxu0 %v4052
        %4292 = vmatpush1.msra.mxu0 %v4049
        %4293 = vmatprep.subr.mxu0 0.0
        %4294 = vmatpush1.msra.mxu0 0.0
        %4295 = vmatprep.subr.mxu0 0.0
        %4296 = vmatpush1.msra.mxu0 0.0
        %4297 = vmatprep.subr.mxu0 0.0
        %4298 = vmatpush1.msra.mxu0 0.0
        %4299 = vmatprep.subr.mxu0 0.0
        %4300 = vmatpush1.msra.mxu0 0.0
        %4301 = vmatprep.subr.mxu0 0.0
        %4302 = vmatpush1.msra.mxu0 0.0
        %4303 = vmatprep.subr.mxu0 0.0
        %4304 = vmatpush1.msra.mxu0 0.0
        %4305 = vmatprep.subr.mxu0 0.0
        %4306 = vmatpush1.msra.mxu0 0.0
        %4307 = vmatprep.subr.mxu0 0.0
        %4308 = vmatpush1.msra.mxu0 0.0
        %4309 = vmatprep.subr.mxu0 0.0
        %4310 = vmatpush1.msra.mxu0 0.0
        %4311 = vmatprep.subr.mxu0 0.0
        %4312 = vmatpush1.msra.mxu0 0.0
        %4313 = vmatprep.subr.mxu0 0.0
        %4314 = vmatpush1.msra.mxu0 0.0
        %4315 = vmatprep.subr.mxu0 0.0
        %4316 = vmatpush1.msra.mxu0 0.0
        %4317 = vmatprep.subr.mxu0 0.0
        %4318 = vmatpush1.msra.mxu0 0.0
        %4319 = vmatprep.subr.mxu0 0.0
        %4320 = vmatpush1.msra.mxu0 0.0
        %4321 = vmatprep.subr.mxu0 0.0
        %4322 = vmatpush1.msra.mxu0 0.0
        %4323 = vmatprep.subr.mxu0 0.0
        %4324 = vmatpush1.msra.mxu0 0.0
        %4325 = vmatprep.subr.mxu0 0.0
        %4326 = vmatpush1.msra.mxu0 0.0
        %4327 = vmatprep.subr.mxu0 0.0
        %4328 = vmatpush1.msra.mxu0 0.0
        %4329 = vmatprep.subr.mxu0 0.0
        %4330 = vmatpush1.msra.mxu0 0.0
        %4331 = vmatprep.subr.mxu0 0.0
        %4332 = vmatpush1.msra.mxu0 0.0
        %4333 = vmatprep.subr.mxu0 0.0
        %4334 = vmatpush1.msra.mxu0 0.0
        %4335 = vmatprep.subr.mxu0 0.0
        %4336 = vmatpush1.msra.mxu0 0.0
        %4337 = vmatprep.subr.mxu0 0.0
        %4338 = vmatpush1.msra.mxu0 0.0
        %4339 = vmatprep.subr.mxu0 0.0
        %4340 = vmatpush1.msra.mxu0 0.0
        %4341 = vmatprep.subr.mxu0 0.0
        %4342 = vmatpush1.msra.mxu0 0.0
        %4343 = vmatprep.subr.mxu0 0.0
        %4344 = vmatpush1.msra.mxu0 0.0
        %4345 = vmatprep.subr.mxu0 0.0
        %4346 = vmatpush1.msra.mxu0 0.0
        %4347 = vmatprep.subr.mxu0 0.0
        %4348 = vmatpush1.msra.mxu0 0.0
        %4349 = vmatprep.subr.mxu0 0.0
        %4350 = vmatpush1.msra.mxu0 0.0
        %4351 = vmatprep.subr.mxu0 0.0
        %4352 = vmatpush1.msra.mxu0 0.0
        %4353 = vmatprep.subr.mxu0 0.0
        %4354 = vmatpush1.msra.mxu0 0.0
        %4355 = vmatprep.mubr.f32.mxu0 0.0
        %4356 = vmatmul.mubr.f32.gmra.mrb[0].mxu0 %v4028
        %v4357 = vpop.f32.mrb[0].mxu0
        %v4358 = vadd.f32 0.0, %v4357
        %v4359 = vpop.f32.mrb[0].mxu0
        %v4360 = vadd.f32 0.0, %v4359
        %4361 = vdwg.mxu0
        %4362 = vmatprep.subr.mxu0 %v4058
        %4363 = vmatpush1.msra.mxu0 %v4055
        %4364 = vmatprep.subr.mxu0 0.0
        %4365 = vmatpush1.msra.mxu0 0.0
        %4366 = vmatprep.subr.mxu0 0.0
        %4367 = vmatpush1.msra.mxu0 0.0
        %4368 = vmatprep.subr.mxu0 0.0
        %4369 = vmatpush1.msra.mxu0 0.0
        %4370 = vmatprep.subr.mxu0 0.0
        %4371 = vmatpush1.msra.mxu0 0.0
        %4372 = vmatprep.subr.mxu0 0.0
        %4373 = vmatpush1.msra.mxu0 0.0
        %4374 = vmatprep.subr.mxu0 0.0
        %4375 = vmatpush1.msra.mxu0 0.0
        %4376 = vmatprep.subr.mxu0 0.0
        %4377 = vmatpush1.msra.mxu0 0.0
        %4378 = vmatprep.subr.mxu0 0.0
        %4379 = vmatpush1.msra.mxu0 0.0
        %4380 = vmatprep.subr.mxu0 0.0
        %4381 = vmatpush1.msra.mxu0 0.0
        %4382 = vmatprep.subr.mxu0 0.0
        %4383 = vmatpush1.msra.mxu0 0.0
        %4384 = vmatprep.subr.mxu0 0.0
        %4385 = vmatpush1.msra.mxu0 0.0
        %4386 = vmatprep.subr.mxu0 0.0
        %4387 = vmatpush1.msra.mxu0 0.0
        %4388 = vmatprep.subr.mxu0 0.0
        %4389 = vmatpush1.msra.mxu0 0.0
        %4390 = vmatprep.subr.mxu0 0.0
        %4391 = vmatpush1.msra.mxu0 0.0
        %4392 = vmatprep.subr.mxu0 0.0
        %4393 = vmatpush1.msra.mxu0 0.0
        %4394 = vmatprep.subr.mxu0 0.0
        %4395 = vmatpush1.msra.mxu0 0.0
        %4396 = vmatprep.subr.mxu0 0.0
        %4397 = vmatpush1.msra.mxu0 0.0
        %4398 = vmatprep.subr.mxu0 0.0
        %4399 = vmatpush1.msra.mxu0 0.0
        %4400 = vmatprep.subr.mxu0 0.0
        %4401 = vmatpush1.msra.mxu0 0.0
        %4402 = vmatprep.subr.mxu0 0.0
        %4403 = vmatpush1.msra.mxu0 0.0
        %4404 = vmatprep.subr.mxu0 0.0
        %4405 = vmatpush1.msra.mxu0 0.0
        %4406 = vmatprep.subr.mxu0 0.0
        %4407 = vmatpush1.msra.mxu0 0.0
        %4408 = vmatprep.subr.mxu0 0.0
        %4409 = vmatpush1.msra.mxu0 0.0
        %4410 = vmatprep.subr.mxu0 0.0
        %4411 = vmatpush1.msra.mxu0 0.0
        %4412 = vmatprep.subr.mxu0 0.0
        %4413 = vmatpush1.msra.mxu0 0.0
        %4414 = vmatprep.subr.mxu0 0.0
        %4415 = vmatpush1.msra.mxu0 0.0
        %4416 = vmatprep.subr.mxu0 0.0
        %4417 = vmatpush1.msra.mxu0 0.0
        %4418 = vmatprep.subr.mxu0 0.0
        %4419 = vmatpush1.msra.mxu0 0.0
        %4420 = vmatprep.subr.mxu0 0.0
        %4421 = vmatpush1.msra.mxu0 0.0
        %4422 = vmatprep.subr.mxu0 0.0
        %4423 = vmatpush1.msra.mxu0 0.0
        %4424 = vmatprep.subr.mxu0 0.0
        %4425 = vmatpush1.msra.mxu0 0.0
        %4426 = vmatprep.mubr.f32.mxu0 0.0
        %4427 = vmatmul.mubr.f32.gmra.mrb[0].mxu0 %v4028
        %v4428 = vpop.f32.mrb[0].mxu0
        %v4429 = vadd.f32 0.0, %v4428
        %v4430 = vpop.f32.mrb[0].mxu0
        %v4431 = vadd.f32 0.0, %v4430
        %4432 = vdwg.mxu0
        %4433 = vmatprep.subr.mxu0 %v4064
        %4434 = vmatpush1.msra.mxu0 %v4061
        %4435 = vmatprep.subr.mxu0 0.0
        %4436 = vmatpush1.msra.mxu0 0.0
        %4437 = vmatprep.subr.mxu0 0.0
        %4438 = vmatpush1.msra.mxu0 0.0
        %4439 = vmatprep.subr.mxu0 0.0
        %4440 = vmatpush1.msra.mxu0 0.0
        %4441 = vmatprep.subr.mxu0 0.0
        %4442 = vmatpush1.msra.mxu0 0.0
        %4443 = vmatprep.subr.mxu0 0.0
        %4444 = vmatpush1.msra.mxu0 0.0
        %4445 = vmatprep.subr.mxu0 0.0
        %4446 = vmatpush1.msra.mxu0 0.0
        %4447 = vmatprep.subr.mxu0 0.0
        %4448 = vmatpush1.msra.mxu0 0.0
        %4449 = vmatprep.subr.mxu0 0.0
        %4450 = vmatpush1.msra.mxu0 0.0
        %4451 = vmatprep.subr.mxu0 0.0
        %4452 = vmatpush1.msra.mxu0 0.0
        %4453 = vmatprep.subr.mxu0 0.0
        %4454 = vmatpush1.msra.mxu0 0.0
        %4455 = vmatprep.subr.mxu0 0.0
        %4456 = vmatpush1.msra.mxu0 0.0
        %4457 = vmatprep.subr.mxu0 0.0
        %4458 = vmatpush1.msra.mxu0 0.0
        %4459 = vmatprep.subr.mxu0 0.0
        %4460 = vmatpush1.msra.mxu0 0.0
        %4461 = vmatprep.subr.mxu0 0.0
        %4462 = vmatpush1.msra.mxu0 0.0
        %4463 = vmatprep.subr.mxu0 0.0
        %4464 = vmatpush1.msra.mxu0 0.0
        %4465 = vmatprep.subr.mxu0 0.0
        %4466 = vmatpush1.msra.mxu0 0.0
        %4467 = vmatprep.subr.mxu0 0.0
        %4468 = vmatpush1.msra.mxu0 0.0
        %4469 = vmatprep.subr.mxu0 0.0
        %4470 = vmatpush1.msra.mxu0 0.0
        %4471 = vmatprep.subr.mxu0 0.0
        %4472 = vmatpush1.msra.mxu0 0.0
        %4473 = vmatprep.subr.mxu0 0.0
        %4474 = vmatpush1.msra.mxu0 0.0
        %4475 = vmatprep.subr.mxu0 0.0
        %4476 = vmatpush1.msra.mxu0 0.0
        %4477 = vmatprep.subr.mxu0 0.0
        %4478 = vmatpush1.msra.mxu0 0.0
        %4479 = vmatprep.subr.mxu0 0.0
        %4480 = vmatpush1.msra.mxu0 0.0
        %4481 = vmatprep.subr.mxu0 0.0
        %4482 = vmatpush1.msra.mxu0 0.0
        %4483 = vmatprep.subr.mxu0 0.0
        %4484 = vmatpush1.msra.mxu0 0.0
        %4485 = vmatprep.subr.mxu0 0.0
        %4486 = vmatpush1.msra.mxu0 0.0
        %4487 = vmatprep.subr.mxu0 0.0
        %4488 = vmatpush1.msra.mxu0 0.0
        %4489 = vmatprep.subr.mxu0 0.0
        %4490 = vmatpush1.msra.mxu0 0.0
        %4491 = vmatprep.subr.mxu0 0.0
        %4492 = vmatpush1.msra.mxu0 0.0
        %4493 = vmatprep.subr.mxu0 0.0
        %4494 = vmatpush1.msra.mxu0 0.0
        %4495 = vmatprep.subr.mxu0 0.0
        %4496 = vmatpush1.msra.mxu0 0.0
        %4497 = vmatprep.mubr.f32.mxu0 0.0
        %4498 = vmatmul.mubr.f32.gmra.mrb[0].mxu0 %v4028
        %v4499 = vpop.f32.mrb[0].mxu0
        %v4500 = vadd.f32 0.0, %v4499
        %v4501 = vpop.f32.mrb[0].mxu0
        %v4502 = vadd.f32 0.0, %v4501
        %4503 = vdwg.mxu0
        %4504 = vmatprep.subr.mxu0 %v4070
        %4505 = vmatpush1.msra.mxu0 %v4067
        %4506 = vmatprep.subr.mxu0 0.0
        %4507 = vmatpush1.msra.mxu0 0.0
        %4508 = vmatprep.subr.mxu0 0.0
        %4509 = vmatpush1.msra.mxu0 0.0
        %4510 = vmatprep.subr.mxu0 0.0
        %4511 = vmatpush1.msra.mxu0 0.0
        %4512 = vmatprep.subr.mxu0 0.0
        %4513 = vmatpush1.msra.mxu0 0.0
        %4514 = vmatprep.subr.mxu0 0.0
        %4515 = vmatpush1.msra.mxu0 0.0
        %4516 = vmatprep.subr.mxu0 0.0
        %4517 = vmatpush1.msra.mxu0 0.0
        %4518 = vmatprep.subr.mxu0 0.0
        %4519 = vmatpush1.msra.mxu0 0.0
        %4520 = vmatprep.subr.mxu0 0.0
        %4521 = vmatpush1.msra.mxu0 0.0
        %4522 = vmatprep.subr.mxu0 0.0
        %4523 = vmatpush1.msra.mxu0 0.0
        %4524 = vmatprep.subr.mxu0 0.0
        %4525 = vmatpush1.msra.mxu0 0.0
        %4526 = vmatprep.subr.mxu0 0.0
        %4527 = vmatpush1.msra.mxu0 0.0
        %4528 = vmatprep.subr.mxu0 0.0
        %4529 = vmatpush1.msra.mxu0 0.0
        %4530 = vmatprep.subr.mxu0 0.0
        %4531 = vmatpush1.msra.mxu0 0.0
        %4532 = vmatprep.subr.mxu0 0.0
        %4533 = vmatpush1.msra.mxu0 0.0
        %4534 = vmatprep.subr.mxu0 0.0
        %4535 = vmatpush1.msra.mxu0 0.0
        %4536 = vmatprep.subr.mxu0 0.0
        %4537 = vmatpush1.msra.mxu0 0.0
        %4538 = vmatprep.subr.mxu0 0.0
        %4539 = vmatpush1.msra.mxu0 0.0
        %4540 = vmatprep.subr.mxu0 0.0
        %4541 = vmatpush1.msra.mxu0 0.0
        %4542 = vmatprep.subr.mxu0 0.0
        %4543 = vmatpush1.msra.mxu0 0.0
        %4544 = vmatprep.subr.mxu0 0.0
        %4545 = vmatpush1.msra.mxu0 0.0
        %4546 = vmatprep.subr.mxu0 0.0
        %4547 = vmatpush1.msra.mxu0 0.0
        %4548 = vmatprep.subr.mxu0 0.0
        %4549 = vmatpush1.msra.mxu0 0.0
        %4550 = vmatprep.subr.mxu0 0.0
        %4551 = vmatpush1.msra.mxu0 0.0
        %4552 = vmatprep.subr.mxu0 0.0
        %4553 = vmatpush1.msra.mxu0 0.0
        %4554 = vmatprep.subr.mxu0 0.0
        %4555 = vmatpush1.msra.mxu0 0.0
        %4556 = vmatprep.subr.mxu0 0.0
        %4557 = vmatpush1.msra.mxu0 0.0
        %4558 = vmatprep.subr.mxu0 0.0
        %4559 = vmatpush1.msra.mxu0 0.0
        %4560 = vmatprep.subr.mxu0 0.0
        %4561 = vmatpush1.msra.mxu0 0.0
        %4562 = vmatprep.subr.mxu0 0.0
        %4563 = vmatpush1.msra.mxu0 0.0
        %4564 = vmatprep.subr.mxu0 0.0
        %4565 = vmatpush1.msra.mxu0 0.0
        %4566 = vmatprep.subr.mxu0 0.0
        %4567 = vmatpush1.msra.mxu0 0.0
        %4568 = vmatprep.mubr.f32.mxu0 0.0
        %4569 = vmatmul.mubr.f32.gmra.mrb[0].mxu0 %v4028
        %v4570 = vpop.f32.mrb[0].mxu0
        %v4571 = vadd.f32 0.0, %v4570
        %v4572 = vpop.f32.mrb[0].mxu0
        %v4573 = vadd.f32 0.0, %v4572
        %4574 = vdwg.mxu0
        %4575 = vmatprep.subr.mxu0 %v4076
        %4576 = vmatpush1.msra.mxu0 %v4073
        %4577 = vmatprep.subr.mxu0 0.0
        %4578 = vmatpush1.msra.mxu0 0.0
        %4579 = vmatprep.subr.mxu0 0.0
        %4580 = vmatpush1.msra.mxu0 0.0
        %4581 = vmatprep.subr.mxu0 0.0
        %4582 = vmatpush1.msra.mxu0 0.0
        %4583 = vmatprep.subr.mxu0 0.0
        %4584 = vmatpush1.msra.mxu0 0.0
        %4585 = vmatprep.subr.mxu0 0.0
        %4586 = vmatpush1.msra.mxu0 0.0
        %4587 = vmatprep.subr.mxu0 0.0
        %4588 = vmatpush1.msra.mxu0 0.0
        %4589 = vmatprep.subr.mxu0 0.0
        %4590 = vmatpush1.msra.mxu0 0.0
        %4591 = vmatprep.subr.mxu0 0.0
        %4592 = vmatpush1.msra.mxu0 0.0
        %4593 = vmatprep.subr.mxu0 0.0
        %4594 = vmatpush1.msra.mxu0 0.0
        %4595 = vmatprep.subr.mxu0 0.0
        %4596 = vmatpush1.msra.mxu0 0.0
        %4597 = vmatprep.subr.mxu0 0.0
        %4598 = vmatpush1.msra.mxu0 0.0
        %4599 = vmatprep.subr.mxu0 0.0
        %4600 = vmatpush1.msra.mxu0 0.0
        %4601 = vmatprep.subr.mxu0 0.0
        %4602 = vmatpush1.msra.mxu0 0.0
        %4603 = vmatprep.subr.mxu0 0.0
        %4604 = vmatpush1.msra.mxu0 0.0
        %4605 = vmatprep.subr.mxu0 0.0
        %4606 = vmatpush1.msra.mxu0 0.0
        %4607 = vmatprep.subr.mxu0 0.0
        %4608 = vmatpush1.msra.mxu0 0.0
        %4609 = vmatprep.subr.mxu0 0.0
        %4610 = vmatpush1.msra.mxu0 0.0
        %4611 = vmatprep.subr.mxu0 0.0
        %4612 = vmatpush1.msra.mxu0 0.0
        %4613 = vmatprep.subr.mxu0 0.0
        %4614 = vmatpush1.msra.mxu0 0.0
        %4615 = vmatprep.subr.mxu0 0.0
        %4616 = vmatpush1.msra.mxu0 0.0
        %4617 = vmatprep.subr.mxu0 0.0
        %4618 = vmatpush1.msra.mxu0 0.0
        %4619 = vmatprep.subr.mxu0 0.0
        %4620 = vmatpush1.msra.mxu0 0.0
        %4621 = vmatprep.subr.mxu0 0.0
        %4622 = vmatpush1.msra.mxu0 0.0
        %4623 = vmatprep.subr.mxu0 0.0
        %4624 = vmatpush1.msra.mxu0 0.0
        %4625 = vmatprep.subr.mxu0 0.0
        %4626 = vmatpush1.msra.mxu0 0.0
        %4627 = vmatprep.subr.mxu0 0.0
        %4628 = vmatpush1.msra.mxu0 0.0
        %4629 = vmatprep.subr.mxu0 0.0
        %4630 = vmatpush1.msra.mxu0 0.0
        %4631 = vmatprep.subr.mxu0 0.0
        %4632 = vmatpush1.msra.mxu0 0.0
        %4633 = vmatprep.subr.mxu0 0.0
        %4634 = vmatpush1.msra.mxu0 0.0
        %4635 = vmatprep.subr.mxu0 0.0
        %4636 = vmatpush1.msra.mxu0 0.0
        %4637 = vmatprep.subr.mxu0 0.0
        %4638 = vmatpush1.msra.mxu0 0.0
        %4639 = vmatprep.mubr.f32.mxu0 0.0
        %4640 = vmatmul.mubr.f32.gmra.mrb[0].mxu0 %v4028
        %v4641 = vpop.f32.mrb[0].mxu0
        %v4642 = vadd.f32 0.0, %v4641
        %v4643 = vpop.f32.mrb[0].mxu0
        %v4644 = vadd.f32 0.0, %v4643
        %4645 = vdwg.mxu0
        %v4646 = vadd.f32 %v3859, %v4145
        %v4647 = vadd.f32 %v3860, %v4147
        %v4648 = vadd.f32 %v3861, %v4216
        %v4649 = vadd.f32 %v3862, %v4218
        %v4650 = vadd.f32 %v3863, %v4287
        %v4651 = vadd.f32 %v3864, %v4289
        %v4652 = vadd.f32 %v3865, %v4358
        %v4653 = vadd.f32 %v3866, %v4360
        %v4654 = vadd.f32 %v3867, %v4429
        %v4655 = vadd.f32 %v3868, %v4431
        %v4656 = vadd.f32 %v3869, %v4500
        %v4657 = vadd.f32 %v3870, %v4502
        %v4658 = vadd.f32 %v3871, %v4571
        %v4659 = vadd.f32 %v3872, %v4573
        %v4660 = vadd.f32 %v3873, %v4642
        %v4661 = vadd.f32 %v3874, %v4644
        %4662 = vrot.lane.b32.xlu0 %v202, 1
        %v4663 = vpop.permute.xlu0 %4662
        %4664 = vrot.lane.b32.xlu0 %v219, 1
        %v4665 = vpop.permute.xlu0 %4664
        %4666 = vrot.lane.b32.xlu0 %v203, 1
        %v4667 = vpop.permute.xlu0 %4666
        %4668 = vrot.lane.b32.xlu0 %v220, 1
        %v4669 = vpop.permute.xlu0 %4668
        %4670 = vrot.lane.b32.xlu0 %v204, 1
        %v4671 = vpop.permute.xlu0 %4670
        %4672 = vrot.lane.b32.xlu0 %v221, 1
        %v4673 = vpop.permute.xlu0 %4672
        %4674 = vrot.lane.b32.xlu0 %v205, 1
        %v4675 = vpop.permute.xlu0 %4674
        %4676 = vrot.lane.b32.xlu0 %v222, 1
        %v4677 = vpop.permute.xlu0 %4676
        %4678 = vrot.lane.b32.xlu0 %v206, 1
        %v4679 = vpop.permute.xlu0 %4678
        %4680 = vrot.lane.b32.xlu0 %v223, 1
        %v4681 = vpop.permute.xlu0 %4680
        %4682 = vrot.lane.b32.xlu0 %v207, 1
        %v4683 = vpop.permute.xlu0 %4682
        %4684 = vrot.lane.b32.xlu0 %v224, 1
        %v4685 = vpop.permute.xlu0 %4684
        %4686 = vrot.lane.b32.xlu0 %v208, 1
        %v4687 = vpop.permute.xlu0 %4686
        %4688 = vrot.lane.b32.xlu0 %v225, 1
        %v4689 = vpop.permute.xlu0 %4688
        %4690 = vrot.lane.b32.xlu0 %v209, 1
        %v4691 = vpop.permute.xlu0 %4690
        %4692 = vrot.lane.b32.xlu0 %v226, 1
        %v4693 = vpop.permute.xlu0 %4692
        %vm4694 = vcmp.lt.s32.totalorder %v2332, 1
        %v4695 = vsel %vm4694, %v4691, %v4693
        %v4696 = vsel %vm4694, %v4689, %v4691
        %v4697 = vsel %vm4694, %v4687, %v4689
        %v4698 = vsel %vm4694, %v4685, %v4687
        %v4699 = vsel %vm4694, %v4683, %v4685
        %v4700 = vsel %vm4694, %v4681, %v4683
        %v4701 = vsel %vm4694, %v4679, %v4681
        %v4702 = vsel %vm4694, %v4677, %v4679
        %v4703 = vsel %vm4694, %v4675, %v4677
        %v4704 = vsel %vm4694, %v4673, %v4675
        %v4705 = vsel %vm4694, %v4671, %v4673
        %v4706 = vsel %vm4694, %v4669, %v4671
        %v4707 = vsel %vm4694, %v4667, %v4669
        %v4708 = vsel %vm4694, %v4665, %v4667
        %v4709 = vsel %vm4694, %v4663, %v4665
        %v4710 = vsel %vm4694, %v4693, %v4663
        %s4711 = scalar_lea.vmem [#allocation5], 80
        %v4712 = vld [vmem:[%s4711] sm:$0xff]
        %v4713 = vld [vmem:[%s4711 + $0x8] sm:$0xff]
        %v4716 = vlaneseq
        %v4717 = vshrl.u32 %v4716, 7
        %v4718 = vsub.s32 0, %v4717
        %v4719 = vrot.slane %v4712, %v4718
        %v4720 = vlaneseq
        %v4721 = vshrl.u32 %v4720, 7
        %v4722 = vsub.s32 1, %v4721
        %v4723 = vrot.slane %v4712, %v4722
        %v4724 = vlaneseq
        %v4725 = vshrl.u32 %v4724, 7
        %v4726 = vsub.s32 2, %v4725
        %v4727 = vrot.slane %v4712, %v4726
        %v4728 = vlaneseq
        %v4729 = vshrl.u32 %v4728, 7
        %v4730 = vsub.s32 3, %v4729
        %v4731 = vrot.slane %v4712, %v4730
        %v4732 = vlaneseq
        %v4733 = vshrl.u32 %v4732, 7
        %v4734 = vsub.s32 4, %v4733
        %v4735 = vrot.slane %v4712, %v4734
        %v4736 = vlaneseq
        %v4737 = vshrl.u32 %v4736, 7
        %v4738 = vsub.s32 5, %v4737
        %v4739 = vrot.slane %v4712, %v4738
        %v4740 = vlaneseq
        %v4741 = vshrl.u32 %v4740, 7
        %v4742 = vsub.s32 6, %v4741
        %v4743 = vrot.slane %v4712, %v4742
        %v4744 = vlaneseq
        %v4745 = vshrl.u32 %v4744, 7
        %v4746 = vsub.s32 7, %v4745
        %v4747 = vrot.slane %v4712, %v4746
        %v4748 = vlaneseq
        %v4749 = vshrl.u32 %v4748, 7
        %v4750 = vsub.s32 0, %v4749
        %v4751 = vrot.slane %v4713, %v4750
        %v4752 = vlaneseq
        %v4753 = vshrl.u32 %v4752, 7
        %v4754 = vsub.s32 1, %v4753
        %v4755 = vrot.slane %v4713, %v4754
        %v4756 = vlaneseq
        %v4757 = vshrl.u32 %v4756, 7
        %v4758 = vsub.s32 2, %v4757
        %v4759 = vrot.slane %v4713, %v4758
        %v4760 = vlaneseq
        %v4761 = vshrl.u32 %v4760, 7
        %v4762 = vsub.s32 3, %v4761
        %v4763 = vrot.slane %v4713, %v4762
        %v4764 = vlaneseq
        %v4765 = vshrl.u32 %v4764, 7
        %v4766 = vsub.s32 4, %v4765
        %v4767 = vrot.slane %v4713, %v4766
        %v4768 = vlaneseq
        %v4769 = vshrl.u32 %v4768, 7
        %v4770 = vsub.s32 5, %v4769
        %v4771 = vrot.slane %v4713, %v4770
        %v4772 = vlaneseq
        %v4773 = vshrl.u32 %v4772, 7
        %v4774 = vsub.s32 6, %v4773
        %v4775 = vrot.slane %v4713, %v4774
        %v4776 = vlaneseq
        %v4777 = vshrl.u32 %v4776, 7
        %v4778 = vsub.s32 7, %v4777
        %v4779 = vrot.slane %v4713, %v4778
        %v4796 = vmul.f32 %v4710, %v4719
        %v4797 = vmul.f32 %v4709, %v4723
        %v4798 = vmul.f32 %v4708, %v4727
        %v4799 = vmul.f32 %v4707, %v4731
        %v4800 = vmul.f32 %v4706, %v4735
        %v4801 = vmul.f32 %v4705, %v4739
        %v4802 = vmul.f32 %v4704, %v4743
        %v4803 = vmul.f32 %v4703, %v4747
        %v4804 = vmul.f32 %v4702, %v4751
        %v4805 = vmul.f32 %v4701, %v4755
        %v4806 = vmul.f32 %v4700, %v4759
        %v4807 = vmul.f32 %v4699, %v4763
        %v4808 = vmul.f32 %v4698, %v4767
        %v4809 = vmul.f32 %v4697, %v4771
        %v4810 = vmul.f32 %v4696, %v4775
        %v4811 = vmul.f32 %v4695, %v4779
        %s4812 = scalar_lea.vmem %s1, 24
        %v4813 = vld [vmem:[%s4812] sm:$0xf]
        %v4815 = vsel %vm337, %v4813, 0
        %v4818 = vsel %vm341, %v4796, 0
        %v4821 = vsel %vm341, %v4797, 0
        %v4824 = vsel %vm341, %v4798, 0
        %v4827 = vsel %vm341, %v4799, 0
        %v4830 = vsel %vm341, %v4800, 0
        %v4833 = vsel %vm341, %v4801, 0
        %v4836 = vsel %vm341, %v4802, 0
        %v4839 = vsel %vm341, %v4803, 0
        %v4842 = vsel %vm341, %v4804, 0
        %v4845 = vsel %vm341, %v4805, 0
        %v4848 = vsel %vm341, %v4806, 0
        %v4851 = vsel %vm341, %v4807, 0
        %v4854 = vsel %vm341, %v4808, 0
        %v4857 = vsel %vm341, %v4809, 0
        %v4860 = vsel %vm341, %v4810, 0
        %v4863 = vsel %vm341, %v4811, 0
        %4865 = vmatprep.subr.mxu0 %v4821
        %4866 = vmatpush1.msra.mxu0 %v4818
        %4867 = vmatprep.subr.mxu0 0.0
        %4868 = vmatpush1.msra.mxu0 0.0
        %4869 = vmatprep.subr.mxu0 0.0
        %4870 = vmatpush1.msra.mxu0 0.0
        %4871 = vmatprep.subr.mxu0 0.0
        %4872 = vmatpush1.msra.mxu0 0.0
        %4873 = vmatprep.subr.mxu0 0.0
        %4874 = vmatpush1.msra.mxu0 0.0
        %4875 = vmatprep.subr.mxu0 0.0
        %4876 = vmatpush1.msra.mxu0 0.0
        %4877 = vmatprep.subr.mxu0 0.0
        %4878 = vmatpush1.msra.mxu0 0.0
        %4879 = vmatprep.subr.mxu0 0.0
        %4880 = vmatpush1.msra.mxu0 0.0
        %4881 = vmatprep.subr.mxu0 0.0
        %4882 = vmatpush1.msra.mxu0 0.0
        %4883 = vmatprep.subr.mxu0 0.0
        %4884 = vmatpush1.msra.mxu0 0.0
        %4885 = vmatprep.subr.mxu0 0.0
        %4886 = vmatpush1.msra.mxu0 0.0
        %4887 = vmatprep.subr.mxu0 0.0
        %4888 = vmatpush1.msra.mxu0 0.0
        %4889 = vmatprep.subr.mxu0 0.0
        %4890 = vmatpush1.msra.mxu0 0.0
        %4891 = vmatprep.subr.mxu0 0.0
        %4892 = vmatpush1.msra.mxu0 0.0
        %4893 = vmatprep.subr.mxu0 0.0
        %4894 = vmatpush1.msra.mxu0 0.0
        %4895 = vmatprep.subr.mxu0 0.0
        %4896 = vmatpush1.msra.mxu0 0.0
        %4897 = vmatprep.subr.mxu0 0.0
        %4898 = vmatpush1.msra.mxu0 0.0
        %4899 = vmatprep.subr.mxu0 0.0
        %4900 = vmatpush1.msra.mxu0 0.0
        %4901 = vmatprep.subr.mxu0 0.0
        %4902 = vmatpush1.msra.mxu0 0.0
        %4903 = vmatprep.subr.mxu0 0.0
        %4904 = vmatpush1.msra.mxu0 0.0
        %4905 = vmatprep.subr.mxu0 0.0
        %4906 = vmatpush1.msra.mxu0 0.0
        %4907 = vmatprep.subr.mxu0 0.0
        %4908 = vmatpush1.msra.mxu0 0.0
        %4909 = vmatprep.subr.mxu0 0.0
        %4910 = vmatpush1.msra.mxu0 0.0
        %4911 = vmatprep.subr.mxu0 0.0
        %4912 = vmatpush1.msra.mxu0 0.0
        %4913 = vmatprep.subr.mxu0 0.0
        %4914 = vmatpush1.msra.mxu0 0.0
        %4915 = vmatprep.subr.mxu0 0.0
        %4916 = vmatpush1.msra.mxu0 0.0
        %4917 = vmatprep.subr.mxu0 0.0
        %4918 = vmatpush1.msra.mxu0 0.0
        %4919 = vmatprep.subr.mxu0 0.0
        %4920 = vmatpush1.msra.mxu0 0.0
        %4921 = vmatprep.subr.mxu0 0.0
        %4922 = vmatpush1.msra.mxu0 0.0
        %4923 = vmatprep.subr.mxu0 0.0
        %4924 = vmatpush1.msra.mxu0 0.0
        %4925 = vmatprep.subr.mxu0 0.0
        %4926 = vmatpush1.msra.mxu0 0.0
        %4927 = vmatprep.subr.mxu0 0.0
        %4928 = vmatpush1.msra.mxu0 0.0
        %4929 = vmatprep.mubr.f32.mxu0 0.0
        %4930 = vmatmul.mubr.f32.gmra.mrb[0].mxu0 %v4815
        %v4931 = vpop.f32.mrb[0].mxu0
        %v4932 = vadd.f32 0.0, %v4931
        %v4933 = vpop.f32.mrb[0].mxu0
        %v4934 = vadd.f32 0.0, %v4933
        %4935 = vdwg.mxu0
        %4936 = vmatprep.subr.mxu0 %v4827
        %4937 = vmatpush1.msra.mxu0 %v4824
        %4938 = vmatprep.subr.mxu0 0.0
        %4939 = vmatpush1.msra.mxu0 0.0
        %4940 = vmatprep.subr.mxu0 0.0
        %4941 = vmatpush1.msra.mxu0 0.0
        %4942 = vmatprep.subr.mxu0 0.0
        %4943 = vmatpush1.msra.mxu0 0.0
        %4944 = vmatprep.subr.mxu0 0.0
        %4945 = vmatpush1.msra.mxu0 0.0
        %4946 = vmatprep.subr.mxu0 0.0
        %4947 = vmatpush1.msra.mxu0 0.0
        %4948 = vmatprep.subr.mxu0 0.0
        %4949 = vmatpush1.msra.mxu0 0.0
        %4950 = vmatprep.subr.mxu0 0.0
        %4951 = vmatpush1.msra.mxu0 0.0
        %4952 = vmatprep.subr.mxu0 0.0
        %4953 = vmatpush1.msra.mxu0 0.0
        %4954 = vmatprep.subr.mxu0 0.0
        %4955 = vmatpush1.msra.mxu0 0.0
        %4956 = vmatprep.subr.mxu0 0.0
        %4957 = vmatpush1.msra.mxu0 0.0
        %4958 = vmatprep.subr.mxu0 0.0
        %4959 = vmatpush1.msra.mxu0 0.0
        %4960 = vmatprep.subr.mxu0 0.0
        %4961 = vmatpush1.msra.mxu0 0.0
        %4962 = vmatprep.subr.mxu0 0.0
        %4963 = vmatpush1.msra.mxu0 0.0
        %4964 = vmatprep.subr.mxu0 0.0
        %4965 = vmatpush1.msra.mxu0 0.0
        %4966 = vmatprep.subr.mxu0 0.0
        %4967 = vmatpush1.msra.mxu0 0.0
        %4968 = vmatprep.subr.mxu0 0.0
        %4969 = vmatpush1.msra.mxu0 0.0
        %4970 = vmatprep.subr.mxu0 0.0
        %4971 = vmatpush1.msra.mxu0 0.0
        %4972 = vmatprep.subr.mxu0 0.0
        %4973 = vmatpush1.msra.mxu0 0.0
        %4974 = vmatprep.subr.mxu0 0.0
        %4975 = vmatpush1.msra.mxu0 0.0
        %4976 = vmatprep.subr.mxu0 0.0
        %4977 = vmatpush1.msra.mxu0 0.0
        %4978 = vmatprep.subr.mxu0 0.0
        %4979 = vmatpush1.msra.mxu0 0.0
        %4980 = vmatprep.subr.mxu0 0.0
        %4981 = vmatpush1.msra.mxu0 0.0
        %4982 = vmatprep.subr.mxu0 0.0
        %4983 = vmatpush1.msra.mxu0 0.0
        %4984 = vmatprep.subr.mxu0 0.0
        %4985 = vmatpush1.msra.mxu0 0.0
        %4986 = vmatprep.subr.mxu0 0.0
        %4987 = vmatpush1.msra.mxu0 0.0
        %4988 = vmatprep.subr.mxu0 0.0
        %4989 = vmatpush1.msra.mxu0 0.0
        %4990 = vmatprep.subr.mxu0 0.0
        %4991 = vmatpush1.msra.mxu0 0.0
        %4992 = vmatprep.subr.mxu0 0.0
        %4993 = vmatpush1.msra.mxu0 0.0
        %4994 = vmatprep.subr.mxu0 0.0
        %4995 = vmatpush1.msra.mxu0 0.0
        %4996 = vmatprep.subr.mxu0 0.0
        %4997 = vmatpush1.msra.mxu0 0.0
        %4998 = vmatprep.subr.mxu0 0.0
        %4999 = vmatpush1.msra.mxu0 0.0
        %5000 = vmatprep.mubr.f32.mxu0 0.0
        %5001 = vmatmul.mubr.f32.gmra.mrb[0].mxu0 %v4815
        %v5002 = vpop.f32.mrb[0].mxu0
        %v5003 = vadd.f32 0.0, %v5002
        %v5004 = vpop.f32.mrb[0].mxu0
        %v5005 = vadd.f32 0.0, %v5004
        %5006 = vdwg.mxu0
        %5007 = vmatprep.subr.mxu0 %v4833
        %5008 = vmatpush1.msra.mxu0 %v4830
        %5009 = vmatprep.subr.mxu0 0.0
        %5010 = vmatpush1.msra.mxu0 0.0
        %5011 = vmatprep.subr.mxu0 0.0
        %5012 = vmatpush1.msra.mxu0 0.0
        %5013 = vmatprep.subr.mxu0 0.0
        %5014 = vmatpush1.msra.mxu0 0.0
        %5015 = vmatprep.subr.mxu0 0.0
        %5016 = vmatpush1.msra.mxu0 0.0
        %5017 = vmatprep.subr.mxu0 0.0
        %5018 = vmatpush1.msra.mxu0 0.0
        %5019 = vmatprep.subr.mxu0 0.0
        %5020 = vmatpush1.msra.mxu0 0.0
        %5021 = vmatprep.subr.mxu0 0.0
        %5022 = vmatpush1.msra.mxu0 0.0
        %5023 = vmatprep.subr.mxu0 0.0
        %5024 = vmatpush1.msra.mxu0 0.0
        %5025 = vmatprep.subr.mxu0 0.0
        %5026 = vmatpush1.msra.mxu0 0.0
        %5027 = vmatprep.subr.mxu0 0.0
        %5028 = vmatpush1.msra.mxu0 0.0
        %5029 = vmatprep.subr.mxu0 0.0
        %5030 = vmatpush1.msra.mxu0 0.0
        %5031 = vmatprep.subr.mxu0 0.0
        %5032 = vmatpush1.msra.mxu0 0.0
        %5033 = vmatprep.subr.mxu0 0.0
        %5034 = vmatpush1.msra.mxu0 0.0
        %5035 = vmatprep.subr.mxu0 0.0
        %5036 = vmatpush1.msra.mxu0 0.0
        %5037 = vmatprep.subr.mxu0 0.0
        %5038 = vmatpush1.msra.mxu0 0.0
        %5039 = vmatprep.subr.mxu0 0.0
        %5040 = vmatpush1.msra.mxu0 0.0
        %5041 = vmatprep.subr.mxu0 0.0
        %5042 = vmatpush1.msra.mxu0 0.0
        %5043 = vmatprep.subr.mxu0 0.0
        %5044 = vmatpush1.msra.mxu0 0.0
        %5045 = vmatprep.subr.mxu0 0.0
        %5046 = vmatpush1.msra.mxu0 0.0
        %5047 = vmatprep.subr.mxu0 0.0
        %5048 = vmatpush1.msra.mxu0 0.0
        %5049 = vmatprep.subr.mxu0 0.0
        %5050 = vmatpush1.msra.mxu0 0.0
        %5051 = vmatprep.subr.mxu0 0.0
        %5052 = vmatpush1.msra.mxu0 0.0
        %5053 = vmatprep.subr.mxu0 0.0
        %5054 = vmatpush1.msra.mxu0 0.0
        %5055 = vmatprep.subr.mxu0 0.0
        %5056 = vmatpush1.msra.mxu0 0.0
        %5057 = vmatprep.subr.mxu0 0.0
        %5058 = vmatpush1.msra.mxu0 0.0
        %5059 = vmatprep.subr.mxu0 0.0
        %5060 = vmatpush1.msra.mxu0 0.0
        %5061 = vmatprep.subr.mxu0 0.0
        %5062 = vmatpush1.msra.mxu0 0.0
        %5063 = vmatprep.subr.mxu0 0.0
        %5064 = vmatpush1.msra.mxu0 0.0
        %5065 = vmatprep.subr.mxu0 0.0
        %5066 = vmatpush1.msra.mxu0 0.0
        %5067 = vmatprep.subr.mxu0 0.0
        %5068 = vmatpush1.msra.mxu0 0.0
        %5069 = vmatprep.subr.mxu0 0.0
        %5070 = vmatpush1.msra.mxu0 0.0
        %5071 = vmatprep.mubr.f32.mxu0 0.0
        %5072 = vmatmul.mubr.f32.gmra.mrb[0].mxu0 %v4815
        %v5073 = vpop.f32.mrb[0].mxu0
        %v5074 = vadd.f32 0.0, %v5073
        %v5075 = vpop.f32.mrb[0].mxu0
        %v5076 = vadd.f32 0.0, %v5075
        %5077 = vdwg.mxu0
        %5078 = vmatprep.subr.mxu0 %v4839
        %5079 = vmatpush1.msra.mxu0 %v4836
        %5080 = vmatprep.subr.mxu0 0.0
        %5081 = vmatpush1.msra.mxu0 0.0
        %5082 = vmatprep.subr.mxu0 0.0
        %5083 = vmatpush1.msra.mxu0 0.0
        %5084 = vmatprep.subr.mxu0 0.0
        %5085 = vmatpush1.msra.mxu0 0.0
        %5086 = vmatprep.subr.mxu0 0.0
        %5087 = vmatpush1.msra.mxu0 0.0
        %5088 = vmatprep.subr.mxu0 0.0
        %5089 = vmatpush1.msra.mxu0 0.0
        %5090 = vmatprep.subr.mxu0 0.0
        %5091 = vmatpush1.msra.mxu0 0.0
        %5092 = vmatprep.subr.mxu0 0.0
        %5093 = vmatpush1.msra.mxu0 0.0
        %5094 = vmatprep.subr.mxu0 0.0
        %5095 = vmatpush1.msra.mxu0 0.0
        %5096 = vmatprep.subr.mxu0 0.0
        %5097 = vmatpush1.msra.mxu0 0.0
        %5098 = vmatprep.subr.mxu0 0.0
        %5099 = vmatpush1.msra.mxu0 0.0
        %5100 = vmatprep.subr.mxu0 0.0
        %5101 = vmatpush1.msra.mxu0 0.0
        %5102 = vmatprep.subr.mxu0 0.0
        %5103 = vmatpush1.msra.mxu0 0.0
        %5104 = vmatprep.subr.mxu0 0.0
        %5105 = vmatpush1.msra.mxu0 0.0
        %5106 = vmatprep.subr.mxu0 0.0
        %5107 = vmatpush1.msra.mxu0 0.0
        %5108 = vmatprep.subr.mxu0 0.0
        %5109 = vmatpush1.msra.mxu0 0.0
        %5110 = vmatprep.subr.mxu0 0.0
        %5111 = vmatpush1.msra.mxu0 0.0
        %5112 = vmatprep.subr.mxu0 0.0
        %5113 = vmatpush1.msra.mxu0 0.0
        %5114 = vmatprep.subr.mxu0 0.0
        %5115 = vmatpush1.msra.mxu0 0.0
        %5116 = vmatprep.subr.mxu0 0.0
        %5117 = vmatpush1.msra.mxu0 0.0
        %5118 = vmatprep.subr.mxu0 0.0
        %5119 = vmatpush1.msra.mxu0 0.0
        %5120 = vmatprep.subr.mxu0 0.0
        %5121 = vmatpush1.msra.mxu0 0.0
        %5122 = vmatprep.subr.mxu0 0.0
        %5123 = vmatpush1.msra.mxu0 0.0
        %5124 = vmatprep.subr.mxu0 0.0
        %5125 = vmatpush1.msra.mxu0 0.0
        %5126 = vmatprep.subr.mxu0 0.0
        %5127 = vmatpush1.msra.mxu0 0.0
        %5128 = vmatprep.subr.mxu0 0.0
        %5129 = vmatpush1.msra.mxu0 0.0
        %5130 = vmatprep.subr.mxu0 0.0
        %5131 = vmatpush1.msra.mxu0 0.0
        %5132 = vmatprep.subr.mxu0 0.0
        %5133 = vmatpush1.msra.mxu0 0.0
        %5134 = vmatprep.subr.mxu0 0.0
        %5135 = vmatpush1.msra.mxu0 0.0
        %5136 = vmatprep.subr.mxu0 0.0
        %5137 = vmatpush1.msra.mxu0 0.0
        %5138 = vmatprep.subr.mxu0 0.0
        %5139 = vmatpush1.msra.mxu0 0.0
        %5140 = vmatprep.subr.mxu0 0.0
        %5141 = vmatpush1.msra.mxu0 0.0
        %5142 = vmatprep.mubr.f32.mxu0 0.0
        %5143 = vmatmul.mubr.f32.gmra.mrb[0].mxu0 %v4815
        %v5144 = vpop.f32.mrb[0].mxu0
        %v5145 = vadd.f32 0.0, %v5144
        %v5146 = vpop.f32.mrb[0].mxu0
        %v5147 = vadd.f32 0.0, %v5146
        %5148 = vdwg.mxu0
        %5149 = vmatprep.subr.mxu0 %v4845
        %5150 = vmatpush1.msra.mxu0 %v4842
        %5151 = vmatprep.subr.mxu0 0.0
        %5152 = vmatpush1.msra.mxu0 0.0
        %5153 = vmatprep.subr.mxu0 0.0
        %5154 = vmatpush1.msra.mxu0 0.0
        %5155 = vmatprep.subr.mxu0 0.0
        %5156 = vmatpush1.msra.mxu0 0.0
        %5157 = vmatprep.subr.mxu0 0.0
        %5158 = vmatpush1.msra.mxu0 0.0
        %5159 = vmatprep.subr.mxu0 0.0
        %5160 = vmatpush1.msra.mxu0 0.0
        %5161 = vmatprep.subr.mxu0 0.0
        %5162 = vmatpush1.msra.mxu0 0.0
        %5163 = vmatprep.subr.mxu0 0.0
        %5164 = vmatpush1.msra.mxu0 0.0
        %5165 = vmatprep.subr.mxu0 0.0
        %5166 = vmatpush1.msra.mxu0 0.0
        %5167 = vmatprep.subr.mxu0 0.0
        %5168 = vmatpush1.msra.mxu0 0.0
        %5169 = vmatprep.subr.mxu0 0.0
        %5170 = vmatpush1.msra.mxu0 0.0
        %5171 = vmatprep.subr.mxu0 0.0
        %5172 = vmatpush1.msra.mxu0 0.0
        %5173 = vmatprep.subr.mxu0 0.0
        %5174 = vmatpush1.msra.mxu0 0.0
        %5175 = vmatprep.subr.mxu0 0.0
        %5176 = vmatpush1.msra.mxu0 0.0
        %5177 = vmatprep.subr.mxu0 0.0
        %5178 = vmatpush1.msra.mxu0 0.0
        %5179 = vmatprep.subr.mxu0 0.0
        %5180 = vmatpush1.msra.mxu0 0.0
        %5181 = vmatprep.subr.mxu0 0.0
        %5182 = vmatpush1.msra.mxu0 0.0
        %5183 = vmatprep.subr.mxu0 0.0
        %5184 = vmatpush1.msra.mxu0 0.0
        %5185 = vmatprep.subr.mxu0 0.0
        %5186 = vmatpush1.msra.mxu0 0.0
        %5187 = vmatprep.subr.mxu0 0.0
        %5188 = vmatpush1.msra.mxu0 0.0
        %5189 = vmatprep.subr.mxu0 0.0
        %5190 = vmatpush1.msra.mxu0 0.0
        %5191 = vmatprep.subr.mxu0 0.0
        %5192 = vmatpush1.msra.mxu0 0.0
        %5193 = vmatprep.subr.mxu0 0.0
        %5194 = vmatpush1.msra.mxu0 0.0
        %5195 = vmatprep.subr.mxu0 0.0
        %5196 = vmatpush1.msra.mxu0 0.0
        %5197 = vmatprep.subr.mxu0 0.0
        %5198 = vmatpush1.msra.mxu0 0.0
        %5199 = vmatprep.subr.mxu0 0.0
        %5200 = vmatpush1.msra.mxu0 0.0
        %5201 = vmatprep.subr.mxu0 0.0
        %5202 = vmatpush1.msra.mxu0 0.0
        %5203 = vmatprep.subr.mxu0 0.0
        %5204 = vmatpush1.msra.mxu0 0.0
        %5205 = vmatprep.subr.mxu0 0.0
        %5206 = vmatpush1.msra.mxu0 0.0
        %5207 = vmatprep.subr.mxu0 0.0
        %5208 = vmatpush1.msra.mxu0 0.0
        %5209 = vmatprep.subr.mxu0 0.0
        %5210 = vmatpush1.msra.mxu0 0.0
        %5211 = vmatprep.subr.mxu0 0.0
        %5212 = vmatpush1.msra.mxu0 0.0
        %5213 = vmatprep.mubr.f32.mxu0 0.0
        %5214 = vmatmul.mubr.f32.gmra.mrb[0].mxu0 %v4815
        %v5215 = vpop.f32.mrb[0].mxu0
        %v5216 = vadd.f32 0.0, %v5215
        %v5217 = vpop.f32.mrb[0].mxu0
        %v5218 = vadd.f32 0.0, %v5217
        %5219 = vdwg.mxu0
        %5220 = vmatprep.subr.mxu0 %v4851
        %5221 = vmatpush1.msra.mxu0 %v4848
        %5222 = vmatprep.subr.mxu0 0.0
        %5223 = vmatpush1.msra.mxu0 0.0
        %5224 = vmatprep.subr.mxu0 0.0
        %5225 = vmatpush1.msra.mxu0 0.0
        %5226 = vmatprep.subr.mxu0 0.0
        %5227 = vmatpush1.msra.mxu0 0.0
        %5228 = vmatprep.subr.mxu0 0.0
        %5229 = vmatpush1.msra.mxu0 0.0
        %5230 = vmatprep.subr.mxu0 0.0
        %5231 = vmatpush1.msra.mxu0 0.0
        %5232 = vmatprep.subr.mxu0 0.0
        %5233 = vmatpush1.msra.mxu0 0.0
        %5234 = vmatprep.subr.mxu0 0.0
        %5235 = vmatpush1.msra.mxu0 0.0
        %5236 = vmatprep.subr.mxu0 0.0
        %5237 = vmatpush1.msra.mxu0 0.0
        %5238 = vmatprep.subr.mxu0 0.0
        %5239 = vmatpush1.msra.mxu0 0.0
        %5240 = vmatprep.subr.mxu0 0.0
        %5241 = vmatpush1.msra.mxu0 0.0
        %5242 = vmatprep.subr.mxu0 0.0
        %5243 = vmatpush1.msra.mxu0 0.0
        %5244 = vmatprep.subr.mxu0 0.0
        %5245 = vmatpush1.msra.mxu0 0.0
        %5246 = vmatprep.subr.mxu0 0.0
        %5247 = vmatpush1.msra.mxu0 0.0
        %5248 = vmatprep.subr.mxu0 0.0
        %5249 = vmatpush1.msra.mxu0 0.0
        %5250 = vmatprep.subr.mxu0 0.0
        %5251 = vmatpush1.msra.mxu0 0.0
        %5252 = vmatprep.subr.mxu0 0.0
        %5253 = vmatpush1.msra.mxu0 0.0
        %5254 = vmatprep.subr.mxu0 0.0
        %5255 = vmatpush1.msra.mxu0 0.0
        %5256 = vmatprep.subr.mxu0 0.0
        %5257 = vmatpush1.msra.mxu0 0.0
        %5258 = vmatprep.subr.mxu0 0.0
        %5259 = vmatpush1.msra.mxu0 0.0
        %5260 = vmatprep.subr.mxu0 0.0
        %5261 = vmatpush1.msra.mxu0 0.0
        %5262 = vmatprep.subr.mxu0 0.0
        %5263 = vmatpush1.msra.mxu0 0.0
        %5264 = vmatprep.subr.mxu0 0.0
        %5265 = vmatpush1.msra.mxu0 0.0
        %5266 = vmatprep.subr.mxu0 0.0
        %5267 = vmatpush1.msra.mxu0 0.0
        %5268 = vmatprep.subr.mxu0 0.0
        %5269 = vmatpush1.msra.mxu0 0.0
        %5270 = vmatprep.subr.mxu0 0.0
        %5271 = vmatpush1.msra.mxu0 0.0
        %5272 = vmatprep.subr.mxu0 0.0
        %5273 = vmatpush1.msra.mxu0 0.0
        %5274 = vmatprep.subr.mxu0 0.0
        %5275 = vmatpush1.msra.mxu0 0.0
        %5276 = vmatprep.subr.mxu0 0.0
        %5277 = vmatpush1.msra.mxu0 0.0
        %5278 = vmatprep.subr.mxu0 0.0
        %5279 = vmatpush1.msra.mxu0 0.0
        %5280 = vmatprep.subr.mxu0 0.0
        %5281 = vmatpush1.msra.mxu0 0.0
        %5282 = vmatprep.subr.mxu0 0.0
        %5283 = vmatpush1.msra.mxu0 0.0
        %5284 = vmatprep.mubr.f32.mxu0 0.0
        %5285 = vmatmul.mubr.f32.gmra.mrb[0].mxu0 %v4815
        %v5286 = vpop.f32.mrb[0].mxu0
        %v5287 = vadd.f32 0.0, %v5286
        %v5288 = vpop.f32.mrb[0].mxu0
        %v5289 = vadd.f32 0.0, %v5288
        %5290 = vdwg.mxu0
        %5291 = vmatprep.subr.mxu0 %v4857
        %5292 = vmatpush1.msra.mxu0 %v4854
        %5293 = vmatprep.subr.mxu0 0.0
        %5294 = vmatpush1.msra.mxu0 0.0
        %5295 = vmatprep.subr.mxu0 0.0
        %5296 = vmatpush1.msra.mxu0 0.0
        %5297 = vmatprep.subr.mxu0 0.0
        %5298 = vmatpush1.msra.mxu0 0.0
        %5299 = vmatprep.subr.mxu0 0.0
        %5300 = vmatpush1.msra.mxu0 0.0
        %5301 = vmatprep.subr.mxu0 0.0
        %5302 = vmatpush1.msra.mxu0 0.0
        %5303 = vmatprep.subr.mxu0 0.0
        %5304 = vmatpush1.msra.mxu0 0.0
        %5305 = vmatprep.subr.mxu0 0.0
        %5306 = vmatpush1.msra.mxu0 0.0
        %5307 = vmatprep.subr.mxu0 0.0
        %5308 = vmatpush1.msra.mxu0 0.0
        %5309 = vmatprep.subr.mxu0 0.0
        %5310 = vmatpush1.msra.mxu0 0.0
        %5311 = vmatprep.subr.mxu0 0.0
        %5312 = vmatpush1.msra.mxu0 0.0
        %5313 = vmatprep.subr.mxu0 0.0
        %5314 = vmatpush1.msra.mxu0 0.0
        %5315 = vmatprep.subr.mxu0 0.0
        %5316 = vmatpush1.msra.mxu0 0.0
        %5317 = vmatprep.subr.mxu0 0.0
        %5318 = vmatpush1.msra.mxu0 0.0
        %5319 = vmatprep.subr.mxu0 0.0
        %5320 = vmatpush1.msra.mxu0 0.0
        %5321 = vmatprep.subr.mxu0 0.0
        %5322 = vmatpush1.msra.mxu0 0.0
        %5323 = vmatprep.subr.mxu0 0.0
        %5324 = vmatpush1.msra.mxu0 0.0
        %5325 = vmatprep.subr.mxu0 0.0
        %5326 = vmatpush1.msra.mxu0 0.0
        %5327 = vmatprep.subr.mxu0 0.0
        %5328 = vmatpush1.msra.mxu0 0.0
        %5329 = vmatprep.subr.mxu0 0.0
        %5330 = vmatpush1.msra.mxu0 0.0
        %5331 = vmatprep.subr.mxu0 0.0
        %5332 = vmatpush1.msra.mxu0 0.0
        %5333 = vmatprep.subr.mxu0 0.0
        %5334 = vmatpush1.msra.mxu0 0.0
        %5335 = vmatprep.subr.mxu0 0.0
        %5336 = vmatpush1.msra.mxu0 0.0
        %5337 = vmatprep.subr.mxu0 0.0
        %5338 = vmatpush1.msra.mxu0 0.0
        %5339 = vmatprep.subr.mxu0 0.0
        %5340 = vmatpush1.msra.mxu0 0.0
        %5341 = vmatprep.subr.mxu0 0.0
        %5342 = vmatpush1.msra.mxu0 0.0
        %5343 = vmatprep.subr.mxu0 0.0
        %5344 = vmatpush1.msra.mxu0 0.0
        %5345 = vmatprep.subr.mxu0 0.0
        %5346 = vmatpush1.msra.mxu0 0.0
        %5347 = vmatprep.subr.mxu0 0.0
        %5348 = vmatpush1.msra.mxu0 0.0
        %5349 = vmatprep.subr.mxu0 0.0
        %5350 = vmatpush1.msra.mxu0 0.0
        %5351 = vmatprep.subr.mxu0 0.0
        %5352 = vmatpush1.msra.mxu0 0.0
        %5353 = vmatprep.subr.mxu0 0.0
        %5354 = vmatpush1.msra.mxu0 0.0
        %5355 = vmatprep.mubr.f32.mxu0 0.0
        %5356 = vmatmul.mubr.f32.gmra.mrb[0].mxu0 %v4815
        %v5357 = vpop.f32.mrb[0].mxu0
        %v5358 = vadd.f32 0.0, %v5357
        %v5359 = vpop.f32.mrb[0].mxu0
        %v5360 = vadd.f32 0.0, %v5359
        %5361 = vdwg.mxu0
        %5362 = vmatprep.subr.mxu0 %v4863
        %5363 = vmatpush1.msra.mxu0 %v4860
        %5364 = vmatprep.subr.mxu0 0.0
        %5365 = vmatpush1.msra.mxu0 0.0
        %5366 = vmatprep.subr.mxu0 0.0
        %5367 = vmatpush1.msra.mxu0 0.0
        %5368 = vmatprep.subr.mxu0 0.0
        %5369 = vmatpush1.msra.mxu0 0.0
        %5370 = vmatprep.subr.mxu0 0.0
        %5371 = vmatpush1.msra.mxu0 0.0
        %5372 = vmatprep.subr.mxu0 0.0
        %5373 = vmatpush1.msra.mxu0 0.0
        %5374 = vmatprep.subr.mxu0 0.0
        %5375 = vmatpush1.msra.mxu0 0.0
        %5376 = vmatprep.subr.mxu0 0.0
        %5377 = vmatpush1.msra.mxu0 0.0
        %5378 = vmatprep.subr.mxu0 0.0
        %5379 = vmatpush1.msra.mxu0 0.0
        %5380 = vmatprep.subr.mxu0 0.0
        %5381 = vmatpush1.msra.mxu0 0.0
        %5382 = vmatprep.subr.mxu0 0.0
        %5383 = vmatpush1.msra.mxu0 0.0
        %5384 = vmatprep.subr.mxu0 0.0
        %5385 = vmatpush1.msra.mxu0 0.0
        %5386 = vmatprep.subr.mxu0 0.0
        %5387 = vmatpush1.msra.mxu0 0.0
        %5388 = vmatprep.subr.mxu0 0.0
        %5389 = vmatpush1.msra.mxu0 0.0
        %5390 = vmatprep.subr.mxu0 0.0
        %5391 = vmatpush1.msra.mxu0 0.0
        %5392 = vmatprep.subr.mxu0 0.0
        %5393 = vmatpush1.msra.mxu0 0.0
        %5394 = vmatprep.subr.mxu0 0.0
        %5395 = vmatpush1.msra.mxu0 0.0
        %5396 = vmatprep.subr.mxu0 0.0
        %5397 = vmatpush1.msra.mxu0 0.0
        %5398 = vmatprep.subr.mxu0 0.0
        %5399 = vmatpush1.msra.mxu0 0.0
        %5400 = vmatprep.subr.mxu0 0.0
        %5401 = vmatpush1.msra.mxu0 0.0
        %5402 = vmatprep.subr.mxu0 0.0
        %5403 = vmatpush1.msra.mxu0 0.0
        %5404 = vmatprep.subr.mxu0 0.0
        %5405 = vmatpush1.msra.mxu0 0.0
        %5406 = vmatprep.subr.mxu0 0.0
        %5407 = vmatpush1.msra.mxu0 0.0
        %5408 = vmatprep.subr.mxu0 0.0
        %5409 = vmatpush1.msra.mxu0 0.0
        %5410 = vmatprep.subr.mxu0 0.0
        %5411 = vmatpush1.msra.mxu0 0.0
        %5412 = vmatprep.subr.mxu0 0.0
        %5413 = vmatpush1.msra.mxu0 0.0
        %5414 = vmatprep.subr.mxu0 0.0
        %5415 = vmatpush1.msra.mxu0 0.0
        %5416 = vmatprep.subr.mxu0 0.0
        %5417 = vmatpush1.msra.mxu0 0.0
        %5418 = vmatprep.subr.mxu0 0.0
        %5419 = vmatpush1.msra.mxu0 0.0
        %5420 = vmatprep.subr.mxu0 0.0
        %5421 = vmatpush1.msra.mxu0 0.0
        %5422 = vmatprep.subr.mxu0 0.0
        %5423 = vmatpush1.msra.mxu0 0.0
        %5424 = vmatprep.subr.mxu0 0.0
        %5425 = vmatpush1.msra.mxu0 0.0
        %5426 = vmatprep.mubr.f32.mxu0 0.0
        %5427 = vmatmul.mubr.f32.gmra.mrb[0].mxu0 %v4815
        %v5428 = vpop.f32.mrb[0].mxu0
        %v5429 = vadd.f32 0.0, %v5428
        %v5430 = vpop.f32.mrb[0].mxu0
        %v5431 = vadd.f32 0.0, %v5430
        %5432 = vdwg.mxu0
        %v5433 = vadd.f32 %v4646, %v4932
        %v5434 = vadd.f32 %v4647, %v4934
        %v5435 = vadd.f32 %v4648, %v5003
        %v5436 = vadd.f32 %v4649, %v5005
        %v5437 = vadd.f32 %v4650, %v5074
        %v5438 = vadd.f32 %v4651, %v5076
        %v5439 = vadd.f32 %v4652, %v5145
        %v5440 = vadd.f32 %v4653, %v5147
        %v5441 = vadd.f32 %v4654, %v5216
        %v5442 = vadd.f32 %v4655, %v5218
        %v5443 = vadd.f32 %v4656, %v5287
        %v5444 = vadd.f32 %v4657, %v5289
        %v5445 = vadd.f32 %v4658, %v5358
        %v5446 = vadd.f32 %v4659, %v5360
        %v5447 = vadd.f32 %v4660, %v5429
        %v5448 = vadd.f32 %v4661, %v5431
        %5449 = vrot.lane.b32.xlu0 %v202, 127
        %v5450 = vpop.permute.xlu0 %5449
        %5451 = vrot.lane.b32.xlu0 %v219, 127
        %v5452 = vpop.permute.xlu0 %5451
        %5453 = vrot.lane.b32.xlu0 %v203, 127
        %v5454 = vpop.permute.xlu0 %5453
        %5455 = vrot.lane.b32.xlu0 %v220, 127
        %v5456 = vpop.permute.xlu0 %5455
        %5457 = vrot.lane.b32.xlu0 %v204, 127
        %v5458 = vpop.permute.xlu0 %5457
        %5459 = vrot.lane.b32.xlu0 %v221, 127
        %v5460 = vpop.permute.xlu0 %5459
        %5461 = vrot.lane.b32.xlu0 %v205, 127
        %v5462 = vpop.permute.xlu0 %5461
        %5463 = vrot.lane.b32.xlu0 %v222, 127
        %v5464 = vpop.permute.xlu0 %5463
        %5465 = vrot.lane.b32.xlu0 %v206, 127
        %v5466 = vpop.permute.xlu0 %5465
        %5467 = vrot.lane.b32.xlu0 %v223, 127
        %v5468 = vpop.permute.xlu0 %5467
        %5469 = vrot.lane.b32.xlu0 %v207, 127
        %v5470 = vpop.permute.xlu0 %5469
        %5471 = vrot.lane.b32.xlu0 %v224, 127
        %v5472 = vpop.permute.xlu0 %5471
        %5473 = vrot.lane.b32.xlu0 %v208, 127
        %v5474 = vpop.permute.xlu0 %5473
        %5475 = vrot.lane.b32.xlu0 %v225, 127
        %v5476 = vpop.permute.xlu0 %5475
        %5477 = vrot.lane.b32.xlu0 %v209, 127
        %v5478 = vpop.permute.xlu0 %5477
        %5479 = vrot.lane.b32.xlu0 %v226, 127
        %v5480 = vpop.permute.xlu0 %5479
        %vm5481 = vcmp.lt.s32.totalorder %v2332, 127
        %v5482 = vsel %vm5481, %v5478, %v5480
        %v5483 = vsel %vm5481, %v5476, %v5478
        %v5484 = vsel %vm5481, %v5474, %v5476
        %v5485 = vsel %vm5481, %v5472, %v5474
        %v5486 = vsel %vm5481, %v5470, %v5472
        %v5487 = vsel %vm5481, %v5468, %v5470
        %v5488 = vsel %vm5481, %v5466, %v5468
        %v5489 = vsel %vm5481, %v5464, %v5466
        %v5490 = vsel %vm5481, %v5462, %v5464
        %v5491 = vsel %vm5481, %v5460, %v5462
        %v5492 = vsel %vm5481, %v5458, %v5460
        %v5493 = vsel %vm5481, %v5456, %v5458
        %v5494 = vsel %vm5481, %v5454, %v5456
        %v5495 = vsel %vm5481, %v5452, %v5454
        %v5496 = vsel %vm5481, %v5450, %v5452
        %v5497 = vsel %vm5481, %v5480, %v5450
        %s5498 = scalar_lea.vmem [#allocation5], 96
        %v5499 = vld [vmem:[%s5498] sm:$0xff]
        %v5500 = vld [vmem:[%s5498 + $0x8] sm:$0xff]
        %v5503 = vlaneseq
        %v5504 = vshrl.u32 %v5503, 7
        %v5505 = vsub.s32 0, %v5504
        %v5506 = vrot.slane %v5499, %v5505
        %v5507 = vlaneseq
        %v5508 = vshrl.u32 %v5507, 7
        %v5509 = vsub.s32 1, %v5508
        %v5510 = vrot.slane %v5499, %v5509
        %v5511 = vlaneseq
        %v5512 = vshrl.u32 %v5511, 7
        %v5513 = vsub.s32 2, %v5512
        %v5514 = vrot.slane %v5499, %v5513
        %v5515 = vlaneseq
        %v5516 = vshrl.u32 %v5515, 7
        %v5517 = vsub.s32 3, %v5516
        %v5518 = vrot.slane %v5499, %v5517
        %v5519 = vlaneseq
        %v5520 = vshrl.u32 %v5519, 7
        %v5521 = vsub.s32 4, %v5520
        %v5522 = vrot.slane %v5499, %v5521
        %v5523 = vlaneseq
        %v5524 = vshrl.u32 %v5523, 7
        %v5525 = vsub.s32 5, %v5524
        %v5526 = vrot.slane %v5499, %v5525
        %v5527 = vlaneseq
        %v5528 = vshrl.u32 %v5527, 7
        %v5529 = vsub.s32 6, %v5528
        %v5530 = vrot.slane %v5499, %v5529
        %v5531 = vlaneseq
        %v5532 = vshrl.u32 %v5531, 7
        %v5533 = vsub.s32 7, %v5532
        %v5534 = vrot.slane %v5499, %v5533
        %v5535 = vlaneseq
        %v5536 = vshrl.u32 %v5535, 7
        %v5537 = vsub.s32 0, %v5536
        %v5538 = vrot.slane %v5500, %v5537
        %v5539 = vlaneseq
        %v5540 = vshrl.u32 %v5539, 7
        %v5541 = vsub.s32 1, %v5540
        %v5542 = vrot.slane %v5500, %v5541
        %v5543 = vlaneseq
        %v5544 = vshrl.u32 %v5543, 7
        %v5545 = vsub.s32 2, %v5544
        %v5546 = vrot.slane %v5500, %v5545
        %v5547 = vlaneseq
        %v5548 = vshrl.u32 %v5547, 7
        %v5549 = vsub.s32 3, %v5548
        %v5550 = vrot.slane %v5500, %v5549
        %v5551 = vlaneseq
        %v5552 = vshrl.u32 %v5551, 7
        %v5553 = vsub.s32 4, %v5552
        %v5554 = vrot.slane %v5500, %v5553
        %v5555 = vlaneseq
        %v5556 = vshrl.u32 %v5555, 7
        %v5557 = vsub.s32 5, %v5556
        %v5558 = vrot.slane %v5500, %v5557
        %v5559 = vlaneseq
        %v5560 = vshrl.u32 %v5559, 7
        %v5561 = vsub.s32 6, %v5560
        %v5562 = vrot.slane %v5500, %v5561
        %v5563 = vlaneseq
        %v5564 = vshrl.u32 %v5563, 7
        %v5565 = vsub.s32 7, %v5564
        %v5566 = vrot.slane %v5500, %v5565
        %v5583 = vmul.f32 %v5496, %v5506
        %v5584 = vmul.f32 %v5495, %v5510
        %v5585 = vmul.f32 %v5494, %v5514
        %v5586 = vmul.f32 %v5493, %v5518
        %v5587 = vmul.f32 %v5492, %v5522
        %v5588 = vmul.f32 %v5491, %v5526
        %v5589 = vmul.f32 %v5490, %v5530
        %v5590 = vmul.f32 %v5489, %v5534
        %v5591 = vmul.f32 %v5488, %v5538
        %v5592 = vmul.f32 %v5487, %v5542
        %v5593 = vmul.f32 %v5486, %v5546
        %v5594 = vmul.f32 %v5485, %v5550
        %v5595 = vmul.f32 %v5484, %v5554
        %v5596 = vmul.f32 %v5483, %v5558
        %v5597 = vmul.f32 %v5482, %v5562
        %v5598 = vmul.f32 %v5497, %v5566
        %s5599 = scalar_lea.vmem %s1, 28
        %v5600 = vld [vmem:[%s5599] sm:$0xf]
        %v5602 = vsel %vm337, %v5600, 0
        %v5605 = vsel %vm341, %v5583, 0
        %v5608 = vsel %vm341, %v5584, 0
        %v5611 = vsel %vm341, %v5585, 0
        %v5614 = vsel %vm341, %v5586, 0
        %v5617 = vsel %vm341, %v5587, 0
        %v5620 = vsel %vm341, %v5588, 0
        %v5623 = vsel %vm341, %v5589, 0
        %v5626 = vsel %vm341, %v5590, 0
        %v5629 = vsel %vm341, %v5591, 0
        %v5632 = vsel %vm341, %v5592, 0
        %v5635 = vsel %vm341, %v5593, 0
        %v5638 = vsel %vm341, %v5594, 0
        %v5641 = vsel %vm341, %v5595, 0
        %v5644 = vsel %vm341, %v5596, 0
        %v5647 = vsel %vm341, %v5597, 0
        %v5650 = vsel %vm341, %v5598, 0
        %5652 = vmatprep.subr.mxu0 %v5608
        %5653 = vmatpush1.msra.mxu0 %v5605
        %5654 = vmatprep.subr.mxu0 0.0
        %5655 = vmatpush1.msra.mxu0 0.0
        %5656 = vmatprep.subr.mxu0 0.0
        %5657 = vmatpush1.msra.mxu0 0.0
        %5658 = vmatprep.subr.mxu0 0.0
        %5659 = vmatpush1.msra.mxu0 0.0
        %5660 = vmatprep.subr.mxu0 0.0
        %5661 = vmatpush1.msra.mxu0 0.0
        %5662 = vmatprep.subr.mxu0 0.0
        %5663 = vmatpush1.msra.mxu0 0.0
        %5664 = vmatprep.subr.mxu0 0.0
        %5665 = vmatpush1.msra.mxu0 0.0
        %5666 = vmatprep.subr.mxu0 0.0
        %5667 = vmatpush1.msra.mxu0 0.0
        %5668 = vmatprep.subr.mxu0 0.0
        %5669 = vmatpush1.msra.mxu0 0.0
        %5670 = vmatprep.subr.mxu0 0.0
        %5671 = vmatpush1.msra.mxu0 0.0
        %5672 = vmatprep.subr.mxu0 0.0
        %5673 = vmatpush1.msra.mxu0 0.0
        %5674 = vmatprep.subr.mxu0 0.0
        %5675 = vmatpush1.msra.mxu0 0.0
        %5676 = vmatprep.subr.mxu0 0.0
        %5677 = vmatpush1.msra.mxu0 0.0
        %5678 = vmatprep.subr.mxu0 0.0
        %5679 = vmatpush1.msra.mxu0 0.0
        %5680 = vmatprep.subr.mxu0 0.0
        %5681 = vmatpush1.msra.mxu0 0.0
        %5682 = vmatprep.subr.mxu0 0.0
        %5683 = vmatpush1.msra.mxu0 0.0
        %5684 = vmatprep.subr.mxu0 0.0
        %5685 = vmatpush1.msra.mxu0 0.0
        %5686 = vmatprep.subr.mxu0 0.0
        %5687 = vmatpush1.msra.mxu0 0.0
        %5688 = vmatprep.subr.mxu0 0.0
        %5689 = vmatpush1.msra.mxu0 0.0
        %5690 = vmatprep.subr.mxu0 0.0
        %5691 = vmatpush1.msra.mxu0 0.0
        %5692 = vmatprep.subr.mxu0 0.0
        %5693 = vmatpush1.msra.mxu0 0.0
        %5694 = vmatprep.subr.mxu0 0.0
        %5695 = vmatpush1.msra.mxu0 0.0
        %5696 = vmatprep.subr.mxu0 0.0
        %5697 = vmatpush1.msra.mxu0 0.0
        %5698 = vmatprep.subr.mxu0 0.0
        %5699 = vmatpush1.msra.mxu0 0.0
        %5700 = vmatprep.subr.mxu0 0.0
        %5701 = vmatpush1.msra.mxu0 0.0
        %5702 = vmatprep.subr.mxu0 0.0
        %5703 = vmatpush1.msra.mxu0 0.0
        %5704 = vmatprep.subr.mxu0 0.0
        %5705 = vmatpush1.msra.mxu0 0.0
        %5706 = vmatprep.subr.mxu0 0.0
        %5707 = vmatpush1.msra.mxu0 0.0
        %5708 = vmatprep.subr.mxu0 0.0
        %5709 = vmatpush1.msra.mxu0 0.0
        %5710 = vmatprep.subr.mxu0 0.0
        %5711 = vmatpush1.msra.mxu0 0.0
        %5712 = vmatprep.subr.mxu0 0.0
        %5713 = vmatpush1.msra.mxu0 0.0
        %5714 = vmatprep.subr.mxu0 0.0
        %5715 = vmatpush1.msra.mxu0 0.0
        %5716 = vmatprep.mubr.f32.mxu0 0.0
        %5717 = vmatmul.mubr.f32.gmra.mrb[0].mxu0 %v5602
        %v5718 = vpop.f32.mrb[0].mxu0
        %v5719 = vadd.f32 0.0, %v5718
        %v5720 = vpop.f32.mrb[0].mxu0
        %v5721 = vadd.f32 0.0, %v5720
        %5722 = vdwg.mxu0
        %5723 = vmatprep.subr.mxu0 %v5614
        %5724 = vmatpush1.msra.mxu0 %v5611
        %5725 = vmatprep.subr.mxu0 0.0
        %5726 = vmatpush1.msra.mxu0 0.0
        %5727 = vmatprep.subr.mxu0 0.0
        %5728 = vmatpush1.msra.mxu0 0.0
        %5729 = vmatprep.subr.mxu0 0.0
        %5730 = vmatpush1.msra.mxu0 0.0
        %5731 = vmatprep.subr.mxu0 0.0
        %5732 = vmatpush1.msra.mxu0 0.0
        %5733 = vmatprep.subr.mxu0 0.0
        %5734 = vmatpush1.msra.mxu0 0.0
        %5735 = vmatprep.subr.mxu0 0.0
        %5736 = vmatpush1.msra.mxu0 0.0
        %5737 = vmatprep.subr.mxu0 0.0
        %5738 = vmatpush1.msra.mxu0 0.0
        %5739 = vmatprep.subr.mxu0 0.0
        %5740 = vmatpush1.msra.mxu0 0.0
        %5741 = vmatprep.subr.mxu0 0.0
        %5742 = vmatpush1.msra.mxu0 0.0
        %5743 = vmatprep.subr.mxu0 0.0
        %5744 = vmatpush1.msra.mxu0 0.0
        %5745 = vmatprep.subr.mxu0 0.0
        %5746 = vmatpush1.msra.mxu0 0.0
        %5747 = vmatprep.subr.mxu0 0.0
        %5748 = vmatpush1.msra.mxu0 0.0
        %5749 = vmatprep.subr.mxu0 0.0
        %5750 = vmatpush1.msra.mxu0 0.0
        %5751 = vmatprep.subr.mxu0 0.0
        %5752 = vmatpush1.msra.mxu0 0.0
        %5753 = vmatprep.subr.mxu0 0.0
        %5754 = vmatpush1.msra.mxu0 0.0
        %5755 = vmatprep.subr.mxu0 0.0
        %5756 = vmatpush1.msra.mxu0 0.0
        %5757 = vmatprep.subr.mxu0 0.0
        %5758 = vmatpush1.msra.mxu0 0.0
        %5759 = vmatprep.subr.mxu0 0.0
        %5760 = vmatpush1.msra.mxu0 0.0
        %5761 = vmatprep.subr.mxu0 0.0
        %5762 = vmatpush1.msra.mxu0 0.0
        %5763 = vmatprep.subr.mxu0 0.0
        %5764 = vmatpush1.msra.mxu0 0.0
        %5765 = vmatprep.subr.mxu0 0.0
        %5766 = vmatpush1.msra.mxu0 0.0
        %5767 = vmatprep.subr.mxu0 0.0
        %5768 = vmatpush1.msra.mxu0 0.0
        %5769 = vmatprep.subr.mxu0 0.0
        %5770 = vmatpush1.msra.mxu0 0.0
        %5771 = vmatprep.subr.mxu0 0.0
        %5772 = vmatpush1.msra.mxu0 0.0
        %5773 = vmatprep.subr.mxu0 0.0
        %5774 = vmatpush1.msra.mxu0 0.0
        %5775 = vmatprep.subr.mxu0 0.0
        %5776 = vmatpush1.msra.mxu0 0.0
        %5777 = vmatprep.subr.mxu0 0.0
        %5778 = vmatpush1.msra.mxu0 0.0
        %5779 = vmatprep.subr.mxu0 0.0
        %5780 = vmatpush1.msra.mxu0 0.0
        %5781 = vmatprep.subr.mxu0 0.0
        %5782 = vmatpush1.msra.mxu0 0.0
        %5783 = vmatprep.subr.mxu0 0.0
        %5784 = vmatpush1.msra.mxu0 0.0
        %5785 = vmatprep.subr.mxu0 0.0
        %5786 = vmatpush1.msra.mxu0 0.0
        %5787 = vmatprep.mubr.f32.mxu0 0.0
        %5788 = vmatmul.mubr.f32.gmra.mrb[0].mxu0 %v5602
        %v5789 = vpop.f32.mrb[0].mxu0
        %v5790 = vadd.f32 0.0, %v5789
        %v5791 = vpop.f32.mrb[0].mxu0
        %v5792 = vadd.f32 0.0, %v5791
        %5793 = vdwg.mxu0
        %5794 = vmatprep.subr.mxu0 %v5620
        %5795 = vmatpush1.msra.mxu0 %v5617
        %5796 = vmatprep.subr.mxu0 0.0
        %5797 = vmatpush1.msra.mxu0 0.0
        %5798 = vmatprep.subr.mxu0 0.0
        %5799 = vmatpush1.msra.mxu0 0.0
        %5800 = vmatprep.subr.mxu0 0.0
        %5801 = vmatpush1.msra.mxu0 0.0
        %5802 = vmatprep.subr.mxu0 0.0
        %5803 = vmatpush1.msra.mxu0 0.0
        %5804 = vmatprep.subr.mxu0 0.0
        %5805 = vmatpush1.msra.mxu0 0.0
        %5806 = vmatprep.subr.mxu0 0.0
        %5807 = vmatpush1.msra.mxu0 0.0
        %5808 = vmatprep.subr.mxu0 0.0
        %5809 = vmatpush1.msra.mxu0 0.0
        %5810 = vmatprep.subr.mxu0 0.0
        %5811 = vmatpush1.msra.mxu0 0.0
        %5812 = vmatprep.subr.mxu0 0.0
        %5813 = vmatpush1.msra.mxu0 0.0
        %5814 = vmatprep.subr.mxu0 0.0
        %5815 = vmatpush1.msra.mxu0 0.0
        %5816 = vmatprep.subr.mxu0 0.0
        %5817 = vmatpush1.msra.mxu0 0.0
        %5818 = vmatprep.subr.mxu0 0.0
        %5819 = vmatpush1.msra.mxu0 0.0
        %5820 = vmatprep.subr.mxu0 0.0
        %5821 = vmatpush1.msra.mxu0 0.0
        %5822 = vmatprep.subr.mxu0 0.0
        %5823 = vmatpush1.msra.mxu0 0.0
        %5824 = vmatprep.subr.mxu0 0.0
        %5825 = vmatpush1.msra.mxu0 0.0
        %5826 = vmatprep.subr.mxu0 0.0
        %5827 = vmatpush1.msra.mxu0 0.0
        %5828 = vmatprep.subr.mxu0 0.0
        %5829 = vmatpush1.msra.mxu0 0.0
        %5830 = vmatprep.subr.mxu0 0.0
        %5831 = vmatpush1.msra.mxu0 0.0
        %5832 = vmatprep.subr.mxu0 0.0
        %5833 = vmatpush1.msra.mxu0 0.0
        %5834 = vmatprep.subr.mxu0 0.0
        %5835 = vmatpush1.msra.mxu0 0.0
        %5836 = vmatprep.subr.mxu0 0.0
        %5837 = vmatpush1.msra.mxu0 0.0
        %5838 = vmatprep.subr.mxu0 0.0
        %5839 = vmatpush1.msra.mxu0 0.0
        %5840 = vmatprep.subr.mxu0 0.0
        %5841 = vmatpush1.msra.mxu0 0.0
        %5842 = vmatprep.subr.mxu0 0.0
        %5843 = vmatpush1.msra.mxu0 0.0
        %5844 = vmatprep.subr.mxu0 0.0
        %5845 = vmatpush1.msra.mxu0 0.0
        %5846 = vmatprep.subr.mxu0 0.0
        %5847 = vmatpush1.msra.mxu0 0.0
        %5848 = vmatprep.subr.mxu0 0.0
        %5849 = vmatpush1.msra.mxu0 0.0
        %5850 = vmatprep.subr.mxu0 0.0
        %5851 = vmatpush1.msra.mxu0 0.0
        %5852 = vmatprep.subr.mxu0 0.0
        %5853 = vmatpush1.msra.mxu0 0.0
        %5854 = vmatprep.subr.mxu0 0.0
        %5855 = vmatpush1.msra.mxu0 0.0
        %5856 = vmatprep.subr.mxu0 0.0
        %5857 = vmatpush1.msra.mxu0 0.0
        %5858 = vmatprep.mubr.f32.mxu0 0.0
        %5859 = vmatmul.mubr.f32.gmra.mrb[0].mxu0 %v5602
        %v5860 = vpop.f32.mrb[0].mxu0
        %v5861 = vadd.f32 0.0, %v5860
        %v5862 = vpop.f32.mrb[0].mxu0
        %v5863 = vadd.f32 0.0, %v5862
        %5864 = vdwg.mxu0
        %5865 = vmatprep.subr.mxu0 %v5626
        %5866 = vmatpush1.msra.mxu0 %v5623
        %5867 = vmatprep.subr.mxu0 0.0
        %5868 = vmatpush1.msra.mxu0 0.0
        %5869 = vmatprep.subr.mxu0 0.0
        %5870 = vmatpush1.msra.mxu0 0.0
        %5871 = vmatprep.subr.mxu0 0.0
        %5872 = vmatpush1.msra.mxu0 0.0
        %5873 = vmatprep.subr.mxu0 0.0
        %5874 = vmatpush1.msra.mxu0 0.0
        %5875 = vmatprep.subr.mxu0 0.0
        %5876 = vmatpush1.msra.mxu0 0.0
        %5877 = vmatprep.subr.mxu0 0.0
        %5878 = vmatpush1.msra.mxu0 0.0
        %5879 = vmatprep.subr.mxu0 0.0
        %5880 = vmatpush1.msra.mxu0 0.0
        %5881 = vmatprep.subr.mxu0 0.0
        %5882 = vmatpush1.msra.mxu0 0.0
        %5883 = vmatprep.subr.mxu0 0.0
        %5884 = vmatpush1.msra.mxu0 0.0
        %5885 = vmatprep.subr.mxu0 0.0
        %5886 = vmatpush1.msra.mxu0 0.0
        %5887 = vmatprep.subr.mxu0 0.0
        %5888 = vmatpush1.msra.mxu0 0.0
        %5889 = vmatprep.subr.mxu0 0.0
        %5890 = vmatpush1.msra.mxu0 0.0
        %5891 = vmatprep.subr.mxu0 0.0
        %5892 = vmatpush1.msra.mxu0 0.0
        %5893 = vmatprep.subr.mxu0 0.0
        %5894 = vmatpush1.msra.mxu0 0.0
        %5895 = vmatprep.subr.mxu0 0.0
        %5896 = vmatpush1.msra.mxu0 0.0
        %5897 = vmatprep.subr.mxu0 0.0
        %5898 = vmatpush1.msra.mxu0 0.0
        %5899 = vmatprep.subr.mxu0 0.0
        %5900 = vmatpush1.msra.mxu0 0.0
        %5901 = vmatprep.subr.mxu0 0.0
        %5902 = vmatpush1.msra.mxu0 0.0
        %5903 = vmatprep.subr.mxu0 0.0
        %5904 = vmatpush1.msra.mxu0 0.0
        %5905 = vmatprep.subr.mxu0 0.0
        %5906 = vmatpush1.msra.mxu0 0.0
        %5907 = vmatprep.subr.mxu0 0.0
        %5908 = vmatpush1.msra.mxu0 0.0
        %5909 = vmatprep.subr.mxu0 0.0
        %5910 = vmatpush1.msra.mxu0 0.0
        %5911 = vmatprep.subr.mxu0 0.0
        %5912 = vmatpush1.msra.mxu0 0.0
        %5913 = vmatprep.subr.mxu0 0.0
        %5914 = vmatpush1.msra.mxu0 0.0
        %5915 = vmatprep.subr.mxu0 0.0
        %5916 = vmatpush1.msra.mxu0 0.0
        %5917 = vmatprep.subr.mxu0 0.0
        %5918 = vmatpush1.msra.mxu0 0.0
        %5919 = vmatprep.subr.mxu0 0.0
        %5920 = vmatpush1.msra.mxu0 0.0
        %5921 = vmatprep.subr.mxu0 0.0
        %5922 = vmatpush1.msra.mxu0 0.0
        %5923 = vmatprep.subr.mxu0 0.0
        %5924 = vmatpush1.msra.mxu0 0.0
        %5925 = vmatprep.subr.mxu0 0.0
        %5926 = vmatpush1.msra.mxu0 0.0
        %5927 = vmatprep.subr.mxu0 0.0
        %5928 = vmatpush1.msra.mxu0 0.0
        %5929 = vmatprep.mubr.f32.mxu0 0.0
        %5930 = vmatmul.mubr.f32.gmra.mrb[0].mxu0 %v5602
        %v5931 = vpop.f32.mrb[0].mxu0
        %v5932 = vadd.f32 0.0, %v5931
        %v5933 = vpop.f32.mrb[0].mxu0
        %v5934 = vadd.f32 0.0, %v5933
        %5935 = vdwg.mxu0
        %5936 = vmatprep.subr.mxu0 %v5632
        %5937 = vmatpush1.msra.mxu0 %v5629
        %5938 = vmatprep.subr.mxu0 0.0
        %5939 = vmatpush1.msra.mxu0 0.0
        %5940 = vmatprep.subr.mxu0 0.0
        %5941 = vmatpush1.msra.mxu0 0.0
        %5942 = vmatprep.subr.mxu0 0.0
        %5943 = vmatpush1.msra.mxu0 0.0
        %5944 = vmatprep.subr.mxu0 0.0
        %5945 = vmatpush1.msra.mxu0 0.0
        %5946 = vmatprep.subr.mxu0 0.0
        %5947 = vmatpush1.msra.mxu0 0.0
        %5948 = vmatprep.subr.mxu0 0.0
        %5949 = vmatpush1.msra.mxu0 0.0
        %5950 = vmatprep.subr.mxu0 0.0
        %5951 = vmatpush1.msra.mxu0 0.0
        %5952 = vmatprep.subr.mxu0 0.0
        %5953 = vmatpush1.msra.mxu0 0.0
        %5954 = vmatprep.subr.mxu0 0.0
        %5955 = vmatpush1.msra.mxu0 0.0
        %5956 = vmatprep.subr.mxu0 0.0
        %5957 = vmatpush1.msra.mxu0 0.0
        %5958 = vmatprep.subr.mxu0 0.0
        %5959 = vmatpush1.msra.mxu0 0.0
        %5960 = vmatprep.subr.mxu0 0.0
        %5961 = vmatpush1.msra.mxu0 0.0
        %5962 = vmatprep.subr.mxu0 0.0
        %5963 = vmatpush1.msra.mxu0 0.0
        %5964 = vmatprep.subr.mxu0 0.0
        %5965 = vmatpush1.msra.mxu0 0.0
        %5966 = vmatprep.subr.mxu0 0.0
        %5967 = vmatpush1.msra.mxu0 0.0
        %5968 = vmatprep.subr.mxu0 0.0
        %5969 = vmatpush1.msra.mxu0 0.0
        %5970 = vmatprep.subr.mxu0 0.0
        %5971 = vmatpush1.msra.mxu0 0.0
        %5972 = vmatprep.subr.mxu0 0.0
        %5973 = vmatpush1.msra.mxu0 0.0
        %5974 = vmatprep.subr.mxu0 0.0
        %5975 = vmatpush1.msra.mxu0 0.0
        %5976 = vmatprep.subr.mxu0 0.0
        %5977 = vmatpush1.msra.mxu0 0.0
        %5978 = vmatprep.subr.mxu0 0.0
        %5979 = vmatpush1.msra.mxu0 0.0
        %5980 = vmatprep.subr.mxu0 0.0
        %5981 = vmatpush1.msra.mxu0 0.0
        %5982 = vmatprep.subr.mxu0 0.0
        %5983 = vmatpush1.msra.mxu0 0.0
        %5984 = vmatprep.subr.mxu0 0.0
        %5985 = vmatpush1.msra.mxu0 0.0
        %5986 = vmatprep.subr.mxu0 0.0
        %5987 = vmatpush1.msra.mxu0 0.0
        %5988 = vmatprep.subr.mxu0 0.0
        %5989 = vmatpush1.msra.mxu0 0.0
        %5990 = vmatprep.subr.mxu0 0.0
        %5991 = vmatpush1.msra.mxu0 0.0
        %5992 = vmatprep.subr.mxu0 0.0
        %5993 = vmatpush1.msra.mxu0 0.0
        %5994 = vmatprep.subr.mxu0 0.0
        %5995 = vmatpush1.msra.mxu0 0.0
        %5996 = vmatprep.subr.mxu0 0.0
        %5997 = vmatpush1.msra.mxu0 0.0
        %5998 = vmatprep.subr.mxu0 0.0
        %5999 = vmatpush1.msra.mxu0 0.0
        %6000 = vmatprep.mubr.f32.mxu0 0.0
        %6001 = vmatmul.mubr.f32.gmra.mrb[0].mxu0 %v5602
        %v6002 = vpop.f32.mrb[0].mxu0
        %v6003 = vadd.f32 0.0, %v6002
        %v6004 = vpop.f32.mrb[0].mxu0
        %v6005 = vadd.f32 0.0, %v6004
        %6006 = vdwg.mxu0
        %6007 = vmatprep.subr.mxu0 %v5638
        %6008 = vmatpush1.msra.mxu0 %v5635
        %6009 = vmatprep.subr.mxu0 0.0
        %6010 = vmatpush1.msra.mxu0 0.0
        %6011 = vmatprep.subr.mxu0 0.0
        %6012 = vmatpush1.msra.mxu0 0.0
        %6013 = vmatprep.subr.mxu0 0.0
        %6014 = vmatpush1.msra.mxu0 0.0
        %6015 = vmatprep.subr.mxu0 0.0
        %6016 = vmatpush1.msra.mxu0 0.0
        %6017 = vmatprep.subr.mxu0 0.0
        %6018 = vmatpush1.msra.mxu0 0.0
        %6019 = vmatprep.subr.mxu0 0.0
        %6020 = vmatpush1.msra.mxu0 0.0
        %6021 = vmatprep.subr.mxu0 0.0
        %6022 = vmatpush1.msra.mxu0 0.0
        %6023 = vmatprep.subr.mxu0 0.0
        %6024 = vmatpush1.msra.mxu0 0.0
        %6025 = vmatprep.subr.mxu0 0.0
        %6026 = vmatpush1.msra.mxu0 0.0
        %6027 = vmatprep.subr.mxu0 0.0
        %6028 = vmatpush1.msra.mxu0 0.0
        %6029 = vmatprep.subr.mxu0 0.0
        %6030 = vmatpush1.msra.mxu0 0.0
        %6031 = vmatprep.subr.mxu0 0.0
        %6032 = vmatpush1.msra.mxu0 0.0
        %6033 = vmatprep.subr.mxu0 0.0
        %6034 = vmatpush1.msra.mxu0 0.0
        %6035 = vmatprep.subr.mxu0 0.0
        %6036 = vmatpush1.msra.mxu0 0.0
        %6037 = vmatprep.subr.mxu0 0.0
        %6038 = vmatpush1.msra.mxu0 0.0
        %6039 = vmatprep.subr.mxu0 0.0
        %6040 = vmatpush1.msra.mxu0 0.0
        %6041 = vmatprep.subr.mxu0 0.0
        %6042 = vmatpush1.msra.mxu0 0.0
        %6043 = vmatprep.subr.mxu0 0.0
        %6044 = vmatpush1.msra.mxu0 0.0
        %6045 = vmatprep.subr.mxu0 0.0
        %6046 = vmatpush1.msra.mxu0 0.0
        %6047 = vmatprep.subr.mxu0 0.0
        %6048 = vmatpush1.msra.mxu0 0.0
        %6049 = vmatprep.subr.mxu0 0.0
        %6050 = vmatpush1.msra.mxu0 0.0
        %6051 = vmatprep.subr.mxu0 0.0
        %6052 = vmatpush1.msra.mxu0 0.0
        %6053 = vmatprep.subr.mxu0 0.0
        %6054 = vmatpush1.msra.mxu0 0.0
        %6055 = vmatprep.subr.mxu0 0.0
        %6056 = vmatpush1.msra.mxu0 0.0
        %6057 = vmatprep.subr.mxu0 0.0
        %6058 = vmatpush1.msra.mxu0 0.0
        %6059 = vmatprep.subr.mxu0 0.0
        %6060 = vmatpush1.msra.mxu0 0.0
        %6061 = vmatprep.subr.mxu0 0.0
        %6062 = vmatpush1.msra.mxu0 0.0
        %6063 = vmatprep.subr.mxu0 0.0
        %6064 = vmatpush1.msra.mxu0 0.0
        %6065 = vmatprep.subr.mxu0 0.0
        %6066 = vmatpush1.msra.mxu0 0.0
        %6067 = vmatprep.subr.mxu0 0.0
        %6068 = vmatpush1.msra.mxu0 0.0
        %6069 = vmatprep.subr.mxu0 0.0
        %6070 = vmatpush1.msra.mxu0 0.0
        %6071 = vmatprep.mubr.f32.mxu0 0.0
        %6072 = vmatmul.mubr.f32.gmra.mrb[0].mxu0 %v5602
        %v6073 = vpop.f32.mrb[0].mxu0
        %v6074 = vadd.f32 0.0, %v6073
        %v6075 = vpop.f32.mrb[0].mxu0
        %v6076 = vadd.f32 0.0, %v6075
        %6077 = vdwg.mxu0
        %6078 = vmatprep.subr.mxu0 %v5644
        %6079 = vmatpush1.msra.mxu0 %v5641
        %6080 = vmatprep.subr.mxu0 0.0
        %6081 = vmatpush1.msra.mxu0 0.0
        %6082 = vmatprep.subr.mxu0 0.0
        %6083 = vmatpush1.msra.mxu0 0.0
        %6084 = vmatprep.subr.mxu0 0.0
        %6085 = vmatpush1.msra.mxu0 0.0
        %6086 = vmatprep.subr.mxu0 0.0
        %6087 = vmatpush1.msra.mxu0 0.0
        %6088 = vmatprep.subr.mxu0 0.0
        %6089 = vmatpush1.msra.mxu0 0.0
        %6090 = vmatprep.subr.mxu0 0.0
        %6091 = vmatpush1.msra.mxu0 0.0
        %6092 = vmatprep.subr.mxu0 0.0
        %6093 = vmatpush1.msra.mxu0 0.0
        %6094 = vmatprep.subr.mxu0 0.0
        %6095 = vmatpush1.msra.mxu0 0.0
        %6096 = vmatprep.subr.mxu0 0.0
        %6097 = vmatpush1.msra.mxu0 0.0
        %6098 = vmatprep.subr.mxu0 0.0
        %6099 = vmatpush1.msra.mxu0 0.0
        %6100 = vmatprep.subr.mxu0 0.0
        %6101 = vmatpush1.msra.mxu0 0.0
        %6102 = vmatprep.subr.mxu0 0.0
        %6103 = vmatpush1.msra.mxu0 0.0
        %6104 = vmatprep.subr.mxu0 0.0
        %6105 = vmatpush1.msra.mxu0 0.0
        %6106 = vmatprep.subr.mxu0 0.0
        %6107 = vmatpush1.msra.mxu0 0.0
        %6108 = vmatprep.subr.mxu0 0.0
        %6109 = vmatpush1.msra.mxu0 0.0
        %6110 = vmatprep.subr.mxu0 0.0
        %6111 = vmatpush1.msra.mxu0 0.0
        %6112 = vmatprep.subr.mxu0 0.0
        %6113 = vmatpush1.msra.mxu0 0.0
        %6114 = vmatprep.subr.mxu0 0.0
        %6115 = vmatpush1.msra.mxu0 0.0
        %6116 = vmatprep.subr.mxu0 0.0
        %6117 = vmatpush1.msra.mxu0 0.0
        %6118 = vmatprep.subr.mxu0 0.0
        %6119 = vmatpush1.msra.mxu0 0.0
        %6120 = vmatprep.subr.mxu0 0.0
        %6121 = vmatpush1.msra.mxu0 0.0
        %6122 = vmatprep.subr.mxu0 0.0
        %6123 = vmatpush1.msra.mxu0 0.0
        %6124 = vmatprep.subr.mxu0 0.0
        %6125 = vmatpush1.msra.mxu0 0.0
        %6126 = vmatprep.subr.mxu0 0.0
        %6127 = vmatpush1.msra.mxu0 0.0
        %6128 = vmatprep.subr.mxu0 0.0
        %6129 = vmatpush1.msra.mxu0 0.0
        %6130 = vmatprep.subr.mxu0 0.0
        %6131 = vmatpush1.msra.mxu0 0.0
        %6132 = vmatprep.subr.mxu0 0.0
        %6133 = vmatpush1.msra.mxu0 0.0
        %6134 = vmatprep.subr.mxu0 0.0
        %6135 = vmatpush1.msra.mxu0 0.0
        %6136 = vmatprep.subr.mxu0 0.0
        %6137 = vmatpush1.msra.mxu0 0.0
        %6138 = vmatprep.subr.mxu0 0.0
        %6139 = vmatpush1.msra.mxu0 0.0
        %6140 = vmatprep.subr.mxu0 0.0
        %6141 = vmatpush1.msra.mxu0 0.0
        %6142 = vmatprep.mubr.f32.mxu0 0.0
        %6143 = vmatmul.mubr.f32.gmra.mrb[0].mxu0 %v5602
        %v6144 = vpop.f32.mrb[0].mxu0
        %v6145 = vadd.f32 0.0, %v6144
        %v6146 = vpop.f32.mrb[0].mxu0
        %v6147 = vadd.f32 0.0, %v6146
        %6148 = vdwg.mxu0
        %6149 = vmatprep.subr.mxu0 %v5650
        %6150 = vmatpush1.msra.mxu0 %v5647
        %6151 = vmatprep.subr.mxu0 0.0
        %6152 = vmatpush1.msra.mxu0 0.0
        %6153 = vmatprep.subr.mxu0 0.0
        %6154 = vmatpush1.msra.mxu0 0.0
        %6155 = vmatprep.subr.mxu0 0.0
        %6156 = vmatpush1.msra.mxu0 0.0
        %6157 = vmatprep.subr.mxu0 0.0
        %6158 = vmatpush1.msra.mxu0 0.0
        %6159 = vmatprep.subr.mxu0 0.0
        %6160 = vmatpush1.msra.mxu0 0.0
        %6161 = vmatprep.subr.mxu0 0.0
        %6162 = vmatpush1.msra.mxu0 0.0
        %6163 = vmatprep.subr.mxu0 0.0
        %6164 = vmatpush1.msra.mxu0 0.0
        %6165 = vmatprep.subr.mxu0 0.0
        %6166 = vmatpush1.msra.mxu0 0.0
        %6167 = vmatprep.subr.mxu0 0.0
        %6168 = vmatpush1.msra.mxu0 0.0
        %6169 = vmatprep.subr.mxu0 0.0
        %6170 = vmatpush1.msra.mxu0 0.0
        %6171 = vmatprep.subr.mxu0 0.0
        %6172 = vmatpush1.msra.mxu0 0.0
        %6173 = vmatprep.subr.mxu0 0.0
        %6174 = vmatpush1.msra.mxu0 0.0
        %6175 = vmatprep.subr.mxu0 0.0
        %6176 = vmatpush1.msra.mxu0 0.0
        %6177 = vmatprep.subr.mxu0 0.0
        %6178 = vmatpush1.msra.mxu0 0.0
        %6179 = vmatprep.subr.mxu0 0.0
        %6180 = vmatpush1.msra.mxu0 0.0
        %6181 = vmatprep.subr.mxu0 0.0
        %6182 = vmatpush1.msra.mxu0 0.0
        %6183 = vmatprep.subr.mxu0 0.0
        %6184 = vmatpush1.msra.mxu0 0.0
        %6185 = vmatprep.subr.mxu0 0.0
        %6186 = vmatpush1.msra.mxu0 0.0
        %6187 = vmatprep.subr.mxu0 0.0
        %6188 = vmatpush1.msra.mxu0 0.0
        %6189 = vmatprep.subr.mxu0 0.0
        %6190 = vmatpush1.msra.mxu0 0.0
        %6191 = vmatprep.subr.mxu0 0.0
        %6192 = vmatpush1.msra.mxu0 0.0
        %6193 = vmatprep.subr.mxu0 0.0
        %6194 = vmatpush1.msra.mxu0 0.0
        %6195 = vmatprep.subr.mxu0 0.0
        %6196 = vmatpush1.msra.mxu0 0.0
        %6197 = vmatprep.subr.mxu0 0.0
        %6198 = vmatpush1.msra.mxu0 0.0
        %6199 = vmatprep.subr.mxu0 0.0
        %6200 = vmatpush1.msra.mxu0 0.0
        %6201 = vmatprep.subr.mxu0 0.0
        %6202 = vmatpush1.msra.mxu0 0.0
        %6203 = vmatprep.subr.mxu0 0.0
        %6204 = vmatpush1.msra.mxu0 0.0
        %6205 = vmatprep.subr.mxu0 0.0
        %6206 = vmatpush1.msra.mxu0 0.0
        %6207 = vmatprep.subr.mxu0 0.0
        %6208 = vmatpush1.msra.mxu0 0.0
        %6209 = vmatprep.subr.mxu0 0.0
        %6210 = vmatpush1.msra.mxu0 0.0
        %6211 = vmatprep.subr.mxu0 0.0
        %6212 = vmatpush1.msra.mxu0 0.0
        %6213 = vmatprep.mubr.f32.mxu0 0.0
        %6214 = vmatmul.mubr.f32.gmra.mrb[0].mxu0 %v5602
        %v6215 = vpop.f32.mrb[0].mxu0
        %v6216 = vadd.f32 0.0, %v6215
        %v6217 = vpop.f32.mrb[0].mxu0
        %v6218 = vadd.f32 0.0, %v6217
        %6219 = vdwg.mxu0
        %v6220 = vadd.f32 %v5433, %v5719
        %v6221 = vadd.f32 %v5434, %v5721
        %v6222 = vadd.f32 %v5435, %v5790
        %v6223 = vadd.f32 %v5436, %v5792
        %v6224 = vadd.f32 %v5437, %v5861
        %v6225 = vadd.f32 %v5438, %v5863
        %v6226 = vadd.f32 %v5439, %v5932
        %v6227 = vadd.f32 %v5440, %v5934
        %v6228 = vadd.f32 %v5441, %v6003
        %v6229 = vadd.f32 %v5442, %v6005
        %v6230 = vadd.f32 %v5443, %v6074
        %v6231 = vadd.f32 %v5444, %v6076
        %v6232 = vadd.f32 %v5445, %v6145
        %v6233 = vadd.f32 %v5446, %v6147
        %v6234 = vadd.f32 %v5447, %v6216
        %v6235 = vadd.f32 %v5448, %v6218
        %6236 = vrot.lane.b32.xlu0 %v202, 113
        %v6237 = vpop.permute.xlu0 %6236
        %6238 = vrot.lane.b32.xlu0 %v219, 113
        %v6239 = vpop.permute.xlu0 %6238
        %6240 = vrot.lane.b32.xlu0 %v203, 113
        %v6241 = vpop.permute.xlu0 %6240
        %6242 = vrot.lane.b32.xlu0 %v220, 113
        %v6243 = vpop.permute.xlu0 %6242
        %6244 = vrot.lane.b32.xlu0 %v204, 113
        %v6245 = vpop.permute.xlu0 %6244
        %6246 = vrot.lane.b32.xlu0 %v221, 113
        %v6247 = vpop.permute.xlu0 %6246
        %6248 = vrot.lane.b32.xlu0 %v205, 113
        %v6249 = vpop.permute.xlu0 %6248
        %6250 = vrot.lane.b32.xlu0 %v222, 113
        %v6251 = vpop.permute.xlu0 %6250
        %6252 = vrot.lane.b32.xlu0 %v206, 113
        %v6253 = vpop.permute.xlu0 %6252
        %6254 = vrot.lane.b32.xlu0 %v223, 113
        %v6255 = vpop.permute.xlu0 %6254
        %6256 = vrot.lane.b32.xlu0 %v207, 113
        %v6257 = vpop.permute.xlu0 %6256
        %6258 = vrot.lane.b32.xlu0 %v224, 113
        %v6259 = vpop.permute.xlu0 %6258
        %6260 = vrot.lane.b32.xlu0 %v208, 113
        %v6261 = vpop.permute.xlu0 %6260
        %6262 = vrot.lane.b32.xlu0 %v225, 113
        %v6263 = vpop.permute.xlu0 %6262
        %6264 = vrot.lane.b32.xlu0 %v209, 113
        %v6265 = vpop.permute.xlu0 %6264
        %6266 = vrot.lane.b32.xlu0 %v226, 113
        %v6267 = vpop.permute.xlu0 %6266
        %vm6268 = vcmp.lt.s32.totalorder %v2332, 113
        %v6269 = vsel %vm6268, %v6265, %v6267
        %v6270 = vsel %vm6268, %v6263, %v6265
        %v6271 = vsel %vm6268, %v6261, %v6263
        %v6272 = vsel %vm6268, %v6259, %v6261
        %v6273 = vsel %vm6268, %v6257, %v6259
        %v6274 = vsel %vm6268, %v6255, %v6257
        %v6275 = vsel %vm6268, %v6253, %v6255
        %v6276 = vsel %vm6268, %v6251, %v6253
        %v6277 = vsel %vm6268, %v6249, %v6251
        %v6278 = vsel %vm6268, %v6247, %v6249
        %v6279 = vsel %vm6268, %v6245, %v6247
        %v6280 = vsel %vm6268, %v6243, %v6245
        %v6281 = vsel %vm6268, %v6241, %v6243
        %v6282 = vsel %vm6268, %v6239, %v6241
        %v6283 = vsel %vm6268, %v6237, %v6239
        %v6284 = vsel %vm6268, %v6267, %v6237
        %s6285 = scalar_lea.vmem [#allocation5], 112
        %v6286 = vld [vmem:[%s6285] sm:$0xff]
        %v6287 = vld [vmem:[%s6285 + $0x8] sm:$0xff]
        %v6290 = vlaneseq
        %v6291 = vshrl.u32 %v6290, 7
        %v6292 = vsub.s32 0, %v6291
        %v6293 = vrot.slane %v6286, %v6292
        %v6294 = vlaneseq
        %v6295 = vshrl.u32 %v6294, 7
        %v6296 = vsub.s32 1, %v6295
        %v6297 = vrot.slane %v6286, %v6296
        %v6298 = vlaneseq
        %v6299 = vshrl.u32 %v6298, 7
        %v6300 = vsub.s32 2, %v6299
        %v6301 = vrot.slane %v6286, %v6300
        %v6302 = vlaneseq
        %v6303 = vshrl.u32 %v6302, 7
        %v6304 = vsub.s32 3, %v6303
        %v6305 = vrot.slane %v6286, %v6304
        %v6306 = vlaneseq
        %v6307 = vshrl.u32 %v6306, 7
        %v6308 = vsub.s32 4, %v6307
        %v6309 = vrot.slane %v6286, %v6308
        %v6310 = vlaneseq
        %v6311 = vshrl.u32 %v6310, 7
        %v6312 = vsub.s32 5, %v6311
        %v6313 = vrot.slane %v6286, %v6312
        %v6314 = vlaneseq
        %v6315 = vshrl.u32 %v6314, 7
        %v6316 = vsub.s32 6, %v6315
        %v6317 = vrot.slane %v6286, %v6316
        %v6318 = vlaneseq
        %v6319 = vshrl.u32 %v6318, 7
        %v6320 = vsub.s32 7, %v6319
        %v6321 = vrot.slane %v6286, %v6320
        %v6322 = vlaneseq
        %v6323 = vshrl.u32 %v6322, 7
        %v6324 = vsub.s32 0, %v6323
        %v6325 = vrot.slane %v6287, %v6324
        %v6326 = vlaneseq
        %v6327 = vshrl.u32 %v6326, 7
        %v6328 = vsub.s32 1, %v6327
        %v6329 = vrot.slane %v6287, %v6328
        %v6330 = vlaneseq
        %v6331 = vshrl.u32 %v6330, 7
        %v6332 = vsub.s32 2, %v6331
        %v6333 = vrot.slane %v6287, %v6332
        %v6334 = vlaneseq
        %v6335 = vshrl.u32 %v6334, 7
        %v6336 = vsub.s32 3, %v6335
        %v6337 = vrot.slane %v6287, %v6336
        %v6338 = vlaneseq
        %v6339 = vshrl.u32 %v6338, 7
        %v6340 = vsub.s32 4, %v6339
        %v6341 = vrot.slane %v6287, %v6340
        %v6342 = vlaneseq
        %v6343 = vshrl.u32 %v6342, 7
        %v6344 = vsub.s32 5, %v6343
        %v6345 = vrot.slane %v6287, %v6344
        %v6346 = vlaneseq
        %v6347 = vshrl.u32 %v6346, 7
        %v6348 = vsub.s32 6, %v6347
        %v6349 = vrot.slane %v6287, %v6348
        %v6350 = vlaneseq
        %v6351 = vshrl.u32 %v6350, 7
        %v6352 = vsub.s32 7, %v6351
        %v6353 = vrot.slane %v6287, %v6352
        %v6370 = vmul.f32 %v6283, %v6293
        %v6371 = vmul.f32 %v6282, %v6297
        %v6372 = vmul.f32 %v6281, %v6301
        %v6373 = vmul.f32 %v6280, %v6305
        %v6374 = vmul.f32 %v6279, %v6309
        %v6375 = vmul.f32 %v6278, %v6313
        %v6376 = vmul.f32 %v6277, %v6317
        %v6377 = vmul.f32 %v6276, %v6321
        %v6378 = vmul.f32 %v6275, %v6325
        %v6379 = vmul.f32 %v6274, %v6329
        %v6380 = vmul.f32 %v6273, %v6333
        %v6381 = vmul.f32 %v6272, %v6337
        %v6382 = vmul.f32 %v6271, %v6341
        %v6383 = vmul.f32 %v6270, %v6345
        %v6384 = vmul.f32 %v6269, %v6349
        %v6385 = vmul.f32 %v6284, %v6353
        %s6386 = scalar_lea.vmem %s1, 32
        %v6387 = vld [vmem:[%s6386] sm:$0xf]
        %v6389 = vsel %vm337, %v6387, 0
        %v6392 = vsel %vm341, %v6370, 0
        %v6395 = vsel %vm341, %v6371, 0
        %v6398 = vsel %vm341, %v6372, 0
        %v6401 = vsel %vm341, %v6373, 0
        %v6404 = vsel %vm341, %v6374, 0
        %v6407 = vsel %vm341, %v6375, 0
        %v6410 = vsel %vm341, %v6376, 0
        %v6413 = vsel %vm341, %v6377, 0
        %v6416 = vsel %vm341, %v6378, 0
        %v6419 = vsel %vm341, %v6379, 0
        %v6422 = vsel %vm341, %v6380, 0
        %v6425 = vsel %vm341, %v6381, 0
        %v6428 = vsel %vm341, %v6382, 0
        %v6431 = vsel %vm341, %v6383, 0
        %v6434 = vsel %vm341, %v6384, 0
        %v6437 = vsel %vm341, %v6385, 0
        %6439 = vmatprep.subr.mxu0 %v6395
        %6440 = vmatpush1.msra.mxu0 %v6392
        %6441 = vmatprep.subr.mxu0 0.0
        %6442 = vmatpush1.msra.mxu0 0.0
        %6443 = vmatprep.subr.mxu0 0.0
        %6444 = vmatpush1.msra.mxu0 0.0
        %6445 = vmatprep.subr.mxu0 0.0
        %6446 = vmatpush1.msra.mxu0 0.0
        %6447 = vmatprep.subr.mxu0 0.0
        %6448 = vmatpush1.msra.mxu0 0.0
        %6449 = vmatprep.subr.mxu0 0.0
        %6450 = vmatpush1.msra.mxu0 0.0
        %6451 = vmatprep.subr.mxu0 0.0
        %6452 = vmatpush1.msra.mxu0 0.0
        %6453 = vmatprep.subr.mxu0 0.0
        %6454 = vmatpush1.msra.mxu0 0.0
        %6455 = vmatprep.subr.mxu0 0.0
        %6456 = vmatpush1.msra.mxu0 0.0
        %6457 = vmatprep.subr.mxu0 0.0
        %6458 = vmatpush1.msra.mxu0 0.0
        %6459 = vmatprep.subr.mxu0 0.0
        %6460 = vmatpush1.msra.mxu0 0.0
        %6461 = vmatprep.subr.mxu0 0.0
        %6462 = vmatpush1.msra.mxu0 0.0
        %6463 = vmatprep.subr.mxu0 0.0
        %6464 = vmatpush1.msra.mxu0 0.0
        %6465 = vmatprep.subr.mxu0 0.0
        %6466 = vmatpush1.msra.mxu0 0.0
        %6467 = vmatprep.subr.mxu0 0.0
        %6468 = vmatpush1.msra.mxu0 0.0
        %6469 = vmatprep.subr.mxu0 0.0
        %6470 = vmatpush1.msra.mxu0 0.0
        %6471 = vmatprep.subr.mxu0 0.0
        %6472 = vmatpush1.msra.mxu0 0.0
        %6473 = vmatprep.subr.mxu0 0.0
        %6474 = vmatpush1.msra.mxu0 0.0
        %6475 = vmatprep.subr.mxu0 0.0
        %6476 = vmatpush1.msra.mxu0 0.0
        %6477 = vmatprep.subr.mxu0 0.0
        %6478 = vmatpush1.msra.mxu0 0.0
        %6479 = vmatprep.subr.mxu0 0.0
        %6480 = vmatpush1.msra.mxu0 0.0
        %6481 = vmatprep.subr.mxu0 0.0
        %6482 = vmatpush1.msra.mxu0 0.0
        %6483 = vmatprep.subr.mxu0 0.0
        %6484 = vmatpush1.msra.mxu0 0.0
        %6485 = vmatprep.subr.mxu0 0.0
        %6486 = vmatpush1.msra.mxu0 0.0
        %6487 = vmatprep.subr.mxu0 0.0
        %6488 = vmatpush1.msra.mxu0 0.0
        %6489 = vmatprep.subr.mxu0 0.0
        %6490 = vmatpush1.msra.mxu0 0.0
        %6491 = vmatprep.subr.mxu0 0.0
        %6492 = vmatpush1.msra.mxu0 0.0
        %6493 = vmatprep.subr.mxu0 0.0
        %6494 = vmatpush1.msra.mxu0 0.0
        %6495 = vmatprep.subr.mxu0 0.0
        %6496 = vmatpush1.msra.mxu0 0.0
        %6497 = vmatprep.subr.mxu0 0.0
        %6498 = vmatpush1.msra.mxu0 0.0
        %6499 = vmatprep.subr.mxu0 0.0
        %6500 = vmatpush1.msra.mxu0 0.0
        %6501 = vmatprep.subr.mxu0 0.0
        %6502 = vmatpush1.msra.mxu0 0.0
        %6503 = vmatprep.mubr.f32.mxu0 0.0
        %6504 = vmatmul.mubr.f32.gmra.mrb[0].mxu0 %v6389
        %v6505 = vpop.f32.mrb[0].mxu0
        %v6506 = vadd.f32 0.0, %v6505
        %v6507 = vpop.f32.mrb[0].mxu0
        %v6508 = vadd.f32 0.0, %v6507
        %6509 = vdwg.mxu0
        %6510 = vmatprep.subr.mxu0 %v6401
        %6511 = vmatpush1.msra.mxu0 %v6398
        %6512 = vmatprep.subr.mxu0 0.0
        %6513 = vmatpush1.msra.mxu0 0.0
        %6514 = vmatprep.subr.mxu0 0.0
        %6515 = vmatpush1.msra.mxu0 0.0
        %6516 = vmatprep.subr.mxu0 0.0
        %6517 = vmatpush1.msra.mxu0 0.0
        %6518 = vmatprep.subr.mxu0 0.0
        %6519 = vmatpush1.msra.mxu0 0.0
        %6520 = vmatprep.subr.mxu0 0.0
        %6521 = vmatpush1.msra.mxu0 0.0
        %6522 = vmatprep.subr.mxu0 0.0
        %6523 = vmatpush1.msra.mxu0 0.0
        %6524 = vmatprep.subr.mxu0 0.0
        %6525 = vmatpush1.msra.mxu0 0.0
        %6526 = vmatprep.subr.mxu0 0.0
        %6527 = vmatpush1.msra.mxu0 0.0
        %6528 = vmatprep.subr.mxu0 0.0
        %6529 = vmatpush1.msra.mxu0 0.0
        %6530 = vmatprep.subr.mxu0 0.0
        %6531 = vmatpush1.msra.mxu0 0.0
        %6532 = vmatprep.subr.mxu0 0.0
        %6533 = vmatpush1.msra.mxu0 0.0
        %6534 = vmatprep.subr.mxu0 0.0
        %6535 = vmatpush1.msra.mxu0 0.0
        %6536 = vmatprep.subr.mxu0 0.0
        %6537 = vmatpush1.msra.mxu0 0.0
        %6538 = vmatprep.subr.mxu0 0.0
        %6539 = vmatpush1.msra.mxu0 0.0
        %6540 = vmatprep.subr.mxu0 0.0
        %6541 = vmatpush1.msra.mxu0 0.0
        %6542 = vmatprep.subr.mxu0 0.0
        %6543 = vmatpush1.msra.mxu0 0.0
        %6544 = vmatprep.subr.mxu0 0.0
        %6545 = vmatpush1.msra.mxu0 0.0
        %6546 = vmatprep.subr.mxu0 0.0
        %6547 = vmatpush1.msra.mxu0 0.0
        %6548 = vmatprep.subr.mxu0 0.0
        %6549 = vmatpush1.msra.mxu0 0.0
        %6550 = vmatprep.subr.mxu0 0.0
        %6551 = vmatpush1.msra.mxu0 0.0
        %6552 = vmatprep.subr.mxu0 0.0
        %6553 = vmatpush1.msra.mxu0 0.0
        %6554 = vmatprep.subr.mxu0 0.0
        %6555 = vmatpush1.msra.mxu0 0.0
        %6556 = vmatprep.subr.mxu0 0.0
        %6557 = vmatpush1.msra.mxu0 0.0
        %6558 = vmatprep.subr.mxu0 0.0
        %6559 = vmatpush1.msra.mxu0 0.0
        %6560 = vmatprep.subr.mxu0 0.0
        %6561 = vmatpush1.msra.mxu0 0.0
        %6562 = vmatprep.subr.mxu0 0.0
        %6563 = vmatpush1.msra.mxu0 0.0
        %6564 = vmatprep.subr.mxu0 0.0
        %6565 = vmatpush1.msra.mxu0 0.0
        %6566 = vmatprep.subr.mxu0 0.0
        %6567 = vmatpush1.msra.mxu0 0.0
        %6568 = vmatprep.subr.mxu0 0.0
        %6569 = vmatpush1.msra.mxu0 0.0
        %6570 = vmatprep.subr.mxu0 0.0
        %6571 = vmatpush1.msra.mxu0 0.0
        %6572 = vmatprep.subr.mxu0 0.0
        %6573 = vmatpush1.msra.mxu0 0.0
        %6574 = vmatprep.mubr.f32.mxu0 0.0
        %6575 = vmatmul.mubr.f32.gmra.mrb[0].mxu0 %v6389
        %v6576 = vpop.f32.mrb[0].mxu0
        %v6577 = vadd.f32 0.0, %v6576
        %v6578 = vpop.f32.mrb[0].mxu0
        %v6579 = vadd.f32 0.0, %v6578
        %6580 = vdwg.mxu0
        %6581 = vmatprep.subr.mxu0 %v6407
        %6582 = vmatpush1.msra.mxu0 %v6404
        %6583 = vmatprep.subr.mxu0 0.0
        %6584 = vmatpush1.msra.mxu0 0.0
        %6585 = vmatprep.subr.mxu0 0.0
        %6586 = vmatpush1.msra.mxu0 0.0
        %6587 = vmatprep.subr.mxu0 0.0
        %6588 = vmatpush1.msra.mxu0 0.0
        %6589 = vmatprep.subr.mxu0 0.0
        %6590 = vmatpush1.msra.mxu0 0.0
        %6591 = vmatprep.subr.mxu0 0.0
        %6592 = vmatpush1.msra.mxu0 0.0
        %6593 = vmatprep.subr.mxu0 0.0
        %6594 = vmatpush1.msra.mxu0 0.0
        %6595 = vmatprep.subr.mxu0 0.0
        %6596 = vmatpush1.msra.mxu0 0.0
        %6597 = vmatprep.subr.mxu0 0.0
        %6598 = vmatpush1.msra.mxu0 0.0
        %6599 = vmatprep.subr.mxu0 0.0
        %6600 = vmatpush1.msra.mxu0 0.0
        %6601 = vmatprep.subr.mxu0 0.0
        %6602 = vmatpush1.msra.mxu0 0.0
        %6603 = vmatprep.subr.mxu0 0.0
        %6604 = vmatpush1.msra.mxu0 0.0
        %6605 = vmatprep.subr.mxu0 0.0
        %6606 = vmatpush1.msra.mxu0 0.0
        %6607 = vmatprep.subr.mxu0 0.0
        %6608 = vmatpush1.msra.mxu0 0.0
        %6609 = vmatprep.subr.mxu0 0.0
        %6610 = vmatpush1.msra.mxu0 0.0
        %6611 = vmatprep.subr.mxu0 0.0
        %6612 = vmatpush1.msra.mxu0 0.0
        %6613 = vmatprep.subr.mxu0 0.0
        %6614 = vmatpush1.msra.mxu0 0.0
        %6615 = vmatprep.subr.mxu0 0.0
        %6616 = vmatpush1.msra.mxu0 0.0
        %6617 = vmatprep.subr.mxu0 0.0
        %6618 = vmatpush1.msra.mxu0 0.0
        %6619 = vmatprep.subr.mxu0 0.0
        %6620 = vmatpush1.msra.mxu0 0.0
        %6621 = vmatprep.subr.mxu0 0.0
        %6622 = vmatpush1.msra.mxu0 0.0
        %6623 = vmatprep.subr.mxu0 0.0
        %6624 = vmatpush1.msra.mxu0 0.0
        %6625 = vmatprep.subr.mxu0 0.0
        %6626 = vmatpush1.msra.mxu0 0.0
        %6627 = vmatprep.subr.mxu0 0.0
        %6628 = vmatpush1.msra.mxu0 0.0
        %6629 = vmatprep.subr.mxu0 0.0
        %6630 = vmatpush1.msra.mxu0 0.0
        %6631 = vmatprep.subr.mxu0 0.0
        %6632 = vmatpush1.msra.mxu0 0.0
        %6633 = vmatprep.subr.mxu0 0.0
        %6634 = vmatpush1.msra.mxu0 0.0
        %6635 = vmatprep.subr.mxu0 0.0
        %6636 = vmatpush1.msra.mxu0 0.0
        %6637 = vmatprep.subr.mxu0 0.0
        %6638 = vmatpush1.msra.mxu0 0.0
        %6639 = vmatprep.subr.mxu0 0.0
        %6640 = vmatpush1.msra.mxu0 0.0
        %6641 = vmatprep.subr.mxu0 0.0
        %6642 = vmatpush1.msra.mxu0 0.0
        %6643 = vmatprep.subr.mxu0 0.0
        %6644 = vmatpush1.msra.mxu0 0.0
        %6645 = vmatprep.mubr.f32.mxu0 0.0
        %6646 = vmatmul.mubr.f32.gmra.mrb[0].mxu0 %v6389
        %v6647 = vpop.f32.mrb[0].mxu0
        %v6648 = vadd.f32 0.0, %v6647
        %v6649 = vpop.f32.mrb[0].mxu0
        %v6650 = vadd.f32 0.0, %v6649
        %6651 = vdwg.mxu0
        %6652 = vmatprep.subr.mxu0 %v6413
        %6653 = vmatpush1.msra.mxu0 %v6410
        %6654 = vmatprep.subr.mxu0 0.0
        %6655 = vmatpush1.msra.mxu0 0.0
        %6656 = vmatprep.subr.mxu0 0.0
        %6657 = vmatpush1.msra.mxu0 0.0
        %6658 = vmatprep.subr.mxu0 0.0
        %6659 = vmatpush1.msra.mxu0 0.0
        %6660 = vmatprep.subr.mxu0 0.0
        %6661 = vmatpush1.msra.mxu0 0.0
        %6662 = vmatprep.subr.mxu0 0.0
        %6663 = vmatpush1.msra.mxu0 0.0
        %6664 = vmatprep.subr.mxu0 0.0
        %6665 = vmatpush1.msra.mxu0 0.0
        %6666 = vmatprep.subr.mxu0 0.0
        %6667 = vmatpush1.msra.mxu0 0.0
        %6668 = vmatprep.subr.mxu0 0.0
        %6669 = vmatpush1.msra.mxu0 0.0
        %6670 = vmatprep.subr.mxu0 0.0
        %6671 = vmatpush1.msra.mxu0 0.0
        %6672 = vmatprep.subr.mxu0 0.0
        %6673 = vmatpush1.msra.mxu0 0.0
        %6674 = vmatprep.subr.mxu0 0.0
        %6675 = vmatpush1.msra.mxu0 0.0
        %6676 = vmatprep.subr.mxu0 0.0
        %6677 = vmatpush1.msra.mxu0 0.0
        %6678 = vmatprep.subr.mxu0 0.0
        %6679 = vmatpush1.msra.mxu0 0.0
        %6680 = vmatprep.subr.mxu0 0.0
        %6681 = vmatpush1.msra.mxu0 0.0
        %6682 = vmatprep.subr.mxu0 0.0
        %6683 = vmatpush1.msra.mxu0 0.0
        %6684 = vmatprep.subr.mxu0 0.0
        %6685 = vmatpush1.msra.mxu0 0.0
        %6686 = vmatprep.subr.mxu0 0.0
        %6687 = vmatpush1.msra.mxu0 0.0
        %6688 = vmatprep.subr.mxu0 0.0
        %6689 = vmatpush1.msra.mxu0 0.0
        %6690 = vmatprep.subr.mxu0 0.0
        %6691 = vmatpush1.msra.mxu0 0.0
        %6692 = vmatprep.subr.mxu0 0.0
        %6693 = vmatpush1.msra.mxu0 0.0
        %6694 = vmatprep.subr.mxu0 0.0
        %6695 = vmatpush1.msra.mxu0 0.0
        %6696 = vmatprep.subr.mxu0 0.0
        %6697 = vmatpush1.msra.mxu0 0.0
        %6698 = vmatprep.subr.mxu0 0.0
        %6699 = vmatpush1.msra.mxu0 0.0
        %6700 = vmatprep.subr.mxu0 0.0
        %6701 = vmatpush1.msra.mxu0 0.0
        %6702 = vmatprep.subr.mxu0 0.0
        %6703 = vmatpush1.msra.mxu0 0.0
        %6704 = vmatprep.subr.mxu0 0.0
        %6705 = vmatpush1.msra.mxu0 0.0
        %6706 = vmatprep.subr.mxu0 0.0
        %6707 = vmatpush1.msra.mxu0 0.0
        %6708 = vmatprep.subr.mxu0 0.0
        %6709 = vmatpush1.msra.mxu0 0.0
        %6710 = vmatprep.subr.mxu0 0.0
        %6711 = vmatpush1.msra.mxu0 0.0
        %6712 = vmatprep.subr.mxu0 0.0
        %6713 = vmatpush1.msra.mxu0 0.0
        %6714 = vmatprep.subr.mxu0 0.0
        %6715 = vmatpush1.msra.mxu0 0.0
        %6716 = vmatprep.mubr.f32.mxu0 0.0
        %6717 = vmatmul.mubr.f32.gmra.mrb[0].mxu0 %v6389
        %v6718 = vpop.f32.mrb[0].mxu0
        %v6719 = vadd.f32 0.0, %v6718
        %v6720 = vpop.f32.mrb[0].mxu0
        %v6721 = vadd.f32 0.0, %v6720
        %6722 = vdwg.mxu0
        %6723 = vmatprep.subr.mxu0 %v6419
        %6724 = vmatpush1.msra.mxu0 %v6416
        %6725 = vmatprep.subr.mxu0 0.0
        %6726 = vmatpush1.msra.mxu0 0.0
        %6727 = vmatprep.subr.mxu0 0.0
        %6728 = vmatpush1.msra.mxu0 0.0
        %6729 = vmatprep.subr.mxu0 0.0
        %6730 = vmatpush1.msra.mxu0 0.0
        %6731 = vmatprep.subr.mxu0 0.0
        %6732 = vmatpush1.msra.mxu0 0.0
        %6733 = vmatprep.subr.mxu0 0.0
        %6734 = vmatpush1.msra.mxu0 0.0
        %6735 = vmatprep.subr.mxu0 0.0
        %6736 = vmatpush1.msra.mxu0 0.0
        %6737 = vmatprep.subr.mxu0 0.0
        %6738 = vmatpush1.msra.mxu0 0.0
        %6739 = vmatprep.subr.mxu0 0.0
        %6740 = vmatpush1.msra.mxu0 0.0
        %6741 = vmatprep.subr.mxu0 0.0
        %6742 = vmatpush1.msra.mxu0 0.0
        %6743 = vmatprep.subr.mxu0 0.0
        %6744 = vmatpush1.msra.mxu0 0.0
        %6745 = vmatprep.subr.mxu0 0.0
        %6746 = vmatpush1.msra.mxu0 0.0
        %6747 = vmatprep.subr.mxu0 0.0
        %6748 = vmatpush1.msra.mxu0 0.0
        %6749 = vmatprep.subr.mxu0 0.0
        %6750 = vmatpush1.msra.mxu0 0.0
        %6751 = vmatprep.subr.mxu0 0.0
        %6752 = vmatpush1.msra.mxu0 0.0
        %6753 = vmatprep.subr.mxu0 0.0
        %6754 = vmatpush1.msra.mxu0 0.0
        %6755 = vmatprep.subr.mxu0 0.0
        %6756 = vmatpush1.msra.mxu0 0.0
        %6757 = vmatprep.subr.mxu0 0.0
        %6758 = vmatpush1.msra.mxu0 0.0
        %6759 = vmatprep.subr.mxu0 0.0
        %6760 = vmatpush1.msra.mxu0 0.0
        %6761 = vmatprep.subr.mxu0 0.0
        %6762 = vmatpush1.msra.mxu0 0.0
        %6763 = vmatprep.subr.mxu0 0.0
        %6764 = vmatpush1.msra.mxu0 0.0
        %6765 = vmatprep.subr.mxu0 0.0
        %6766 = vmatpush1.msra.mxu0 0.0
        %6767 = vmatprep.subr.mxu0 0.0
        %6768 = vmatpush1.msra.mxu0 0.0
        %6769 = vmatprep.subr.mxu0 0.0
        %6770 = vmatpush1.msra.mxu0 0.0
        %6771 = vmatprep.subr.mxu0 0.0
        %6772 = vmatpush1.msra.mxu0 0.0
        %6773 = vmatprep.subr.mxu0 0.0
        %6774 = vmatpush1.msra.mxu0 0.0
        %6775 = vmatprep.subr.mxu0 0.0
        %6776 = vmatpush1.msra.mxu0 0.0
        %6777 = vmatprep.subr.mxu0 0.0
        %6778 = vmatpush1.msra.mxu0 0.0
        %6779 = vmatprep.subr.mxu0 0.0
        %6780 = vmatpush1.msra.mxu0 0.0
        %6781 = vmatprep.subr.mxu0 0.0
        %6782 = vmatpush1.msra.mxu0 0.0
        %6783 = vmatprep.subr.mxu0 0.0
        %6784 = vmatpush1.msra.mxu0 0.0
        %6785 = vmatprep.subr.mxu0 0.0
        %6786 = vmatpush1.msra.mxu0 0.0
        %6787 = vmatprep.mubr.f32.mxu0 0.0
        %6788 = vmatmul.mubr.f32.gmra.mrb[0].mxu0 %v6389
        %v6789 = vpop.f32.mrb[0].mxu0
        %v6790 = vadd.f32 0.0, %v6789
        %v6791 = vpop.f32.mrb[0].mxu0
        %v6792 = vadd.f32 0.0, %v6791
        %6793 = vdwg.mxu0
        %6794 = vmatprep.subr.mxu0 %v6425
        %6795 = vmatpush1.msra.mxu0 %v6422
        %6796 = vmatprep.subr.mxu0 0.0
        %6797 = vmatpush1.msra.mxu0 0.0
        %6798 = vmatprep.subr.mxu0 0.0
        %6799 = vmatpush1.msra.mxu0 0.0
        %6800 = vmatprep.subr.mxu0 0.0
        %6801 = vmatpush1.msra.mxu0 0.0
        %6802 = vmatprep.subr.mxu0 0.0
        %6803 = vmatpush1.msra.mxu0 0.0
        %6804 = vmatprep.subr.mxu0 0.0
        %6805 = vmatpush1.msra.mxu0 0.0
        %6806 = vmatprep.subr.mxu0 0.0
        %6807 = vmatpush1.msra.mxu0 0.0
        %6808 = vmatprep.subr.mxu0 0.0
        %6809 = vmatpush1.msra.mxu0 0.0
        %6810 = vmatprep.subr.mxu0 0.0
        %6811 = vmatpush1.msra.mxu0 0.0
        %6812 = vmatprep.subr.mxu0 0.0
        %6813 = vmatpush1.msra.mxu0 0.0
        %6814 = vmatprep.subr.mxu0 0.0
        %6815 = vmatpush1.msra.mxu0 0.0
        %6816 = vmatprep.subr.mxu0 0.0
        %6817 = vmatpush1.msra.mxu0 0.0
        %6818 = vmatprep.subr.mxu0 0.0
        %6819 = vmatpush1.msra.mxu0 0.0
        %6820 = vmatprep.subr.mxu0 0.0
        %6821 = vmatpush1.msra.mxu0 0.0
        %6822 = vmatprep.subr.mxu0 0.0
        %6823 = vmatpush1.msra.mxu0 0.0
        %6824 = vmatprep.subr.mxu0 0.0
        %6825 = vmatpush1.msra.mxu0 0.0
        %6826 = vmatprep.subr.mxu0 0.0
        %6827 = vmatpush1.msra.mxu0 0.0
        %6828 = vmatprep.subr.mxu0 0.0
        %6829 = vmatpush1.msra.mxu0 0.0
        %6830 = vmatprep.subr.mxu0 0.0
        %6831 = vmatpush1.msra.mxu0 0.0
        %6832 = vmatprep.subr.mxu0 0.0
        %6833 = vmatpush1.msra.mxu0 0.0
        %6834 = vmatprep.subr.mxu0 0.0
        %6835 = vmatpush1.msra.mxu0 0.0
        %6836 = vmatprep.subr.mxu0 0.0
        %6837 = vmatpush1.msra.mxu0 0.0
        %6838 = vmatprep.subr.mxu0 0.0
        %6839 = vmatpush1.msra.mxu0 0.0
        %6840 = vmatprep.subr.mxu0 0.0
        %6841 = vmatpush1.msra.mxu0 0.0
        %6842 = vmatprep.subr.mxu0 0.0
        %6843 = vmatpush1.msra.mxu0 0.0
        %6844 = vmatprep.subr.mxu0 0.0
        %6845 = vmatpush1.msra.mxu0 0.0
        %6846 = vmatprep.subr.mxu0 0.0
        %6847 = vmatpush1.msra.mxu0 0.0
        %6848 = vmatprep.subr.mxu0 0.0
        %6849 = vmatpush1.msra.mxu0 0.0
        %6850 = vmatprep.subr.mxu0 0.0
        %6851 = vmatpush1.msra.mxu0 0.0
        %6852 = vmatprep.subr.mxu0 0.0
        %6853 = vmatpush1.msra.mxu0 0.0
        %6854 = vmatprep.subr.mxu0 0.0
        %6855 = vmatpush1.msra.mxu0 0.0
        %6856 = vmatprep.subr.mxu0 0.0
        %6857 = vmatpush1.msra.mxu0 0.0
        %6858 = vmatprep.mubr.f32.mxu0 0.0
        %6859 = vmatmul.mubr.f32.gmra.mrb[0].mxu0 %v6389
        %v6860 = vpop.f32.mrb[0].mxu0
        %v6861 = vadd.f32 0.0, %v6860
        %v6862 = vpop.f32.mrb[0].mxu0
        %v6863 = vadd.f32 0.0, %v6862
        %6864 = vdwg.mxu0
        %6865 = vmatprep.subr.mxu0 %v6431
        %6866 = vmatpush1.msra.mxu0 %v6428
        %6867 = vmatprep.subr.mxu0 0.0
        %6868 = vmatpush1.msra.mxu0 0.0
        %6869 = vmatprep.subr.mxu0 0.0
        %6870 = vmatpush1.msra.mxu0 0.0
        %6871 = vmatprep.subr.mxu0 0.0
        %6872 = vmatpush1.msra.mxu0 0.0
        %6873 = vmatprep.subr.mxu0 0.0
        %6874 = vmatpush1.msra.mxu0 0.0
        %6875 = vmatprep.subr.mxu0 0.0
        %6876 = vmatpush1.msra.mxu0 0.0
        %6877 = vmatprep.subr.mxu0 0.0
        %6878 = vmatpush1.msra.mxu0 0.0
        %6879 = vmatprep.subr.mxu0 0.0
        %6880 = vmatpush1.msra.mxu0 0.0
        %6881 = vmatprep.subr.mxu0 0.0
        %6882 = vmatpush1.msra.mxu0 0.0
        %6883 = vmatprep.subr.mxu0 0.0
        %6884 = vmatpush1.msra.mxu0 0.0
        %6885 = vmatprep.subr.mxu0 0.0
        %6886 = vmatpush1.msra.mxu0 0.0
        %6887 = vmatprep.subr.mxu0 0.0
        %6888 = vmatpush1.msra.mxu0 0.0
        %6889 = vmatprep.subr.mxu0 0.0
        %6890 = vmatpush1.msra.mxu0 0.0
        %6891 = vmatprep.subr.mxu0 0.0
        %6892 = vmatpush1.msra.mxu0 0.0
        %6893 = vmatprep.subr.mxu0 0.0
        %6894 = vmatpush1.msra.mxu0 0.0
        %6895 = vmatprep.subr.mxu0 0.0
        %6896 = vmatpush1.msra.mxu0 0.0
        %6897 = vmatprep.subr.mxu0 0.0
        %6898 = vmatpush1.msra.mxu0 0.0
        %6899 = vmatprep.subr.mxu0 0.0
        %6900 = vmatpush1.msra.mxu0 0.0
        %6901 = vmatprep.subr.mxu0 0.0
        %6902 = vmatpush1.msra.mxu0 0.0
        %6903 = vmatprep.subr.mxu0 0.0
        %6904 = vmatpush1.msra.mxu0 0.0
        %6905 = vmatprep.subr.mxu0 0.0
        %6906 = vmatpush1.msra.mxu0 0.0
        %6907 = vmatprep.subr.mxu0 0.0
        %6908 = vmatpush1.msra.mxu0 0.0
        %6909 = vmatprep.subr.mxu0 0.0
        %6910 = vmatpush1.msra.mxu0 0.0
        %6911 = vmatprep.subr.mxu0 0.0
        %6912 = vmatpush1.msra.mxu0 0.0
        %6913 = vmatprep.subr.mxu0 0.0
        %6914 = vmatpush1.msra.mxu0 0.0
        %6915 = vmatprep.subr.mxu0 0.0
        %6916 = vmatpush1.msra.mxu0 0.0
        %6917 = vmatprep.subr.mxu0 0.0
        %6918 = vmatpush1.msra.mxu0 0.0
        %6919 = vmatprep.subr.mxu0 0.0
        %6920 = vmatpush1.msra.mxu0 0.0
        %6921 = vmatprep.subr.mxu0 0.0
        %6922 = vmatpush1.msra.mxu0 0.0
        %6923 = vmatprep.subr.mxu0 0.0
        %6924 = vmatpush1.msra.mxu0 0.0
        %6925 = vmatprep.subr.mxu0 0.0
        %6926 = vmatpush1.msra.mxu0 0.0
        %6927 = vmatprep.subr.mxu0 0.0
        %6928 = vmatpush1.msra.mxu0 0.0
        %6929 = vmatprep.mubr.f32.mxu0 0.0
        %6930 = vmatmul.mubr.f32.gmra.mrb[0].mxu0 %v6389
        %v6931 = vpop.f32.mrb[0].mxu0
        %v6932 = vadd.f32 0.0, %v6931
        %v6933 = vpop.f32.mrb[0].mxu0
        %v6934 = vadd.f32 0.0, %v6933
        %6935 = vdwg.mxu0
        %6936 = vmatprep.subr.mxu0 %v6437
        %6937 = vmatpush1.msra.mxu0 %v6434
        %6938 = vmatprep.subr.mxu0 0.0
        %6939 = vmatpush1.msra.mxu0 0.0
        %6940 = vmatprep.subr.mxu0 0.0
        %6941 = vmatpush1.msra.mxu0 0.0
        %6942 = vmatprep.subr.mxu0 0.0
        %6943 = vmatpush1.msra.mxu0 0.0
        %6944 = vmatprep.subr.mxu0 0.0
        %6945 = vmatpush1.msra.mxu0 0.0
        %6946 = vmatprep.subr.mxu0 0.0
        %6947 = vmatpush1.msra.mxu0 0.0
        %6948 = vmatprep.subr.mxu0 0.0
        %6949 = vmatpush1.msra.mxu0 0.0
        %6950 = vmatprep.subr.mxu0 0.0
        %6951 = vmatpush1.msra.mxu0 0.0
        %6952 = vmatprep.subr.mxu0 0.0
        %6953 = vmatpush1.msra.mxu0 0.0
        %6954 = vmatprep.subr.mxu0 0.0
        %6955 = vmatpush1.msra.mxu0 0.0
        %6956 = vmatprep.subr.mxu0 0.0
        %6957 = vmatpush1.msra.mxu0 0.0
        %6958 = vmatprep.subr.mxu0 0.0
        %6959 = vmatpush1.msra.mxu0 0.0
        %6960 = vmatprep.subr.mxu0 0.0
        %6961 = vmatpush1.msra.mxu0 0.0
        %6962 = vmatprep.subr.mxu0 0.0
        %6963 = vmatpush1.msra.mxu0 0.0
        %6964 = vmatprep.subr.mxu0 0.0
        %6965 = vmatpush1.msra.mxu0 0.0
        %6966 = vmatprep.subr.mxu0 0.0
        %6967 = vmatpush1.msra.mxu0 0.0
        %6968 = vmatprep.subr.mxu0 0.0
        %6969 = vmatpush1.msra.mxu0 0.0
        %6970 = vmatprep.subr.mxu0 0.0
        %6971 = vmatpush1.msra.mxu0 0.0
        %6972 = vmatprep.subr.mxu0 0.0
        %6973 = vmatpush1.msra.mxu0 0.0
        %6974 = vmatprep.subr.mxu0 0.0
        %6975 = vmatpush1.msra.mxu0 0.0
        %6976 = vmatprep.subr.mxu0 0.0
        %6977 = vmatpush1.msra.mxu0 0.0
        %6978 = vmatprep.subr.mxu0 0.0
        %6979 = vmatpush1.msra.mxu0 0.0
        %6980 = vmatprep.subr.mxu0 0.0
        %6981 = vmatpush1.msra.mxu0 0.0
        %6982 = vmatprep.subr.mxu0 0.0
        %6983 = vmatpush1.msra.mxu0 0.0
        %6984 = vmatprep.subr.mxu0 0.0
        %6985 = vmatpush1.msra.mxu0 0.0
        %6986 = vmatprep.subr.mxu0 0.0
        %6987 = vmatpush1.msra.mxu0 0.0
        %6988 = vmatprep.subr.mxu0 0.0
        %6989 = vmatpush1.msra.mxu0 0.0
        %6990 = vmatprep.subr.mxu0 0.0
        %6991 = vmatpush1.msra.mxu0 0.0
        %6992 = vmatprep.subr.mxu0 0.0
        %6993 = vmatpush1.msra.mxu0 0.0
        %6994 = vmatprep.subr.mxu0 0.0
        %6995 = vmatpush1.msra.mxu0 0.0
        %6996 = vmatprep.subr.mxu0 0.0
        %6997 = vmatpush1.msra.mxu0 0.0
        %6998 = vmatprep.subr.mxu0 0.0
        %6999 = vmatpush1.msra.mxu0 0.0
        %7000 = vmatprep.mubr.f32.mxu0 0.0
        %7001 = vmatmul.mubr.f32.gmra.mrb[0].mxu0 %v6389
        %v7002 = vpop.f32.mrb[0].mxu0
        %v7003 = vadd.f32 0.0, %v7002
        %v7004 = vpop.f32.mrb[0].mxu0
        %v7005 = vadd.f32 0.0, %v7004
        %7006 = vdwg.mxu0
        %v7007 = vadd.f32 %v6220, %v6506
        %v7008 = vadd.f32 %v6221, %v6508
        %v7009 = vadd.f32 %v6222, %v6577
        %v7010 = vadd.f32 %v6223, %v6579
        %v7011 = vadd.f32 %v6224, %v6648
        %v7012 = vadd.f32 %v6225, %v6650
        %v7013 = vadd.f32 %v6226, %v6719
        %v7014 = vadd.f32 %v6227, %v6721
        %v7015 = vadd.f32 %v6228, %v6790
        %v7016 = vadd.f32 %v6229, %v6792
        %v7017 = vadd.f32 %v6230, %v6861
        %v7018 = vadd.f32 %v6231, %v6863
        %v7019 = vadd.f32 %v6232, %v6932
        %v7020 = vadd.f32 %v6233, %v6934
        %v7021 = vadd.f32 %v6234, %v7003
        %v7022 = vadd.f32 %v6235, %v7005
        %7023 = vrot.lane.b32.xlu0 %v202, 112
        %v7024 = vpop.permute.xlu0 %7023
        %7025 = vrot.lane.b32.xlu0 %v219, 112
        %v7026 = vpop.permute.xlu0 %7025
        %7027 = vrot.lane.b32.xlu0 %v203, 112
        %v7028 = vpop.permute.xlu0 %7027
        %7029 = vrot.lane.b32.xlu0 %v220, 112
        %v7030 = vpop.permute.xlu0 %7029
        %7031 = vrot.lane.b32.xlu0 %v204, 112
        %v7032 = vpop.permute.xlu0 %7031
        %7033 = vrot.lane.b32.xlu0 %v221, 112
        %v7034 = vpop.permute.xlu0 %7033
        %7035 = vrot.lane.b32.xlu0 %v205, 112
        %v7036 = vpop.permute.xlu0 %7035
        %7037 = vrot.lane.b32.xlu0 %v222, 112
        %v7038 = vpop.permute.xlu0 %7037
        %7039 = vrot.lane.b32.xlu0 %v206, 112
        %v7040 = vpop.permute.xlu0 %7039
        %7041 = vrot.lane.b32.xlu0 %v223, 112
        %v7042 = vpop.permute.xlu0 %7041
        %7043 = vrot.lane.b32.xlu0 %v207, 112
        %v7044 = vpop.permute.xlu0 %7043
        %7045 = vrot.lane.b32.xlu0 %v224, 112
        %v7046 = vpop.permute.xlu0 %7045
        %7047 = vrot.lane.b32.xlu0 %v208, 112
        %v7048 = vpop.permute.xlu0 %7047
        %7049 = vrot.lane.b32.xlu0 %v225, 112
        %v7050 = vpop.permute.xlu0 %7049
        %7051 = vrot.lane.b32.xlu0 %v209, 112
        %v7052 = vpop.permute.xlu0 %7051
        %7053 = vrot.lane.b32.xlu0 %v226, 112
        %v7054 = vpop.permute.xlu0 %7053
        %vm7055 = vcmp.lt.s32.totalorder %v2332, 112
        %v7056 = vsel %vm7055, %v7052, %v7054
        %v7057 = vsel %vm7055, %v7050, %v7052
        %v7058 = vsel %vm7055, %v7048, %v7050
        %v7059 = vsel %vm7055, %v7046, %v7048
        %v7060 = vsel %vm7055, %v7044, %v7046
        %v7061 = vsel %vm7055, %v7042, %v7044
        %v7062 = vsel %vm7055, %v7040, %v7042
        %v7063 = vsel %vm7055, %v7038, %v7040
        %v7064 = vsel %vm7055, %v7036, %v7038
        %v7065 = vsel %vm7055, %v7034, %v7036
        %v7066 = vsel %vm7055, %v7032, %v7034
        %v7067 = vsel %vm7055, %v7030, %v7032
        %v7068 = vsel %vm7055, %v7028, %v7030
        %v7069 = vsel %vm7055, %v7026, %v7028
        %v7070 = vsel %vm7055, %v7024, %v7026
        %v7071 = vsel %vm7055, %v7054, %v7024
        %s7072 = scalar_lea.vmem [#allocation5], 128
        %v7073 = vld [vmem:[%s7072] sm:$0xff]
        %v7074 = vld [vmem:[%s7072 + $0x8] sm:$0xff]
        %v7077 = vlaneseq
        %v7078 = vshrl.u32 %v7077, 7
        %v7079 = vsub.s32 0, %v7078
        %v7080 = vrot.slane %v7073, %v7079
        %v7081 = vlaneseq
        %v7082 = vshrl.u32 %v7081, 7
        %v7083 = vsub.s32 1, %v7082
        %v7084 = vrot.slane %v7073, %v7083
        %v7085 = vlaneseq
        %v7086 = vshrl.u32 %v7085, 7
        %v7087 = vsub.s32 2, %v7086
        %v7088 = vrot.slane %v7073, %v7087
        %v7089 = vlaneseq
        %v7090 = vshrl.u32 %v7089, 7
        %v7091 = vsub.s32 3, %v7090
        %v7092 = vrot.slane %v7073, %v7091
        %v7093 = vlaneseq
        %v7094 = vshrl.u32 %v7093, 7
        %v7095 = vsub.s32 4, %v7094
        %v7096 = vrot.slane %v7073, %v7095
        %v7097 = vlaneseq
        %v7098 = vshrl.u32 %v7097, 7
        %v7099 = vsub.s32 5, %v7098
        %v7100 = vrot.slane %v7073, %v7099
        %v7101 = vlaneseq
        %v7102 = vshrl.u32 %v7101, 7
        %v7103 = vsub.s32 6, %v7102
        %v7104 = vrot.slane %v7073, %v7103
        %v7105 = vlaneseq
        %v7106 = vshrl.u32 %v7105, 7
        %v7107 = vsub.s32 7, %v7106
        %v7108 = vrot.slane %v7073, %v7107
        %v7109 = vlaneseq
        %v7110 = vshrl.u32 %v7109, 7
        %v7111 = vsub.s32 0, %v7110
        %v7112 = vrot.slane %v7074, %v7111
        %v7113 = vlaneseq
        %v7114 = vshrl.u32 %v7113, 7
        %v7115 = vsub.s32 1, %v7114
        %v7116 = vrot.slane %v7074, %v7115
        %v7117 = vlaneseq
        %v7118 = vshrl.u32 %v7117, 7
        %v7119 = vsub.s32 2, %v7118
        %v7120 = vrot.slane %v7074, %v7119
        %v7121 = vlaneseq
        %v7122 = vshrl.u32 %v7121, 7
        %v7123 = vsub.s32 3, %v7122
        %v7124 = vrot.slane %v7074, %v7123
        %v7125 = vlaneseq
        %v7126 = vshrl.u32 %v7125, 7
        %v7127 = vsub.s32 4, %v7126
        %v7128 = vrot.slane %v7074, %v7127
        %v7129 = vlaneseq
        %v7130 = vshrl.u32 %v7129, 7
        %v7131 = vsub.s32 5, %v7130
        %v7132 = vrot.slane %v7074, %v7131
        %v7133 = vlaneseq
        %v7134 = vshrl.u32 %v7133, 7
        %v7135 = vsub.s32 6, %v7134
        %v7136 = vrot.slane %v7074, %v7135
        %v7137 = vlaneseq
        %v7138 = vshrl.u32 %v7137, 7
        %v7139 = vsub.s32 7, %v7138
        %v7140 = vrot.slane %v7074, %v7139
        %v7157 = vmul.f32 %v7070, %v7080
        %v7158 = vmul.f32 %v7069, %v7084
        %v7159 = vmul.f32 %v7068, %v7088
        %v7160 = vmul.f32 %v7067, %v7092
        %v7161 = vmul.f32 %v7066, %v7096
        %v7162 = vmul.f32 %v7065, %v7100
        %v7163 = vmul.f32 %v7064, %v7104
        %v7164 = vmul.f32 %v7063, %v7108
        %v7165 = vmul.f32 %v7062, %v7112
        %v7166 = vmul.f32 %v7061, %v7116
        %v7167 = vmul.f32 %v7060, %v7120
        %v7168 = vmul.f32 %v7059, %v7124
        %v7169 = vmul.f32 %v7058, %v7128
        %v7170 = vmul.f32 %v7057, %v7132
        %v7171 = vmul.f32 %v7056, %v7136
        %v7172 = vmul.f32 %v7071, %v7140
        %s7173 = scalar_lea.vmem %s1, 36
        %v7174 = vld [vmem:[%s7173] sm:$0xf]
        %v7176 = vsel %vm337, %v7174, 0
        %v7179 = vsel %vm341, %v7157, 0
        %v7182 = vsel %vm341, %v7158, 0
        %v7185 = vsel %vm341, %v7159, 0
        %v7188 = vsel %vm341, %v7160, 0
        %v7191 = vsel %vm341, %v7161, 0
        %v7194 = vsel %vm341, %v7162, 0
        %v7197 = vsel %vm341, %v7163, 0
        %v7200 = vsel %vm341, %v7164, 0
        %v7203 = vsel %vm341, %v7165, 0
        %v7206 = vsel %vm341, %v7166, 0
        %v7209 = vsel %vm341, %v7167, 0
        %v7212 = vsel %vm341, %v7168, 0
        %v7215 = vsel %vm341, %v7169, 0
        %v7218 = vsel %vm341, %v7170, 0
        %v7221 = vsel %vm341, %v7171, 0
        %v7224 = vsel %vm341, %v7172, 0
        %7226 = vmatprep.subr.mxu0 %v7182
        %7227 = vmatpush1.msra.mxu0 %v7179
        %7228 = vmatprep.subr.mxu0 0.0
        %7229 = vmatpush1.msra.mxu0 0.0
        %7230 = vmatprep.subr.mxu0 0.0
        %7231 = vmatpush1.msra.mxu0 0.0
        %7232 = vmatprep.subr.mxu0 0.0
        %7233 = vmatpush1.msra.mxu0 0.0
        %7234 = vmatprep.subr.mxu0 0.0
        %7235 = vmatpush1.msra.mxu0 0.0
        %7236 = vmatprep.subr.mxu0 0.0
        %7237 = vmatpush1.msra.mxu0 0.0
        %7238 = vmatprep.subr.mxu0 0.0
        %7239 = vmatpush1.msra.mxu0 0.0
        %7240 = vmatprep.subr.mxu0 0.0
        %7241 = vmatpush1.msra.mxu0 0.0
        %7242 = vmatprep.subr.mxu0 0.0
        %7243 = vmatpush1.msra.mxu0 0.0
        %7244 = vmatprep.subr.mxu0 0.0
        %7245 = vmatpush1.msra.mxu0 0.0
        %7246 = vmatprep.subr.mxu0 0.0
        %7247 = vmatpush1.msra.mxu0 0.0
        %7248 = vmatprep.subr.mxu0 0.0
        %7249 = vmatpush1.msra.mxu0 0.0
        %7250 = vmatprep.subr.mxu0 0.0
        %7251 = vmatpush1.msra.mxu0 0.0
        %7252 = vmatprep.subr.mxu0 0.0
        %7253 = vmatpush1.msra.mxu0 0.0
        %7254 = vmatprep.subr.mxu0 0.0
        %7255 = vmatpush1.msra.mxu0 0.0
        %7256 = vmatprep.subr.mxu0 0.0
        %7257 = vmatpush1.msra.mxu0 0.0
        %7258 = vmatprep.subr.mxu0 0.0
        %7259 = vmatpush1.msra.mxu0 0.0
        %7260 = vmatprep.subr.mxu0 0.0
        %7261 = vmatpush1.msra.mxu0 0.0
        %7262 = vmatprep.subr.mxu0 0.0
        %7263 = vmatpush1.msra.mxu0 0.0
        %7264 = vmatprep.subr.mxu0 0.0
        %7265 = vmatpush1.msra.mxu0 0.0
        %7266 = vmatprep.subr.mxu0 0.0
        %7267 = vmatpush1.msra.mxu0 0.0
        %7268 = vmatprep.subr.mxu0 0.0
        %7269 = vmatpush1.msra.mxu0 0.0
        %7270 = vmatprep.subr.mxu0 0.0
        %7271 = vmatpush1.msra.mxu0 0.0
        %7272 = vmatprep.subr.mxu0 0.0
        %7273 = vmatpush1.msra.mxu0 0.0
        %7274 = vmatprep.subr.mxu0 0.0
        %7275 = vmatpush1.msra.mxu0 0.0
        %7276 = vmatprep.subr.mxu0 0.0
        %7277 = vmatpush1.msra.mxu0 0.0
        %7278 = vmatprep.subr.mxu0 0.0
        %7279 = vmatpush1.msra.mxu0 0.0
        %7280 = vmatprep.subr.mxu0 0.0
        %7281 = vmatpush1.msra.mxu0 0.0
        %7282 = vmatprep.subr.mxu0 0.0
        %7283 = vmatpush1.msra.mxu0 0.0
        %7284 = vmatprep.subr.mxu0 0.0
        %7285 = vmatpush1.msra.mxu0 0.0
        %7286 = vmatprep.subr.mxu0 0.0
        %7287 = vmatpush1.msra.mxu0 0.0
        %7288 = vmatprep.subr.mxu0 0.0
        %7289 = vmatpush1.msra.mxu0 0.0
        %7290 = vmatprep.mubr.f32.mxu0 0.0
        %7291 = vmatmul.mubr.f32.gmra.mrb[0].mxu0 %v7176
        %v7292 = vpop.f32.mrb[0].mxu0
        %v7293 = vadd.f32 0.0, %v7292
        %v7294 = vpop.f32.mrb[0].mxu0
        %v7295 = vadd.f32 0.0, %v7294
        %7296 = vdwg.mxu0
        %7297 = vmatprep.subr.mxu0 %v7188
        %7298 = vmatpush1.msra.mxu0 %v7185
        %7299 = vmatprep.subr.mxu0 0.0
        %7300 = vmatpush1.msra.mxu0 0.0
        %7301 = vmatprep.subr.mxu0 0.0
        %7302 = vmatpush1.msra.mxu0 0.0
        %7303 = vmatprep.subr.mxu0 0.0
        %7304 = vmatpush1.msra.mxu0 0.0
        %7305 = vmatprep.subr.mxu0 0.0
        %7306 = vmatpush1.msra.mxu0 0.0
        %7307 = vmatprep.subr.mxu0 0.0
        %7308 = vmatpush1.msra.mxu0 0.0
        %7309 = vmatprep.subr.mxu0 0.0
        %7310 = vmatpush1.msra.mxu0 0.0
        %7311 = vmatprep.subr.mxu0 0.0
        %7312 = vmatpush1.msra.mxu0 0.0
        %7313 = vmatprep.subr.mxu0 0.0
        %7314 = vmatpush1.msra.mxu0 0.0
        %7315 = vmatprep.subr.mxu0 0.0
        %7316 = vmatpush1.msra.mxu0 0.0
        %7317 = vmatprep.subr.mxu0 0.0
        %7318 = vmatpush1.msra.mxu0 0.0
        %7319 = vmatprep.subr.mxu0 0.0
        %7320 = vmatpush1.msra.mxu0 0.0
        %7321 = vmatprep.subr.mxu0 0.0
        %7322 = vmatpush1.msra.mxu0 0.0
        %7323 = vmatprep.subr.mxu0 0.0
        %7324 = vmatpush1.msra.mxu0 0.0
        %7325 = vmatprep.subr.mxu0 0.0
        %7326 = vmatpush1.msra.mxu0 0.0
        %7327 = vmatprep.subr.mxu0 0.0
        %7328 = vmatpush1.msra.mxu0 0.0
        %7329 = vmatprep.subr.mxu0 0.0
        %7330 = vmatpush1.msra.mxu0 0.0
        %7331 = vmatprep.subr.mxu0 0.0
        %7332 = vmatpush1.msra.mxu0 0.0
        %7333 = vmatprep.subr.mxu0 0.0
        %7334 = vmatpush1.msra.mxu0 0.0
        %7335 = vmatprep.subr.mxu0 0.0
        %7336 = vmatpush1.msra.mxu0 0.0
        %7337 = vmatprep.subr.mxu0 0.0
        %7338 = vmatpush1.msra.mxu0 0.0
        %7339 = vmatprep.subr.mxu0 0.0
        %7340 = vmatpush1.msra.mxu0 0.0
        %7341 = vmatprep.subr.mxu0 0.0
        %7342 = vmatpush1.msra.mxu0 0.0
        %7343 = vmatprep.subr.mxu0 0.0
        %7344 = vmatpush1.msra.mxu0 0.0
        %7345 = vmatprep.subr.mxu0 0.0
        %7346 = vmatpush1.msra.mxu0 0.0
        %7347 = vmatprep.subr.mxu0 0.0
        %7348 = vmatpush1.msra.mxu0 0.0
        %7349 = vmatprep.subr.mxu0 0.0
        %7350 = vmatpush1.msra.mxu0 0.0
        %7351 = vmatprep.subr.mxu0 0.0
        %7352 = vmatpush1.msra.mxu0 0.0
        %7353 = vmatprep.subr.mxu0 0.0
        %7354 = vmatpush1.msra.mxu0 0.0
        %7355 = vmatprep.subr.mxu0 0.0
        %7356 = vmatpush1.msra.mxu0 0.0
        %7357 = vmatprep.subr.mxu0 0.0
        %7358 = vmatpush1.msra.mxu0 0.0
        %7359 = vmatprep.subr.mxu0 0.0
        %7360 = vmatpush1.msra.mxu0 0.0
        %7361 = vmatprep.mubr.f32.mxu0 0.0
        %7362 = vmatmul.mubr.f32.gmra.mrb[0].mxu0 %v7176
        %v7363 = vpop.f32.mrb[0].mxu0
        %v7364 = vadd.f32 0.0, %v7363
        %v7365 = vpop.f32.mrb[0].mxu0
        %v7366 = vadd.f32 0.0, %v7365
        %7367 = vdwg.mxu0
        %7368 = vmatprep.subr.mxu0 %v7194
        %7369 = vmatpush1.msra.mxu0 %v7191
        %7370 = vmatprep.subr.mxu0 0.0
        %7371 = vmatpush1.msra.mxu0 0.0
        %7372 = vmatprep.subr.mxu0 0.0
        %7373 = vmatpush1.msra.mxu0 0.0
        %7374 = vmatprep.subr.mxu0 0.0
        %7375 = vmatpush1.msra.mxu0 0.0
        %7376 = vmatprep.subr.mxu0 0.0
        %7377 = vmatpush1.msra.mxu0 0.0
        %7378 = vmatprep.subr.mxu0 0.0
        %7379 = vmatpush1.msra.mxu0 0.0
        %7380 = vmatprep.subr.mxu0 0.0
        %7381 = vmatpush1.msra.mxu0 0.0
        %7382 = vmatprep.subr.mxu0 0.0
        %7383 = vmatpush1.msra.mxu0 0.0
        %7384 = vmatprep.subr.mxu0 0.0
        %7385 = vmatpush1.msra.mxu0 0.0
        %7386 = vmatprep.subr.mxu0 0.0
        %7387 = vmatpush1.msra.mxu0 0.0
        %7388 = vmatprep.subr.mxu0 0.0
        %7389 = vmatpush1.msra.mxu0 0.0
        %7390 = vmatprep.subr.mxu0 0.0
        %7391 = vmatpush1.msra.mxu0 0.0
        %7392 = vmatprep.subr.mxu0 0.0
        %7393 = vmatpush1.msra.mxu0 0.0
        %7394 = vmatprep.subr.mxu0 0.0
        %7395 = vmatpush1.msra.mxu0 0.0
        %7396 = vmatprep.subr.mxu0 0.0
        %7397 = vmatpush1.msra.mxu0 0.0
        %7398 = vmatprep.subr.mxu0 0.0
        %7399 = vmatpush1.msra.mxu0 0.0
        %7400 = vmatprep.subr.mxu0 0.0
        %7401 = vmatpush1.msra.mxu0 0.0
        %7402 = vmatprep.subr.mxu0 0.0
        %7403 = vmatpush1.msra.mxu0 0.0
        %7404 = vmatprep.subr.mxu0 0.0
        %7405 = vmatpush1.msra.mxu0 0.0
        %7406 = vmatprep.subr.mxu0 0.0
        %7407 = vmatpush1.msra.mxu0 0.0
        %7408 = vmatprep.subr.mxu0 0.0
        %7409 = vmatpush1.msra.mxu0 0.0
        %7410 = vmatprep.subr.mxu0 0.0
        %7411 = vmatpush1.msra.mxu0 0.0
        %7412 = vmatprep.subr.mxu0 0.0
        %7413 = vmatpush1.msra.mxu0 0.0
        %7414 = vmatprep.subr.mxu0 0.0
        %7415 = vmatpush1.msra.mxu0 0.0
        %7416 = vmatprep.subr.mxu0 0.0
        %7417 = vmatpush1.msra.mxu0 0.0
        %7418 = vmatprep.subr.mxu0 0.0
        %7419 = vmatpush1.msra.mxu0 0.0
        %7420 = vmatprep.subr.mxu0 0.0
        %7421 = vmatpush1.msra.mxu0 0.0
        %7422 = vmatprep.subr.mxu0 0.0
        %7423 = vmatpush1.msra.mxu0 0.0
        %7424 = vmatprep.subr.mxu0 0.0
        %7425 = vmatpush1.msra.mxu0 0.0
        %7426 = vmatprep.subr.mxu0 0.0
        %7427 = vmatpush1.msra.mxu0 0.0
        %7428 = vmatprep.subr.mxu0 0.0
        %7429 = vmatpush1.msra.mxu0 0.0
        %7430 = vmatprep.subr.mxu0 0.0
        %7431 = vmatpush1.msra.mxu0 0.0
        %7432 = vmatprep.mubr.f32.mxu0 0.0
        %7433 = vmatmul.mubr.f32.gmra.mrb[0].mxu0 %v7176
        %v7434 = vpop.f32.mrb[0].mxu0
        %v7435 = vadd.f32 0.0, %v7434
        %v7436 = vpop.f32.mrb[0].mxu0
        %v7437 = vadd.f32 0.0, %v7436
        %7438 = vdwg.mxu0
        %7439 = vmatprep.subr.mxu0 %v7200
        %7440 = vmatpush1.msra.mxu0 %v7197
        %7441 = vmatprep.subr.mxu0 0.0
        %7442 = vmatpush1.msra.mxu0 0.0
        %7443 = vmatprep.subr.mxu0 0.0
        %7444 = vmatpush1.msra.mxu0 0.0
        %7445 = vmatprep.subr.mxu0 0.0
        %7446 = vmatpush1.msra.mxu0 0.0
        %7447 = vmatprep.subr.mxu0 0.0
        %7448 = vmatpush1.msra.mxu0 0.0
        %7449 = vmatprep.subr.mxu0 0.0
        %7450 = vmatpush1.msra.mxu0 0.0
        %7451 = vmatprep.subr.mxu0 0.0
        %7452 = vmatpush1.msra.mxu0 0.0
        %7453 = vmatprep.subr.mxu0 0.0
        %7454 = vmatpush1.msra.mxu0 0.0
        %7455 = vmatprep.subr.mxu0 0.0
        %7456 = vmatpush1.msra.mxu0 0.0
        %7457 = vmatprep.subr.mxu0 0.0
        %7458 = vmatpush1.msra.mxu0 0.0
        %7459 = vmatprep.subr.mxu0 0.0
        %7460 = vmatpush1.msra.mxu0 0.0
        %7461 = vmatprep.subr.mxu0 0.0
        %7462 = vmatpush1.msra.mxu0 0.0
        %7463 = vmatprep.subr.mxu0 0.0
        %7464 = vmatpush1.msra.mxu0 0.0
        %7465 = vmatprep.subr.mxu0 0.0
        %7466 = vmatpush1.msra.mxu0 0.0
        %7467 = vmatprep.subr.mxu0 0.0
        %7468 = vmatpush1.msra.mxu0 0.0
        %7469 = vmatprep.subr.mxu0 0.0
        %7470 = vmatpush1.msra.mxu0 0.0
        %7471 = vmatprep.subr.mxu0 0.0
        %7472 = vmatpush1.msra.mxu0 0.0
        %7473 = vmatprep.subr.mxu0 0.0
        %7474 = vmatpush1.msra.mxu0 0.0
        %7475 = vmatprep.subr.mxu0 0.0
        %7476 = vmatpush1.msra.mxu0 0.0
        %7477 = vmatprep.subr.mxu0 0.0
        %7478 = vmatpush1.msra.mxu0 0.0
        %7479 = vmatprep.subr.mxu0 0.0
        %7480 = vmatpush1.msra.mxu0 0.0
        %7481 = vmatprep.subr.mxu0 0.0
        %7482 = vmatpush1.msra.mxu0 0.0
        %7483 = vmatprep.subr.mxu0 0.0
        %7484 = vmatpush1.msra.mxu0 0.0
        %7485 = vmatprep.subr.mxu0 0.0
        %7486 = vmatpush1.msra.mxu0 0.0
        %7487 = vmatprep.subr.mxu0 0.0
        %7488 = vmatpush1.msra.mxu0 0.0
        %7489 = vmatprep.subr.mxu0 0.0
        %7490 = vmatpush1.msra.mxu0 0.0
        %7491 = vmatprep.subr.mxu0 0.0
        %7492 = vmatpush1.msra.mxu0 0.0
        %7493 = vmatprep.subr.mxu0 0.0
        %7494 = vmatpush1.msra.mxu0 0.0
        %7495 = vmatprep.subr.mxu0 0.0
        %7496 = vmatpush1.msra.mxu0 0.0
        %7497 = vmatprep.subr.mxu0 0.0
        %7498 = vmatpush1.msra.mxu0 0.0
        %7499 = vmatprep.subr.mxu0 0.0
        %7500 = vmatpush1.msra.mxu0 0.0
        %7501 = vmatprep.subr.mxu0 0.0
        %7502 = vmatpush1.msra.mxu0 0.0
        %7503 = vmatprep.mubr.f32.mxu0 0.0
        %7504 = vmatmul.mubr.f32.gmra.mrb[0].mxu0 %v7176
        %v7505 = vpop.f32.mrb[0].mxu0
        %v7506 = vadd.f32 0.0, %v7505
        %v7507 = vpop.f32.mrb[0].mxu0
        %v7508 = vadd.f32 0.0, %v7507
        %7509 = vdwg.mxu0
        %7510 = vmatprep.subr.mxu0 %v7206
        %7511 = vmatpush1.msra.mxu0 %v7203
        %7512 = vmatprep.subr.mxu0 0.0
        %7513 = vmatpush1.msra.mxu0 0.0
        %7514 = vmatprep.subr.mxu0 0.0
        %7515 = vmatpush1.msra.mxu0 0.0
        %7516 = vmatprep.subr.mxu0 0.0
        %7517 = vmatpush1.msra.mxu0 0.0
        %7518 = vmatprep.subr.mxu0 0.0
        %7519 = vmatpush1.msra.mxu0 0.0
        %7520 = vmatprep.subr.mxu0 0.0
        %7521 = vmatpush1.msra.mxu0 0.0
        %7522 = vmatprep.subr.mxu0 0.0
        %7523 = vmatpush1.msra.mxu0 0.0
        %7524 = vmatprep.subr.mxu0 0.0
        %7525 = vmatpush1.msra.mxu0 0.0
        %7526 = vmatprep.subr.mxu0 0.0
        %7527 = vmatpush1.msra.mxu0 0.0
        %7528 = vmatprep.subr.mxu0 0.0
        %7529 = vmatpush1.msra.mxu0 0.0
        %7530 = vmatprep.subr.mxu0 0.0
        %7531 = vmatpush1.msra.mxu0 0.0
        %7532 = vmatprep.subr.mxu0 0.0
        %7533 = vmatpush1.msra.mxu0 0.0
        %7534 = vmatprep.subr.mxu0 0.0
        %7535 = vmatpush1.msra.mxu0 0.0
        %7536 = vmatprep.subr.mxu0 0.0
        %7537 = vmatpush1.msra.mxu0 0.0
        %7538 = vmatprep.subr.mxu0 0.0
        %7539 = vmatpush1.msra.mxu0 0.0
        %7540 = vmatprep.subr.mxu0 0.0
        %7541 = vmatpush1.msra.mxu0 0.0
        %7542 = vmatprep.subr.mxu0 0.0
        %7543 = vmatpush1.msra.mxu0 0.0
        %7544 = vmatprep.subr.mxu0 0.0
        %7545 = vmatpush1.msra.mxu0 0.0
        %7546 = vmatprep.subr.mxu0 0.0
        %7547 = vmatpush1.msra.mxu0 0.0
        %7548 = vmatprep.subr.mxu0 0.0
        %7549 = vmatpush1.msra.mxu0 0.0
        %7550 = vmatprep.subr.mxu0 0.0
        %7551 = vmatpush1.msra.mxu0 0.0
        %7552 = vmatprep.subr.mxu0 0.0
        %7553 = vmatpush1.msra.mxu0 0.0
        %7554 = vmatprep.subr.mxu0 0.0
        %7555 = vmatpush1.msra.mxu0 0.0
        %7556 = vmatprep.subr.mxu0 0.0
        %7557 = vmatpush1.msra.mxu0 0.0
        %7558 = vmatprep.subr.mxu0 0.0
        %7559 = vmatpush1.msra.mxu0 0.0
        %7560 = vmatprep.subr.mxu0 0.0
        %7561 = vmatpush1.msra.mxu0 0.0
        %7562 = vmatprep.subr.mxu0 0.0
        %7563 = vmatpush1.msra.mxu0 0.0
        %7564 = vmatprep.subr.mxu0 0.0
        %7565 = vmatpush1.msra.mxu0 0.0
        %7566 = vmatprep.subr.mxu0 0.0
        %7567 = vmatpush1.msra.mxu0 0.0
        %7568 = vmatprep.subr.mxu0 0.0
        %7569 = vmatpush1.msra.mxu0 0.0
        %7570 = vmatprep.subr.mxu0 0.0
        %7571 = vmatpush1.msra.mxu0 0.0
        %7572 = vmatprep.subr.mxu0 0.0
        %7573 = vmatpush1.msra.mxu0 0.0
        %7574 = vmatprep.mubr.f32.mxu0 0.0
        %7575 = vmatmul.mubr.f32.gmra.mrb[0].mxu0 %v7176
        %v7576 = vpop.f32.mrb[0].mxu0
        %v7577 = vadd.f32 0.0, %v7576
        %v7578 = vpop.f32.mrb[0].mxu0
        %v7579 = vadd.f32 0.0, %v7578
        %7580 = vdwg.mxu0
        %7581 = vmatprep.subr.mxu0 %v7212
        %7582 = vmatpush1.msra.mxu0 %v7209
        %7583 = vmatprep.subr.mxu0 0.0
        %7584 = vmatpush1.msra.mxu0 0.0
        %7585 = vmatprep.subr.mxu0 0.0
        %7586 = vmatpush1.msra.mxu0 0.0
        %7587 = vmatprep.subr.mxu0 0.0
        %7588 = vmatpush1.msra.mxu0 0.0
        %7589 = vmatprep.subr.mxu0 0.0
        %7590 = vmatpush1.msra.mxu0 0.0
        %7591 = vmatprep.subr.mxu0 0.0
        %7592 = vmatpush1.msra.mxu0 0.0
        %7593 = vmatprep.subr.mxu0 0.0
        %7594 = vmatpush1.msra.mxu0 0.0
        %7595 = vmatprep.subr.mxu0 0.0
        %7596 = vmatpush1.msra.mxu0 0.0
        %7597 = vmatprep.subr.mxu0 0.0
        %7598 = vmatpush1.msra.mxu0 0.0
        %7599 = vmatprep.subr.mxu0 0.0
        %7600 = vmatpush1.msra.mxu0 0.0
        %7601 = vmatprep.subr.mxu0 0.0
        %7602 = vmatpush1.msra.mxu0 0.0
        %7603 = vmatprep.subr.mxu0 0.0
        %7604 = vmatpush1.msra.mxu0 0.0
        %7605 = vmatprep.subr.mxu0 0.0
        %7606 = vmatpush1.msra.mxu0 0.0
        %7607 = vmatprep.subr.mxu0 0.0
        %7608 = vmatpush1.msra.mxu0 0.0
        %7609 = vmatprep.subr.mxu0 0.0
        %7610 = vmatpush1.msra.mxu0 0.0
        %7611 = vmatprep.subr.mxu0 0.0
        %7612 = vmatpush1.msra.mxu0 0.0
        %7613 = vmatprep.subr.mxu0 0.0
        %7614 = vmatpush1.msra.mxu0 0.0
        %7615 = vmatprep.subr.mxu0 0.0
        %7616 = vmatpush1.msra.mxu0 0.0
        %7617 = vmatprep.subr.mxu0 0.0
        %7618 = vmatpush1.msra.mxu0 0.0
        %7619 = vmatprep.subr.mxu0 0.0
        %7620 = vmatpush1.msra.mxu0 0.0
        %7621 = vmatprep.subr.mxu0 0.0
        %7622 = vmatpush1.msra.mxu0 0.0
        %7623 = vmatprep.subr.mxu0 0.0
        %7624 = vmatpush1.msra.mxu0 0.0
        %7625 = vmatprep.subr.mxu0 0.0
        %7626 = vmatpush1.msra.mxu0 0.0
        %7627 = vmatprep.subr.mxu0 0.0
        %7628 = vmatpush1.msra.mxu0 0.0
        %7629 = vmatprep.subr.mxu0 0.0
        %7630 = vmatpush1.msra.mxu0 0.0
        %7631 = vmatprep.subr.mxu0 0.0
        %7632 = vmatpush1.msra.mxu0 0.0
        %7633 = vmatprep.subr.mxu0 0.0
        %7634 = vmatpush1.msra.mxu0 0.0
        %7635 = vmatprep.subr.mxu0 0.0
        %7636 = vmatpush1.msra.mxu0 0.0
        %7637 = vmatprep.subr.mxu0 0.0
        %7638 = vmatpush1.msra.mxu0 0.0
        %7639 = vmatprep.subr.mxu0 0.0
        %7640 = vmatpush1.msra.mxu0 0.0
        %7641 = vmatprep.subr.mxu0 0.0
        %7642 = vmatpush1.msra.mxu0 0.0
        %7643 = vmatprep.subr.mxu0 0.0
        %7644 = vmatpush1.msra.mxu0 0.0
        %7645 = vmatprep.mubr.f32.mxu0 0.0
        %7646 = vmatmul.mubr.f32.gmra.mrb[0].mxu0 %v7176
        %v7647 = vpop.f32.mrb[0].mxu0
        %v7648 = vadd.f32 0.0, %v7647
        %v7649 = vpop.f32.mrb[0].mxu0
        %v7650 = vadd.f32 0.0, %v7649
        %7651 = vdwg.mxu0
        %7652 = vmatprep.subr.mxu0 %v7218
        %7653 = vmatpush1.msra.mxu0 %v7215
        %7654 = vmatprep.subr.mxu0 0.0
        %7655 = vmatpush1.msra.mxu0 0.0
        %7656 = vmatprep.subr.mxu0 0.0
        %7657 = vmatpush1.msra.mxu0 0.0
        %7658 = vmatprep.subr.mxu0 0.0
        %7659 = vmatpush1.msra.mxu0 0.0
        %7660 = vmatprep.subr.mxu0 0.0
        %7661 = vmatpush1.msra.mxu0 0.0
        %7662 = vmatprep.subr.mxu0 0.0
        %7663 = vmatpush1.msra.mxu0 0.0
        %7664 = vmatprep.subr.mxu0 0.0
        %7665 = vmatpush1.msra.mxu0 0.0
        %7666 = vmatprep.subr.mxu0 0.0
        %7667 = vmatpush1.msra.mxu0 0.0
        %7668 = vmatprep.subr.mxu0 0.0
        %7669 = vmatpush1.msra.mxu0 0.0
        %7670 = vmatprep.subr.mxu0 0.0
        %7671 = vmatpush1.msra.mxu0 0.0
        %7672 = vmatprep.subr.mxu0 0.0
        %7673 = vmatpush1.msra.mxu0 0.0
        %7674 = vmatprep.subr.mxu0 0.0
        %7675 = vmatpush1.msra.mxu0 0.0
        %7676 = vmatprep.subr.mxu0 0.0
        %7677 = vmatpush1.msra.mxu0 0.0
        %7678 = vmatprep.subr.mxu0 0.0
        %7679 = vmatpush1.msra.mxu0 0.0
        %7680 = vmatprep.subr.mxu0 0.0
        %7681 = vmatpush1.msra.mxu0 0.0
        %7682 = vmatprep.subr.mxu0 0.0
        %7683 = vmatpush1.msra.mxu0 0.0
        %7684 = vmatprep.subr.mxu0 0.0
        %7685 = vmatpush1.msra.mxu0 0.0
        %7686 = vmatprep.subr.mxu0 0.0
        %7687 = vmatpush1.msra.mxu0 0.0
        %7688 = vmatprep.subr.mxu0 0.0
        %7689 = vmatpush1.msra.mxu0 0.0
        %7690 = vmatprep.subr.mxu0 0.0
        %7691 = vmatpush1.msra.mxu0 0.0
        %7692 = vmatprep.subr.mxu0 0.0
        %7693 = vmatpush1.msra.mxu0 0.0
        %7694 = vmatprep.subr.mxu0 0.0
        %7695 = vmatpush1.msra.mxu0 0.0
        %7696 = vmatprep.subr.mxu0 0.0
        %7697 = vmatpush1.msra.mxu0 0.0
        %7698 = vmatprep.subr.mxu0 0.0
        %7699 = vmatpush1.msra.mxu0 0.0
        %7700 = vmatprep.subr.mxu0 0.0
        %7701 = vmatpush1.msra.mxu0 0.0
        %7702 = vmatprep.subr.mxu0 0.0
        %7703 = vmatpush1.msra.mxu0 0.0
        %7704 = vmatprep.subr.mxu0 0.0
        %7705 = vmatpush1.msra.mxu0 0.0
        %7706 = vmatprep.subr.mxu0 0.0
        %7707 = vmatpush1.msra.mxu0 0.0
        %7708 = vmatprep.subr.mxu0 0.0
        %7709 = vmatpush1.msra.mxu0 0.0
        %7710 = vmatprep.subr.mxu0 0.0
        %7711 = vmatpush1.msra.mxu0 0.0
        %7712 = vmatprep.subr.mxu0 0.0
        %7713 = vmatpush1.msra.mxu0 0.0
        %7714 = vmatprep.subr.mxu0 0.0
        %7715 = vmatpush1.msra.mxu0 0.0
        %7716 = vmatprep.mubr.f32.mxu0 0.0
        %7717 = vmatmul.mubr.f32.gmra.mrb[0].mxu0 %v7176
        %v7718 = vpop.f32.mrb[0].mxu0
        %v7719 = vadd.f32 0.0, %v7718
        %v7720 = vpop.f32.mrb[0].mxu0
        %v7721 = vadd.f32 0.0, %v7720
        %7722 = vdwg.mxu0
        %7723 = vmatprep.subr.mxu0 %v7224
        %7724 = vmatpush1.msra.mxu0 %v7221
        %7725 = vmatprep.subr.mxu0 0.0
        %7726 = vmatpush1.msra.mxu0 0.0
        %7727 = vmatprep.subr.mxu0 0.0
        %7728 = vmatpush1.msra.mxu0 0.0
        %7729 = vmatprep.subr.mxu0 0.0
        %7730 = vmatpush1.msra.mxu0 0.0
        %7731 = vmatprep.subr.mxu0 0.0
        %7732 = vmatpush1.msra.mxu0 0.0
        %7733 = vmatprep.subr.mxu0 0.0
        %7734 = vmatpush1.msra.mxu0 0.0
        %7735 = vmatprep.subr.mxu0 0.0
        %7736 = vmatpush1.msra.mxu0 0.0
        %7737 = vmatprep.subr.mxu0 0.0
        %7738 = vmatpush1.msra.mxu0 0.0
        %7739 = vmatprep.subr.mxu0 0.0
        %7740 = vmatpush1.msra.mxu0 0.0
        %7741 = vmatprep.subr.mxu0 0.0
        %7742 = vmatpush1.msra.mxu0 0.0
        %7743 = vmatprep.subr.mxu0 0.0
        %7744 = vmatpush1.msra.mxu0 0.0
        %7745 = vmatprep.subr.mxu0 0.0
        %7746 = vmatpush1.msra.mxu0 0.0
        %7747 = vmatprep.subr.mxu0 0.0
        %7748 = vmatpush1.msra.mxu0 0.0
        %7749 = vmatprep.subr.mxu0 0.0
        %7750 = vmatpush1.msra.mxu0 0.0
        %7751 = vmatprep.subr.mxu0 0.0
        %7752 = vmatpush1.msra.mxu0 0.0
        %7753 = vmatprep.subr.mxu0 0.0
        %7754 = vmatpush1.msra.mxu0 0.0
        %7755 = vmatprep.subr.mxu0 0.0
        %7756 = vmatpush1.msra.mxu0 0.0
        %7757 = vmatprep.subr.mxu0 0.0
        %7758 = vmatpush1.msra.mxu0 0.0
        %7759 = vmatprep.subr.mxu0 0.0
        %7760 = vmatpush1.msra.mxu0 0.0
        %7761 = vmatprep.subr.mxu0 0.0
        %7762 = vmatpush1.msra.mxu0 0.0
        %7763 = vmatprep.subr.mxu0 0.0
        %7764 = vmatpush1.msra.mxu0 0.0
        %7765 = vmatprep.subr.mxu0 0.0
        %7766 = vmatpush1.msra.mxu0 0.0
        %7767 = vmatprep.subr.mxu0 0.0
        %7768 = vmatpush1.msra.mxu0 0.0
        %7769 = vmatprep.subr.mxu0 0.0
        %7770 = vmatpush1.msra.mxu0 0.0
        %7771 = vmatprep.subr.mxu0 0.0
        %7772 = vmatpush1.msra.mxu0 0.0
        %7773 = vmatprep.subr.mxu0 0.0
        %7774 = vmatpush1.msra.mxu0 0.0
        %7775 = vmatprep.subr.mxu0 0.0
        %7776 = vmatpush1.msra.mxu0 0.0
        %7777 = vmatprep.subr.mxu0 0.0
        %7778 = vmatpush1.msra.mxu0 0.0
        %7779 = vmatprep.subr.mxu0 0.0
        %7780 = vmatpush1.msra.mxu0 0.0
        %7781 = vmatprep.subr.mxu0 0.0
        %7782 = vmatpush1.msra.mxu0 0.0
        %7783 = vmatprep.subr.mxu0 0.0
        %7784 = vmatpush1.msra.mxu0 0.0
        %7785 = vmatprep.subr.mxu0 0.0
        %7786 = vmatpush1.msra.mxu0 0.0
        %7787 = vmatprep.mubr.f32.mxu0 0.0
        %7788 = vmatmul.mubr.f32.gmra.mrb[0].mxu0 %v7176
        %v7789 = vpop.f32.mrb[0].mxu0
        %v7790 = vadd.f32 0.0, %v7789
        %v7791 = vpop.f32.mrb[0].mxu0
        %v7792 = vadd.f32 0.0, %v7791
        %7793 = vdwg.mxu0
        %v7794 = vadd.f32 %v7007, %v7293
        %v7795 = vadd.f32 %v7008, %v7295
        %v7796 = vadd.f32 %v7009, %v7364
        %v7797 = vadd.f32 %v7010, %v7366
        %v7798 = vadd.f32 %v7011, %v7435
        %v7799 = vadd.f32 %v7012, %v7437
        %v7800 = vadd.f32 %v7013, %v7506
        %v7801 = vadd.f32 %v7014, %v7508
        %v7802 = vadd.f32 %v7015, %v7577
        %v7803 = vadd.f32 %v7016, %v7579
        %v7804 = vadd.f32 %v7017, %v7648
        %v7805 = vadd.f32 %v7018, %v7650
        %v7806 = vadd.f32 %v7019, %v7719
        %v7807 = vadd.f32 %v7020, %v7721
        %v7808 = vadd.f32 %v7021, %v7790
        %v7809 = vadd.f32 %v7022, %v7792
        %7810 = vrot.lane.b32.xlu0 %v202, 111
        %v7811 = vpop.permute.xlu0 %7810
        %7812 = vrot.lane.b32.xlu0 %v219, 111
        %v7813 = vpop.permute.xlu0 %7812
        %7814 = vrot.lane.b32.xlu0 %v203, 111
        %v7815 = vpop.permute.xlu0 %7814
        %7816 = vrot.lane.b32.xlu0 %v220, 111
        %v7817 = vpop.permute.xlu0 %7816
        %7818 = vrot.lane.b32.xlu0 %v204, 111
        %v7819 = vpop.permute.xlu0 %7818
        %7820 = vrot.lane.b32.xlu0 %v221, 111
        %v7821 = vpop.permute.xlu0 %7820
        %7822 = vrot.lane.b32.xlu0 %v205, 111
        %v7823 = vpop.permute.xlu0 %7822
        %7824 = vrot.lane.b32.xlu0 %v222, 111
        %v7825 = vpop.permute.xlu0 %7824
        %7826 = vrot.lane.b32.xlu0 %v206, 111
        %v7827 = vpop.permute.xlu0 %7826
        %7828 = vrot.lane.b32.xlu0 %v223, 111
        %v7829 = vpop.permute.xlu0 %7828
        %7830 = vrot.lane.b32.xlu0 %v207, 111
        %v7831 = vpop.permute.xlu0 %7830
        %7832 = vrot.lane.b32.xlu0 %v224, 111
        %v7833 = vpop.permute.xlu0 %7832
        %7834 = vrot.lane.b32.xlu0 %v208, 111
        %v7835 = vpop.permute.xlu0 %7834
        %7836 = vrot.lane.b32.xlu0 %v225, 111
        %v7837 = vpop.permute.xlu0 %7836
        %7838 = vrot.lane.b32.xlu0 %v209, 111
        %v7839 = vpop.permute.xlu0 %7838
        %7840 = vrot.lane.b32.xlu0 %v226, 111
        %v7841 = vpop.permute.xlu0 %7840
        %vm7842 = vcmp.lt.s32.totalorder %v2332, 111
        %v7843 = vsel %vm7842, %v7839, %v7841
        %v7844 = vsel %vm7842, %v7837, %v7839
        %v7845 = vsel %vm7842, %v7835, %v7837
        %v7846 = vsel %vm7842, %v7833, %v7835
        %v7847 = vsel %vm7842, %v7831, %v7833
        %v7848 = vsel %vm7842, %v7829, %v7831
        %v7849 = vsel %vm7842, %v7827, %v7829
        %v7850 = vsel %vm7842, %v7825, %v7827
        %v7851 = vsel %vm7842, %v7823, %v7825
        %v7852 = vsel %vm7842, %v7821, %v7823
        %v7853 = vsel %vm7842, %v7819, %v7821
        %v7854 = vsel %vm7842, %v7817, %v7819
        %v7855 = vsel %vm7842, %v7815, %v7817
        %v7856 = vsel %vm7842, %v7813, %v7815
        %v7857 = vsel %vm7842, %v7811, %v7813
        %v7858 = vsel %vm7842, %v7841, %v7811
        %s7859 = scalar_lea.vmem [#allocation5], 144
        %v7860 = vld [vmem:[%s7859] sm:$0xff]
        %v7861 = vld [vmem:[%s7859 + $0x8] sm:$0xff]
        %v7864 = vlaneseq
        %v7865 = vshrl.u32 %v7864, 7
        %v7866 = vsub.s32 0, %v7865
        %v7867 = vrot.slane %v7860, %v7866
        %v7868 = vlaneseq
        %v7869 = vshrl.u32 %v7868, 7
        %v7870 = vsub.s32 1, %v7869
        %v7871 = vrot.slane %v7860, %v7870
        %v7872 = vlaneseq
        %v7873 = vshrl.u32 %v7872, 7
        %v7874 = vsub.s32 2, %v7873
        %v7875 = vrot.slane %v7860, %v7874
        %v7876 = vlaneseq
        %v7877 = vshrl.u32 %v7876, 7
        %v7878 = vsub.s32 3, %v7877
        %v7879 = vrot.slane %v7860, %v7878
        %v7880 = vlaneseq
        %v7881 = vshrl.u32 %v7880, 7
        %v7882 = vsub.s32 4, %v7881
        %v7883 = vrot.slane %v7860, %v7882
        %v7884 = vlaneseq
        %v7885 = vshrl.u32 %v7884, 7
        %v7886 = vsub.s32 5, %v7885
        %v7887 = vrot.slane %v7860, %v7886
        %v7888 = vlaneseq
        %v7889 = vshrl.u32 %v7888, 7
        %v7890 = vsub.s32 6, %v7889
        %v7891 = vrot.slane %v7860, %v7890
        %v7892 = vlaneseq
        %v7893 = vshrl.u32 %v7892, 7
        %v7894 = vsub.s32 7, %v7893
        %v7895 = vrot.slane %v7860, %v7894
        %v7896 = vlaneseq
        %v7897 = vshrl.u32 %v7896, 7
        %v7898 = vsub.s32 0, %v7897
        %v7899 = vrot.slane %v7861, %v7898
        %v7900 = vlaneseq
        %v7901 = vshrl.u32 %v7900, 7
        %v7902 = vsub.s32 1, %v7901
        %v7903 = vrot.slane %v7861, %v7902
        %v7904 = vlaneseq
        %v7905 = vshrl.u32 %v7904, 7
        %v7906 = vsub.s32 2, %v7905
        %v7907 = vrot.slane %v7861, %v7906
        %v7908 = vlaneseq
        %v7909 = vshrl.u32 %v7908, 7
        %v7910 = vsub.s32 3, %v7909
        %v7911 = vrot.slane %v7861, %v7910
        %v7912 = vlaneseq
        %v7913 = vshrl.u32 %v7912, 7
        %v7914 = vsub.s32 4, %v7913
        %v7915 = vrot.slane %v7861, %v7914
        %v7916 = vlaneseq
        %v7917 = vshrl.u32 %v7916, 7
        %v7918 = vsub.s32 5, %v7917
        %v7919 = vrot.slane %v7861, %v7918
        %v7920 = vlaneseq
        %v7921 = vshrl.u32 %v7920, 7
        %v7922 = vsub.s32 6, %v7921
        %v7923 = vrot.slane %v7861, %v7922
        %v7924 = vlaneseq
        %v7925 = vshrl.u32 %v7924, 7
        %v7926 = vsub.s32 7, %v7925
        %v7927 = vrot.slane %v7861, %v7926
        %v7944 = vmul.f32 %v7857, %v7867
        %v7945 = vmul.f32 %v7856, %v7871
        %v7946 = vmul.f32 %v7855, %v7875
        %v7947 = vmul.f32 %v7854, %v7879
        %v7948 = vmul.f32 %v7853, %v7883
        %v7949 = vmul.f32 %v7852, %v7887
        %v7950 = vmul.f32 %v7851, %v7891
        %v7951 = vmul.f32 %v7850, %v7895
        %v7952 = vmul.f32 %v7849, %v7899
        %v7953 = vmul.f32 %v7848, %v7903
        %v7954 = vmul.f32 %v7847, %v7907
        %v7955 = vmul.f32 %v7846, %v7911
        %v7956 = vmul.f32 %v7845, %v7915
        %v7957 = vmul.f32 %v7844, %v7919
        %v7958 = vmul.f32 %v7843, %v7923
        %v7959 = vmul.f32 %v7858, %v7927
        %s7960 = scalar_lea.vmem %s1, 40
        %v7961 = vld [vmem:[%s7960] sm:$0xf]
        %v7963 = vsel %vm337, %v7961, 0
        %v7966 = vsel %vm341, %v7944, 0
        %v7969 = vsel %vm341, %v7945, 0
        %v7972 = vsel %vm341, %v7946, 0
        %v7975 = vsel %vm341, %v7947, 0
        %v7978 = vsel %vm341, %v7948, 0
        %v7981 = vsel %vm341, %v7949, 0
        %v7984 = vsel %vm341, %v7950, 0
        %v7987 = vsel %vm341, %v7951, 0
        %v7990 = vsel %vm341, %v7952, 0
        %v7993 = vsel %vm341, %v7953, 0
        %v7996 = vsel %vm341, %v7954, 0
        %v7999 = vsel %vm341, %v7955, 0
        %v8002 = vsel %vm341, %v7956, 0
        %v8005 = vsel %vm341, %v7957, 0
        %v8008 = vsel %vm341, %v7958, 0
        %v8011 = vsel %vm341, %v7959, 0
        %8013 = vmatprep.subr.mxu0 %v7969
        %8014 = vmatpush1.msra.mxu0 %v7966
        %8015 = vmatprep.subr.mxu0 0.0
        %8016 = vmatpush1.msra.mxu0 0.0
        %8017 = vmatprep.subr.mxu0 0.0
        %8018 = vmatpush1.msra.mxu0 0.0
        %8019 = vmatprep.subr.mxu0 0.0
        %8020 = vmatpush1.msra.mxu0 0.0
        %8021 = vmatprep.subr.mxu0 0.0
        %8022 = vmatpush1.msra.mxu0 0.0
        %8023 = vmatprep.subr.mxu0 0.0
        %8024 = vmatpush1.msra.mxu0 0.0
        %8025 = vmatprep.subr.mxu0 0.0
        %8026 = vmatpush1.msra.mxu0 0.0
        %8027 = vmatprep.subr.mxu0 0.0
        %8028 = vmatpush1.msra.mxu0 0.0
        %8029 = vmatprep.subr.mxu0 0.0
        %8030 = vmatpush1.msra.mxu0 0.0
        %8031 = vmatprep.subr.mxu0 0.0
        %8032 = vmatpush1.msra.mxu0 0.0
        %8033 = vmatprep.subr.mxu0 0.0
        %8034 = vmatpush1.msra.mxu0 0.0
        %8035 = vmatprep.subr.mxu0 0.0
        %8036 = vmatpush1.msra.mxu0 0.0
        %8037 = vmatprep.subr.mxu0 0.0
        %8038 = vmatpush1.msra.mxu0 0.0
        %8039 = vmatprep.subr.mxu0 0.0
        %8040 = vmatpush1.msra.mxu0 0.0
        %8041 = vmatprep.subr.mxu0 0.0
        %8042 = vmatpush1.msra.mxu0 0.0
        %8043 = vmatprep.subr.mxu0 0.0
        %8044 = vmatpush1.msra.mxu0 0.0
        %8045 = vmatprep.subr.mxu0 0.0
        %8046 = vmatpush1.msra.mxu0 0.0
        %8047 = vmatprep.subr.mxu0 0.0
        %8048 = vmatpush1.msra.mxu0 0.0
        %8049 = vmatprep.subr.mxu0 0.0
        %8050 = vmatpush1.msra.mxu0 0.0
        %8051 = vmatprep.subr.mxu0 0.0
        %8052 = vmatpush1.msra.mxu0 0.0
        %8053 = vmatprep.subr.mxu0 0.0
        %8054 = vmatpush1.msra.mxu0 0.0
        %8055 = vmatprep.subr.mxu0 0.0
        %8056 = vmatpush1.msra.mxu0 0.0
        %8057 = vmatprep.subr.mxu0 0.0
        %8058 = vmatpush1.msra.mxu0 0.0
        %8059 = vmatprep.subr.mxu0 0.0
        %8060 = vmatpush1.msra.mxu0 0.0
        %8061 = vmatprep.subr.mxu0 0.0
        %8062 = vmatpush1.msra.mxu0 0.0
        %8063 = vmatprep.subr.mxu0 0.0
        %8064 = vmatpush1.msra.mxu0 0.0
        %8065 = vmatprep.subr.mxu0 0.0
        %8066 = vmatpush1.msra.mxu0 0.0
        %8067 = vmatprep.subr.mxu0 0.0
        %8068 = vmatpush1.msra.mxu0 0.0
        %8069 = vmatprep.subr.mxu0 0.0
        %8070 = vmatpush1.msra.mxu0 0.0
        %8071 = vmatprep.subr.mxu0 0.0
        %8072 = vmatpush1.msra.mxu0 0.0
        %8073 = vmatprep.subr.mxu0 0.0
        %8074 = vmatpush1.msra.mxu0 0.0
        %8075 = vmatprep.subr.mxu0 0.0
        %8076 = vmatpush1.msra.mxu0 0.0
        %8077 = vmatprep.mubr.f32.mxu0 0.0
        %8078 = vmatmul.mubr.f32.gmra.mrb[0].mxu0 %v7963
        %v8079 = vpop.f32.mrb[0].mxu0
        %v8080 = vadd.f32 0.0, %v8079
        %v8081 = vpop.f32.mrb[0].mxu0
        %v8082 = vadd.f32 0.0, %v8081
        %8083 = vdwg.mxu0
        %8084 = vmatprep.subr.mxu0 %v7975
        %8085 = vmatpush1.msra.mxu0 %v7972
        %8086 = vmatprep.subr.mxu0 0.0
        %8087 = vmatpush1.msra.mxu0 0.0
        %8088 = vmatprep.subr.mxu0 0.0
        %8089 = vmatpush1.msra.mxu0 0.0
        %8090 = vmatprep.subr.mxu0 0.0
        %8091 = vmatpush1.msra.mxu0 0.0
        %8092 = vmatprep.subr.mxu0 0.0
        %8093 = vmatpush1.msra.mxu0 0.0
        %8094 = vmatprep.subr.mxu0 0.0
        %8095 = vmatpush1.msra.mxu0 0.0
        %8096 = vmatprep.subr.mxu0 0.0
        %8097 = vmatpush1.msra.mxu0 0.0
        %8098 = vmatprep.subr.mxu0 0.0
        %8099 = vmatpush1.msra.mxu0 0.0
        %8100 = vmatprep.subr.mxu0 0.0
        %8101 = vmatpush1.msra.mxu0 0.0
        %8102 = vmatprep.subr.mxu0 0.0
        %8103 = vmatpush1.msra.mxu0 0.0
        %8104 = vmatprep.subr.mxu0 0.0
        %8105 = vmatpush1.msra.mxu0 0.0
        %8106 = vmatprep.subr.mxu0 0.0
        %8107 = vmatpush1.msra.mxu0 0.0
        %8108 = vmatprep.subr.mxu0 0.0
        %8109 = vmatpush1.msra.mxu0 0.0
        %8110 = vmatprep.subr.mxu0 0.0
        %8111 = vmatpush1.msra.mxu0 0.0
        %8112 = vmatprep.subr.mxu0 0.0
        %8113 = vmatpush1.msra.mxu0 0.0
        %8114 = vmatprep.subr.mxu0 0.0
        %8115 = vmatpush1.msra.mxu0 0.0
        %8116 = vmatprep.subr.mxu0 0.0
        %8117 = vmatpush1.msra.mxu0 0.0
        %8118 = vmatprep.subr.mxu0 0.0
        %8119 = vmatpush1.msra.mxu0 0.0
        %8120 = vmatprep.subr.mxu0 0.0
        %8121 = vmatpush1.msra.mxu0 0.0
        %8122 = vmatprep.subr.mxu0 0.0
        %8123 = vmatpush1.msra.mxu0 0.0
        %8124 = vmatprep.subr.mxu0 0.0
        %8125 = vmatpush1.msra.mxu0 0.0
        %8126 = vmatprep.subr.mxu0 0.0
        %8127 = vmatpush1.msra.mxu0 0.0
        %8128 = vmatprep.subr.mxu0 0.0
        %8129 = vmatpush1.msra.mxu0 0.0
        %8130 = vmatprep.subr.mxu0 0.0
        %8131 = vmatpush1.msra.mxu0 0.0
        %8132 = vmatprep.subr.mxu0 0.0
        %8133 = vmatpush1.msra.mxu0 0.0
        %8134 = vmatprep.subr.mxu0 0.0
        %8135 = vmatpush1.msra.mxu0 0.0
        %8136 = vmatprep.subr.mxu0 0.0
        %8137 = vmatpush1.msra.mxu0 0.0
        %8138 = vmatprep.subr.mxu0 0.0
        %8139 = vmatpush1.msra.mxu0 0.0
        %8140 = vmatprep.subr.mxu0 0.0
        %8141 = vmatpush1.msra.mxu0 0.0
        %8142 = vmatprep.subr.mxu0 0.0
        %8143 = vmatpush1.msra.mxu0 0.0
        %8144 = vmatprep.subr.mxu0 0.0
        %8145 = vmatpush1.msra.mxu0 0.0
        %8146 = vmatprep.subr.mxu0 0.0
        %8147 = vmatpush1.msra.mxu0 0.0
        %8148 = vmatprep.mubr.f32.mxu0 0.0
        %8149 = vmatmul.mubr.f32.gmra.mrb[0].mxu0 %v7963
        %v8150 = vpop.f32.mrb[0].mxu0
        %v8151 = vadd.f32 0.0, %v8150
        %v8152 = vpop.f32.mrb[0].mxu0
        %v8153 = vadd.f32 0.0, %v8152
        %8154 = vdwg.mxu0
        %8155 = vmatprep.subr.mxu0 %v7981
        %8156 = vmatpush1.msra.mxu0 %v7978
        %8157 = vmatprep.subr.mxu0 0.0
        %8158 = vmatpush1.msra.mxu0 0.0
        %8159 = vmatprep.subr.mxu0 0.0
        %8160 = vmatpush1.msra.mxu0 0.0
        %8161 = vmatprep.subr.mxu0 0.0
        %8162 = vmatpush1.msra.mxu0 0.0
        %8163 = vmatprep.subr.mxu0 0.0
        %8164 = vmatpush1.msra.mxu0 0.0
        %8165 = vmatprep.subr.mxu0 0.0
        %8166 = vmatpush1.msra.mxu0 0.0
        %8167 = vmatprep.subr.mxu0 0.0
        %8168 = vmatpush1.msra.mxu0 0.0
        %8169 = vmatprep.subr.mxu0 0.0
        %8170 = vmatpush1.msra.mxu0 0.0
        %8171 = vmatprep.subr.mxu0 0.0
        %8172 = vmatpush1.msra.mxu0 0.0
        %8173 = vmatprep.subr.mxu0 0.0
        %8174 = vmatpush1.msra.mxu0 0.0
        %8175 = vmatprep.subr.mxu0 0.0
        %8176 = vmatpush1.msra.mxu0 0.0
        %8177 = vmatprep.subr.mxu0 0.0
        %8178 = vmatpush1.msra.mxu0 0.0
        %8179 = vmatprep.subr.mxu0 0.0
        %8180 = vmatpush1.msra.mxu0 0.0
        %8181 = vmatprep.subr.mxu0 0.0
        %8182 = vmatpush1.msra.mxu0 0.0
        %8183 = vmatprep.subr.mxu0 0.0
        %8184 = vmatpush1.msra.mxu0 0.0
        %8185 = vmatprep.subr.mxu0 0.0
        %8186 = vmatpush1.msra.mxu0 0.0
        %8187 = vmatprep.subr.mxu0 0.0
        %8188 = vmatpush1.msra.mxu0 0.0
        %8189 = vmatprep.subr.mxu0 0.0
        %8190 = vmatpush1.msra.mxu0 0.0
        %8191 = vmatprep.subr.mxu0 0.0
        %8192 = vmatpush1.msra.mxu0 0.0
        %8193 = vmatprep.subr.mxu0 0.0
        %8194 = vmatpush1.msra.mxu0 0.0
        %8195 = vmatprep.subr.mxu0 0.0
        %8196 = vmatpush1.msra.mxu0 0.0
        %8197 = vmatprep.subr.mxu0 0.0
        %8198 = vmatpush1.msra.mxu0 0.0
        %8199 = vmatprep.subr.mxu0 0.0
        %8200 = vmatpush1.msra.mxu0 0.0
        %8201 = vmatprep.subr.mxu0 0.0
        %8202 = vmatpush1.msra.mxu0 0.0
        %8203 = vmatprep.subr.mxu0 0.0
        %8204 = vmatpush1.msra.mxu0 0.0
        %8205 = vmatprep.subr.mxu0 0.0
        %8206 = vmatpush1.msra.mxu0 0.0
        %8207 = vmatprep.subr.mxu0 0.0
        %8208 = vmatpush1.msra.mxu0 0.0
        %8209 = vmatprep.subr.mxu0 0.0
        %8210 = vmatpush1.msra.mxu0 0.0
        %8211 = vmatprep.subr.mxu0 0.0
        %8212 = vmatpush1.msra.mxu0 0.0
        %8213 = vmatprep.subr.mxu0 0.0
        %8214 = vmatpush1.msra.mxu0 0.0
        %8215 = vmatprep.subr.mxu0 0.0
        %8216 = vmatpush1.msra.mxu0 0.0
        %8217 = vmatprep.subr.mxu0 0.0
        %8218 = vmatpush1.msra.mxu0 0.0
        %8219 = vmatprep.mubr.f32.mxu0 0.0
        %8220 = vmatmul.mubr.f32.gmra.mrb[0].mxu0 %v7963
        %v8221 = vpop.f32.mrb[0].mxu0
        %v8222 = vadd.f32 0.0, %v8221
        %v8223 = vpop.f32.mrb[0].mxu0
        %v8224 = vadd.f32 0.0, %v8223
        %8225 = vdwg.mxu0
        %8226 = vmatprep.subr.mxu0 %v7987
        %8227 = vmatpush1.msra.mxu0 %v7984
        %8228 = vmatprep.subr.mxu0 0.0
        %8229 = vmatpush1.msra.mxu0 0.0
        %8230 = vmatprep.subr.mxu0 0.0
        %8231 = vmatpush1.msra.mxu0 0.0
        %8232 = vmatprep.subr.mxu0 0.0
        %8233 = vmatpush1.msra.mxu0 0.0
        %8234 = vmatprep.subr.mxu0 0.0
        %8235 = vmatpush1.msra.mxu0 0.0
        %8236 = vmatprep.subr.mxu0 0.0
        %8237 = vmatpush1.msra.mxu0 0.0
        %8238 = vmatprep.subr.mxu0 0.0
        %8239 = vmatpush1.msra.mxu0 0.0
        %8240 = vmatprep.subr.mxu0 0.0
        %8241 = vmatpush1.msra.mxu0 0.0
        %8242 = vmatprep.subr.mxu0 0.0
        %8243 = vmatpush1.msra.mxu0 0.0
        %8244 = vmatprep.subr.mxu0 0.0
        %8245 = vmatpush1.msra.mxu0 0.0
        %8246 = vmatprep.subr.mxu0 0.0
        %8247 = vmatpush1.msra.mxu0 0.0
        %8248 = vmatprep.subr.mxu0 0.0
        %8249 = vmatpush1.msra.mxu0 0.0
        %8250 = vmatprep.subr.mxu0 0.0
        %8251 = vmatpush1.msra.mxu0 0.0
        %8252 = vmatprep.subr.mxu0 0.0
        %8253 = vmatpush1.msra.mxu0 0.0
        %8254 = vmatprep.subr.mxu0 0.0
        %8255 = vmatpush1.msra.mxu0 0.0
        %8256 = vmatprep.subr.mxu0 0.0
        %8257 = vmatpush1.msra.mxu0 0.0
        %8258 = vmatprep.subr.mxu0 0.0
        %8259 = vmatpush1.msra.mxu0 0.0
        %8260 = vmatprep.subr.mxu0 0.0
        %8261 = vmatpush1.msra.mxu0 0.0
        %8262 = vmatprep.subr.mxu0 0.0
        %8263 = vmatpush1.msra.mxu0 0.0
        %8264 = vmatprep.subr.mxu0 0.0
        %8265 = vmatpush1.msra.mxu0 0.0
        %8266 = vmatprep.subr.mxu0 0.0
        %8267 = vmatpush1.msra.mxu0 0.0
        %8268 = vmatprep.subr.mxu0 0.0
        %8269 = vmatpush1.msra.mxu0 0.0
        %8270 = vmatprep.subr.mxu0 0.0
        %8271 = vmatpush1.msra.mxu0 0.0
        %8272 = vmatprep.subr.mxu0 0.0
        %8273 = vmatpush1.msra.mxu0 0.0
        %8274 = vmatprep.subr.mxu0 0.0
        %8275 = vmatpush1.msra.mxu0 0.0
        %8276 = vmatprep.subr.mxu0 0.0
        %8277 = vmatpush1.msra.mxu0 0.0
        %8278 = vmatprep.subr.mxu0 0.0
        %8279 = vmatpush1.msra.mxu0 0.0
        %8280 = vmatprep.subr.mxu0 0.0
        %8281 = vmatpush1.msra.mxu0 0.0
        %8282 = vmatprep.subr.mxu0 0.0
        %8283 = vmatpush1.msra.mxu0 0.0
        %8284 = vmatprep.subr.mxu0 0.0
        %8285 = vmatpush1.msra.mxu0 0.0
        %8286 = vmatprep.subr.mxu0 0.0
        %8287 = vmatpush1.msra.mxu0 0.0
        %8288 = vmatprep.subr.mxu0 0.0
        %8289 = vmatpush1.msra.mxu0 0.0
        %8290 = vmatprep.mubr.f32.mxu0 0.0
        %8291 = vmatmul.mubr.f32.gmra.mrb[0].mxu0 %v7963
        %v8292 = vpop.f32.mrb[0].mxu0
        %v8293 = vadd.f32 0.0, %v8292
        %v8294 = vpop.f32.mrb[0].mxu0
        %v8295 = vadd.f32 0.0, %v8294
        %8296 = vdwg.mxu0
        %8297 = vmatprep.subr.mxu0 %v7993
        %8298 = vmatpush1.msra.mxu0 %v7990
        %8299 = vmatprep.subr.mxu0 0.0
        %8300 = vmatpush1.msra.mxu0 0.0
        %8301 = vmatprep.subr.mxu0 0.0
        %8302 = vmatpush1.msra.mxu0 0.0
        %8303 = vmatprep.subr.mxu0 0.0
        %8304 = vmatpush1.msra.mxu0 0.0
        %8305 = vmatprep.subr.mxu0 0.0
        %8306 = vmatpush1.msra.mxu0 0.0
        %8307 = vmatprep.subr.mxu0 0.0
        %8308 = vmatpush1.msra.mxu0 0.0
        %8309 = vmatprep.subr.mxu0 0.0
        %8310 = vmatpush1.msra.mxu0 0.0
        %8311 = vmatprep.subr.mxu0 0.0
        %8312 = vmatpush1.msra.mxu0 0.0
        %8313 = vmatprep.subr.mxu0 0.0
        %8314 = vmatpush1.msra.mxu0 0.0
        %8315 = vmatprep.subr.mxu0 0.0
        %8316 = vmatpush1.msra.mxu0 0.0
        %8317 = vmatprep.subr.mxu0 0.0
        %8318 = vmatpush1.msra.mxu0 0.0
        %8319 = vmatprep.subr.mxu0 0.0
        %8320 = vmatpush1.msra.mxu0 0.0
        %8321 = vmatprep.subr.mxu0 0.0
        %8322 = vmatpush1.msra.mxu0 0.0
        %8323 = vmatprep.subr.mxu0 0.0
        %8324 = vmatpush1.msra.mxu0 0.0
        %8325 = vmatprep.subr.mxu0 0.0
        %8326 = vmatpush1.msra.mxu0 0.0
        %8327 = vmatprep.subr.mxu0 0.0
        %8328 = vmatpush1.msra.mxu0 0.0
        %8329 = vmatprep.subr.mxu0 0.0
        %8330 = vmatpush1.msra.mxu0 0.0
        %8331 = vmatprep.subr.mxu0 0.0
        %8332 = vmatpush1.msra.mxu0 0.0
        %8333 = vmatprep.subr.mxu0 0.0
        %8334 = vmatpush1.msra.mxu0 0.0
        %8335 = vmatprep.subr.mxu0 0.0
        %8336 = vmatpush1.msra.mxu0 0.0
        %8337 = vmatprep.subr.mxu0 0.0
        %8338 = vmatpush1.msra.mxu0 0.0
        %8339 = vmatprep.subr.mxu0 0.0
        %8340 = vmatpush1.msra.mxu0 0.0
        %8341 = vmatprep.subr.mxu0 0.0
        %8342 = vmatpush1.msra.mxu0 0.0
        %8343 = vmatprep.subr.mxu0 0.0
        %8344 = vmatpush1.msra.mxu0 0.0
        %8345 = vmatprep.subr.mxu0 0.0
        %8346 = vmatpush1.msra.mxu0 0.0
        %8347 = vmatprep.subr.mxu0 0.0
        %8348 = vmatpush1.msra.mxu0 0.0
        %8349 = vmatprep.subr.mxu0 0.0
        %8350 = vmatpush1.msra.mxu0 0.0
        %8351 = vmatprep.subr.mxu0 0.0
        %8352 = vmatpush1.msra.mxu0 0.0
        %8353 = vmatprep.subr.mxu0 0.0
        %8354 = vmatpush1.msra.mxu0 0.0
        %8355 = vmatprep.subr.mxu0 0.0
        %8356 = vmatpush1.msra.mxu0 0.0
        %8357 = vmatprep.subr.mxu0 0.0
        %8358 = vmatpush1.msra.mxu0 0.0
        %8359 = vmatprep.subr.mxu0 0.0
        %8360 = vmatpush1.msra.mxu0 0.0
        %8361 = vmatprep.mubr.f32.mxu0 0.0
        %8362 = vmatmul.mubr.f32.gmra.mrb[0].mxu0 %v7963
        %v8363 = vpop.f32.mrb[0].mxu0
        %v8364 = vadd.f32 0.0, %v8363
        %v8365 = vpop.f32.mrb[0].mxu0
        %v8366 = vadd.f32 0.0, %v8365
        %8367 = vdwg.mxu0
        %8368 = vmatprep.subr.mxu0 %v7999
        %8369 = vmatpush1.msra.mxu0 %v7996
        %8370 = vmatprep.subr.mxu0 0.0
        %8371 = vmatpush1.msra.mxu0 0.0
        %8372 = vmatprep.subr.mxu0 0.0
        %8373 = vmatpush1.msra.mxu0 0.0
        %8374 = vmatprep.subr.mxu0 0.0
        %8375 = vmatpush1.msra.mxu0 0.0
        %8376 = vmatprep.subr.mxu0 0.0
        %8377 = vmatpush1.msra.mxu0 0.0
        %8378 = vmatprep.subr.mxu0 0.0
        %8379 = vmatpush1.msra.mxu0 0.0
        %8380 = vmatprep.subr.mxu0 0.0
        %8381 = vmatpush1.msra.mxu0 0.0
        %8382 = vmatprep.subr.mxu0 0.0
        %8383 = vmatpush1.msra.mxu0 0.0
        %8384 = vmatprep.subr.mxu0 0.0
        %8385 = vmatpush1.msra.mxu0 0.0
        %8386 = vmatprep.subr.mxu0 0.0
        %8387 = vmatpush1.msra.mxu0 0.0
        %8388 = vmatprep.subr.mxu0 0.0
        %8389 = vmatpush1.msra.mxu0 0.0
        %8390 = vmatprep.subr.mxu0 0.0
        %8391 = vmatpush1.msra.mxu0 0.0
        %8392 = vmatprep.subr.mxu0 0.0
        %8393 = vmatpush1.msra.mxu0 0.0
        %8394 = vmatprep.subr.mxu0 0.0
        %8395 = vmatpush1.msra.mxu0 0.0
        %8396 = vmatprep.subr.mxu0 0.0
        %8397 = vmatpush1.msra.mxu0 0.0
        %8398 = vmatprep.subr.mxu0 0.0
        %8399 = vmatpush1.msra.mxu0 0.0
        %8400 = vmatprep.subr.mxu0 0.0
        %8401 = vmatpush1.msra.mxu0 0.0
        %8402 = vmatprep.subr.mxu0 0.0
        %8403 = vmatpush1.msra.mxu0 0.0
        %8404 = vmatprep.subr.mxu0 0.0
        %8405 = vmatpush1.msra.mxu0 0.0
        %8406 = vmatprep.subr.mxu0 0.0
        %8407 = vmatpush1.msra.mxu0 0.0
        %8408 = vmatprep.subr.mxu0 0.0
        %8409 = vmatpush1.msra.mxu0 0.0
        %8410 = vmatprep.subr.mxu0 0.0
        %8411 = vmatpush1.msra.mxu0 0.0
        %8412 = vmatprep.subr.mxu0 0.0
        %8413 = vmatpush1.msra.mxu0 0.0
        %8414 = vmatprep.subr.mxu0 0.0
        %8415 = vmatpush1.msra.mxu0 0.0
        %8416 = vmatprep.subr.mxu0 0.0
        %8417 = vmatpush1.msra.mxu0 0.0
        %8418 = vmatprep.subr.mxu0 0.0
        %8419 = vmatpush1.msra.mxu0 0.0
        %8420 = vmatprep.subr.mxu0 0.0
        %8421 = vmatpush1.msra.mxu0 0.0
        %8422 = vmatprep.subr.mxu0 0.0
        %8423 = vmatpush1.msra.mxu0 0.0
        %8424 = vmatprep.subr.mxu0 0.0
        %8425 = vmatpush1.msra.mxu0 0.0
        %8426 = vmatprep.subr.mxu0 0.0
        %8427 = vmatpush1.msra.mxu0 0.0
        %8428 = vmatprep.subr.mxu0 0.0
        %8429 = vmatpush1.msra.mxu0 0.0
        %8430 = vmatprep.subr.mxu0 0.0
        %8431 = vmatpush1.msra.mxu0 0.0
        %8432 = vmatprep.mubr.f32.mxu0 0.0
        %8433 = vmatmul.mubr.f32.gmra.mrb[0].mxu0 %v7963
        %v8434 = vpop.f32.mrb[0].mxu0
        %v8435 = vadd.f32 0.0, %v8434
        %v8436 = vpop.f32.mrb[0].mxu0
        %v8437 = vadd.f32 0.0, %v8436
        %8438 = vdwg.mxu0
        %8439 = vmatprep.subr.mxu0 %v8005
        %8440 = vmatpush1.msra.mxu0 %v8002
        %8441 = vmatprep.subr.mxu0 0.0
        %8442 = vmatpush1.msra.mxu0 0.0
        %8443 = vmatprep.subr.mxu0 0.0
        %8444 = vmatpush1.msra.mxu0 0.0
        %8445 = vmatprep.subr.mxu0 0.0
        %8446 = vmatpush1.msra.mxu0 0.0
        %8447 = vmatprep.subr.mxu0 0.0
        %8448 = vmatpush1.msra.mxu0 0.0
        %8449 = vmatprep.subr.mxu0 0.0
        %8450 = vmatpush1.msra.mxu0 0.0
        %8451 = vmatprep.subr.mxu0 0.0
        %8452 = vmatpush1.msra.mxu0 0.0
        %8453 = vmatprep.subr.mxu0 0.0
        %8454 = vmatpush1.msra.mxu0 0.0
        %8455 = vmatprep.subr.mxu0 0.0
        %8456 = vmatpush1.msra.mxu0 0.0
        %8457 = vmatprep.subr.mxu0 0.0
        %8458 = vmatpush1.msra.mxu0 0.0
        %8459 = vmatprep.subr.mxu0 0.0
        %8460 = vmatpush1.msra.mxu0 0.0
        %8461 = vmatprep.subr.mxu0 0.0
        %8462 = vmatpush1.msra.mxu0 0.0
        %8463 = vmatprep.subr.mxu0 0.0
        %8464 = vmatpush1.msra.mxu0 0.0
        %8465 = vmatprep.subr.mxu0 0.0
        %8466 = vmatpush1.msra.mxu0 0.0
        %8467 = vmatprep.subr.mxu0 0.0
        %8468 = vmatpush1.msra.mxu0 0.0
        %8469 = vmatprep.subr.mxu0 0.0
        %8470 = vmatpush1.msra.mxu0 0.0
        %8471 = vmatprep.subr.mxu0 0.0
        %8472 = vmatpush1.msra.mxu0 0.0
        %8473 = vmatprep.subr.mxu0 0.0
        %8474 = vmatpush1.msra.mxu0 0.0
        %8475 = vmatprep.subr.mxu0 0.0
        %8476 = vmatpush1.msra.mxu0 0.0
        %8477 = vmatprep.subr.mxu0 0.0
        %8478 = vmatpush1.msra.mxu0 0.0
        %8479 = vmatprep.subr.mxu0 0.0
        %8480 = vmatpush1.msra.mxu0 0.0
        %8481 = vmatprep.subr.mxu0 0.0
        %8482 = vmatpush1.msra.mxu0 0.0
        %8483 = vmatprep.subr.mxu0 0.0
        %8484 = vmatpush1.msra.mxu0 0.0
        %8485 = vmatprep.subr.mxu0 0.0
        %8486 = vmatpush1.msra.mxu0 0.0
        %8487 = vmatprep.subr.mxu0 0.0
        %8488 = vmatpush1.msra.mxu0 0.0
        %8489 = vmatprep.subr.mxu0 0.0
        %8490 = vmatpush1.msra.mxu0 0.0
        %8491 = vmatprep.subr.mxu0 0.0
        %8492 = vmatpush1.msra.mxu0 0.0
        %8493 = vmatprep.subr.mxu0 0.0
        %8494 = vmatpush1.msra.mxu0 0.0
        %8495 = vmatprep.subr.mxu0 0.0
        %8496 = vmatpush1.msra.mxu0 0.0
        %8497 = vmatprep.subr.mxu0 0.0
        %8498 = vmatpush1.msra.mxu0 0.0
        %8499 = vmatprep.subr.mxu0 0.0
        %8500 = vmatpush1.msra.mxu0 0.0
        %8501 = vmatprep.subr.mxu0 0.0
        %8502 = vmatpush1.msra.mxu0 0.0
        %8503 = vmatprep.mubr.f32.mxu0 0.0
        %8504 = vmatmul.mubr.f32.gmra.mrb[0].mxu0 %v7963
        %v8505 = vpop.f32.mrb[0].mxu0
        %v8506 = vadd.f32 0.0, %v8505
        %v8507 = vpop.f32.mrb[0].mxu0
        %v8508 = vadd.f32 0.0, %v8507
        %8509 = vdwg.mxu0
        %8510 = vmatprep.subr.mxu0 %v8011
        %8511 = vmatpush1.msra.mxu0 %v8008
        %8512 = vmatprep.subr.mxu0 0.0
        %8513 = vmatpush1.msra.mxu0 0.0
        %8514 = vmatprep.subr.mxu0 0.0
        %8515 = vmatpush1.msra.mxu0 0.0
        %8516 = vmatprep.subr.mxu0 0.0
        %8517 = vmatpush1.msra.mxu0 0.0
        %8518 = vmatprep.subr.mxu0 0.0
        %8519 = vmatpush1.msra.mxu0 0.0
        %8520 = vmatprep.subr.mxu0 0.0
        %8521 = vmatpush1.msra.mxu0 0.0
        %8522 = vmatprep.subr.mxu0 0.0
        %8523 = vmatpush1.msra.mxu0 0.0
        %8524 = vmatprep.subr.mxu0 0.0
        %8525 = vmatpush1.msra.mxu0 0.0
        %8526 = vmatprep.subr.mxu0 0.0
        %8527 = vmatpush1.msra.mxu0 0.0
        %8528 = vmatprep.subr.mxu0 0.0
        %8529 = vmatpush1.msra.mxu0 0.0
        %8530 = vmatprep.subr.mxu0 0.0
        %8531 = vmatpush1.msra.mxu0 0.0
        %8532 = vmatprep.subr.mxu0 0.0
        %8533 = vmatpush1.msra.mxu0 0.0
        %8534 = vmatprep.subr.mxu0 0.0
        %8535 = vmatpush1.msra.mxu0 0.0
        %8536 = vmatprep.subr.mxu0 0.0
        %8537 = vmatpush1.msra.mxu0 0.0
        %8538 = vmatprep.subr.mxu0 0.0
        %8539 = vmatpush1.msra.mxu0 0.0
        %8540 = vmatprep.subr.mxu0 0.0
        %8541 = vmatpush1.msra.mxu0 0.0
        %8542 = vmatprep.subr.mxu0 0.0
        %8543 = vmatpush1.msra.mxu0 0.0
        %8544 = vmatprep.subr.mxu0 0.0
        %8545 = vmatpush1.msra.mxu0 0.0
        %8546 = vmatprep.subr.mxu0 0.0
        %8547 = vmatpush1.msra.mxu0 0.0
        %8548 = vmatprep.subr.mxu0 0.0
        %8549 = vmatpush1.msra.mxu0 0.0
        %8550 = vmatprep.subr.mxu0 0.0
        %8551 = vmatpush1.msra.mxu0 0.0
        %8552 = vmatprep.subr.mxu0 0.0
        %8553 = vmatpush1.msra.mxu0 0.0
        %8554 = vmatprep.subr.mxu0 0.0
        %8555 = vmatpush1.msra.mxu0 0.0
        %8556 = vmatprep.subr.mxu0 0.0
        %8557 = vmatpush1.msra.mxu0 0.0
        %8558 = vmatprep.subr.mxu0 0.0
        %8559 = vmatpush1.msra.mxu0 0.0
        %8560 = vmatprep.subr.mxu0 0.0
        %8561 = vmatpush1.msra.mxu0 0.0
        %8562 = vmatprep.subr.mxu0 0.0
        %8563 = vmatpush1.msra.mxu0 0.0
        %8564 = vmatprep.subr.mxu0 0.0
        %8565 = vmatpush1.msra.mxu0 0.0
        %8566 = vmatprep.subr.mxu0 0.0
        %8567 = vmatpush1.msra.mxu0 0.0
        %8568 = vmatprep.subr.mxu0 0.0
        %8569 = vmatpush1.msra.mxu0 0.0
        %8570 = vmatprep.subr.mxu0 0.0
        %8571 = vmatpush1.msra.mxu0 0.0
        %8572 = vmatprep.subr.mxu0 0.0
        %8573 = vmatpush1.msra.mxu0 0.0
        %8574 = vmatprep.mubr.f32.mxu0 0.0
        %8575 = vmatmul.mubr.f32.gmra.mrb[0].mxu0 %v7963
        %v8576 = vpop.f32.mrb[0].mxu0
        %v8577 = vadd.f32 0.0, %v8576
        %v8578 = vpop.f32.mrb[0].mxu0
        %v8579 = vadd.f32 0.0, %v8578
        %8580 = vdwg.mxu0
        %v8581 = vadd.f32 %v7794, %v8080
        %v8582 = vadd.f32 %v7795, %v8082
        %v8583 = vadd.f32 %v7796, %v8151
        %v8584 = vadd.f32 %v7797, %v8153
        %v8585 = vadd.f32 %v7798, %v8222
        %v8586 = vadd.f32 %v7799, %v8224
        %v8587 = vadd.f32 %v7800, %v8293
        %v8588 = vadd.f32 %v7801, %v8295
        %v8589 = vadd.f32 %v7802, %v8364
        %v8590 = vadd.f32 %v7803, %v8366
        %v8591 = vadd.f32 %v7804, %v8435
        %v8592 = vadd.f32 %v7805, %v8437
        %v8593 = vadd.f32 %v7806, %v8506
        %v8594 = vadd.f32 %v7807, %v8508
        %v8595 = vadd.f32 %v7808, %v8577
        %v8596 = vadd.f32 %v7809, %v8579
        %v8597 = vsel %vm341, %v8581, 0.0
        %v8598 = vsel %vm341, %v8582, 0.0
        %v8599 = vadd.f32 %v8597, %v8598
        %v8600 = vsel %vm341, %v8583, 0.0
        %v8601 = vadd.f32 %v8599, %v8600
        %v8602 = vsel %vm341, %v8584, 0.0
        %v8603 = vadd.f32 %v8601, %v8602
        %v8604 = vsel %vm341, %v8585, 0.0
        %v8605 = vadd.f32 %v8603, %v8604
        %v8606 = vsel %vm341, %v8586, 0.0
        %v8607 = vadd.f32 %v8605, %v8606
        %v8608 = vsel %vm341, %v8587, 0.0
        %v8609 = vadd.f32 %v8607, %v8608
        %v8610 = vsel %vm341, %v8588, 0.0
        %v8611 = vadd.f32 %v8609, %v8610
        %v8612 = vsel %vm341, %v8589, 0.0
        %v8613 = vadd.f32 %v8611, %v8612
        %v8614 = vsel %vm341, %v8590, 0.0
        %v8615 = vadd.f32 %v8613, %v8614
        %v8616 = vsel %vm341, %v8591, 0.0
        %v8617 = vadd.f32 %v8615, %v8616
        %v8618 = vsel %vm341, %v8592, 0.0
        %v8619 = vadd.f32 %v8617, %v8618
        %v8620 = vsel %vm341, %v8593, 0.0
        %v8621 = vadd.f32 %v8619, %v8620
        %v8622 = vsel %vm341, %v8594, 0.0
        %v8623 = vadd.f32 %v8621, %v8622
        %v8624 = vsel %vm341, %v8595, 0.0
        %v8625 = vadd.f32 %v8623, %v8624
        %v8626 = vsel %vm341, %v8596, 0.0
        %v8627 = vadd.f32 %v8625, %v8626
        %8628 = vadd.xlane.f32.xlu0 %v8627
        %v8629 = vpop.xlane.xlu0 %8628
        %v8630 = vrcp.pop 2048.0
        %v8631 = vmul.f32 %v8629, %v8630
        %v8632 = vsub.f32 %v8581, %v8631
        %v8633 = vsub.f32 %v8582, %v8631
        %v8634 = vsub.f32 %v8583, %v8631
        %v8635 = vsub.f32 %v8584, %v8631
        %v8636 = vsub.f32 %v8585, %v8631
        %v8637 = vsub.f32 %v8586, %v8631
        %v8638 = vsub.f32 %v8587, %v8631
        %v8639 = vsub.f32 %v8588, %v8631
        %v8640 = vsub.f32 %v8589, %v8631
        %v8641 = vsub.f32 %v8590, %v8631
        %v8642 = vsub.f32 %v8591, %v8631
        %v8643 = vsub.f32 %v8592, %v8631
        %v8644 = vsub.f32 %v8593, %v8631
        %v8645 = vsub.f32 %v8594, %v8631
        %v8646 = vsub.f32 %v8595, %v8631
        %v8647 = vsub.f32 %v8596, %v8631
        %v8648 = vmul.f32 %v8632, %v8632
        %v8649 = vmul.f32 %v8633, %v8633
        %v8650 = vmul.f32 %v8634, %v8634
        %v8651 = vmul.f32 %v8635, %v8635
        %v8652 = vmul.f32 %v8636, %v8636
        %v8653 = vmul.f32 %v8637, %v8637
        %v8654 = vmul.f32 %v8638, %v8638
        %v8655 = vmul.f32 %v8639, %v8639
        %v8656 = vmul.f32 %v8640, %v8640
        %v8657 = vmul.f32 %v8641, %v8641
        %v8658 = vmul.f32 %v8642, %v8642
        %v8659 = vmul.f32 %v8643, %v8643
        %v8660 = vmul.f32 %v8644, %v8644
        %v8661 = vmul.f32 %v8645, %v8645
        %v8662 = vmul.f32 %v8646, %v8646
        %v8663 = vmul.f32 %v8647, %v8647
        %v8664 = vsel %vm341, %v8648, 0.0
        %v8665 = vsel %vm341, %v8649, 0.0
        %v8666 = vadd.f32 %v8664, %v8665
        %v8667 = vsel %vm341, %v8650, 0.0
        %v8668 = vadd.f32 %v8666, %v8667
        %v8669 = vsel %vm341, %v8651, 0.0
        %v8670 = vadd.f32 %v8668, %v8669
        %v8671 = vsel %vm341, %v8652, 0.0
        %v8672 = vadd.f32 %v8670, %v8671
        %v8673 = vsel %vm341, %v8653, 0.0
        %v8674 = vadd.f32 %v8672, %v8673
        %v8675 = vsel %vm341, %v8654, 0.0
        %v8676 = vadd.f32 %v8674, %v8675
        %v8677 = vsel %vm341, %v8655, 0.0
        %v8678 = vadd.f32 %v8676, %v8677
        %v8679 = vsel %vm341, %v8656, 0.0
        %v8680 = vadd.f32 %v8678, %v8679
        %v8681 = vsel %vm341, %v8657, 0.0
        %v8682 = vadd.f32 %v8680, %v8681
        %v8683 = vsel %vm341, %v8658, 0.0
        %v8684 = vadd.f32 %v8682, %v8683
        %v8685 = vsel %vm341, %v8659, 0.0
        %v8686 = vadd.f32 %v8684, %v8685
        %v8687 = vsel %vm341, %v8660, 0.0
        %v8688 = vadd.f32 %v8686, %v8687
        %v8689 = vsel %vm341, %v8661, 0.0
        %v8690 = vadd.f32 %v8688, %v8689
        %v8691 = vsel %vm341, %v8662, 0.0
        %v8692 = vadd.f32 %v8690, %v8691
        %v8693 = vsel %vm341, %v8663, 0.0
        %v8694 = vadd.f32 %v8692, %v8693
        %8695 = vadd.xlane.f32.xlu0 %v8694
        %v8696 = vpop.xlane.xlu0 %8695
        %v8697 = vmul.f32 %v8696, %v8630
        %v8698 = vadd.f32 %v8697, 1e-05
        %v8699 = vrsqrt.pop %v8698
        %v8700 = vmul.f32 %v8632, %v8699
        %v8701 = vmul.f32 %v8633, %v8699
        %v8702 = vmul.f32 %v8634, %v8699
        %v8703 = vmul.f32 %v8635, %v8699
        %v8704 = vmul.f32 %v8636, %v8699
        %v8705 = vmul.f32 %v8637, %v8699
        %v8706 = vmul.f32 %v8638, %v8699
        %v8707 = vmul.f32 %v8639, %v8699
        %v8708 = vmul.f32 %v8640, %v8699
        %v8709 = vmul.f32 %v8641, %v8699
        %v8710 = vmul.f32 %v8642, %v8699
        %v8711 = vmul.f32 %v8643, %v8699
        %v8712 = vmul.f32 %v8644, %v8699
        %v8713 = vmul.f32 %v8645, %v8699
        %v8714 = vmul.f32 %v8646, %v8699
        %v8715 = vmul.f32 %v8647, %v8699
        %vm8716 = vcmp.ge.f32.partialorder %v8700, 0.0
        %vm8717 = vcmp.ge.f32.partialorder %v8701, 0.0
        %vm8718 = vcmp.ge.f32.partialorder %v8702, 0.0
        %vm8719 = vcmp.ge.f32.partialorder %v8703, 0.0
        %vm8720 = vcmp.ge.f32.partialorder %v8704, 0.0
        %vm8721 = vcmp.ge.f32.partialorder %v8705, 0.0
        %vm8722 = vcmp.ge.f32.partialorder %v8706, 0.0
        %vm8723 = vcmp.ge.f32.partialorder %v8707, 0.0
        %vm8724 = vcmp.ge.f32.partialorder %v8708, 0.0
        %vm8725 = vcmp.ge.f32.partialorder %v8709, 0.0
        %vm8726 = vcmp.ge.f32.partialorder %v8710, 0.0
        %vm8727 = vcmp.ge.f32.partialorder %v8711, 0.0
        %vm8728 = vcmp.ge.f32.partialorder %v8712, 0.0
        %vm8729 = vcmp.ge.f32.partialorder %v8713, 0.0
        %vm8730 = vcmp.ge.f32.partialorder %v8714, 0.0
        %vm8731 = vcmp.ge.f32.partialorder %v8715, 0.0
        %v8732 = vmul.f32 %v8700, 0.01
        %v8733 = vmul.f32 %v8701, 0.01
        %v8734 = vmul.f32 %v8702, 0.01
        %v8735 = vmul.f32 %v8703, 0.01
        %v8736 = vmul.f32 %v8704, 0.01
        %v8737 = vmul.f32 %v8705, 0.01
        %v8738 = vmul.f32 %v8706, 0.01
        %v8739 = vmul.f32 %v8707, 0.01
        %v8740 = vmul.f32 %v8708, 0.01
        %v8741 = vmul.f32 %v8709, 0.01
        %v8742 = vmul.f32 %v8710, 0.01
        %v8743 = vmul.f32 %v8711, 0.01
        %v8744 = vmul.f32 %v8712, 0.01
        %v8745 = vmul.f32 %v8713, 0.01
        %v8746 = vmul.f32 %v8714, 0.01
        %v8747 = vmul.f32 %v8715, 0.01
        %v8748 = vsel %vm8716, %v8700, %v8732
        %v8749 = vsel %vm8717, %v8701, %v8733
        %v8750 = vsel %vm8718, %v8702, %v8734
        %v8751 = vsel %vm8719, %v8703, %v8735
        %v8752 = vsel %vm8720, %v8704, %v8736
        %v8753 = vsel %vm8721, %v8705, %v8737
        %v8754 = vsel %vm8722, %v8706, %v8738
        %v8755 = vsel %vm8723, %v8707, %v8739
        %v8756 = vsel %vm8724, %v8708, %v8740
        %v8757 = vsel %vm8725, %v8709, %v8741
        %v8758 = vsel %vm8726, %v8710, %v8742
        %v8759 = vsel %vm8727, %v8711, %v8743
        %v8760 = vsel %vm8728, %v8712, %v8744
        %v8761 = vsel %vm8729, %v8713, %v8745
        %v8762 = vsel %vm8730, %v8714, %v8746
        %v8763 = vsel %vm8731, %v8715, %v8747
        %v8780 = vcombine.low %v8748, %v8749
        %v8781 = vcombine.low %v8750, %v8751
        %v8782 = vcombine.low %v8752, %v8753
        %v8783 = vcombine.low %v8754, %v8755
        %v8784 = vcombine.low %v8756, %v8757
        %v8785 = vcombine.low %v8758, %v8759
        %v8786 = vcombine.low %v8760, %v8761
        %v8787 = vcombine.low %v8762, %v8763
        %8796 = vst [vmem:[%s201] sm:$0xff] %v8780
        %8797 = vst [vmem:[%s201 + $0x8] sm:$0xff] %v8781
        %8798 = vst [vmem:[%s201 + $0x10] sm:$0xff] %v8782
        %8799 = vst [vmem:[%s201 + $0x18] sm:$0xff] %v8783
        %8800 = vst [vmem:[%s201 + $0x20] sm:$0xff] %v8784
        %8801 = vst [vmem:[%s201 + $0x28] sm:$0xff] %v8785
        %8802 = vst [vmem:[%s201 + $0x30] sm:$0xff] %v8786
        %8803 = vst [vmem:[%s201 + $0x38] sm:$0xff] %v8787
        %s8804 = sand.u32 %s97, 1
        %s8805 = scalar_lea.sflag [#allocation4], %s8804
        %s8806 = sand.u32 %s97, 1
        %s8807 = smul.addr %s8806, 64
        %s8808 = scalar_lea.vmem [#allocation7], %s8807
        // Predicated region
        $region41: #{tpu_custom_call.1} parent=31 // pred_check
          %p8809 = pneg %p107
        $region42: #{tpu_custom_call.1} parent=31 // pred_check_branch
          %8811 = sbr.rel (%p8809) target = $region44
        $region43: #{tpu_custom_call.1} parent=31 // pred_region
          %s8813 = ssub.s32 1024, 1024
          %8814 = vsyncadd %s8805, %s8813
          %s8815 = smul.addr %s21, 16
          %s8816 = smul.addr %s8815, 64
          %s8817 = scalar_lea.hbm %s3, %s8816
          %s8819 = sshll.u32 %s8808, 4
          %s8820 = int_to_ptr.vmem [resolvable:$true] %s8819
          %8822 = dma.vmem_to_hbm [thread:$0]  %s8820, 1024, %s8817, %s8805
        $region44: #{tpu_custom_call.1} parent=31 // pred_fallthru
          _
      $region32: #{tpu_custom_call.1} parent=5 // pred_fallthru
        _
      %p8823 = scmp.le.s32.totalorder 2, %s16
      // Predicated region
      $region45: #{tpu_custom_call.1} parent=5 // pred_check
        %p8824 = pneg %p8823
      $region46: #{tpu_custom_call.1} parent=5 // pred_check_branch
        %8826 = sbr.rel (%p8824) target = $region48
      $region47: #{tpu_custom_call.1} parent=5 // pred_region
        %s8827 = ssub.s32 %s16, 2
        // Predicated region
        $region49: #{tpu_custom_call.1} parent=47 // pred_check
          %p8828 = pneg %p113
        $region50: #{tpu_custom_call.1} parent=47 // pred_check_branch
          %8830 = sbr.rel (%p8828) target = $region52
        $region51: #{tpu_custom_call.1} parent=47 // pred_region
          %s8831 = sand.u32 %s98, 1
          %s8832 = scalar_lea.sflag [#allocation4], %s8831
          %s8833 = sand.u32 %s98, 1
          %s8834 = smul.addr %s8833, 64
          %s8835 = scalar_lea.vmem [#allocation7], %s8834
          %8836 = dma.done %s8832, 1024
        $region52: #{tpu_custom_call.1} parent=47 // pred_fallthru
          _
      $region48: #{tpu_custom_call.1} parent=5 // pred_fallthru
        _
    $region6: #{tpu_custom_call.1} parent=1 // loop_footer
      %s20 = sadd.s32 1, %s16
    $region7: #{tpu_custom_call.1} parent=1 // loop_footer_branch
      %15 = sbr.rel target = $region3
    $region8: #{tpu_custom_call.1} parent=1 // loop_exit
      _
    %8837 = vsyncpa [#allocation3], 1
    %s8838 = scalar_lea.sflag [#allocation3], 1
    %8839 = vsyncpa %s8838, 1
    %8840 = vsyncpa [#allocation6], 1
    %8841 = vsyncpa [#allocation4], 1
    %s8842 = scalar_lea.sflag [#allocation4], 1
    %8843 = vsyncpa %s8842, 1

</llo_original>
